<compile_context>
chip_gen: v7x
topology: tpu7x:2x2x1
jax: 0.10.0
libtpu: 0.0.40
codegen_flags: <defaults>
</compile_context>

<pallas_src>
import math

import jax
import jax.numpy as jnp
from jax import lax
from jax.experimental import pallas as pl
from jax.experimental.pallas import tpu as pltpu

# ---------------- model dimensions (small, consistent with the module) -------
B = 2          # outer batch
G = 4          # fixed group size from .view(-1, 4, ...)
N = B * G      # flattened batch processed by the LSTMs
L = 8          # sequence length
V = 32         # vocab_size
E = 16         # embedding_dim
H = 32         # encoder_decoder_hidden_dim  (4H = 128 -> lane friendly)
C = 8          # classification_layer_size
HC = H + C
MASK_ID = 3
LN_EPS = 1e-5


def make_kernel(mask_id: int):
    f32 = jnp.float32
    bf16 = jnp.bfloat16

    def kernel(ids_ref, xall_ref, whh_ref, wd_ref, hb_ref, w1h_ref, w2_ref,
               small_ref, o_ref, xcache_ref):
        # ---- hoisted loads / constants (no per-iteration rebuild) ------------
        iota_nv = lax.broadcasted_iota(jnp.int32, (N, V), 1)
        ids_all = ids_ref[...]                         # (N, L) int32
        is_mask = ids_all == mask_id                   # hoisted mask compare
        ln_g_b = jnp.broadcast_to(small_ref[0:1, 0:HC], (N, HC))
        ln_b_b = jnp.broadcast_to(small_ref[1:2, 0:HC], (N, HC))
        b2_b = jnp.broadcast_to(small_ref[2:3, 0:V], (N, V))
        hb = hb_ref[...]                               # cls_proj + b1, (N, HC)
        w1h = w1h_ref[...]
        w2 = w2_ref[...]
        wd = wd_ref[...]                               # emb@w_ih_dec + b_dec (prescaled)
        whh_e = whh_ref[0]                             # bf16 (H, 4H), i/f/o cols * 0.5
        whh_d = whh_ref[1]

        def lstm_step(xproj, h, c, whh):
            # xproj already holds x @ w_ih + (b_ih + b_hh), with the i/f/o
            # columns pre-scaled by 0.5 so sigmoid(z) == 0.5*tanh(z/2)+0.5
            # needs only ONE full-width tanh.  PyTorch gate order i, f, g, o.
            # Only h @ whh (bf16 operands, f32 accumulate) stays on the chain.
            gates = xproj + jnp.dot(h.astype(bf16), whh,
                                    preferred_element_type=f32)
            t = jnp.tanh(gates)                        # EUP issue #1, (N, 4H)
            i = t[:, 0:H] * 0.5 + 0.5
            f = t[:, H:2 * H] * 0.5 + 0.5
            g = t[:, 2 * H:3 * H]
            o = t[:, 3 * H:4 * H] * 0.5 + 0.5
            c_new = f * c + i * g
            h_new = o * jnp.tanh(c_new)                # EUP issue #2
            return h_new, c_new

        # ------------------------- encoder -----------------------------------
        h = jnp.zeros((N, H), f32)
        c = jnp.zeros((N, H), f32)
        for j in range(L):
            h, c = lstm_step(xall_ref[j], h, c, whh_e)

        # slot 0: zeros are prepended (log_softmax is applied in the wrapper).
        o_ref[0] = jnp.zeros((N, V), f32)

        # decoder token-0 input projection precomputed in the wrapper (row L).
        xcache_ref[0] = xall_ref[L]

        # ------------------------- decoder loop -------------------------------
        # The cached per-token input projections live in VMEM scratch, so the
        # O(L^2) prefix re-scan only does the recurrent matmul + gate math.
        for t in range(1, L):
            # Re-run the decoder over the entire prefix with the carried state,
            # exactly as the PyTorch code does (state is NOT reset).
            for j in range(t):
                h, c = lstm_step(xcache_ref[j], h, c, whh_d)
            dec_out = h                                # decoder_output[:, -1, :]

            # fully_connected: Linear -> ReLU -> LayerNorm -> (Dropout=id) -> Linear
            a = jnp.dot(dec_out, w1h, preferred_element_type=f32) + hb
            a = jnp.maximum(a, 0.0)
            mu = jnp.mean(a, axis=-1, keepdims=True)
            var = jnp.mean((a - mu) ** 2, axis=-1, keepdims=True)
            a_n = (a - mu) * lax.rsqrt(var + LN_EPS) * ln_g_b + ln_b_b
            pred = jnp.dot(a_n, w2, preferred_element_type=f32) + b2_b  # (N, V)
            o_ref[t] = pred                            # raw scores; softmax in wrapper

            # next input: greedy argmax where the ground-truth token is masked.
            # The token appended on the final step is never consumed -> skip it.
            if t < L - 1:
                m = jnp.max(pred, axis=-1, keepdims=True)
                cand = jnp.where(pred == m, iota_nv, V)        # first maximum
                argm = jnp.min(cand, axis=-1, keepdims=True)
                nxt = jnp.where(is_mask[:, t:t + 1], argm, ids_all[:, t:t + 1])
                onehot = (iota_nv == nxt).astype(f32)
                # fused emb @ w_ih_dec + bias (prescaled) for the new token
                xcache_ref[t] = jnp.dot(onehot, wd, preferred_element_type=f32)

    return kernel


def init_params(key):
    ks = jax.random.split(key, 16)
    u = lambda k, shape, s: jax.random.uniform(k, shape, jnp.float32, -s, s)
    s_lstm = 1.0 / math.sqrt(H)

    emb = jax.random.normal(ks[0], (V, E), jnp.float32)
    # encoder LSTM (weights transposed to (in, 4H); biases combined b_ih + b_hh)
    wih_e = u(ks[1], (E, 4 * H), s_lstm)
    whh_e = u(ks[2], (H, 4 * H), s_lstm)
    b_e = u(ks[3], (1, 4 * H), s_lstm)
    # decoder LSTM
    wih_d = u(ks[4], (E, 4 * H), s_lstm)
    whh_d = u(ks[5], (H, 4 * H), s_lstm)
    b_d = u(ks[6], (1, 4 * H), s_lstm)
    # classification layer: Linear(1, C)
    wc = u(ks[7], (1, C), 1.0)
    bc = u(ks[8], (1, C), 1.0)
    # fully_connected.linear1: Linear(HC, HC), split into the H and C input rows
    s1 = 1.0 / math.sqrt(HC)
    w1 = u(ks[9], (HC, HC), s1)
    w1h, w1c = w1[:H, :], w1[H:, :]
    b1 = u(ks[10], (1, HC), s1)
    # LayerNorm(HC)
    ln_g = jnp.ones((1, HC), jnp.float32)
    ln_b = jnp.zeros((1, HC), jnp.float32)
    # fully_connected.linear2: Linear(HC, V)
    w2 = u(ks[11], (HC, V), s1)
    b2 = u(ks[12], (1, V), s1)
    return (emb, wih_e, whh_e, b_e, wih_d, whh_d, b_d,
            wc, bc, w1h, w1c, b1, ln_g, ln_b, w2, b2)


@jax.jit
def seq2seq_reinforce_forward(input_ids, attention_mask, token_type_ids,
                              classification_labels, params):
    # attention_mask / token_type_ids are unused by the PyTorch forward.
    del attention_mask, token_type_ids
    (emb, wih_e, whh_e, b_e, wih_d, whh_d, b_d,
     wc, bc, w1h, w1c, b1, ln_g, ln_b, w2, b2) = params

    hi = lax.Precision.HIGHEST
    ids = input_ids.reshape(-1, input_ids.shape[-1]).astype(jnp.int32)   # (N, L)
    labels = classification_labels.reshape(-1, 1).astype(jnp.float32)    # (N, 1)

    # ---- precompute all known-token LSTM input projections as plain XLA ops --
    embedded = jnp.take(emb, ids, axis=0)                                 # (N, L, E)
    # encoder input projections, time-major, with the combined LSTM bias folded in
    xe_proj = jnp.einsum('nle,eg->lng', embedded, wih_e, precision=hi) + b_e  # (L, N, 4H)
    # decoder token 0 (the only decoder token known ahead of time)
    xd0_proj = jnp.dot(embedded[:, 0, :], wih_d, precision=hi) + b_d      # (N, 4H)
    # fused embedding x input-projection (+ folded bias: one-hot rows sum to 1)
    wd_fused = jnp.dot(emb, wih_d, precision=hi) + b_d                    # (V, 4H)

    # classifier contribution to the head is the same every step -> fold with b1.
    # Linear(1, C) is a scalar broadcast-multiply, no K=1 matmul.
    cls_states = labels * wc + bc                                         # (N, C)
    cls_proj = jnp.dot(cls_states, w1c, precision=hi)                     # (N, HC)
    head_bias = cls_proj + b1                                             # (N, HC)

    # sigmoid(z) = 0.5*tanh(z/2) + 0.5: pre-scale the i/f/o pre-activation
    # columns by 0.5 (exact power-of-two scaling, no rounding).
    gscale = jnp.concatenate([jnp.full((2 * H,), 0.5), jnp.ones((H,)),
                              jnp.full((H,), 0.5)]).astype(jnp.float32)
    xall_proj = jnp.concatenate([xe_proj, xd0_proj[None]], axis=0) * gscale  # (L+1, N, 4H)
    wd_fused = wd_fused * gscale
    # bf16 recurrent weights (f32 accumulation inside the kernel).
    whh_pack = jnp.stack([whh_e * gscale, whh_d * gscale]).astype(jnp.bfloat16)

    # pack the remaining tiny per-lane params into one (3, 128) slab.
    small3 = jnp.stack([
        jnp.pad(ln_g.reshape(-1), (0, 128 - HC)),
        jnp.pad(ln_b.reshape(-1), (0, 128 - HC)),
        jnp.pad(b2.reshape(-1), (0, 128 - V)),
    ]).astype(jnp.float32)

    vmem = pl.BlockSpec(memory_space=pltpu.MemorySpace.VMEM)
    kernel_inputs = (ids, xall_proj, whh_pack, wd_fused, head_bias,
                     w1h, w2, small3)
    out_tm = pl.pallas_call(
        make_kernel(MASK_ID),
        out_shape=jax.ShapeDtypeStruct((L, N, V), jnp.float32),
        in_specs=[vmem] * len(kernel_inputs),
        out_specs=vmem,
        scratch_shapes=[pltpu.VMEM((L, N, 4 * H), jnp.float32)],
    )(*kernel_inputs)

    # (L, N, V) -> (N, L, V) -> (B, 4, L, V); zeros slot already at t=0.
    out = jnp.transpose(out_tm, (1, 0, 2)).reshape(B, G, L, V)
    # log_softmax applied once here (numerically identical to the in-kernel version).
    return jax.nn.log_softmax(out, axis=-1)


if __name__ == "__main__":
    key = jax.random.PRNGKey(0)
    k_ids, k_lab, k_par = jax.random.split(key, 3)

    input_ids = jax.random.randint(k_ids, (B, G, L), 0, V, dtype=jnp.int32)
    attention_mask = jnp.ones((B, G, L), jnp.int32)
    token_type_ids = jnp.zeros((B, G, L), jnp.int32)
    classification_labels = jax.random.uniform(k_lab, (B, G), jnp.float32)

    params = init_params(k_par)

    out = seq2seq_reinforce_forward(input_ids, attention_mask, token_type_ids,
                                    classification_labels, params)
    out = jax.block_until_ready(out)

    # Sanity: output shape, valid log-probabilities, uniform first step.
    assert out.shape == (B, G, L, V), out.shape
    probs_sum = jnp.exp(out).sum(axis=-1)
    assert bool(jnp.allclose(probs_sum, 1.0, atol=1e-3)), "log_softmax rows must normalize"
    assert bool(jnp.allclose(out[..., 0, :], -math.log(V), atol=1e-5)), "step-0 must be uniform"

    print("KERNEL_OK")
</pallas_src>

<mosaic_0001>
module attributes {stable_mosaic.version = 11 : i64} {
  func.func @kernel(%arg0: memref<8x8xi32, #tpu.memory_space<vmem>>, %arg1: memref<9x8x128xf32, #tpu.memory_space<vmem>>, %arg2: memref<2x32x128xbf16, #tpu.memory_space<vmem>>, %arg3: memref<32x128xf32, #tpu.memory_space<vmem>>, %arg4: memref<8x40xf32, #tpu.memory_space<vmem>>, %arg5: memref<32x40xf32, #tpu.memory_space<vmem>>, %arg6: memref<40x32xf32, #tpu.memory_space<vmem>>, %arg7: memref<3x128xf32, #tpu.memory_space<vmem>>, %arg8: memref<8x8x32xf32, #tpu.memory_space<vmem>>, %arg9: memref<8x8x128xf32, #tpu.memory_space<vmem>>) attributes {dimension_semantics = [], scalar_prefetch = 0 : i64, scratch_operands = 1 : i64, tpu.core_type = #tpu.core_type<tc>} {
    %0 = tpu.iota {dimensions = array<i32: 1>} : vector<8x32xi32>
    %c0 = arith.constant 0 : index
    %c0_0 = arith.constant 0 : index
    %1 = vector.load %arg0[%c0, %c0_0] : memref<8x8xi32, #tpu.memory_space<vmem>>, vector<8x8xi32>
    %c3_i32 = arith.constant 3 : i32
    %2 = vector.broadcast %c3_i32 : i32 to vector<8x8xi32>
    %3 = arith.cmpi eq, %1, %2 : vector<8x8xi32>
    %c0_1 = arith.constant 0 : index
    %c0_2 = arith.constant 0 : index
    %4 = vector.load %arg7[%c0_1, %c0_2] : memref<3x128xf32, #tpu.memory_space<vmem>>, vector<1x40xf32>
    %5 = vector.shape_cast %4 : vector<1x40xf32> to vector<1x40xf32>
    %6 = vector.broadcast %5 : vector<1x40xf32> to vector<8x40xf32>
    %c1 = arith.constant 1 : index
    %c0_3 = arith.constant 0 : index
    %7 = vector.load %arg7[%c1, %c0_3] : memref<3x128xf32, #tpu.memory_space<vmem>>, vector<1x40xf32>
    %8 = vector.shape_cast %7 : vector<1x40xf32> to vector<1x40xf32>
    %9 = vector.broadcast %8 : vector<1x40xf32> to vector<8x40xf32>
    %c2 = arith.constant 2 : index
    %c0_4 = arith.constant 0 : index
    %10 = vector.load %arg7[%c2, %c0_4] : memref<3x128xf32, #tpu.memory_space<vmem>>, vector<1x32xf32>
    %11 = vector.shape_cast %10 : vector<1x32xf32> to vector<1x32xf32>
    %12 = vector.broadcast %11 : vector<1x32xf32> to vector<8x32xf32>
    %c0_5 = arith.constant 0 : index
    %c0_6 = arith.constant 0 : index
    %13 = vector.load %arg4[%c0_5, %c0_6] : memref<8x40xf32, #tpu.memory_space<vmem>>, vector<8x40xf32>
    %c0_7 = arith.constant 0 : index
    %c0_8 = arith.constant 0 : index
    %14 = vector.load %arg5[%c0_7, %c0_8] : memref<32x40xf32, #tpu.memory_space<vmem>>, vector<32x40xf32>
    %c0_9 = arith.constant 0 : index
    %c0_10 = arith.constant 0 : index
    %15 = vector.load %arg6[%c0_9, %c0_10] : memref<40x32xf32, #tpu.memory_space<vmem>>, vector<40x32xf32>
    %c0_11 = arith.constant 0 : index
    %c0_12 = arith.constant 0 : index
    %16 = vector.load %arg3[%c0_11, %c0_12] : memref<32x128xf32, #tpu.memory_space<vmem>>, vector<32x128xf32>
    %c0_13 = arith.constant 0 : index
    %c0_14 = arith.constant 0 : index
    %c0_15 = arith.constant 0 : index
    %17 = vector.load %arg2[%c0_13, %c0_14, %c0_15] : memref<2x32x128xbf16, #tpu.memory_space<vmem>>, vector<1x32x128xbf16>
    %18 = vector.shape_cast %17 : vector<1x32x128xbf16> to vector<32x128xbf16>
    %c1_16 = arith.constant 1 : index
    %c0_17 = arith.constant 0 : index
    %c0_18 = arith.constant 0 : index
    %19 = vector.load %arg2[%c1_16, %c0_17, %c0_18] : memref<2x32x128xbf16, #tpu.memory_space<vmem>>, vector<1x32x128xbf16>
    %20 = vector.shape_cast %19 : vector<1x32x128xbf16> to vector<32x128xbf16>
    %cst = arith.constant 0.000000e+00 : f32
    %21 = vector.broadcast %cst : f32 to vector<8x32xf32>
    %cst_19 = arith.constant 0.000000e+00 : f32
    %22 = vector.broadcast %cst_19 : f32 to vector<8x32xf32>
    %c0_20 = arith.constant 0 : index
    %c0_21 = arith.constant 0 : index
    %c0_22 = arith.constant 0 : index
    %23 = vector.load %arg1[%c0_20, %c0_21, %c0_22] : memref<9x8x128xf32, #tpu.memory_space<vmem>>, vector<1x8x128xf32>
    %24 = vector.shape_cast %23 : vector<1x8x128xf32> to vector<8x128xf32>
    %25 = arith.truncf %21 : vector<8x32xf32> to vector<8x32xbf16>
    %cst_23 = arith.constant dense<0.000000e+00> : vector<8x128xf32>
    %26 = tpu.matmul %25, %18, %cst_23 {dimension_numbers = #tpu.dot_dimension_numbers<[1], [0], [0], [1], [0, 0, 1, 1], [], []>} : vector<8x32xbf16>, vector<32x128xbf16>, vector<8x128xf32> -> vector<8x128xf32>
    %27 = arith.addf %24, %26 : vector<8x128xf32>
    %28 = math.tanh %27 : vector<8x128xf32>
    %29 = vector.extract_strided_slice %28 {offsets = [0, 0], sizes = [8, 32], strides = [1, 1]} : vector<8x128xf32> to vector<8x32xf32>
    %cst_24 = arith.constant 5.000000e-01 : f32
    %30 = vector.broadcast %cst_24 : f32 to vector<8x32xf32>
    %31 = arith.mulf %29, %30 : vector<8x32xf32>
    %cst_25 = arith.constant 5.000000e-01 : f32
    %32 = vector.broadcast %cst_25 : f32 to vector<8x32xf32>
    %33 = arith.addf %31, %32 : vector<8x32xf32>
    %34 = vector.extract_strided_slice %28 {offsets = [0, 32], sizes = [8, 32], strides = [1, 1]} : vector<8x128xf32> to vector<8x32xf32>
    %cst_26 = arith.constant 5.000000e-01 : f32
    %35 = vector.broadcast %cst_26 : f32 to vector<8x32xf32>
    %36 = arith.mulf %34, %35 : vector<8x32xf32>
    %cst_27 = arith.constant 5.000000e-01 : f32
    %37 = vector.broadcast %cst_27 : f32 to vector<8x32xf32>
    %38 = arith.addf %36, %37 : vector<8x32xf32>
    %39 = vector.extract_strided_slice %28 {offsets = [0, 64], sizes = [8, 32], strides = [1, 1]} : vector<8x128xf32> to vector<8x32xf32>
    %40 = vector.extract_strided_slice %28 {offsets = [0, 96], sizes = [8, 32], strides = [1, 1]} : vector<8x128xf32> to vector<8x32xf32>
    %cst_28 = arith.constant 5.000000e-01 : f32
    %41 = vector.broadcast %cst_28 : f32 to vector<8x32xf32>
    %42 = arith.mulf %40, %41 : vector<8x32xf32>
    %cst_29 = arith.constant 5.000000e-01 : f32
    %43 = vector.broadcast %cst_29 : f32 to vector<8x32xf32>
    %44 = arith.addf %42, %43 : vector<8x32xf32>
    %45 = arith.mulf %38, %22 : vector<8x32xf32>
    %46 = arith.mulf %33, %39 : vector<8x32xf32>
    %47 = arith.addf %45, %46 : vector<8x32xf32>
    %48 = math.tanh %47 : vector<8x32xf32>
    %49 = arith.mulf %44, %48 : vector<8x32xf32>
    %c1_30 = arith.constant 1 : index
    %c0_31 = arith.constant 0 : index
    %c0_32 = arith.constant 0 : index
    %50 = vector.load %arg1[%c1_30, %c0_31, %c0_32] : memref<9x8x128xf32, #tpu.memory_space<vmem>>, vector<1x8x128xf32>
    %51 = vector.shape_cast %50 : vector<1x8x128xf32> to vector<8x128xf32>
    %52 = arith.truncf %49 : vector<8x32xf32> to vector<8x32xbf16>
    %cst_33 = arith.constant dense<0.000000e+00> : vector<8x128xf32>
    %53 = tpu.matmul %52, %18, %cst_33 {dimension_numbers = #tpu.dot_dimension_numbers<[1], [0], [0], [1], [0, 0, 1, 1], [], []>} : vector<8x32xbf16>, vector<32x128xbf16>, vector<8x128xf32> -> vector<8x128xf32>
    %54 = arith.addf %51, %53 : vector<8x128xf32>
    %55 = math.tanh %54 : vector<8x128xf32>
    %56 = vector.extract_strided_slice %55 {offsets = [0, 0], sizes = [8, 32], strides = [1, 1]} : vector<8x128xf32> to vector<8x32xf32>
    %cst_34 = arith.constant 5.000000e-01 : f32
    %57 = vector.broadcast %cst_34 : f32 to vector<8x32xf32>
    %58 = arith.mulf %56, %57 : vector<8x32xf32>
    %cst_35 = arith.constant 5.000000e-01 : f32
    %59 = vector.broadcast %cst_35 : f32 to vector<8x32xf32>
    %60 = arith.addf %58, %59 : vector<8x32xf32>
    %61 = vector.extract_strided_slice %55 {offsets = [0, 32], sizes = [8, 32], strides = [1, 1]} : vector<8x128xf32> to vector<8x32xf32>
    %cst_36 = arith.constant 5.000000e-01 : f32
    %62 = vector.broadcast %cst_36 : f32 to vector<8x32xf32>
    %63 = arith.mulf %61, %62 : vector<8x32xf32>
    %cst_37 = arith.constant 5.000000e-01 : f32
    %64 = vector.broadcast %cst_37 : f32 to vector<8x32xf32>
    %65 = arith.addf %63, %64 : vector<8x32xf32>
    %66 = vector.extract_strided_slice %55 {offsets = [0, 64], sizes = [8, 32], strides = [1, 1]} : vector<8x128xf32> to vector<8x32xf32>
    %67 = vector.extract_strided_slice %55 {offsets = [0, 96], sizes = [8, 32], strides = [1, 1]} : vector<8x128xf32> to vector<8x32xf32>
    %cst_38 = arith.constant 5.000000e-01 : f32
    %68 = vector.broadcast %cst_38 : f32 to vector<8x32xf32>
    %69 = arith.mulf %67, %68 : vector<8x32xf32>
    %cst_39 = arith.constant 5.000000e-01 : f32
    %70 = vector.broadcast %cst_39 : f32 to vector<8x32xf32>
    %71 = arith.addf %69, %70 : vector<8x32xf32>
    %72 = arith.mulf %65, %47 : vector<8x32xf32>
    %73 = arith.mulf %60, %66 : vector<8x32xf32>
    %74 = arith.addf %72, %73 : vector<8x32xf32>
    %75 = math.tanh %74 : vector<8x32xf32>
    %76 = arith.mulf %71, %75 : vector<8x32xf32>
    %c2_40 = arith.constant 2 : index
    %c0_41 = arith.constant 0 : index
    %c0_42 = arith.constant 0 : index
    %77 = vector.load %arg1[%c2_40, %c0_41, %c0_42] : memref<9x8x128xf32, #tpu.memory_space<vmem>>, vector<1x8x128xf32>
    %78 = vector.shape_cast %77 : vector<1x8x128xf32> to vector<8x128xf32>
    %79 = arith.truncf %76 : vector<8x32xf32> to vector<8x32xbf16>
    %cst_43 = arith.constant dense<0.000000e+00> : vector<8x128xf32>
    %80 = tpu.matmul %79, %18, %cst_43 {dimension_numbers = #tpu.dot_dimension_numbers<[1], [0], [0], [1], [0, 0, 1, 1], [], []>} : vector<8x32xbf16>, vector<32x128xbf16>, vector<8x128xf32> -> vector<8x128xf32>
    %81 = arith.addf %78, %80 : vector<8x128xf32>
    %82 = math.tanh %81 : vector<8x128xf32>
    %83 = vector.extract_strided_slice %82 {offsets = [0, 0], sizes = [8, 32], strides = [1, 1]} : vector<8x128xf32> to vector<8x32xf32>
    %cst_44 = arith.constant 5.000000e-01 : f32
    %84 = vector.broadcast %cst_44 : f32 to vector<8x32xf32>
    %85 = arith.mulf %83, %84 : vector<8x32xf32>
    %cst_45 = arith.constant 5.000000e-01 : f32
    %86 = vector.broadcast %cst_45 : f32 to vector<8x32xf32>
    %87 = arith.addf %85, %86 : vector<8x32xf32>
    %88 = vector.extract_strided_slice %82 {offsets = [0, 32], sizes = [8, 32], strides = [1, 1]} : vector<8x128xf32> to vector<8x32xf32>
    %cst_46 = arith.constant 5.000000e-01 : f32
    %89 = vector.broadcast %cst_46 : f32 to vector<8x32xf32>
    %90 = arith.mulf %88, %89 : vector<8x32xf32>
    %cst_47 = arith.constant 5.000000e-01 : f32
    %91 = vector.broadcast %cst_47 : f32 to vector<8x32xf32>
    %92 = arith.addf %90, %91 : vector<8x32xf32>
    %93 = vector.extract_strided_slice %82 {offsets = [0, 64], sizes = [8, 32], strides = [1, 1]} : vector<8x128xf32> to vector<8x32xf32>
    %94 = vector.extract_strided_slice %82 {offsets = [0, 96], sizes = [8, 32], strides = [1, 1]} : vector<8x128xf32> to vector<8x32xf32>
    %cst_48 = arith.constant 5.000000e-01 : f32
    %95 = vector.broadcast %cst_48 : f32 to vector<8x32xf32>
    %96 = arith.mulf %94, %95 : vector<8x32xf32>
    %cst_49 = arith.constant 5.000000e-01 : f32
    %97 = vector.broadcast %cst_49 : f32 to vector<8x32xf32>
    %98 = arith.addf %96, %97 : vector<8x32xf32>
    %99 = arith.mulf %92, %74 : vector<8x32xf32>
    %100 = arith.mulf %87, %93 : vector<8x32xf32>
    %101 = arith.addf %99, %100 : vector<8x32xf32>
    %102 = math.tanh %101 : vector<8x32xf32>
    %103 = arith.mulf %98, %102 : vector<8x32xf32>
    %c3 = arith.constant 3 : index
    %c0_50 = arith.constant 0 : index
    %c0_51 = arith.constant 0 : index
    %104 = vector.load %arg1[%c3, %c0_50, %c0_51] : memref<9x8x128xf32, #tpu.memory_space<vmem>>, vector<1x8x128xf32>
    %105 = vector.shape_cast %104 : vector<1x8x128xf32> to vector<8x128xf32>
    %106 = arith.truncf %103 : vector<8x32xf32> to vector<8x32xbf16>
    %cst_52 = arith.constant dense<0.000000e+00> : vector<8x128xf32>
    %107 = tpu.matmul %106, %18, %cst_52 {dimension_numbers = #tpu.dot_dimension_numbers<[1], [0], [0], [1], [0, 0, 1, 1], [], []>} : vector<8x32xbf16>, vector<32x128xbf16>, vector<8x128xf32> -> vector<8x128xf32>
    %108 = arith.addf %105, %107 : vector<8x128xf32>
    %109 = math.tanh %108 : vector<8x128xf32>
    %110 = vector.extract_strided_slice %109 {offsets = [0, 0], sizes = [8, 32], strides = [1, 1]} : vector<8x128xf32> to vector<8x32xf32>
    %cst_53 = arith.constant 5.000000e-01 : f32
    %111 = vector.broadcast %cst_53 : f32 to vector<8x32xf32>
    %112 = arith.mulf %110, %111 : vector<8x32xf32>
    %cst_54 = arith.constant 5.000000e-01 : f32
    %113 = vector.broadcast %cst_54 : f32 to vector<8x32xf32>
    %114 = arith.addf %112, %113 : vector<8x32xf32>
    %115 = vector.extract_strided_slice %109 {offsets = [0, 32], sizes = [8, 32], strides = [1, 1]} : vector<8x128xf32> to vector<8x32xf32>
    %cst_55 = arith.constant 5.000000e-01 : f32
    %116 = vector.broadcast %cst_55 : f32 to vector<8x32xf32>
    %117 = arith.mulf %115, %116 : vector<8x32xf32>
    %cst_56 = arith.constant 5.000000e-01 : f32
    %118 = vector.broadcast %cst_56 : f32 to vector<8x32xf32>
    %119 = arith.addf %117, %118 : vector<8x32xf32>
    %120 = vector.extract_strided_slice %109 {offsets = [0, 64], sizes = [8, 32], strides = [1, 1]} : vector<8x128xf32> to vector<8x32xf32>
    %121 = vector.extract_strided_slice %109 {offsets = [0, 96], sizes = [8, 32], strides = [1, 1]} : vector<8x128xf32> to vector<8x32xf32>
    %cst_57 = arith.constant 5.000000e-01 : f32
    %122 = vector.broadcast %cst_57 : f32 to vector<8x32xf32>
    %123 = arith.mulf %121, %122 : vector<8x32xf32>
    %cst_58 = arith.constant 5.000000e-01 : f32
    %124 = vector.broadcast %cst_58 : f32 to vector<8x32xf32>
    %125 = arith.addf %123, %124 : vector<8x32xf32>
    %126 = arith.mulf %119, %101 : vector<8x32xf32>
    %127 = arith.mulf %114, %120 : vector<8x32xf32>
    %128 = arith.addf %126, %127 : vector<8x32xf32>
    %129 = math.tanh %128 : vector<8x32xf32>
    %130 = arith.mulf %125, %129 : vector<8x32xf32>
    %c4 = arith.constant 4 : index
    %c0_59 = arith.constant 0 : index
    %c0_60 = arith.constant 0 : index
    %131 = vector.load %arg1[%c4, %c0_59, %c0_60] : memref<9x8x128xf32, #tpu.memory_space<vmem>>, vector<1x8x128xf32>
    %132 = vector.shape_cast %131 : vector<1x8x128xf32> to vector<8x128xf32>
    %133 = arith.truncf %130 : vector<8x32xf32> to vector<8x32xbf16>
    %cst_61 = arith.constant dense<0.000000e+00> : vector<8x128xf32>
    %134 = tpu.matmul %133, %18, %cst_61 {dimension_numbers = #tpu.dot_dimension_numbers<[1], [0], [0], [1], [0, 0, 1, 1], [], []>} : vector<8x32xbf16>, vector<32x128xbf16>, vector<8x128xf32> -> vector<8x128xf32>
    %135 = arith.addf %132, %134 : vector<8x128xf32>
    %136 = math.tanh %135 : vector<8x128xf32>
    %137 = vector.extract_strided_slice %136 {offsets = [0, 0], sizes = [8, 32], strides = [1, 1]} : vector<8x128xf32> to vector<8x32xf32>
    %cst_62 = arith.constant 5.000000e-01 : f32
    %138 = vector.broadcast %cst_62 : f32 to vector<8x32xf32>
    %139 = arith.mulf %137, %138 : vector<8x32xf32>
    %cst_63 = arith.constant 5.000000e-01 : f32
    %140 = vector.broadcast %cst_63 : f32 to vector<8x32xf32>
    %141 = arith.addf %139, %140 : vector<8x32xf32>
    %142 = vector.extract_strided_slice %136 {offsets = [0, 32], sizes = [8, 32], strides = [1, 1]} : vector<8x128xf32> to vector<8x32xf32>
    %cst_64 = arith.constant 5.000000e-01 : f32
    %143 = vector.broadcast %cst_64 : f32 to vector<8x32xf32>
    %144 = arith.mulf %142, %143 : vector<8x32xf32>
    %cst_65 = arith.constant 5.000000e-01 : f32
    %145 = vector.broadcast %cst_65 : f32 to vector<8x32xf32>
    %146 = arith.addf %144, %145 : vector<8x32xf32>
    %147 = vector.extract_strided_slice %136 {offsets = [0, 64], sizes = [8, 32], strides = [1, 1]} : vector<8x128xf32> to vector<8x32xf32>
    %148 = vector.extract_strided_slice %136 {offsets = [0, 96], sizes = [8, 32], strides = [1, 1]} : vector<8x128xf32> to vector<8x32xf32>
    %cst_66 = arith.constant 5.000000e-01 : f32
    %149 = vector.broadcast %cst_66 : f32 to vector<8x32xf32>
    %150 = arith.mulf %148, %149 : vector<8x32xf32>
    %cst_67 = arith.constant 5.000000e-01 : f32
    %151 = vector.broadcast %cst_67 : f32 to vector<8x32xf32>
    %152 = arith.addf %150, %151 : vector<8x32xf32>
    %153 = arith.mulf %146, %128 : vector<8x32xf32>
    %154 = arith.mulf %141, %147 : vector<8x32xf32>
    %155 = arith.addf %153, %154 : vector<8x32xf32>
    %156 = math.tanh %155 : vector<8x32xf32>
    %157 = arith.mulf %152, %156 : vector<8x32xf32>
    %c5 = arith.constant 5 : index
    %c0_68 = arith.constant 0 : index
    %c0_69 = arith.constant 0 : index
    %158 = vector.load %arg1[%c5, %c0_68, %c0_69] : memref<9x8x128xf32, #tpu.memory_space<vmem>>, vector<1x8x128xf32>
    %159 = vector.shape_cast %158 : vector<1x8x128xf32> to vector<8x128xf32>
    %160 = arith.truncf %157 : vector<8x32xf32> to vector<8x32xbf16>
    %cst_70 = arith.constant dense<0.000000e+00> : vector<8x128xf32>
    %161 = tpu.matmul %160, %18, %cst_70 {dimension_numbers = #tpu.dot_dimension_numbers<[1], [0], [0], [1], [0, 0, 1, 1], [], []>} : vector<8x32xbf16>, vector<32x128xbf16>, vector<8x128xf32> -> vector<8x128xf32>
    %162 = arith.addf %159, %161 : vector<8x128xf32>
    %163 = math.tanh %162 : vector<8x128xf32>
    %164 = vector.extract_strided_slice %163 {offsets = [0, 0], sizes = [8, 32], strides = [1, 1]} : vector<8x128xf32> to vector<8x32xf32>
    %cst_71 = arith.constant 5.000000e-01 : f32
    %165 = vector.broadcast %cst_71 : f32 to vector<8x32xf32>
    %166 = arith.mulf %164, %165 : vector<8x32xf32>
    %cst_72 = arith.constant 5.000000e-01 : f32
    %167 = vector.broadcast %cst_72 : f32 to vector<8x32xf32>
    %168 = arith.addf %166, %167 : vector<8x32xf32>
    %169 = vector.extract_strided_slice %163 {offsets = [0, 32], sizes = [8, 32], strides = [1, 1]} : vector<8x128xf32> to vector<8x32xf32>
    %cst_73 = arith.constant 5.000000e-01 : f32
    %170 = vector.broadcast %cst_73 : f32 to vector<8x32xf32>
    %171 = arith.mulf %169, %170 : vector<8x32xf32>
    %cst_74 = arith.constant 5.000000e-01 : f32
    %172 = vector.broadcast %cst_74 : f32 to vector<8x32xf32>
    %173 = arith.addf %171, %172 : vector<8x32xf32>
    %174 = vector.extract_strided_slice %163 {offsets = [0, 64], sizes = [8, 32], strides = [1, 1]} : vector<8x128xf32> to vector<8x32xf32>
    %175 = vector.extract_strided_slice %163 {offsets = [0, 96], sizes = [8, 32], strides = [1, 1]} : vector<8x128xf32> to vector<8x32xf32>
    %cst_75 = arith.constant 5.000000e-01 : f32
    %176 = vector.broadcast %cst_75 : f32 to vector<8x32xf32>
    %177 = arith.mulf %175, %176 : vector<8x32xf32>
    %cst_76 = arith.constant 5.000000e-01 : f32
    %178 = vector.broadcast %cst_76 : f32 to vector<8x32xf32>
    %179 = arith.addf %177, %178 : vector<8x32xf32>
    %180 = arith.mulf %173, %155 : vector<8x32xf32>
    %181 = arith.mulf %168, %174 : vector<8x32xf32>
    %182 = arith.addf %180, %181 : vector<8x32xf32>
    %183 = math.tanh %182 : vector<8x32xf32>
    %184 = arith.mulf %179, %183 : vector<8x32xf32>
    %c6 = arith.constant 6 : index
    %c0_77 = arith.constant 0 : index
    %c0_78 = arith.constant 0 : index
    %185 = vector.load %arg1[%c6, %c0_77, %c0_78] : memref<9x8x128xf32, #tpu.memory_space<vmem>>, vector<1x8x128xf32>
    %186 = vector.shape_cast %185 : vector<1x8x128xf32> to vector<8x128xf32>
    %187 = arith.truncf %184 : vector<8x32xf32> to vector<8x32xbf16>
    %cst_79 = arith.constant dense<0.000000e+00> : vector<8x128xf32>
    %188 = tpu.matmul %187, %18, %cst_79 {dimension_numbers = #tpu.dot_dimension_numbers<[1], [0], [0], [1], [0, 0, 1, 1], [], []>} : vector<8x32xbf16>, vector<32x128xbf16>, vector<8x128xf32> -> vector<8x128xf32>
    %189 = arith.addf %186, %188 : vector<8x128xf32>
    %190 = math.tanh %189 : vector<8x128xf32>
    %191 = vector.extract_strided_slice %190 {offsets = [0, 0], sizes = [8, 32], strides = [1, 1]} : vector<8x128xf32> to vector<8x32xf32>
    %cst_80 = arith.constant 5.000000e-01 : f32
    %192 = vector.broadcast %cst_80 : f32 to vector<8x32xf32>
    %193 = arith.mulf %191, %192 : vector<8x32xf32>
    %cst_81 = arith.constant 5.000000e-01 : f32
    %194 = vector.broadcast %cst_81 : f32 to vector<8x32xf32>
    %195 = arith.addf %193, %194 : vector<8x32xf32>
    %196 = vector.extract_strided_slice %190 {offsets = [0, 32], sizes = [8, 32], strides = [1, 1]} : vector<8x128xf32> to vector<8x32xf32>
    %cst_82 = arith.constant 5.000000e-01 : f32
    %197 = vector.broadcast %cst_82 : f32 to vector<8x32xf32>
    %198 = arith.mulf %196, %197 : vector<8x32xf32>
    %cst_83 = arith.constant 5.000000e-01 : f32
    %199 = vector.broadcast %cst_83 : f32 to vector<8x32xf32>
    %200 = arith.addf %198, %199 : vector<8x32xf32>
    %201 = vector.extract_strided_slice %190 {offsets = [0, 64], sizes = [8, 32], strides = [1, 1]} : vector<8x128xf32> to vector<8x32xf32>
    %202 = vector.extract_strided_slice %190 {offsets = [0, 96], sizes = [8, 32], strides = [1, 1]} : vector<8x128xf32> to vector<8x32xf32>
    %cst_84 = arith.constant 5.000000e-01 : f32
    %203 = vector.broadcast %cst_84 : f32 to vector<8x32xf32>
    %204 = arith.mulf %202, %203 : vector<8x32xf32>
    %cst_85 = arith.constant 5.000000e-01 : f32
    %205 = vector.broadcast %cst_85 : f32 to vector<8x32xf32>
    %206 = arith.addf %204, %205 : vector<8x32xf32>
    %207 = arith.mulf %200, %182 : vector<8x32xf32>
    %208 = arith.mulf %195, %201 : vector<8x32xf32>
    %209 = arith.addf %207, %208 : vector<8x32xf32>
    %210 = math.tanh %209 : vector<8x32xf32>
    %211 = arith.mulf %206, %210 : vector<8x32xf32>
    %c7 = arith.constant 7 : index
    %c0_86 = arith.constant 0 : index
    %c0_87 = arith.constant 0 : index
    %212 = vector.load %arg1[%c7, %c0_86, %c0_87] : memref<9x8x128xf32, #tpu.memory_space<vmem>>, vector<1x8x128xf32>
    %213 = vector.shape_cast %212 : vector<1x8x128xf32> to vector<8x128xf32>
    %214 = arith.truncf %211 : vector<8x32xf32> to vector<8x32xbf16>
    %cst_88 = arith.constant dense<0.000000e+00> : vector<8x128xf32>
    %215 = tpu.matmul %214, %18, %cst_88 {dimension_numbers = #tpu.dot_dimension_numbers<[1], [0], [0], [1], [0, 0, 1, 1], [], []>} : vector<8x32xbf16>, vector<32x128xbf16>, vector<8x128xf32> -> vector<8x128xf32>
    %216 = arith.addf %213, %215 : vector<8x128xf32>
    %217 = math.tanh %216 : vector<8x128xf32>
    %218 = vector.extract_strided_slice %217 {offsets = [0, 0], sizes = [8, 32], strides = [1, 1]} : vector<8x128xf32> to vector<8x32xf32>
    %cst_89 = arith.constant 5.000000e-01 : f32
    %219 = vector.broadcast %cst_89 : f32 to vector<8x32xf32>
    %220 = arith.mulf %218, %219 : vector<8x32xf32>
    %cst_90 = arith.constant 5.000000e-01 : f32
    %221 = vector.broadcast %cst_90 : f32 to vector<8x32xf32>
    %222 = arith.addf %220, %221 : vector<8x32xf32>
    %223 = vector.extract_strided_slice %217 {offsets = [0, 32], sizes = [8, 32], strides = [1, 1]} : vector<8x128xf32> to vector<8x32xf32>
    %cst_91 = arith.constant 5.000000e-01 : f32
    %224 = vector.broadcast %cst_91 : f32 to vector<8x32xf32>
    %225 = arith.mulf %223, %224 : vector<8x32xf32>
    %cst_92 = arith.constant 5.000000e-01 : f32
    %226 = vector.broadcast %cst_92 : f32 to vector<8x32xf32>
    %227 = arith.addf %225, %226 : vector<8x32xf32>
    %228 = vector.extract_strided_slice %217 {offsets = [0, 64], sizes = [8, 32], strides = [1, 1]} : vector<8x128xf32> to vector<8x32xf32>
    %229 = vector.extract_strided_slice %217 {offsets = [0, 96], sizes = [8, 32], strides = [1, 1]} : vector<8x128xf32> to vector<8x32xf32>
    %cst_93 = arith.constant 5.000000e-01 : f32
    %230 = vector.broadcast %cst_93 : f32 to vector<8x32xf32>
    %231 = arith.mulf %229, %230 : vector<8x32xf32>
    %cst_94 = arith.constant 5.000000e-01 : f32
    %232 = vector.broadcast %cst_94 : f32 to vector<8x32xf32>
    %233 = arith.addf %231, %232 : vector<8x32xf32>
    %234 = arith.mulf %227, %209 : vector<8x32xf32>
    %235 = arith.mulf %222, %228 : vector<8x32xf32>
    %236 = arith.addf %234, %235 : vector<8x32xf32>
    %237 = math.tanh %236 : vector<8x32xf32>
    %238 = arith.mulf %233, %237 : vector<8x32xf32>
    %cst_95 = arith.constant 0.000000e+00 : f32
    %239 = vector.broadcast %cst_95 : f32 to vector<8x32xf32>
    %c0_96 = arith.constant 0 : index
    %c0_97 = arith.constant 0 : index
    %c0_98 = arith.constant 0 : index
    %240 = vector.load %arg8[%c0_96, %c0_97, %c0_98] : memref<8x8x32xf32, #tpu.memory_space<vmem>>, vector<1x8x32xf32>
    %241 = vector.shape_cast %240 : vector<1x8x32xf32> to vector<8x32xf32>
    %242 = vector.shape_cast %239 : vector<8x32xf32> to vector<1x8x32xf32>
    tpu.vector_store %arg8[%c0_96, %c0_97, %c0_98], %242 {strides = array<i32>} : memref<8x8x32xf32, #tpu.memory_space<vmem>>, vector<1x8x32xf32>,
    %c8 = arith.constant 8 : index
    %c0_99 = arith.constant 0 : index
    %c0_100 = arith.constant 0 : index
    %243 = vector.load %arg1[%c8, %c0_99, %c0_100] : memref<9x8x128xf32, #tpu.memory_space<vmem>>, vector<1x8x128xf32>
    %244 = vector.shape_cast %243 : vector<1x8x128xf32> to vector<8x128xf32>
    %c0_101 = arith.constant 0 : index
    %c0_102 = arith.constant 0 : index
    %c0_103 = arith.constant 0 : index
    %245 = vector.load %arg9[%c0_101, %c0_102, %c0_103] : memref<8x8x128xf32, #tpu.memory_space<vmem>>, vector<1x8x128xf32>
    %246 = vector.shape_cast %245 : vector<1x8x128xf32> to vector<8x128xf32>
    %247 = vector.shape_cast %244 : vector<8x128xf32> to vector<1x8x128xf32>
    tpu.vector_store %arg9[%c0_101, %c0_102, %c0_103], %247 {strides = array<i32>} : memref<8x8x128xf32, #tpu.memory_space<vmem>>, vector<1x8x128xf32>,
    %c0_104 = arith.constant 0 : index
    %c0_105 = arith.constant 0 : index
    %c0_106 = arith.constant 0 : index
    %248 = vector.load %arg9[%c0_104, %c0_105, %c0_106] : memref<8x8x128xf32, #tpu.memory_space<vmem>>, vector<1x8x128xf32>
    %249 = vector.shape_cast %248 : vector<1x8x128xf32> to vector<8x128xf32>
    %250 = arith.truncf %238 : vector<8x32xf32> to vector<8x32xbf16>
    %cst_107 = arith.constant dense<0.000000e+00> : vector<8x128xf32>
    %251 = tpu.matmul %250, %20, %cst_107 {dimension_numbers = #tpu.dot_dimension_numbers<[1], [0], [0], [1], [0, 0, 1, 1], [], []>} : vector<8x32xbf16>, vector<32x128xbf16>, vector<8x128xf32> -> vector<8x128xf32>
    %252 = arith.addf %249, %251 : vector<8x128xf32>
    %253 = math.tanh %252 : vector<8x128xf32>
    %254 = vector.extract_strided_slice %253 {offsets = [0, 0], sizes = [8, 32], strides = [1, 1]} : vector<8x128xf32> to vector<8x32xf32>
    %cst_108 = arith.constant 5.000000e-01 : f32
    %255 = vector.broadcast %cst_108 : f32 to vector<8x32xf32>
    %256 = arith.mulf %254, %255 : vector<8x32xf32>
    %cst_109 = arith.constant 5.000000e-01 : f32
    %257 = vector.broadcast %cst_109 : f32 to vector<8x32xf32>
    %258 = arith.addf %256, %257 : vector<8x32xf32>
    %259 = vector.extract_strided_slice %253 {offsets = [0, 32], sizes = [8, 32], strides = [1, 1]} : vector<8x128xf32> to vector<8x32xf32>
    %cst_110 = arith.constant 5.000000e-01 : f32
    %260 = vector.broadcast %cst_110 : f32 to vector<8x32xf32>
    %261 = arith.mulf %259, %260 : vector<8x32xf32>
    %cst_111 = arith.constant 5.000000e-01 : f32
    %262 = vector.broadcast %cst_111 : f32 to vector<8x32xf32>
    %263 = arith.addf %261, %262 : vector<8x32xf32>
    %264 = vector.extract_strided_slice %253 {offsets = [0, 64], sizes = [8, 32], strides = [1, 1]} : vector<8x128xf32> to vector<8x32xf32>
    %265 = vector.extract_strided_slice %253 {offsets = [0, 96], sizes = [8, 32], strides = [1, 1]} : vector<8x128xf32> to vector<8x32xf32>
    %cst_112 = arith.constant 5.000000e-01 : f32
    %266 = vector.broadcast %cst_112 : f32 to vector<8x32xf32>
    %267 = arith.mulf %265, %266 : vector<8x32xf32>
    %cst_113 = arith.constant 5.000000e-01 : f32
    %268 = vector.broadcast %cst_113 : f32 to vector<8x32xf32>
    %269 = arith.addf %267, %268 : vector<8x32xf32>
    %270 = arith.mulf %263, %236 : vector<8x32xf32>
    %271 = arith.mulf %258, %264 : vector<8x32xf32>
    %272 = arith.addf %270, %271 : vector<8x32xf32>
    %273 = math.tanh %272 : vector<8x32xf32>
    %274 = arith.mulf %269, %273 : vector<8x32xf32>
    %cst_114 = arith.constant dense<0.000000e+00> : vector<8x40xf32>
    %275 = tpu.matmul %274, %14, %cst_114 {dimension_numbers = #tpu.dot_dimension_numbers<[1], [0], [0], [1], [0, 0, 1, 1], [], []>} : vector<8x32xf32>, vector<32x40xf32>, vector<8x40xf32> -> vector<8x40xf32>
    %276 = arith.addf %275, %13 : vector<8x40xf32>
    %cst_115 = arith.constant 0.000000e+00 : f32
    %277 = vector.broadcast %cst_115 : f32 to vector<8x40xf32>
    %278 = arith.maximumf %276, %277 : vector<8x40xf32>
    %cst_116 = arith.constant dense<0.000000e+00> : vector<8xf32>
    %279 = vector.multi_reduction <add>, %278, %cst_116 [1] : vector<8x40xf32> to vector<8xf32>
    %280 = vector.shape_cast %279 : vector<8xf32> to vector<8x1xf32>
    %cst_117 = arith.constant 4.000000e+01 : f32
    %281 = vector.broadcast %cst_117 : f32 to vector<8x1xf32>
    %282 = arith.divf %280, %281 : vector<8x1xf32>
    %283 = vector.broadcast %282 : vector<8x1xf32> to vector<8x40xf32>
    %284 = arith.subf %278, %283 : vector<8x40xf32>
    %285 = arith.mulf %284, %284 : vector<8x40xf32>
    %cst_118 = arith.constant dense<0.000000e+00> : vector<8xf32>
    %286 = vector.multi_reduction <add>, %285, %cst_118 [1] : vector<8x40xf32> to vector<8xf32>
    %287 = vector.shape_cast %286 : vector<8xf32> to vector<8x1xf32>
    %cst_119 = arith.constant 4.000000e+01 : f32
    %288 = vector.broadcast %cst_119 : f32 to vector<8x1xf32>
    %289 = arith.divf %287, %288 : vector<8x1xf32>
    %290 = vector.broadcast %282 : vector<8x1xf32> to vector<8x40xf32>
    %291 = arith.subf %278, %290 : vector<8x40xf32>
    %cst_120 = arith.constant 9.99999974E-6 : f32
    %292 = vector.broadcast %cst_120 : f32 to vector<8x1xf32>
    %293 = arith.addf %289, %292 : vector<8x1xf32>
    %294 = math.rsqrt %293 : vector<8x1xf32>
    %295 = vector.broadcast %294 : vector<8x1xf32> to vector<8x40xf32>
    %296 = arith.mulf %291, %295 : vector<8x40xf32>
    %297 = arith.mulf %296, %6 : vector<8x40xf32>
    %298 = arith.addf %297, %9 : vector<8x40xf32>
    %cst_121 = arith.constant dense<0.000000e+00> : vector<8x32xf32>
    %299 = tpu.matmul %298, %15, %cst_121 {dimension_numbers = #tpu.dot_dimension_numbers<[1], [0], [0], [1], [0, 0, 1, 1], [], []>} : vector<8x40xf32>, vector<40x32xf32>, vector<8x32xf32> -> vector<8x32xf32>
    %300 = arith.addf %299, %12 : vector<8x32xf32>
    %c1_122 = arith.constant 1 : index
    %c0_123 = arith.constant 0 : index
    %c0_124 = arith.constant 0 : index
    %301 = vector.load %arg8[%c1_122, %c0_123, %c0_124] : memref<8x8x32xf32, #tpu.memory_space<vmem>>, vector<1x8x32xf32>
    %302 = vector.shape_cast %301 : vector<1x8x32xf32> to vector<8x32xf32>
    %303 = vector.shape_cast %300 : vector<8x32xf32> to vector<1x8x32xf32>
    tpu.vector_store %arg8[%c1_122, %c0_123, %c0_124], %303 {strides = array<i32>} : memref<8x8x32xf32, #tpu.memory_space<vmem>>, vector<1x8x32xf32>,
    %cst_125 = arith.constant dense<0xFF800000> : vector<8xf32>
    %304 = vector.multi_reduction <maximumf>, %300, %cst_125 [1] : vector<8x32xf32> to vector<8xf32>
    %305 = vector.shape_cast %304 : vector<8xf32> to vector<8x1xf32>
    %306 = vector.broadcast %305 : vector<8x1xf32> to vector<8x32xf32>
    %307 = arith.cmpf oeq, %300, %306 : vector<8x32xf32>
    %c32_i32 = arith.constant 32 : i32
    %308 = vector.broadcast %c32_i32 : i32 to vector<8x32xi32>
    %309 = arith.select %307, %0, %308 : vector<8x32xi1>, vector<8x32xi32>
    %cst_126 = arith.constant dense<2147483647> : vector<8xi32>
    %310 = vector.multi_reduction <minsi>, %309, %cst_126 [1] : vector<8x32xi32> to vector<8xi32>
    %311 = vector.shape_cast %310 : vector<8xi32> to vector<8x1xi32>
    %312 = vector.extract_strided_slice %3 {offsets = [0, 1], sizes = [8, 1], strides = [1, 1]} : vector<8x8xi1> to vector<8x1xi1>
    %313 = vector.extract_strided_slice %1 {offsets = [0, 1], sizes = [8, 1], strides = [1, 1]} : vector<8x8xi32> to vector<8x1xi32>
    %314 = arith.select %312, %311, %313 : vector<8x1xi1>, vector<8x1xi32>
    %315 = vector.broadcast %314 : vector<8x1xi32> to vector<8x32xi32>
    %316 = arith.cmpi eq, %0, %315 : vector<8x32xi32>
    %317 = arith.extui %316 : vector<8x32xi1> to vector<8x32xi32>
    %318 = arith.sitofp %317 : vector<8x32xi32> to vector<8x32xf32>
    %cst_127 = arith.constant dense<0.000000e+00> : vector<8x128xf32>
    %319 = tpu.matmul %318, %16, %cst_127 {dimension_numbers = #tpu.dot_dimension_numbers<[1], [0], [0], [1], [0, 0, 1, 1], [], []>} : vector<8x32xf32>, vector<32x128xf32>, vector<8x128xf32> -> vector<8x128xf32>
    %c1_128 = arith.constant 1 : index
    %c0_129 = arith.constant 0 : index
    %c0_130 = arith.constant 0 : index
    %320 = vector.load %arg9[%c1_128, %c0_129, %c0_130] : memref<8x8x128xf32, #tpu.memory_space<vmem>>, vector<1x8x128xf32>
    %321 = vector.shape_cast %320 : vector<1x8x128xf32> to vector<8x128xf32>
    %322 = vector.shape_cast %319 : vector<8x128xf32> to vector<1x8x128xf32>
    tpu.vector_store %arg9[%c1_128, %c0_129, %c0_130], %322 {strides = array<i32>} : memref<8x8x128xf32, #tpu.memory_space<vmem>>, vector<1x8x128xf32>,
    %c0_131 = arith.constant 0 : index
    %c0_132 = arith.constant 0 : index
    %c0_133 = arith.constant 0 : index
    %323 = vector.load %arg9[%c0_131, %c0_132, %c0_133] : memref<8x8x128xf32, #tpu.memory_space<vmem>>, vector<1x8x128xf32>
    %324 = vector.shape_cast %323 : vector<1x8x128xf32> to vector<8x128xf32>
    %325 = arith.truncf %274 : vector<8x32xf32> to vector<8x32xbf16>
    %cst_134 = arith.constant dense<0.000000e+00> : vector<8x128xf32>
    %326 = tpu.matmul %325, %20, %cst_134 {dimension_numbers = #tpu.dot_dimension_numbers<[1], [0], [0], [1], [0, 0, 1, 1], [], []>} : vector<8x32xbf16>, vector<32x128xbf16>, vector<8x128xf32> -> vector<8x128xf32>
    %327 = arith.addf %324, %326 : vector<8x128xf32>
    %328 = math.tanh %327 : vector<8x128xf32>
    %329 = vector.extract_strided_slice %328 {offsets = [0, 0], sizes = [8, 32], strides = [1, 1]} : vector<8x128xf32> to vector<8x32xf32>
    %cst_135 = arith.constant 5.000000e-01 : f32
    %330 = vector.broadcast %cst_135 : f32 to vector<8x32xf32>
    %331 = arith.mulf %329, %330 : vector<8x32xf32>
    %cst_136 = arith.constant 5.000000e-01 : f32
    %332 = vector.broadcast %cst_136 : f32 to vector<8x32xf32>
    %333 = arith.addf %331, %332 : vector<8x32xf32>
    %334 = vector.extract_strided_slice %328 {offsets = [0, 32], sizes = [8, 32], strides = [1, 1]} : vector<8x128xf32> to vector<8x32xf32>
    %cst_137 = arith.constant 5.000000e-01 : f32
    %335 = vector.broadcast %cst_137 : f32 to vector<8x32xf32>
    %336 = arith.mulf %334, %335 : vector<8x32xf32>
    %cst_138 = arith.constant 5.000000e-01 : f32
    %337 = vector.broadcast %cst_138 : f32 to vector<8x32xf32>
    %338 = arith.addf %336, %337 : vector<8x32xf32>
    %339 = vector.extract_strided_slice %328 {offsets = [0, 64], sizes = [8, 32], strides = [1, 1]} : vector<8x128xf32> to vector<8x32xf32>
    %340 = vector.extract_strided_slice %328 {offsets = [0, 96], sizes = [8, 32], strides = [1, 1]} : vector<8x128xf32> to vector<8x32xf32>
    %cst_139 = arith.constant 5.000000e-01 : f32
    %341 = vector.broadcast %cst_139 : f32 to vector<8x32xf32>
    %342 = arith.mulf %340, %341 : vector<8x32xf32>
    %cst_140 = arith.constant 5.000000e-01 : f32
    %343 = vector.broadcast %cst_140 : f32 to vector<8x32xf32>
    %344 = arith.addf %342, %343 : vector<8x32xf32>
    %345 = arith.mulf %338, %272 : vector<8x32xf32>
    %346 = arith.mulf %333, %339 : vector<8x32xf32>
    %347 = arith.addf %345, %346 : vector<8x32xf32>
    %348 = math.tanh %347 : vector<8x32xf32>
    %349 = arith.mulf %344, %348 : vector<8x32xf32>
    %c1_141 = arith.constant 1 : index
    %c0_142 = arith.constant 0 : index
    %c0_143 = arith.constant 0 : index
    %350 = vector.load %arg9[%c1_141, %c0_142, %c0_143] : memref<8x8x128xf32, #tpu.memory_space<vmem>>, vector<1x8x128xf32>
    %351 = vector.shape_cast %350 : vector<1x8x128xf32> to vector<8x128xf32>
    %352 = arith.truncf %349 : vector<8x32xf32> to vector<8x32xbf16>
    %cst_144 = arith.constant dense<0.000000e+00> : vector<8x128xf32>
    %353 = tpu.matmul %352, %20, %cst_144 {dimension_numbers = #tpu.dot_dimension_numbers<[1], [0], [0], [1], [0, 0, 1, 1], [], []>} : vector<8x32xbf16>, vector<32x128xbf16>, vector<8x128xf32> -> vector<8x128xf32>
    %354 = arith.addf %351, %353 : vector<8x128xf32>
    %355 = math.tanh %354 : vector<8x128xf32>
    %356 = vector.extract_strided_slice %355 {offsets = [0, 0], sizes = [8, 32], strides = [1, 1]} : vector<8x128xf32> to vector<8x32xf32>
    %cst_145 = arith.constant 5.000000e-01 : f32
    %357 = vector.broadcast %cst_145 : f32 to vector<8x32xf32>
    %358 = arith.mulf %356, %357 : vector<8x32xf32>
    %cst_146 = arith.constant 5.000000e-01 : f32
    %359 = vector.broadcast %cst_146 : f32 to vector<8x32xf32>
    %360 = arith.addf %358, %359 : vector<8x32xf32>
    %361 = vector.extract_strided_slice %355 {offsets = [0, 32], sizes = [8, 32], strides = [1, 1]} : vector<8x128xf32> to vector<8x32xf32>
    %cst_147 = arith.constant 5.000000e-01 : f32
    %362 = vector.broadcast %cst_147 : f32 to vector<8x32xf32>
    %363 = arith.mulf %361, %362 : vector<8x32xf32>
    %cst_148 = arith.constant 5.000000e-01 : f32
    %364 = vector.broadcast %cst_148 : f32 to vector<8x32xf32>
    %365 = arith.addf %363, %364 : vector<8x32xf32>
    %366 = vector.extract_strided_slice %355 {offsets = [0, 64], sizes = [8, 32], strides = [1, 1]} : vector<8x128xf32> to vector<8x32xf32>
    %367 = vector.extract_strided_slice %355 {offsets = [0, 96], sizes = [8, 32], strides = [1, 1]} : vector<8x128xf32> to vector<8x32xf32>
    %cst_149 = arith.constant 5.000000e-01 : f32
    %368 = vector.broadcast %cst_149 : f32 to vector<8x32xf32>
    %369 = arith.mulf %367, %368 : vector<8x32xf32>
    %cst_150 = arith.constant 5.000000e-01 : f32
    %370 = vector.broadcast %cst_150 : f32 to vector<8x32xf32>
    %371 = arith.addf %369, %370 : vector<8x32xf32>
    %372 = arith.mulf %365, %347 : vector<8x32xf32>
    %373 = arith.mulf %360, %366 : vector<8x32xf32>
    %374 = arith.addf %372, %373 : vector<8x32xf32>
    %375 = math.tanh %374 : vector<8x32xf32>
    %376 = arith.mulf %371, %375 : vector<8x32xf32>
    %cst_151 = arith.constant dense<0.000000e+00> : vector<8x40xf32>
    %377 = tpu.matmul %376, %14, %cst_151 {dimension_numbers = #tpu.dot_dimension_numbers<[1], [0], [0], [1], [0, 0, 1, 1], [], []>} : vector<8x32xf32>, vector<32x40xf32>, vector<8x40xf32> -> vector<8x40xf32>
    %378 = arith.addf %377, %13 : vector<8x40xf32>
    %cst_152 = arith.constant 0.000000e+00 : f32
    %379 = vector.broadcast %cst_152 : f32 to vector<8x40xf32>
    %380 = arith.maximumf %378, %379 : vector<8x40xf32>
    %cst_153 = arith.constant dense<0.000000e+00> : vector<8xf32>
    %381 = vector.multi_reduction <add>, %380, %cst_153 [1] : vector<8x40xf32> to vector<8xf32>
    %382 = vector.shape_cast %381 : vector<8xf32> to vector<8x1xf32>
    %cst_154 = arith.constant 4.000000e+01 : f32
    %383 = vector.broadcast %cst_154 : f32 to vector<8x1xf32>
    %384 = arith.divf %382, %383 : vector<8x1xf32>
    %385 = vector.broadcast %384 : vector<8x1xf32> to vector<8x40xf32>
    %386 = arith.subf %380, %385 : vector<8x40xf32>
    %387 = arith.mulf %386, %386 : vector<8x40xf32>
    %cst_155 = arith.constant dense<0.000000e+00> : vector<8xf32>
    %388 = vector.multi_reduction <add>, %387, %cst_155 [1] : vector<8x40xf32> to vector<8xf32>
    %389 = vector.shape_cast %388 : vector<8xf32> to vector<8x1xf32>
    %cst_156 = arith.constant 4.000000e+01 : f32
    %390 = vector.broadcast %cst_156 : f32 to vector<8x1xf32>
    %391 = arith.divf %389, %390 : vector<8x1xf32>
    %392 = vector.broadcast %384 : vector<8x1xf32> to vector<8x40xf32>
    %393 = arith.subf %380, %392 : vector<8x40xf32>
    %cst_157 = arith.constant 9.99999974E-6 : f32
    %394 = vector.broadcast %cst_157 : f32 to vector<8x1xf32>
    %395 = arith.addf %391, %394 : vector<8x1xf32>
    %396 = math.rsqrt %395 : vector<8x1xf32>
    %397 = vector.broadcast %396 : vector<8x1xf32> to vector<8x40xf32>
    %398 = arith.mulf %393, %397 : vector<8x40xf32>
    %399 = arith.mulf %398, %6 : vector<8x40xf32>
    %400 = arith.addf %399, %9 : vector<8x40xf32>
    %cst_158 = arith.constant dense<0.000000e+00> : vector<8x32xf32>
    %401 = tpu.matmul %400, %15, %cst_158 {dimension_numbers = #tpu.dot_dimension_numbers<[1], [0], [0], [1], [0, 0, 1, 1], [], []>} : vector<8x40xf32>, vector<40x32xf32>, vector<8x32xf32> -> vector<8x32xf32>
    %402 = arith.addf %401, %12 : vector<8x32xf32>
    %c2_159 = arith.constant 2 : index
    %c0_160 = arith.constant 0 : index
    %c0_161 = arith.constant 0 : index
    %403 = vector.load %arg8[%c2_159, %c0_160, %c0_161] : memref<8x8x32xf32, #tpu.memory_space<vmem>>, vector<1x8x32xf32>
    %404 = vector.shape_cast %403 : vector<1x8x32xf32> to vector<8x32xf32>
    %405 = vector.shape_cast %402 : vector<8x32xf32> to vector<1x8x32xf32>
    tpu.vector_store %arg8[%c2_159, %c0_160, %c0_161], %405 {strides = array<i32>} : memref<8x8x32xf32, #tpu.memory_space<vmem>>, vector<1x8x32xf32>,
    %cst_162 = arith.constant dense<0xFF800000> : vector<8xf32>
    %406 = vector.multi_reduction <maximumf>, %402, %cst_162 [1] : vector<8x32xf32> to vector<8xf32>
    %407 = vector.shape_cast %406 : vector<8xf32> to vector<8x1xf32>
    %408 = vector.broadcast %407 : vector<8x1xf32> to vector<8x32xf32>
    %409 = arith.cmpf oeq, %402, %408 : vector<8x32xf32>
    %c32_i32_163 = arith.constant 32 : i32
    %410 = vector.broadcast %c32_i32_163 : i32 to vector<8x32xi32>
    %411 = arith.select %409, %0, %410 : vector<8x32xi1>, vector<8x32xi32>
    %cst_164 = arith.constant dense<2147483647> : vector<8xi32>
    %412 = vector.multi_reduction <minsi>, %411, %cst_164 [1] : vector<8x32xi32> to vector<8xi32>
    %413 = vector.shape_cast %412 : vector<8xi32> to vector<8x1xi32>
    %414 = vector.extract_strided_slice %3 {offsets = [0, 2], sizes = [8, 1], strides = [1, 1]} : vector<8x8xi1> to vector<8x1xi1>
    %415 = vector.extract_strided_slice %1 {offsets = [0, 2], sizes = [8, 1], strides = [1, 1]} : vector<8x8xi32> to vector<8x1xi32>
    %416 = arith.select %414, %413, %415 : vector<8x1xi1>, vector<8x1xi32>
    %417 = vector.broadcast %416 : vector<8x1xi32> to vector<8x32xi32>
    %418 = arith.cmpi eq, %0, %417 : vector<8x32xi32>
    %419 = arith.extui %418 : vector<8x32xi1> to vector<8x32xi32>
    %420 = arith.sitofp %419 : vector<8x32xi32> to vector<8x32xf32>
    %cst_165 = arith.constant dense<0.000000e+00> : vector<8x128xf32>
    %421 = tpu.matmul %420, %16, %cst_165 {dimension_numbers = #tpu.dot_dimension_numbers<[1], [0], [0], [1], [0, 0, 1, 1], [], []>} : vector<8x32xf32>, vector<32x128xf32>, vector<8x128xf32> -> vector<8x128xf32>
    %c2_166 = arith.constant 2 : index
    %c0_167 = arith.constant 0 : index
    %c0_168 = arith.constant 0 : index
    %422 = vector.load %arg9[%c2_166, %c0_167, %c0_168] : memref<8x8x128xf32, #tpu.memory_space<vmem>>, vector<1x8x128xf32>
    %423 = vector.shape_cast %422 : vector<1x8x128xf32> to vector<8x128xf32>
    %424 = vector.shape_cast %421 : vector<8x128xf32> to vector<1x8x128xf32>
    tpu.vector_store %arg9[%c2_166, %c0_167, %c0_168], %424 {strides = array<i32>} : memref<8x8x128xf32, #tpu.memory_space<vmem>>, vector<1x8x128xf32>,
    %c0_169 = arith.constant 0 : index
    %c0_170 = arith.constant 0 : index
    %c0_171 = arith.constant 0 : index
    %425 = vector.load %arg9[%c0_169, %c0_170, %c0_171] : memref<8x8x128xf32, #tpu.memory_space<vmem>>, vector<1x8x128xf32>
    %426 = vector.shape_cast %425 : vector<1x8x128xf32> to vector<8x128xf32>
    %427 = arith.truncf %376 : vector<8x32xf32> to vector<8x32xbf16>
    %cst_172 = arith.constant dense<0.000000e+00> : vector<8x128xf32>
    %428 = tpu.matmul %427, %20, %cst_172 {dimension_numbers = #tpu.dot_dimension_numbers<[1], [0], [0], [1], [0, 0, 1, 1], [], []>} : vector<8x32xbf16>, vector<32x128xbf16>, vector<8x128xf32> -> vector<8x128xf32>
    %429 = arith.addf %426, %428 : vector<8x128xf32>
    %430 = math.tanh %429 : vector<8x128xf32>
    %431 = vector.extract_strided_slice %430 {offsets = [0, 0], sizes = [8, 32], strides = [1, 1]} : vector<8x128xf32> to vector<8x32xf32>
    %cst_173 = arith.constant 5.000000e-01 : f32
    %432 = vector.broadcast %cst_173 : f32 to vector<8x32xf32>
    %433 = arith.mulf %431, %432 : vector<8x32xf32>
    %cst_174 = arith.constant 5.000000e-01 : f32
    %434 = vector.broadcast %cst_174 : f32 to vector<8x32xf32>
    %435 = arith.addf %433, %434 : vector<8x32xf32>
    %436 = vector.extract_strided_slice %430 {offsets = [0, 32], sizes = [8, 32], strides = [1, 1]} : vector<8x128xf32> to vector<8x32xf32>
    %cst_175 = arith.constant 5.000000e-01 : f32
    %437 = vector.broadcast %cst_175 : f32 to vector<8x32xf32>
    %438 = arith.mulf %436, %437 : vector<8x32xf32>
    %cst_176 = arith.constant 5.000000e-01 : f32
    %439 = vector.broadcast %cst_176 : f32 to vector<8x32xf32>
    %440 = arith.addf %438, %439 : vector<8x32xf32>
    %441 = vector.extract_strided_slice %430 {offsets = [0, 64], sizes = [8, 32], strides = [1, 1]} : vector<8x128xf32> to vector<8x32xf32>
    %442 = vector.extract_strided_slice %430 {offsets = [0, 96], sizes = [8, 32], strides = [1, 1]} : vector<8x128xf32> to vector<8x32xf32>
    %cst_177 = arith.constant 5.000000e-01 : f32
    %443 = vector.broadcast %cst_177 : f32 to vector<8x32xf32>
    %444 = arith.mulf %442, %443 : vector<8x32xf32>
    %cst_178 = arith.constant 5.000000e-01 : f32
    %445 = vector.broadcast %cst_178 : f32 to vector<8x32xf32>
    %446 = arith.addf %444, %445 : vector<8x32xf32>
    %447 = arith.mulf %440, %374 : vector<8x32xf32>
    %448 = arith.mulf %435, %441 : vector<8x32xf32>
    %449 = arith.addf %447, %448 : vector<8x32xf32>
    %450 = math.tanh %449 : vector<8x32xf32>
    %451 = arith.mulf %446, %450 : vector<8x32xf32>
    %c1_179 = arith.constant 1 : index
    %c0_180 = arith.constant 0 : index
    %c0_181 = arith.constant 0 : index
    %452 = vector.load %arg9[%c1_179, %c0_180, %c0_181] : memref<8x8x128xf32, #tpu.memory_space<vmem>>, vector<1x8x128xf32>
    %453 = vector.shape_cast %452 : vector<1x8x128xf32> to vector<8x128xf32>
    %454 = arith.truncf %451 : vector<8x32xf32> to vector<8x32xbf16>
    %cst_182 = arith.constant dense<0.000000e+00> : vector<8x128xf32>
    %455 = tpu.matmul %454, %20, %cst_182 {dimension_numbers = #tpu.dot_dimension_numbers<[1], [0], [0], [1], [0, 0, 1, 1], [], []>} : vector<8x32xbf16>, vector<32x128xbf16>, vector<8x128xf32> -> vector<8x128xf32>
    %456 = arith.addf %453, %455 : vector<8x128xf32>
    %457 = math.tanh %456 : vector<8x128xf32>
    %458 = vector.extract_strided_slice %457 {offsets = [0, 0], sizes = [8, 32], strides = [1, 1]} : vector<8x128xf32> to vector<8x32xf32>
    %cst_183 = arith.constant 5.000000e-01 : f32
    %459 = vector.broadcast %cst_183 : f32 to vector<8x32xf32>
    %460 = arith.mulf %458, %459 : vector<8x32xf32>
    %cst_184 = arith.constant 5.000000e-01 : f32
    %461 = vector.broadcast %cst_184 : f32 to vector<8x32xf32>
    %462 = arith.addf %460, %461 : vector<8x32xf32>
    %463 = vector.extract_strided_slice %457 {offsets = [0, 32], sizes = [8, 32], strides = [1, 1]} : vector<8x128xf32> to vector<8x32xf32>
    %cst_185 = arith.constant 5.000000e-01 : f32
    %464 = vector.broadcast %cst_185 : f32 to vector<8x32xf32>
    %465 = arith.mulf %463, %464 : vector<8x32xf32>
    %cst_186 = arith.constant 5.000000e-01 : f32
    %466 = vector.broadcast %cst_186 : f32 to vector<8x32xf32>
    %467 = arith.addf %465, %466 : vector<8x32xf32>
    %468 = vector.extract_strided_slice %457 {offsets = [0, 64], sizes = [8, 32], strides = [1, 1]} : vector<8x128xf32> to vector<8x32xf32>
    %469 = vector.extract_strided_slice %457 {offsets = [0, 96], sizes = [8, 32], strides = [1, 1]} : vector<8x128xf32> to vector<8x32xf32>
    %cst_187 = arith.constant 5.000000e-01 : f32
    %470 = vector.broadcast %cst_187 : f32 to vector<8x32xf32>
    %471 = arith.mulf %469, %470 : vector<8x32xf32>
    %cst_188 = arith.constant 5.000000e-01 : f32
    %472 = vector.broadcast %cst_188 : f32 to vector<8x32xf32>
    %473 = arith.addf %471, %472 : vector<8x32xf32>
    %474 = arith.mulf %467, %449 : vector<8x32xf32>
    %475 = arith.mulf %462, %468 : vector<8x32xf32>
    %476 = arith.addf %474, %475 : vector<8x32xf32>
    %477 = math.tanh %476 : vector<8x32xf32>
    %478 = arith.mulf %473, %477 : vector<8x32xf32>
    %c2_189 = arith.constant 2 : index
    %c0_190 = arith.constant 0 : index
    %c0_191 = arith.constant 0 : index
    %479 = vector.load %arg9[%c2_189, %c0_190, %c0_191] : memref<8x8x128xf32, #tpu.memory_space<vmem>>, vector<1x8x128xf32>
    %480 = vector.shape_cast %479 : vector<1x8x128xf32> to vector<8x128xf32>
    %481 = arith.truncf %478 : vector<8x32xf32> to vector<8x32xbf16>
    %cst_192 = arith.constant dense<0.000000e+00> : vector<8x128xf32>
    %482 = tpu.matmul %481, %20, %cst_192 {dimension_numbers = #tpu.dot_dimension_numbers<[1], [0], [0], [1], [0, 0, 1, 1], [], []>} : vector<8x32xbf16>, vector<32x128xbf16>, vector<8x128xf32> -> vector<8x128xf32>
    %483 = arith.addf %480, %482 : vector<8x128xf32>
    %484 = math.tanh %483 : vector<8x128xf32>
    %485 = vector.extract_strided_slice %484 {offsets = [0, 0], sizes = [8, 32], strides = [1, 1]} : vector<8x128xf32> to vector<8x32xf32>
    %cst_193 = arith.constant 5.000000e-01 : f32
    %486 = vector.broadcast %cst_193 : f32 to vector<8x32xf32>
    %487 = arith.mulf %485, %486 : vector<8x32xf32>
    %cst_194 = arith.constant 5.000000e-01 : f32
    %488 = vector.broadcast %cst_194 : f32 to vector<8x32xf32>
    %489 = arith.addf %487, %488 : vector<8x32xf32>
    %490 = vector.extract_strided_slice %484 {offsets = [0, 32], sizes = [8, 32], strides = [1, 1]} : vector<8x128xf32> to vector<8x32xf32>
    %cst_195 = arith.constant 5.000000e-01 : f32
    %491 = vector.broadcast %cst_195 : f32 to vector<8x32xf32>
    %492 = arith.mulf %490, %491 : vector<8x32xf32>
    %cst_196 = arith.constant 5.000000e-01 : f32
    %493 = vector.broadcast %cst_196 : f32 to vector<8x32xf32>
    %494 = arith.addf %492, %493 : vector<8x32xf32>
    %495 = vector.extract_strided_slice %484 {offsets = [0, 64], sizes = [8, 32], strides = [1, 1]} : vector<8x128xf32> to vector<8x32xf32>
    %496 = vector.extract_strided_slice %484 {offsets = [0, 96], sizes = [8, 32], strides = [1, 1]} : vector<8x128xf32> to vector<8x32xf32>
    %cst_197 = arith.constant 5.000000e-01 : f32
    %497 = vector.broadcast %cst_197 : f32 to vector<8x32xf32>
    %498 = arith.mulf %496, %497 : vector<8x32xf32>
    %cst_198 = arith.constant 5.000000e-01 : f32
    %499 = vector.broadcast %cst_198 : f32 to vector<8x32xf32>
    %500 = arith.addf %498, %499 : vector<8x32xf32>
    %501 = arith.mulf %494, %476 : vector<8x32xf32>
    %502 = arith.mulf %489, %495 : vector<8x32xf32>
    %503 = arith.addf %501, %502 : vector<8x32xf32>
    %504 = math.tanh %503 : vector<8x32xf32>
    %505 = arith.mulf %500, %504 : vector<8x32xf32>
    %cst_199 = arith.constant dense<0.000000e+00> : vector<8x40xf32>
    %506 = tpu.matmul %505, %14, %cst_199 {dimension_numbers = #tpu.dot_dimension_numbers<[1], [0], [0], [1], [0, 0, 1, 1], [], []>} : vector<8x32xf32>, vector<32x40xf32>, vector<8x40xf32> -> vector<8x40xf32>
    %507 = arith.addf %506, %13 : vector<8x40xf32>
    %cst_200 = arith.constant 0.000000e+00 : f32
    %508 = vector.broadcast %cst_200 : f32 to vector<8x40xf32>
    %509 = arith.maximumf %507, %508 : vector<8x40xf32>
    %cst_201 = arith.constant dense<0.000000e+00> : vector<8xf32>
    %510 = vector.multi_reduction <add>, %509, %cst_201 [1] : vector<8x40xf32> to vector<8xf32>
    %511 = vector.shape_cast %510 : vector<8xf32> to vector<8x1xf32>
    %cst_202 = arith.constant 4.000000e+01 : f32
    %512 = vector.broadcast %cst_202 : f32 to vector<8x1xf32>
    %513 = arith.divf %511, %512 : vector<8x1xf32>
    %514 = vector.broadcast %513 : vector<8x1xf32> to vector<8x40xf32>
    %515 = arith.subf %509, %514 : vector<8x40xf32>
    %516 = arith.mulf %515, %515 : vector<8x40xf32>
    %cst_203 = arith.constant dense<0.000000e+00> : vector<8xf32>
    %517 = vector.multi_reduction <add>, %516, %cst_203 [1] : vector<8x40xf32> to vector<8xf32>
    %518 = vector.shape_cast %517 : vector<8xf32> to vector<8x1xf32>
    %cst_204 = arith.constant 4.000000e+01 : f32
    %519 = vector.broadcast %cst_204 : f32 to vector<8x1xf32>
    %520 = arith.divf %518, %519 : vector<8x1xf32>
    %521 = vector.broadcast %513 : vector<8x1xf32> to vector<8x40xf32>
    %522 = arith.subf %509, %521 : vector<8x40xf32>
    %cst_205 = arith.constant 9.99999974E-6 : f32
    %523 = vector.broadcast %cst_205 : f32 to vector<8x1xf32>
    %524 = arith.addf %520, %523 : vector<8x1xf32>
    %525 = math.rsqrt %524 : vector<8x1xf32>
    %526 = vector.broadcast %525 : vector<8x1xf32> to vector<8x40xf32>
    %527 = arith.mulf %522, %526 : vector<8x40xf32>
    %528 = arith.mulf %527, %6 : vector<8x40xf32>
    %529 = arith.addf %528, %9 : vector<8x40xf32>
    %cst_206 = arith.constant dense<0.000000e+00> : vector<8x32xf32>
    %530 = tpu.matmul %529, %15, %cst_206 {dimension_numbers = #tpu.dot_dimension_numbers<[1], [0], [0], [1], [0, 0, 1, 1], [], []>} : vector<8x40xf32>, vector<40x32xf32>, vector<8x32xf32> -> vector<8x32xf32>
    %531 = arith.addf %530, %12 : vector<8x32xf32>
    %c3_207 = arith.constant 3 : index
    %c0_208 = arith.constant 0 : index
    %c0_209 = arith.constant 0 : index
    %532 = vector.load %arg8[%c3_207, %c0_208, %c0_209] : memref<8x8x32xf32, #tpu.memory_space<vmem>>, vector<1x8x32xf32>
    %533 = vector.shape_cast %532 : vector<1x8x32xf32> to vector<8x32xf32>
    %534 = vector.shape_cast %531 : vector<8x32xf32> to vector<1x8x32xf32>
    tpu.vector_store %arg8[%c3_207, %c0_208, %c0_209], %534 {strides = array<i32>} : memref<8x8x32xf32, #tpu.memory_space<vmem>>, vector<1x8x32xf32>,
    %cst_210 = arith.constant dense<0xFF800000> : vector<8xf32>
    %535 = vector.multi_reduction <maximumf>, %531, %cst_210 [1] : vector<8x32xf32> to vector<8xf32>
    %536 = vector.shape_cast %535 : vector<8xf32> to vector<8x1xf32>
    %537 = vector.broadcast %536 : vector<8x1xf32> to vector<8x32xf32>
    %538 = arith.cmpf oeq, %531, %537 : vector<8x32xf32>
    %c32_i32_211 = arith.constant 32 : i32
    %539 = vector.broadcast %c32_i32_211 : i32 to vector<8x32xi32>
    %540 = arith.select %538, %0, %539 : vector<8x32xi1>, vector<8x32xi32>
    %cst_212 = arith.constant dense<2147483647> : vector<8xi32>
    %541 = vector.multi_reduction <minsi>, %540, %cst_212 [1] : vector<8x32xi32> to vector<8xi32>
    %542 = vector.shape_cast %541 : vector<8xi32> to vector<8x1xi32>
    %543 = vector.extract_strided_slice %3 {offsets = [0, 3], sizes = [8, 1], strides = [1, 1]} : vector<8x8xi1> to vector<8x1xi1>
    %544 = vector.extract_strided_slice %1 {offsets = [0, 3], sizes = [8, 1], strides = [1, 1]} : vector<8x8xi32> to vector<8x1xi32>
    %545 = arith.select %543, %542, %544 : vector<8x1xi1>, vector<8x1xi32>
    %546 = vector.broadcast %545 : vector<8x1xi32> to vector<8x32xi32>
    %547 = arith.cmpi eq, %0, %546 : vector<8x32xi32>
    %548 = arith.extui %547 : vector<8x32xi1> to vector<8x32xi32>
    %549 = arith.sitofp %548 : vector<8x32xi32> to vector<8x32xf32>
    %cst_213 = arith.constant dense<0.000000e+00> : vector<8x128xf32>
    %550 = tpu.matmul %549, %16, %cst_213 {dimension_numbers = #tpu.dot_dimension_numbers<[1], [0], [0], [1], [0, 0, 1, 1], [], []>} : vector<8x32xf32>, vector<32x128xf32>, vector<8x128xf32> -> vector<8x128xf32>
    %c3_214 = arith.constant 3 : index
    %c0_215 = arith.constant 0 : index
    %c0_216 = arith.constant 0 : index
    %551 = vector.load %arg9[%c3_214, %c0_215, %c0_216] : memref<8x8x128xf32, #tpu.memory_space<vmem>>, vector<1x8x128xf32>
    %552 = vector.shape_cast %551 : vector<1x8x128xf32> to vector<8x128xf32>
    %553 = vector.shape_cast %550 : vector<8x128xf32> to vector<1x8x128xf32>
    tpu.vector_store %arg9[%c3_214, %c0_215, %c0_216], %553 {strides = array<i32>} : memref<8x8x128xf32, #tpu.memory_space<vmem>>, vector<1x8x128xf32>,
    %c0_217 = arith.constant 0 : index
    %c0_218 = arith.constant 0 : index
    %c0_219 = arith.constant 0 : index
    %554 = vector.load %arg9[%c0_217, %c0_218, %c0_219] : memref<8x8x128xf32, #tpu.memory_space<vmem>>, vector<1x8x128xf32>
    %555 = vector.shape_cast %554 : vector<1x8x128xf32> to vector<8x128xf32>
    %556 = arith.truncf %505 : vector<8x32xf32> to vector<8x32xbf16>
    %cst_220 = arith.constant dense<0.000000e+00> : vector<8x128xf32>
    %557 = tpu.matmul %556, %20, %cst_220 {dimension_numbers = #tpu.dot_dimension_numbers<[1], [0], [0], [1], [0, 0, 1, 1], [], []>} : vector<8x32xbf16>, vector<32x128xbf16>, vector<8x128xf32> -> vector<8x128xf32>
    %558 = arith.addf %555, %557 : vector<8x128xf32>
    %559 = math.tanh %558 : vector<8x128xf32>
    %560 = vector.extract_strided_slice %559 {offsets = [0, 0], sizes = [8, 32], strides = [1, 1]} : vector<8x128xf32> to vector<8x32xf32>
    %cst_221 = arith.constant 5.000000e-01 : f32
    %561 = vector.broadcast %cst_221 : f32 to vector<8x32xf32>
    %562 = arith.mulf %560, %561 : vector<8x32xf32>
    %cst_222 = arith.constant 5.000000e-01 : f32
    %563 = vector.broadcast %cst_222 : f32 to vector<8x32xf32>
    %564 = arith.addf %562, %563 : vector<8x32xf32>
    %565 = vector.extract_strided_slice %559 {offsets = [0, 32], sizes = [8, 32], strides = [1, 1]} : vector<8x128xf32> to vector<8x32xf32>
    %cst_223 = arith.constant 5.000000e-01 : f32
    %566 = vector.broadcast %cst_223 : f32 to vector<8x32xf32>
    %567 = arith.mulf %565, %566 : vector<8x32xf32>
    %cst_224 = arith.constant 5.000000e-01 : f32
    %568 = vector.broadcast %cst_224 : f32 to vector<8x32xf32>
    %569 = arith.addf %567, %568 : vector<8x32xf32>
    %570 = vector.extract_strided_slice %559 {offsets = [0, 64], sizes = [8, 32], strides = [1, 1]} : vector<8x128xf32> to vector<8x32xf32>
    %571 = vector.extract_strided_slice %559 {offsets = [0, 96], sizes = [8, 32], strides = [1, 1]} : vector<8x128xf32> to vector<8x32xf32>
    %cst_225 = arith.constant 5.000000e-01 : f32
    %572 = vector.broadcast %cst_225 : f32 to vector<8x32xf32>
    %573 = arith.mulf %571, %572 : vector<8x32xf32>
    %cst_226 = arith.constant 5.000000e-01 : f32
    %574 = vector.broadcast %cst_226 : f32 to vector<8x32xf32>
    %575 = arith.addf %573, %574 : vector<8x32xf32>
    %576 = arith.mulf %569, %503 : vector<8x32xf32>
    %577 = arith.mulf %564, %570 : vector<8x32xf32>
    %578 = arith.addf %576, %577 : vector<8x32xf32>
    %579 = math.tanh %578 : vector<8x32xf32>
    %580 = arith.mulf %575, %579 : vector<8x32xf32>
    %c1_227 = arith.constant 1 : index
    %c0_228 = arith.constant 0 : index
    %c0_229 = arith.constant 0 : index
    %581 = vector.load %arg9[%c1_227, %c0_228, %c0_229] : memref<8x8x128xf32, #tpu.memory_space<vmem>>, vector<1x8x128xf32>
    %582 = vector.shape_cast %581 : vector<1x8x128xf32> to vector<8x128xf32>
    %583 = arith.truncf %580 : vector<8x32xf32> to vector<8x32xbf16>
    %cst_230 = arith.constant dense<0.000000e+00> : vector<8x128xf32>
    %584 = tpu.matmul %583, %20, %cst_230 {dimension_numbers = #tpu.dot_dimension_numbers<[1], [0], [0], [1], [0, 0, 1, 1], [], []>} : vector<8x32xbf16>, vector<32x128xbf16>, vector<8x128xf32> -> vector<8x128xf32>
    %585 = arith.addf %582, %584 : vector<8x128xf32>
    %586 = math.tanh %585 : vector<8x128xf32>
    %587 = vector.extract_strided_slice %586 {offsets = [0, 0], sizes = [8, 32], strides = [1, 1]} : vector<8x128xf32> to vector<8x32xf32>
    %cst_231 = arith.constant 5.000000e-01 : f32
    %588 = vector.broadcast %cst_231 : f32 to vector<8x32xf32>
    %589 = arith.mulf %587, %588 : vector<8x32xf32>
    %cst_232 = arith.constant 5.000000e-01 : f32
    %590 = vector.broadcast %cst_232 : f32 to vector<8x32xf32>
    %591 = arith.addf %589, %590 : vector<8x32xf32>
    %592 = vector.extract_strided_slice %586 {offsets = [0, 32], sizes = [8, 32], strides = [1, 1]} : vector<8x128xf32> to vector<8x32xf32>
    %cst_233 = arith.constant 5.000000e-01 : f32
    %593 = vector.broadcast %cst_233 : f32 to vector<8x32xf32>
    %594 = arith.mulf %592, %593 : vector<8x32xf32>
    %cst_234 = arith.constant 5.000000e-01 : f32
    %595 = vector.broadcast %cst_234 : f32 to vector<8x32xf32>
    %596 = arith.addf %594, %595 : vector<8x32xf32>
    %597 = vector.extract_strided_slice %586 {offsets = [0, 64], sizes = [8, 32], strides = [1, 1]} : vector<8x128xf32> to vector<8x32xf32>
    %598 = vector.extract_strided_slice %586 {offsets = [0, 96], sizes = [8, 32], strides = [1, 1]} : vector<8x128xf32> to vector<8x32xf32>
    %cst_235 = arith.constant 5.000000e-01 : f32
    %599 = vector.broadcast %cst_235 : f32 to vector<8x32xf32>
    %600 = arith.mulf %598, %599 : vector<8x32xf32>
    %cst_236 = arith.constant 5.000000e-01 : f32
    %601 = vector.broadcast %cst_236 : f32 to vector<8x32xf32>
    %602 = arith.addf %600, %601 : vector<8x32xf32>
    %603 = arith.mulf %596, %578 : vector<8x32xf32>
    %604 = arith.mulf %591, %597 : vector<8x32xf32>
    %605 = arith.addf %603, %604 : vector<8x32xf32>
    %606 = math.tanh %605 : vector<8x32xf32>
    %607 = arith.mulf %602, %606 : vector<8x32xf32>
    %c2_237 = arith.constant 2 : index
    %c0_238 = arith.constant 0 : index
    %c0_239 = arith.constant 0 : index
    %608 = vector.load %arg9[%c2_237, %c0_238, %c0_239] : memref<8x8x128xf32, #tpu.memory_space<vmem>>, vector<1x8x128xf32>
    %609 = vector.shape_cast %608 : vector<1x8x128xf32> to vector<8x128xf32>
    %610 = arith.truncf %607 : vector<8x32xf32> to vector<8x32xbf16>
    %cst_240 = arith.constant dense<0.000000e+00> : vector<8x128xf32>
    %611 = tpu.matmul %610, %20, %cst_240 {dimension_numbers = #tpu.dot_dimension_numbers<[1], [0], [0], [1], [0, 0, 1, 1], [], []>} : vector<8x32xbf16>, vector<32x128xbf16>, vector<8x128xf32> -> vector<8x128xf32>
    %612 = arith.addf %609, %611 : vector<8x128xf32>
    %613 = math.tanh %612 : vector<8x128xf32>
    %614 = vector.extract_strided_slice %613 {offsets = [0, 0], sizes = [8, 32], strides = [1, 1]} : vector<8x128xf32> to vector<8x32xf32>
    %cst_241 = arith.constant 5.000000e-01 : f32
    %615 = vector.broadcast %cst_241 : f32 to vector<8x32xf32>
    %616 = arith.mulf %614, %615 : vector<8x32xf32>
    %cst_242 = arith.constant 5.000000e-01 : f32
    %617 = vector.broadcast %cst_242 : f32 to vector<8x32xf32>
    %618 = arith.addf %616, %617 : vector<8x32xf32>
    %619 = vector.extract_strided_slice %613 {offsets = [0, 32], sizes = [8, 32], strides = [1, 1]} : vector<8x128xf32> to vector<8x32xf32>
    %cst_243 = arith.constant 5.000000e-01 : f32
    %620 = vector.broadcast %cst_243 : f32 to vector<8x32xf32>
    %621 = arith.mulf %619, %620 : vector<8x32xf32>
    %cst_244 = arith.constant 5.000000e-01 : f32
    %622 = vector.broadcast %cst_244 : f32 to vector<8x32xf32>
    %623 = arith.addf %621, %622 : vector<8x32xf32>
    %624 = vector.extract_strided_slice %613 {offsets = [0, 64], sizes = [8, 32], strides = [1, 1]} : vector<8x128xf32> to vector<8x32xf32>
    %625 = vector.extract_strided_slice %613 {offsets = [0, 96], sizes = [8, 32], strides = [1, 1]} : vector<8x128xf32> to vector<8x32xf32>
    %cst_245 = arith.constant 5.000000e-01 : f32
    %626 = vector.broadcast %cst_245 : f32 to vector<8x32xf32>
    %627 = arith.mulf %625, %626 : vector<8x32xf32>
    %cst_246 = arith.constant 5.000000e-01 : f32
    %628 = vector.broadcast %cst_246 : f32 to vector<8x32xf32>
    %629 = arith.addf %627, %628 : vector<8x32xf32>
    %630 = arith.mulf %623, %605 : vector<8x32xf32>
    %631 = arith.mulf %618, %624 : vector<8x32xf32>
    %632 = arith.addf %630, %631 : vector<8x32xf32>
    %633 = math.tanh %632 : vector<8x32xf32>
    %634 = arith.mulf %629, %633 : vector<8x32xf32>
    %c3_247 = arith.constant 3 : index
    %c0_248 = arith.constant 0 : index
    %c0_249 = arith.constant 0 : index
    %635 = vector.load %arg9[%c3_247, %c0_248, %c0_249] : memref<8x8x128xf32, #tpu.memory_space<vmem>>, vector<1x8x128xf32>
    %636 = vector.shape_cast %635 : vector<1x8x128xf32> to vector<8x128xf32>
    %637 = arith.truncf %634 : vector<8x32xf32> to vector<8x32xbf16>
    %cst_250 = arith.constant dense<0.000000e+00> : vector<8x128xf32>
    %638 = tpu.matmul %637, %20, %cst_250 {dimension_numbers = #tpu.dot_dimension_numbers<[1], [0], [0], [1], [0, 0, 1, 1], [], []>} : vector<8x32xbf16>, vector<32x128xbf16>, vector<8x128xf32> -> vector<8x128xf32>
    %639 = arith.addf %636, %638 : vector<8x128xf32>
    %640 = math.tanh %639 : vector<8x128xf32>
    %641 = vector.extract_strided_slice %640 {offsets = [0, 0], sizes = [8, 32], strides = [1, 1]} : vector<8x128xf32> to vector<8x32xf32>
    %cst_251 = arith.constant 5.000000e-01 : f32
    %642 = vector.broadcast %cst_251 : f32 to vector<8x32xf32>
    %643 = arith.mulf %641, %642 : vector<8x32xf32>
    %cst_252 = arith.constant 5.000000e-01 : f32
    %644 = vector.broadcast %cst_252 : f32 to vector<8x32xf32>
    %645 = arith.addf %643, %644 : vector<8x32xf32>
    %646 = vector.extract_strided_slice %640 {offsets = [0, 32], sizes = [8, 32], strides = [1, 1]} : vector<8x128xf32> to vector<8x32xf32>
    %cst_253 = arith.constant 5.000000e-01 : f32
    %647 = vector.broadcast %cst_253 : f32 to vector<8x32xf32>
    %648 = arith.mulf %646, %647 : vector<8x32xf32>
    %cst_254 = arith.constant 5.000000e-01 : f32
    %649 = vector.broadcast %cst_254 : f32 to vector<8x32xf32>
    %650 = arith.addf %648, %649 : vector<8x32xf32>
    %651 = vector.extract_strided_slice %640 {offsets = [0, 64], sizes = [8, 32], strides = [1, 1]} : vector<8x128xf32> to vector<8x32xf32>
    %652 = vector.extract_strided_slice %640 {offsets = [0, 96], sizes = [8, 32], strides = [1, 1]} : vector<8x128xf32> to vector<8x32xf32>
    %cst_255 = arith.constant 5.000000e-01 : f32
    %653 = vector.broadcast %cst_255 : f32 to vector<8x32xf32>
    %654 = arith.mulf %652, %653 : vector<8x32xf32>
    %cst_256 = arith.constant 5.000000e-01 : f32
    %655 = vector.broadcast %cst_256 : f32 to vector<8x32xf32>
    %656 = arith.addf %654, %655 : vector<8x32xf32>
    %657 = arith.mulf %650, %632 : vector<8x32xf32>
    %658 = arith.mulf %645, %651 : vector<8x32xf32>
    %659 = arith.addf %657, %658 : vector<8x32xf32>
    %660 = math.tanh %659 : vector<8x32xf32>
    %661 = arith.mulf %656, %660 : vector<8x32xf32>
    %cst_257 = arith.constant dense<0.000000e+00> : vector<8x40xf32>
    %662 = tpu.matmul %661, %14, %cst_257 {dimension_numbers = #tpu.dot_dimension_numbers<[1], [0], [0], [1], [0, 0, 1, 1], [], []>} : vector<8x32xf32>, vector<32x40xf32>, vector<8x40xf32> -> vector<8x40xf32>
    %663 = arith.addf %662, %13 : vector<8x40xf32>
    %cst_258 = arith.constant 0.000000e+00 : f32
    %664 = vector.broadcast %cst_258 : f32 to vector<8x40xf32>
    %665 = arith.maximumf %663, %664 : vector<8x40xf32>
    %cst_259 = arith.constant dense<0.000000e+00> : vector<8xf32>
    %666 = vector.multi_reduction <add>, %665, %cst_259 [1] : vector<8x40xf32> to vector<8xf32>
    %667 = vector.shape_cast %666 : vector<8xf32> to vector<8x1xf32>
    %cst_260 = arith.constant 4.000000e+01 : f32
    %668 = vector.broadcast %cst_260 : f32 to vector<8x1xf32>
    %669 = arith.divf %667, %668 : vector<8x1xf32>
    %670 = vector.broadcast %669 : vector<8x1xf32> to vector<8x40xf32>
    %671 = arith.subf %665, %670 : vector<8x40xf32>
    %672 = arith.mulf %671, %671 : vector<8x40xf32>
    %cst_261 = arith.constant dense<0.000000e+00> : vector<8xf32>
    %673 = vector.multi_reduction <add>, %672, %cst_261 [1] : vector<8x40xf32> to vector<8xf32>
    %674 = vector.shape_cast %673 : vector<8xf32> to vector<8x1xf32>
    %cst_262 = arith.constant 4.000000e+01 : f32
    %675 = vector.broadcast %cst_262 : f32 to vector<8x1xf32>
    %676 = arith.divf %674, %675 : vector<8x1xf32>
    %677 = vector.broadcast %669 : vector<8x1xf32> to vector<8x40xf32>
    %678 = arith.subf %665, %677 : vector<8x40xf32>
    %cst_263 = arith.constant 9.99999974E-6 : f32
    %679 = vector.broadcast %cst_263 : f32 to vector<8x1xf32>
    %680 = arith.addf %676, %679 : vector<8x1xf32>
    %681 = math.rsqrt %680 : vector<8x1xf32>
    %682 = vector.broadcast %681 : vector<8x1xf32> to vector<8x40xf32>
    %683 = arith.mulf %678, %682 : vector<8x40xf32>
    %684 = arith.mulf %683, %6 : vector<8x40xf32>
    %685 = arith.addf %684, %9 : vector<8x40xf32>
    %cst_264 = arith.constant dense<0.000000e+00> : vector<8x32xf32>
    %686 = tpu.matmul %685, %15, %cst_264 {dimension_numbers = #tpu.dot_dimension_numbers<[1], [0], [0], [1], [0, 0, 1, 1], [], []>} : vector<8x40xf32>, vector<40x32xf32>, vector<8x32xf32> -> vector<8x32xf32>
    %687 = arith.addf %686, %12 : vector<8x32xf32>
    %c4_265 = arith.constant 4 : index
    %c0_266 = arith.constant 0 : index
    %c0_267 = arith.constant 0 : index
    %688 = vector.load %arg8[%c4_265, %c0_266, %c0_267] : memref<8x8x32xf32, #tpu.memory_space<vmem>>, vector<1x8x32xf32>
    %689 = vector.shape_cast %688 : vector<1x8x32xf32> to vector<8x32xf32>
    %690 = vector.shape_cast %687 : vector<8x32xf32> to vector<1x8x32xf32>
    tpu.vector_store %arg8[%c4_265, %c0_266, %c0_267], %690 {strides = array<i32>} : memref<8x8x32xf32, #tpu.memory_space<vmem>>, vector<1x8x32xf32>,
    %cst_268 = arith.constant dense<0xFF800000> : vector<8xf32>
    %691 = vector.multi_reduction <maximumf>, %687, %cst_268 [1] : vector<8x32xf32> to vector<8xf32>
    %692 = vector.shape_cast %691 : vector<8xf32> to vector<8x1xf32>
    %693 = vector.broadcast %692 : vector<8x1xf32> to vector<8x32xf32>
    %694 = arith.cmpf oeq, %687, %693 : vector<8x32xf32>
    %c32_i32_269 = arith.constant 32 : i32
    %695 = vector.broadcast %c32_i32_269 : i32 to vector<8x32xi32>
    %696 = arith.select %694, %0, %695 : vector<8x32xi1>, vector<8x32xi32>
    %cst_270 = arith.constant dense<2147483647> : vector<8xi32>
    %697 = vector.multi_reduction <minsi>, %696, %cst_270 [1] : vector<8x32xi32> to vector<8xi32>
    %698 = vector.shape_cast %697 : vector<8xi32> to vector<8x1xi32>
    %699 = vector.extract_strided_slice %3 {offsets = [0, 4], sizes = [8, 1], strides = [1, 1]} : vector<8x8xi1> to vector<8x1xi1>
    %700 = vector.extract_strided_slice %1 {offsets = [0, 4], sizes = [8, 1], strides = [1, 1]} : vector<8x8xi32> to vector<8x1xi32>
    %701 = arith.select %699, %698, %700 : vector<8x1xi1>, vector<8x1xi32>
    %702 = vector.broadcast %701 : vector<8x1xi32> to vector<8x32xi32>
    %703 = arith.cmpi eq, %0, %702 : vector<8x32xi32>
    %704 = arith.extui %703 : vector<8x32xi1> to vector<8x32xi32>
    %705 = arith.sitofp %704 : vector<8x32xi32> to vector<8x32xf32>
    %cst_271 = arith.constant dense<0.000000e+00> : vector<8x128xf32>
    %706 = tpu.matmul %705, %16, %cst_271 {dimension_numbers = #tpu.dot_dimension_numbers<[1], [0], [0], [1], [0, 0, 1, 1], [], []>} : vector<8x32xf32>, vector<32x128xf32>, vector<8x128xf32> -> vector<8x128xf32>
    %c4_272 = arith.constant 4 : index
    %c0_273 = arith.constant 0 : index
    %c0_274 = arith.constant 0 : index
    %707 = vector.load %arg9[%c4_272, %c0_273, %c0_274] : memref<8x8x128xf32, #tpu.memory_space<vmem>>, vector<1x8x128xf32>
    %708 = vector.shape_cast %707 : vector<1x8x128xf32> to vector<8x128xf32>
    %709 = vector.shape_cast %706 : vector<8x128xf32> to vector<1x8x128xf32>
    tpu.vector_store %arg9[%c4_272, %c0_273, %c0_274], %709 {strides = array<i32>} : memref<8x8x128xf32, #tpu.memory_space<vmem>>, vector<1x8x128xf32>,
    %c0_275 = arith.constant 0 : index
    %c0_276 = arith.constant 0 : index
    %c0_277 = arith.constant 0 : index
    %710 = vector.load %arg9[%c0_275, %c0_276, %c0_277] : memref<8x8x128xf32, #tpu.memory_space<vmem>>, vector<1x8x128xf32>
    %711 = vector.shape_cast %710 : vector<1x8x128xf32> to vector<8x128xf32>
    %712 = arith.truncf %661 : vector<8x32xf32> to vector<8x32xbf16>
    %cst_278 = arith.constant dense<0.000000e+00> : vector<8x128xf32>
    %713 = tpu.matmul %712, %20, %cst_278 {dimension_numbers = #tpu.dot_dimension_numbers<[1], [0], [0], [1], [0, 0, 1, 1], [], []>} : vector<8x32xbf16>, vector<32x128xbf16>, vector<8x128xf32> -> vector<8x128xf32>
    %714 = arith.addf %711, %713 : vector<8x128xf32>
    %715 = math.tanh %714 : vector<8x128xf32>
    %716 = vector.extract_strided_slice %715 {offsets = [0, 0], sizes = [8, 32], strides = [1, 1]} : vector<8x128xf32> to vector<8x32xf32>
    %cst_279 = arith.constant 5.000000e-01 : f32
    %717 = vector.broadcast %cst_279 : f32 to vector<8x32xf32>
    %718 = arith.mulf %716, %717 : vector<8x32xf32>
    %cst_280 = arith.constant 5.000000e-01 : f32
    %719 = vector.broadcast %cst_280 : f32 to vector<8x32xf32>
    %720 = arith.addf %718, %719 : vector<8x32xf32>
    %721 = vector.extract_strided_slice %715 {offsets = [0, 32], sizes = [8, 32], strides = [1, 1]} : vector<8x128xf32> to vector<8x32xf32>
    %cst_281 = arith.constant 5.000000e-01 : f32
    %722 = vector.broadcast %cst_281 : f32 to vector<8x32xf32>
    %723 = arith.mulf %721, %722 : vector<8x32xf32>
    %cst_282 = arith.constant 5.000000e-01 : f32
    %724 = vector.broadcast %cst_282 : f32 to vector<8x32xf32>
    %725 = arith.addf %723, %724 : vector<8x32xf32>
    %726 = vector.extract_strided_slice %715 {offsets = [0, 64], sizes = [8, 32], strides = [1, 1]} : vector<8x128xf32> to vector<8x32xf32>
    %727 = vector.extract_strided_slice %715 {offsets = [0, 96], sizes = [8, 32], strides = [1, 1]} : vector<8x128xf32> to vector<8x32xf32>
    %cst_283 = arith.constant 5.000000e-01 : f32
    %728 = vector.broadcast %cst_283 : f32 to vector<8x32xf32>
    %729 = arith.mulf %727, %728 : vector<8x32xf32>
    %cst_284 = arith.constant 5.000000e-01 : f32
    %730 = vector.broadcast %cst_284 : f32 to vector<8x32xf32>
    %731 = arith.addf %729, %730 : vector<8x32xf32>
    %732 = arith.mulf %725, %659 : vector<8x32xf32>
    %733 = arith.mulf %720, %726 : vector<8x32xf32>
    %734 = arith.addf %732, %733 : vector<8x32xf32>
    %735 = math.tanh %734 : vector<8x32xf32>
    %736 = arith.mulf %731, %735 : vector<8x32xf32>
    %c1_285 = arith.constant 1 : index
    %c0_286 = arith.constant 0 : index
    %c0_287 = arith.constant 0 : index
    %737 = vector.load %arg9[%c1_285, %c0_286, %c0_287] : memref<8x8x128xf32, #tpu.memory_space<vmem>>, vector<1x8x128xf32>
    %738 = vector.shape_cast %737 : vector<1x8x128xf32> to vector<8x128xf32>
    %739 = arith.truncf %736 : vector<8x32xf32> to vector<8x32xbf16>
    %cst_288 = arith.constant dense<0.000000e+00> : vector<8x128xf32>
    %740 = tpu.matmul %739, %20, %cst_288 {dimension_numbers = #tpu.dot_dimension_numbers<[1], [0], [0], [1], [0, 0, 1, 1], [], []>} : vector<8x32xbf16>, vector<32x128xbf16>, vector<8x128xf32> -> vector<8x128xf32>
    %741 = arith.addf %738, %740 : vector<8x128xf32>
    %742 = math.tanh %741 : vector<8x128xf32>
    %743 = vector.extract_strided_slice %742 {offsets = [0, 0], sizes = [8, 32], strides = [1, 1]} : vector<8x128xf32> to vector<8x32xf32>
    %cst_289 = arith.constant 5.000000e-01 : f32
    %744 = vector.broadcast %cst_289 : f32 to vector<8x32xf32>
    %745 = arith.mulf %743, %744 : vector<8x32xf32>
    %cst_290 = arith.constant 5.000000e-01 : f32
    %746 = vector.broadcast %cst_290 : f32 to vector<8x32xf32>
    %747 = arith.addf %745, %746 : vector<8x32xf32>
    %748 = vector.extract_strided_slice %742 {offsets = [0, 32], sizes = [8, 32], strides = [1, 1]} : vector<8x128xf32> to vector<8x32xf32>
    %cst_291 = arith.constant 5.000000e-01 : f32
    %749 = vector.broadcast %cst_291 : f32 to vector<8x32xf32>
    %750 = arith.mulf %748, %749 : vector<8x32xf32>
    %cst_292 = arith.constant 5.000000e-01 : f32
    %751 = vector.broadcast %cst_292 : f32 to vector<8x32xf32>
    %752 = arith.addf %750, %751 : vector<8x32xf32>
    %753 = vector.extract_strided_slice %742 {offsets = [0, 64], sizes = [8, 32], strides = [1, 1]} : vector<8x128xf32> to vector<8x32xf32>
    %754 = vector.extract_strided_slice %742 {offsets = [0, 96], sizes = [8, 32], strides = [1, 1]} : vector<8x128xf32> to vector<8x32xf32>
    %cst_293 = arith.constant 5.000000e-01 : f32
    %755 = vector.broadcast %cst_293 : f32 to vector<8x32xf32>
    %756 = arith.mulf %754, %755 : vector<8x32xf32>
    %cst_294 = arith.constant 5.000000e-01 : f32
    %757 = vector.broadcast %cst_294 : f32 to vector<8x32xf32>
    %758 = arith.addf %756, %757 : vector<8x32xf32>
    %759 = arith.mulf %752, %734 : vector<8x32xf32>
    %760 = arith.mulf %747, %753 : vector<8x32xf32>
    %761 = arith.addf %759, %760 : vector<8x32xf32>
    %762 = math.tanh %761 : vector<8x32xf32>
    %763 = arith.mulf %758, %762 : vector<8x32xf32>
    %c2_295 = arith.constant 2 : index
    %c0_296 = arith.constant 0 : index
    %c0_297 = arith.constant 0 : index
    %764 = vector.load %arg9[%c2_295, %c0_296, %c0_297] : memref<8x8x128xf32, #tpu.memory_space<vmem>>, vector<1x8x128xf32>
    %765 = vector.shape_cast %764 : vector<1x8x128xf32> to vector<8x128xf32>
    %766 = arith.truncf %763 : vector<8x32xf32> to vector<8x32xbf16>
    %cst_298 = arith.constant dense<0.000000e+00> : vector<8x128xf32>
    %767 = tpu.matmul %766, %20, %cst_298 {dimension_numbers = #tpu.dot_dimension_numbers<[1], [0], [0], [1], [0, 0, 1, 1], [], []>} : vector<8x32xbf16>, vector<32x128xbf16>, vector<8x128xf32> -> vector<8x128xf32>
    %768 = arith.addf %765, %767 : vector<8x128xf32>
    %769 = math.tanh %768 : vector<8x128xf32>
    %770 = vector.extract_strided_slice %769 {offsets = [0, 0], sizes = [8, 32], strides = [1, 1]} : vector<8x128xf32> to vector<8x32xf32>
    %cst_299 = arith.constant 5.000000e-01 : f32
    %771 = vector.broadcast %cst_299 : f32 to vector<8x32xf32>
    %772 = arith.mulf %770, %771 : vector<8x32xf32>
    %cst_300 = arith.constant 5.000000e-01 : f32
    %773 = vector.broadcast %cst_300 : f32 to vector<8x32xf32>
    %774 = arith.addf %772, %773 : vector<8x32xf32>
    %775 = vector.extract_strided_slice %769 {offsets = [0, 32], sizes = [8, 32], strides = [1, 1]} : vector<8x128xf32> to vector<8x32xf32>
    %cst_301 = arith.constant 5.000000e-01 : f32
    %776 = vector.broadcast %cst_301 : f32 to vector<8x32xf32>
    %777 = arith.mulf %775, %776 : vector<8x32xf32>
    %cst_302 = arith.constant 5.000000e-01 : f32
    %778 = vector.broadcast %cst_302 : f32 to vector<8x32xf32>
    %779 = arith.addf %777, %778 : vector<8x32xf32>
    %780 = vector.extract_strided_slice %769 {offsets = [0, 64], sizes = [8, 32], strides = [1, 1]} : vector<8x128xf32> to vector<8x32xf32>
    %781 = vector.extract_strided_slice %769 {offsets = [0, 96], sizes = [8, 32], strides = [1, 1]} : vector<8x128xf32> to vector<8x32xf32>
    %cst_303 = arith.constant 5.000000e-01 : f32
    %782 = vector.broadcast %cst_303 : f32 to vector<8x32xf32>
    %783 = arith.mulf %781, %782 : vector<8x32xf32>
    %cst_304 = arith.constant 5.000000e-01 : f32
    %784 = vector.broadcast %cst_304 : f32 to vector<8x32xf32>
    %785 = arith.addf %783, %784 : vector<8x32xf32>
    %786 = arith.mulf %779, %761 : vector<8x32xf32>
    %787 = arith.mulf %774, %780 : vector<8x32xf32>
    %788 = arith.addf %786, %787 : vector<8x32xf32>
    %789 = math.tanh %788 : vector<8x32xf32>
    %790 = arith.mulf %785, %789 : vector<8x32xf32>
    %c3_305 = arith.constant 3 : index
    %c0_306 = arith.constant 0 : index
    %c0_307 = arith.constant 0 : index
    %791 = vector.load %arg9[%c3_305, %c0_306, %c0_307] : memref<8x8x128xf32, #tpu.memory_space<vmem>>, vector<1x8x128xf32>
    %792 = vector.shape_cast %791 : vector<1x8x128xf32> to vector<8x128xf32>
    %793 = arith.truncf %790 : vector<8x32xf32> to vector<8x32xbf16>
    %cst_308 = arith.constant dense<0.000000e+00> : vector<8x128xf32>
    %794 = tpu.matmul %793, %20, %cst_308 {dimension_numbers = #tpu.dot_dimension_numbers<[1], [0], [0], [1], [0, 0, 1, 1], [], []>} : vector<8x32xbf16>, vector<32x128xbf16>, vector<8x128xf32> -> vector<8x128xf32>
    %795 = arith.addf %792, %794 : vector<8x128xf32>
    %796 = math.tanh %795 : vector<8x128xf32>
    %797 = vector.extract_strided_slice %796 {offsets = [0, 0], sizes = [8, 32], strides = [1, 1]} : vector<8x128xf32> to vector<8x32xf32>
    %cst_309 = arith.constant 5.000000e-01 : f32
    %798 = vector.broadcast %cst_309 : f32 to vector<8x32xf32>
    %799 = arith.mulf %797, %798 : vector<8x32xf32>
    %cst_310 = arith.constant 5.000000e-01 : f32
    %800 = vector.broadcast %cst_310 : f32 to vector<8x32xf32>
    %801 = arith.addf %799, %800 : vector<8x32xf32>
    %802 = vector.extract_strided_slice %796 {offsets = [0, 32], sizes = [8, 32], strides = [1, 1]} : vector<8x128xf32> to vector<8x32xf32>
    %cst_311 = arith.constant 5.000000e-01 : f32
    %803 = vector.broadcast %cst_311 : f32 to vector<8x32xf32>
    %804 = arith.mulf %802, %803 : vector<8x32xf32>
    %cst_312 = arith.constant 5.000000e-01 : f32
    %805 = vector.broadcast %cst_312 : f32 to vector<8x32xf32>
    %806 = arith.addf %804, %805 : vector<8x32xf32>
    %807 = vector.extract_strided_slice %796 {offsets = [0, 64], sizes = [8, 32], strides = [1, 1]} : vector<8x128xf32> to vector<8x32xf32>
    %808 = vector.extract_strided_slice %796 {offsets = [0, 96], sizes = [8, 32], strides = [1, 1]} : vector<8x128xf32> to vector<8x32xf32>
    %cst_313 = arith.constant 5.000000e-01 : f32
    %809 = vector.broadcast %cst_313 : f32 to vector<8x32xf32>
    %810 = arith.mulf %808, %809 : vector<8x32xf32>
    %cst_314 = arith.constant 5.000000e-01 : f32
    %811 = vector.broadcast %cst_314 : f32 to vector<8x32xf32>
    %812 = arith.addf %810, %811 : vector<8x32xf32>
    %813 = arith.mulf %806, %788 : vector<8x32xf32>
    %814 = arith.mulf %801, %807 : vector<8x32xf32>
    %815 = arith.addf %813, %814 : vector<8x32xf32>
    %816 = math.tanh %815 : vector<8x32xf32>
    %817 = arith.mulf %812, %816 : vector<8x32xf32>
    %c4_315 = arith.constant 4 : index
    %c0_316 = arith.constant 0 : index
    %c0_317 = arith.constant 0 : index
    %818 = vector.load %arg9[%c4_315, %c0_316, %c0_317] : memref<8x8x128xf32, #tpu.memory_space<vmem>>, vector<1x8x128xf32>
    %819 = vector.shape_cast %818 : vector<1x8x128xf32> to vector<8x128xf32>
    %820 = arith.truncf %817 : vector<8x32xf32> to vector<8x32xbf16>
    %cst_318 = arith.constant dense<0.000000e+00> : vector<8x128xf32>
    %821 = tpu.matmul %820, %20, %cst_318 {dimension_numbers = #tpu.dot_dimension_numbers<[1], [0], [0], [1], [0, 0, 1, 1], [], []>} : vector<8x32xbf16>, vector<32x128xbf16>, vector<8x128xf32> -> vector<8x128xf32>
    %822 = arith.addf %819, %821 : vector<8x128xf32>
    %823 = math.tanh %822 : vector<8x128xf32>
    %824 = vector.extract_strided_slice %823 {offsets = [0, 0], sizes = [8, 32], strides = [1, 1]} : vector<8x128xf32> to vector<8x32xf32>
    %cst_319 = arith.constant 5.000000e-01 : f32
    %825 = vector.broadcast %cst_319 : f32 to vector<8x32xf32>
    %826 = arith.mulf %824, %825 : vector<8x32xf32>
    %cst_320 = arith.constant 5.000000e-01 : f32
    %827 = vector.broadcast %cst_320 : f32 to vector<8x32xf32>
    %828 = arith.addf %826, %827 : vector<8x32xf32>
    %829 = vector.extract_strided_slice %823 {offsets = [0, 32], sizes = [8, 32], strides = [1, 1]} : vector<8x128xf32> to vector<8x32xf32>
    %cst_321 = arith.constant 5.000000e-01 : f32
    %830 = vector.broadcast %cst_321 : f32 to vector<8x32xf32>
    %831 = arith.mulf %829, %830 : vector<8x32xf32>
    %cst_322 = arith.constant 5.000000e-01 : f32
    %832 = vector.broadcast %cst_322 : f32 to vector<8x32xf32>
    %833 = arith.addf %831, %832 : vector<8x32xf32>
    %834 = vector.extract_strided_slice %823 {offsets = [0, 64], sizes = [8, 32], strides = [1, 1]} : vector<8x128xf32> to vector<8x32xf32>
    %835 = vector.extract_strided_slice %823 {offsets = [0, 96], sizes = [8, 32], strides = [1, 1]} : vector<8x128xf32> to vector<8x32xf32>
    %cst_323 = arith.constant 5.000000e-01 : f32
    %836 = vector.broadcast %cst_323 : f32 to vector<8x32xf32>
    %837 = arith.mulf %835, %836 : vector<8x32xf32>
    %cst_324 = arith.constant 5.000000e-01 : f32
    %838 = vector.broadcast %cst_324 : f32 to vector<8x32xf32>
    %839 = arith.addf %837, %838 : vector<8x32xf32>
    %840 = arith.mulf %833, %815 : vector<8x32xf32>
    %841 = arith.mulf %828, %834 : vector<8x32xf32>
    %842 = arith.addf %840, %841 : vector<8x32xf32>
    %843 = math.tanh %842 : vector<8x32xf32>
    %844 = arith.mulf %839, %843 : vector<8x32xf32>
    %cst_325 = arith.constant dense<0.000000e+00> : vector<8x40xf32>
    %845 = tpu.matmul %844, %14, %cst_325 {dimension_numbers = #tpu.dot_dimension_numbers<[1], [0], [0], [1], [0, 0, 1, 1], [], []>} : vector<8x32xf32>, vector<32x40xf32>, vector<8x40xf32> -> vector<8x40xf32>
    %846 = arith.addf %845, %13 : vector<8x40xf32>
    %cst_326 = arith.constant 0.000000e+00 : f32
    %847 = vector.broadcast %cst_326 : f32 to vector<8x40xf32>
    %848 = arith.maximumf %846, %847 : vector<8x40xf32>
    %cst_327 = arith.constant dense<0.000000e+00> : vector<8xf32>
    %849 = vector.multi_reduction <add>, %848, %cst_327 [1] : vector<8x40xf32> to vector<8xf32>
    %850 = vector.shape_cast %849 : vector<8xf32> to vector<8x1xf32>
    %cst_328 = arith.constant 4.000000e+01 : f32
    %851 = vector.broadcast %cst_328 : f32 to vector<8x1xf32>
    %852 = arith.divf %850, %851 : vector<8x1xf32>
    %853 = vector.broadcast %852 : vector<8x1xf32> to vector<8x40xf32>
    %854 = arith.subf %848, %853 : vector<8x40xf32>
    %855 = arith.mulf %854, %854 : vector<8x40xf32>
    %cst_329 = arith.constant dense<0.000000e+00> : vector<8xf32>
    %856 = vector.multi_reduction <add>, %855, %cst_329 [1] : vector<8x40xf32> to vector<8xf32>
    %857 = vector.shape_cast %856 : vector<8xf32> to vector<8x1xf32>
    %cst_330 = arith.constant 4.000000e+01 : f32
    %858 = vector.broadcast %cst_330 : f32 to vector<8x1xf32>
    %859 = arith.divf %857, %858 : vector<8x1xf32>
    %860 = vector.broadcast %852 : vector<8x1xf32> to vector<8x40xf32>
    %861 = arith.subf %848, %860 : vector<8x40xf32>
    %cst_331 = arith.constant 9.99999974E-6 : f32
    %862 = vector.broadcast %cst_331 : f32 to vector<8x1xf32>
    %863 = arith.addf %859, %862 : vector<8x1xf32>
    %864 = math.rsqrt %863 : vector<8x1xf32>
    %865 = vector.broadcast %864 : vector<8x1xf32> to vector<8x40xf32>
    %866 = arith.mulf %861, %865 : vector<8x40xf32>
    %867 = arith.mulf %866, %6 : vector<8x40xf32>
    %868 = arith.addf %867, %9 : vector<8x40xf32>
    %cst_332 = arith.constant dense<0.000000e+00> : vector<8x32xf32>
    %869 = tpu.matmul %868, %15, %cst_332 {dimension_numbers = #tpu.dot_dimension_numbers<[1], [0], [0], [1], [0, 0, 1, 1], [], []>} : vector<8x40xf32>, vector<40x32xf32>, vector<8x32xf32> -> vector<8x32xf32>
    %870 = arith.addf %869, %12 : vector<8x32xf32>
    %c5_333 = arith.constant 5 : index
    %c0_334 = arith.constant 0 : index
    %c0_335 = arith.constant 0 : index
    %871 = vector.load %arg8[%c5_333, %c0_334, %c0_335] : memref<8x8x32xf32, #tpu.memory_space<vmem>>, vector<1x8x32xf32>
    %872 = vector.shape_cast %871 : vector<1x8x32xf32> to vector<8x32xf32>
    %873 = vector.shape_cast %870 : vector<8x32xf32> to vector<1x8x32xf32>
    tpu.vector_store %arg8[%c5_333, %c0_334, %c0_335], %873 {strides = array<i32>} : memref<8x8x32xf32, #tpu.memory_space<vmem>>, vector<1x8x32xf32>,
    %cst_336 = arith.constant dense<0xFF800000> : vector<8xf32>
    %874 = vector.multi_reduction <maximumf>, %870, %cst_336 [1] : vector<8x32xf32> to vector<8xf32>
    %875 = vector.shape_cast %874 : vector<8xf32> to vector<8x1xf32>
    %876 = vector.broadcast %875 : vector<8x1xf32> to vector<8x32xf32>
    %877 = arith.cmpf oeq, %870, %876 : vector<8x32xf32>
    %c32_i32_337 = arith.constant 32 : i32
    %878 = vector.broadcast %c32_i32_337 : i32 to vector<8x32xi32>
    %879 = arith.select %877, %0, %878 : vector<8x32xi1>, vector<8x32xi32>
    %cst_338 = arith.constant dense<2147483647> : vector<8xi32>
    %880 = vector.multi_reduction <minsi>, %879, %cst_338 [1] : vector<8x32xi32> to vector<8xi32>
    %881 = vector.shape_cast %880 : vector<8xi32> to vector<8x1xi32>
    %882 = vector.extract_strided_slice %3 {offsets = [0, 5], sizes = [8, 1], strides = [1, 1]} : vector<8x8xi1> to vector<8x1xi1>
    %883 = vector.extract_strided_slice %1 {offsets = [0, 5], sizes = [8, 1], strides = [1, 1]} : vector<8x8xi32> to vector<8x1xi32>
    %884 = arith.select %882, %881, %883 : vector<8x1xi1>, vector<8x1xi32>
    %885 = vector.broadcast %884 : vector<8x1xi32> to vector<8x32xi32>
    %886 = arith.cmpi eq, %0, %885 : vector<8x32xi32>
    %887 = arith.extui %886 : vector<8x32xi1> to vector<8x32xi32>
    %888 = arith.sitofp %887 : vector<8x32xi32> to vector<8x32xf32>
    %cst_339 = arith.constant dense<0.000000e+00> : vector<8x128xf32>
    %889 = tpu.matmul %888, %16, %cst_339 {dimension_numbers = #tpu.dot_dimension_numbers<[1], [0], [0], [1], [0, 0, 1, 1], [], []>} : vector<8x32xf32>, vector<32x128xf32>, vector<8x128xf32> -> vector<8x128xf32>
    %c5_340 = arith.constant 5 : index
    %c0_341 = arith.constant 0 : index
    %c0_342 = arith.constant 0 : index
    %890 = vector.load %arg9[%c5_340, %c0_341, %c0_342] : memref<8x8x128xf32, #tpu.memory_space<vmem>>, vector<1x8x128xf32>
    %891 = vector.shape_cast %890 : vector<1x8x128xf32> to vector<8x128xf32>
    %892 = vector.shape_cast %889 : vector<8x128xf32> to vector<1x8x128xf32>
    tpu.vector_store %arg9[%c5_340, %c0_341, %c0_342], %892 {strides = array<i32>} : memref<8x8x128xf32, #tpu.memory_space<vmem>>, vector<1x8x128xf32>,
    %c0_343 = arith.constant 0 : index
    %c0_344 = arith.constant 0 : index
    %c0_345 = arith.constant 0 : index
    %893 = vector.load %arg9[%c0_343, %c0_344, %c0_345] : memref<8x8x128xf32, #tpu.memory_space<vmem>>, vector<1x8x128xf32>
    %894 = vector.shape_cast %893 : vector<1x8x128xf32> to vector<8x128xf32>
    %895 = arith.truncf %844 : vector<8x32xf32> to vector<8x32xbf16>
    %cst_346 = arith.constant dense<0.000000e+00> : vector<8x128xf32>
    %896 = tpu.matmul %895, %20, %cst_346 {dimension_numbers = #tpu.dot_dimension_numbers<[1], [0], [0], [1], [0, 0, 1, 1], [], []>} : vector<8x32xbf16>, vector<32x128xbf16>, vector<8x128xf32> -> vector<8x128xf32>
    %897 = arith.addf %894, %896 : vector<8x128xf32>
    %898 = math.tanh %897 : vector<8x128xf32>
    %899 = vector.extract_strided_slice %898 {offsets = [0, 0], sizes = [8, 32], strides = [1, 1]} : vector<8x128xf32> to vector<8x32xf32>
    %cst_347 = arith.constant 5.000000e-01 : f32
    %900 = vector.broadcast %cst_347 : f32 to vector<8x32xf32>
    %901 = arith.mulf %899, %900 : vector<8x32xf32>
    %cst_348 = arith.constant 5.000000e-01 : f32
    %902 = vector.broadcast %cst_348 : f32 to vector<8x32xf32>
    %903 = arith.addf %901, %902 : vector<8x32xf32>
    %904 = vector.extract_strided_slice %898 {offsets = [0, 32], sizes = [8, 32], strides = [1, 1]} : vector<8x128xf32> to vector<8x32xf32>
    %cst_349 = arith.constant 5.000000e-01 : f32
    %905 = vector.broadcast %cst_349 : f32 to vector<8x32xf32>
    %906 = arith.mulf %904, %905 : vector<8x32xf32>
    %cst_350 = arith.constant 5.000000e-01 : f32
    %907 = vector.broadcast %cst_350 : f32 to vector<8x32xf32>
    %908 = arith.addf %906, %907 : vector<8x32xf32>
    %909 = vector.extract_strided_slice %898 {offsets = [0, 64], sizes = [8, 32], strides = [1, 1]} : vector<8x128xf32> to vector<8x32xf32>
    %910 = vector.extract_strided_slice %898 {offsets = [0, 96], sizes = [8, 32], strides = [1, 1]} : vector<8x128xf32> to vector<8x32xf32>
    %cst_351 = arith.constant 5.000000e-01 : f32
    %911 = vector.broadcast %cst_351 : f32 to vector<8x32xf32>
    %912 = arith.mulf %910, %911 : vector<8x32xf32>
    %cst_352 = arith.constant 5.000000e-01 : f32
    %913 = vector.broadcast %cst_352 : f32 to vector<8x32xf32>
    %914 = arith.addf %912, %913 : vector<8x32xf32>
    %915 = arith.mulf %908, %842 : vector<8x32xf32>
    %916 = arith.mulf %903, %909 : vector<8x32xf32>
    %917 = arith.addf %915, %916 : vector<8x32xf32>
    %918 = math.tanh %917 : vector<8x32xf32>
    %919 = arith.mulf %914, %918 : vector<8x32xf32>
    %c1_353 = arith.constant 1 : index
    %c0_354 = arith.constant 0 : index
    %c0_355 = arith.constant 0 : index
    %920 = vector.load %arg9[%c1_353, %c0_354, %c0_355] : memref<8x8x128xf32, #tpu.memory_space<vmem>>, vector<1x8x128xf32>
    %921 = vector.shape_cast %920 : vector<1x8x128xf32> to vector<8x128xf32>
    %922 = arith.truncf %919 : vector<8x32xf32> to vector<8x32xbf16>
    %cst_356 = arith.constant dense<0.000000e+00> : vector<8x128xf32>
    %923 = tpu.matmul %922, %20, %cst_356 {dimension_numbers = #tpu.dot_dimension_numbers<[1], [0], [0], [1], [0, 0, 1, 1], [], []>} : vector<8x32xbf16>, vector<32x128xbf16>, vector<8x128xf32> -> vector<8x128xf32>
    %924 = arith.addf %921, %923 : vector<8x128xf32>
    %925 = math.tanh %924 : vector<8x128xf32>
    %926 = vector.extract_strided_slice %925 {offsets = [0, 0], sizes = [8, 32], strides = [1, 1]} : vector<8x128xf32> to vector<8x32xf32>
    %cst_357 = arith.constant 5.000000e-01 : f32
    %927 = vector.broadcast %cst_357 : f32 to vector<8x32xf32>
    %928 = arith.mulf %926, %927 : vector<8x32xf32>
    %cst_358 = arith.constant 5.000000e-01 : f32
    %929 = vector.broadcast %cst_358 : f32 to vector<8x32xf32>
    %930 = arith.addf %928, %929 : vector<8x32xf32>
    %931 = vector.extract_strided_slice %925 {offsets = [0, 32], sizes = [8, 32], strides = [1, 1]} : vector<8x128xf32> to vector<8x32xf32>
    %cst_359 = arith.constant 5.000000e-01 : f32
    %932 = vector.broadcast %cst_359 : f32 to vector<8x32xf32>
    %933 = arith.mulf %931, %932 : vector<8x32xf32>
    %cst_360 = arith.constant 5.000000e-01 : f32
    %934 = vector.broadcast %cst_360 : f32 to vector<8x32xf32>
    %935 = arith.addf %933, %934 : vector<8x32xf32>
    %936 = vector.extract_strided_slice %925 {offsets = [0, 64], sizes = [8, 32], strides = [1, 1]} : vector<8x128xf32> to vector<8x32xf32>
    %937 = vector.extract_strided_slice %925 {offsets = [0, 96], sizes = [8, 32], strides = [1, 1]} : vector<8x128xf32> to vector<8x32xf32>
    %cst_361 = arith.constant 5.000000e-01 : f32
    %938 = vector.broadcast %cst_361 : f32 to vector<8x32xf32>
    %939 = arith.mulf %937, %938 : vector<8x32xf32>
    %cst_362 = arith.constant 5.000000e-01 : f32
    %940 = vector.broadcast %cst_362 : f32 to vector<8x32xf32>
    %941 = arith.addf %939, %940 : vector<8x32xf32>
    %942 = arith.mulf %935, %917 : vector<8x32xf32>
    %943 = arith.mulf %930, %936 : vector<8x32xf32>
    %944 = arith.addf %942, %943 : vector<8x32xf32>
    %945 = math.tanh %944 : vector<8x32xf32>
    %946 = arith.mulf %941, %945 : vector<8x32xf32>
    %c2_363 = arith.constant 2 : index
    %c0_364 = arith.constant 0 : index
    %c0_365 = arith.constant 0 : index
    %947 = vector.load %arg9[%c2_363, %c0_364, %c0_365] : memref<8x8x128xf32, #tpu.memory_space<vmem>>, vector<1x8x128xf32>
    %948 = vector.shape_cast %947 : vector<1x8x128xf32> to vector<8x128xf32>
    %949 = arith.truncf %946 : vector<8x32xf32> to vector<8x32xbf16>
    %cst_366 = arith.constant dense<0.000000e+00> : vector<8x128xf32>
    %950 = tpu.matmul %949, %20, %cst_366 {dimension_numbers = #tpu.dot_dimension_numbers<[1], [0], [0], [1], [0, 0, 1, 1], [], []>} : vector<8x32xbf16>, vector<32x128xbf16>, vector<8x128xf32> -> vector<8x128xf32>
    %951 = arith.addf %948, %950 : vector<8x128xf32>
    %952 = math.tanh %951 : vector<8x128xf32>
    %953 = vector.extract_strided_slice %952 {offsets = [0, 0], sizes = [8, 32], strides = [1, 1]} : vector<8x128xf32> to vector<8x32xf32>
    %cst_367 = arith.constant 5.000000e-01 : f32
    %954 = vector.broadcast %cst_367 : f32 to vector<8x32xf32>
    %955 = arith.mulf %953, %954 : vector<8x32xf32>
    %cst_368 = arith.constant 5.000000e-01 : f32
    %956 = vector.broadcast %cst_368 : f32 to vector<8x32xf32>
    %957 = arith.addf %955, %956 : vector<8x32xf32>
    %958 = vector.extract_strided_slice %952 {offsets = [0, 32], sizes = [8, 32], strides = [1, 1]} : vector<8x128xf32> to vector<8x32xf32>
    %cst_369 = arith.constant 5.000000e-01 : f32
    %959 = vector.broadcast %cst_369 : f32 to vector<8x32xf32>
    %960 = arith.mulf %958, %959 : vector<8x32xf32>
    %cst_370 = arith.constant 5.000000e-01 : f32
    %961 = vector.broadcast %cst_370 : f32 to vector<8x32xf32>
    %962 = arith.addf %960, %961 : vector<8x32xf32>
    %963 = vector.extract_strided_slice %952 {offsets = [0, 64], sizes = [8, 32], strides = [1, 1]} : vector<8x128xf32> to vector<8x32xf32>
    %964 = vector.extract_strided_slice %952 {offsets = [0, 96], sizes = [8, 32], strides = [1, 1]} : vector<8x128xf32> to vector<8x32xf32>
    %cst_371 = arith.constant 5.000000e-01 : f32
    %965 = vector.broadcast %cst_371 : f32 to vector<8x32xf32>
    %966 = arith.mulf %964, %965 : vector<8x32xf32>
    %cst_372 = arith.constant 5.000000e-01 : f32
    %967 = vector.broadcast %cst_372 : f32 to vector<8x32xf32>
    %968 = arith.addf %966, %967 : vector<8x32xf32>
    %969 = arith.mulf %962, %944 : vector<8x32xf32>
    %970 = arith.mulf %957, %963 : vector<8x32xf32>
    %971 = arith.addf %969, %970 : vector<8x32xf32>
    %972 = math.tanh %971 : vector<8x32xf32>
    %973 = arith.mulf %968, %972 : vector<8x32xf32>
    %c3_373 = arith.constant 3 : index
    %c0_374 = arith.constant 0 : index
    %c0_375 = arith.constant 0 : index
    %974 = vector.load %arg9[%c3_373, %c0_374, %c0_375] : memref<8x8x128xf32, #tpu.memory_space<vmem>>, vector<1x8x128xf32>
    %975 = vector.shape_cast %974 : vector<1x8x128xf32> to vector<8x128xf32>
    %976 = arith.truncf %973 : vector<8x32xf32> to vector<8x32xbf16>
    %cst_376 = arith.constant dense<0.000000e+00> : vector<8x128xf32>
    %977 = tpu.matmul %976, %20, %cst_376 {dimension_numbers = #tpu.dot_dimension_numbers<[1], [0], [0], [1], [0, 0, 1, 1], [], []>} : vector<8x32xbf16>, vector<32x128xbf16>, vector<8x128xf32> -> vector<8x128xf32>
    %978 = arith.addf %975, %977 : vector<8x128xf32>
    %979 = math.tanh %978 : vector<8x128xf32>
    %980 = vector.extract_strided_slice %979 {offsets = [0, 0], sizes = [8, 32], strides = [1, 1]} : vector<8x128xf32> to vector<8x32xf32>
    %cst_377 = arith.constant 5.000000e-01 : f32
    %981 = vector.broadcast %cst_377 : f32 to vector<8x32xf32>
    %982 = arith.mulf %980, %981 : vector<8x32xf32>
    %cst_378 = arith.constant 5.000000e-01 : f32
    %983 = vector.broadcast %cst_378 : f32 to vector<8x32xf32>
    %984 = arith.addf %982, %983 : vector<8x32xf32>
    %985 = vector.extract_strided_slice %979 {offsets = [0, 32], sizes = [8, 32], strides = [1, 1]} : vector<8x128xf32> to vector<8x32xf32>
    %cst_379 = arith.constant 5.000000e-01 : f32
    %986 = vector.broadcast %cst_379 : f32 to vector<8x32xf32>
    %987 = arith.mulf %985, %986 : vector<8x32xf32>
    %cst_380 = arith.constant 5.000000e-01 : f32
    %988 = vector.broadcast %cst_380 : f32 to vector<8x32xf32>
    %989 = arith.addf %987, %988 : vector<8x32xf32>
    %990 = vector.extract_strided_slice %979 {offsets = [0, 64], sizes = [8, 32], strides = [1, 1]} : vector<8x128xf32> to vector<8x32xf32>
    %991 = vector.extract_strided_slice %979 {offsets = [0, 96], sizes = [8, 32], strides = [1, 1]} : vector<8x128xf32> to vector<8x32xf32>
    %cst_381 = arith.constant 5.000000e-01 : f32
    %992 = vector.broadcast %cst_381 : f32 to vector<8x32xf32>
    %993 = arith.mulf %991, %992 : vector<8x32xf32>
    %cst_382 = arith.constant 5.000000e-01 : f32
    %994 = vector.broadcast %cst_382 : f32 to vector<8x32xf32>
    %995 = arith.addf %993, %994 : vector<8x32xf32>
    %996 = arith.mulf %989, %971 : vector<8x32xf32>
    %997 = arith.mulf %984, %990 : vector<8x32xf32>
    %998 = arith.addf %996, %997 : vector<8x32xf32>
    %999 = math.tanh %998 : vector<8x32xf32>
    %1000 = arith.mulf %995, %999 : vector<8x32xf32>
    %c4_383 = arith.constant 4 : index
    %c0_384 = arith.constant 0 : index
    %c0_385 = arith.constant 0 : index
    %1001 = vector.load %arg9[%c4_383, %c0_384, %c0_385] : memref<8x8x128xf32, #tpu.memory_space<vmem>>, vector<1x8x128xf32>
    %1002 = vector.shape_cast %1001 : vector<1x8x128xf32> to vector<8x128xf32>
    %1003 = arith.truncf %1000 : vector<8x32xf32> to vector<8x32xbf16>
    %cst_386 = arith.constant dense<0.000000e+00> : vector<8x128xf32>
    %1004 = tpu.matmul %1003, %20, %cst_386 {dimension_numbers = #tpu.dot_dimension_numbers<[1], [0], [0], [1], [0, 0, 1, 1], [], []>} : vector<8x32xbf16>, vector<32x128xbf16>, vector<8x128xf32> -> vector<8x128xf32>
    %1005 = arith.addf %1002, %1004 : vector<8x128xf32>
    %1006 = math.tanh %1005 : vector<8x128xf32>
    %1007 = vector.extract_strided_slice %1006 {offsets = [0, 0], sizes = [8, 32], strides = [1, 1]} : vector<8x128xf32> to vector<8x32xf32>
    %cst_387 = arith.constant 5.000000e-01 : f32
    %1008 = vector.broadcast %cst_387 : f32 to vector<8x32xf32>
    %1009 = arith.mulf %1007, %1008 : vector<8x32xf32>
    %cst_388 = arith.constant 5.000000e-01 : f32
    %1010 = vector.broadcast %cst_388 : f32 to vector<8x32xf32>
    %1011 = arith.addf %1009, %1010 : vector<8x32xf32>
    %1012 = vector.extract_strided_slice %1006 {offsets = [0, 32], sizes = [8, 32], strides = [1, 1]} : vector<8x128xf32> to vector<8x32xf32>
    %cst_389 = arith.constant 5.000000e-01 : f32
    %1013 = vector.broadcast %cst_389 : f32 to vector<8x32xf32>
    %1014 = arith.mulf %1012, %1013 : vector<8x32xf32>
    %cst_390 = arith.constant 5.000000e-01 : f32
    %1015 = vector.broadcast %cst_390 : f32 to vector<8x32xf32>
    %1016 = arith.addf %1014, %1015 : vector<8x32xf32>
    %1017 = vector.extract_strided_slice %1006 {offsets = [0, 64], sizes = [8, 32], strides = [1, 1]} : vector<8x128xf32> to vector<8x32xf32>
    %1018 = vector.extract_strided_slice %1006 {offsets = [0, 96], sizes = [8, 32], strides = [1, 1]} : vector<8x128xf32> to vector<8x32xf32>
    %cst_391 = arith.constant 5.000000e-01 : f32
    %1019 = vector.broadcast %cst_391 : f32 to vector<8x32xf32>
    %1020 = arith.mulf %1018, %1019 : vector<8x32xf32>
    %cst_392 = arith.constant 5.000000e-01 : f32
    %1021 = vector.broadcast %cst_392 : f32 to vector<8x32xf32>
    %1022 = arith.addf %1020, %1021 : vector<8x32xf32>
    %1023 = arith.mulf %1016, %998 : vector<8x32xf32>
    %1024 = arith.mulf %1011, %1017 : vector<8x32xf32>
    %1025 = arith.addf %1023, %1024 : vector<8x32xf32>
    %1026 = math.tanh %1025 : vector<8x32xf32>
    %1027 = arith.mulf %1022, %1026 : vector<8x32xf32>
    %c5_393 = arith.constant 5 : index
    %c0_394 = arith.constant 0 : index
    %c0_395 = arith.constant 0 : index
    %1028 = vector.load %arg9[%c5_393, %c0_394, %c0_395] : memref<8x8x128xf32, #tpu.memory_space<vmem>>, vector<1x8x128xf32>
    %1029 = vector.shape_cast %1028 : vector<1x8x128xf32> to vector<8x128xf32>
    %1030 = arith.truncf %1027 : vector<8x32xf32> to vector<8x32xbf16>
    %cst_396 = arith.constant dense<0.000000e+00> : vector<8x128xf32>
    %1031 = tpu.matmul %1030, %20, %cst_396 {dimension_numbers = #tpu.dot_dimension_numbers<[1], [0], [0], [1], [0, 0, 1, 1], [], []>} : vector<8x32xbf16>, vector<32x128xbf16>, vector<8x128xf32> -> vector<8x128xf32>
    %1032 = arith.addf %1029, %1031 : vector<8x128xf32>
    %1033 = math.tanh %1032 : vector<8x128xf32>
    %1034 = vector.extract_strided_slice %1033 {offsets = [0, 0], sizes = [8, 32], strides = [1, 1]} : vector<8x128xf32> to vector<8x32xf32>
    %cst_397 = arith.constant 5.000000e-01 : f32
    %1035 = vector.broadcast %cst_397 : f32 to vector<8x32xf32>
    %1036 = arith.mulf %1034, %1035 : vector<8x32xf32>
    %cst_398 = arith.constant 5.000000e-01 : f32
    %1037 = vector.broadcast %cst_398 : f32 to vector<8x32xf32>
    %1038 = arith.addf %1036, %1037 : vector<8x32xf32>
    %1039 = vector.extract_strided_slice %1033 {offsets = [0, 32], sizes = [8, 32], strides = [1, 1]} : vector<8x128xf32> to vector<8x32xf32>
    %cst_399 = arith.constant 5.000000e-01 : f32
    %1040 = vector.broadcast %cst_399 : f32 to vector<8x32xf32>
    %1041 = arith.mulf %1039, %1040 : vector<8x32xf32>
    %cst_400 = arith.constant 5.000000e-01 : f32
    %1042 = vector.broadcast %cst_400 : f32 to vector<8x32xf32>
    %1043 = arith.addf %1041, %1042 : vector<8x32xf32>
    %1044 = vector.extract_strided_slice %1033 {offsets = [0, 64], sizes = [8, 32], strides = [1, 1]} : vector<8x128xf32> to vector<8x32xf32>
    %1045 = vector.extract_strided_slice %1033 {offsets = [0, 96], sizes = [8, 32], strides = [1, 1]} : vector<8x128xf32> to vector<8x32xf32>
    %cst_401 = arith.constant 5.000000e-01 : f32
    %1046 = vector.broadcast %cst_401 : f32 to vector<8x32xf32>
    %1047 = arith.mulf %1045, %1046 : vector<8x32xf32>
    %cst_402 = arith.constant 5.000000e-01 : f32
    %1048 = vector.broadcast %cst_402 : f32 to vector<8x32xf32>
    %1049 = arith.addf %1047, %1048 : vector<8x32xf32>
    %1050 = arith.mulf %1043, %1025 : vector<8x32xf32>
    %1051 = arith.mulf %1038, %1044 : vector<8x32xf32>
    %1052 = arith.addf %1050, %1051 : vector<8x32xf32>
    %1053 = math.tanh %1052 : vector<8x32xf32>
    %1054 = arith.mulf %1049, %1053 : vector<8x32xf32>
    %cst_403 = arith.constant dense<0.000000e+00> : vector<8x40xf32>
    %1055 = tpu.matmul %1054, %14, %cst_403 {dimension_numbers = #tpu.dot_dimension_numbers<[1], [0], [0], [1], [0, 0, 1, 1], [], []>} : vector<8x32xf32>, vector<32x40xf32>, vector<8x40xf32> -> vector<8x40xf32>
    %1056 = arith.addf %1055, %13 : vector<8x40xf32>
    %cst_404 = arith.constant 0.000000e+00 : f32
    %1057 = vector.broadcast %cst_404 : f32 to vector<8x40xf32>
    %1058 = arith.maximumf %1056, %1057 : vector<8x40xf32>
    %cst_405 = arith.constant dense<0.000000e+00> : vector<8xf32>
    %1059 = vector.multi_reduction <add>, %1058, %cst_405 [1] : vector<8x40xf32> to vector<8xf32>
    %1060 = vector.shape_cast %1059 : vector<8xf32> to vector<8x1xf32>
    %cst_406 = arith.constant 4.000000e+01 : f32
    %1061 = vector.broadcast %cst_406 : f32 to vector<8x1xf32>
    %1062 = arith.divf %1060, %1061 : vector<8x1xf32>
    %1063 = vector.broadcast %1062 : vector<8x1xf32> to vector<8x40xf32>
    %1064 = arith.subf %1058, %1063 : vector<8x40xf32>
    %1065 = arith.mulf %1064, %1064 : vector<8x40xf32>
    %cst_407 = arith.constant dense<0.000000e+00> : vector<8xf32>
    %1066 = vector.multi_reduction <add>, %1065, %cst_407 [1] : vector<8x40xf32> to vector<8xf32>
    %1067 = vector.shape_cast %1066 : vector<8xf32> to vector<8x1xf32>
    %cst_408 = arith.constant 4.000000e+01 : f32
    %1068 = vector.broadcast %cst_408 : f32 to vector<8x1xf32>
    %1069 = arith.divf %1067, %1068 : vector<8x1xf32>
    %1070 = vector.broadcast %1062 : vector<8x1xf32> to vector<8x40xf32>
    %1071 = arith.subf %1058, %1070 : vector<8x40xf32>
    %cst_409 = arith.constant 9.99999974E-6 : f32
    %1072 = vector.broadcast %cst_409 : f32 to vector<8x1xf32>
    %1073 = arith.addf %1069, %1072 : vector<8x1xf32>
    %1074 = math.rsqrt %1073 : vector<8x1xf32>
    %1075 = vector.broadcast %1074 : vector<8x1xf32> to vector<8x40xf32>
    %1076 = arith.mulf %1071, %1075 : vector<8x40xf32>
    %1077 = arith.mulf %1076, %6 : vector<8x40xf32>
    %1078 = arith.addf %1077, %9 : vector<8x40xf32>
    %cst_410 = arith.constant dense<0.000000e+00> : vector<8x32xf32>
    %1079 = tpu.matmul %1078, %15, %cst_410 {dimension_numbers = #tpu.dot_dimension_numbers<[1], [0], [0], [1], [0, 0, 1, 1], [], []>} : vector<8x40xf32>, vector<40x32xf32>, vector<8x32xf32> -> vector<8x32xf32>
    %1080 = arith.addf %1079, %12 : vector<8x32xf32>
    %c6_411 = arith.constant 6 : index
    %c0_412 = arith.constant 0 : index
    %c0_413 = arith.constant 0 : index
    %1081 = vector.load %arg8[%c6_411, %c0_412, %c0_413] : memref<8x8x32xf32, #tpu.memory_space<vmem>>, vector<1x8x32xf32>
    %1082 = vector.shape_cast %1081 : vector<1x8x32xf32> to vector<8x32xf32>
    %1083 = vector.shape_cast %1080 : vector<8x32xf32> to vector<1x8x32xf32>
    tpu.vector_store %arg8[%c6_411, %c0_412, %c0_413], %1083 {strides = array<i32>} : memref<8x8x32xf32, #tpu.memory_space<vmem>>, vector<1x8x32xf32>,
    %cst_414 = arith.constant dense<0xFF800000> : vector<8xf32>
    %1084 = vector.multi_reduction <maximumf>, %1080, %cst_414 [1] : vector<8x32xf32> to vector<8xf32>
    %1085 = vector.shape_cast %1084 : vector<8xf32> to vector<8x1xf32>
    %1086 = vector.broadcast %1085 : vector<8x1xf32> to vector<8x32xf32>
    %1087 = arith.cmpf oeq, %1080, %1086 : vector<8x32xf32>
    %c32_i32_415 = arith.constant 32 : i32
    %1088 = vector.broadcast %c32_i32_415 : i32 to vector<8x32xi32>
    %1089 = arith.select %1087, %0, %1088 : vector<8x32xi1>, vector<8x32xi32>
    %cst_416 = arith.constant dense<2147483647> : vector<8xi32>
    %1090 = vector.multi_reduction <minsi>, %1089, %cst_416 [1] : vector<8x32xi32> to vector<8xi32>
    %1091 = vector.shape_cast %1090 : vector<8xi32> to vector<8x1xi32>
    %1092 = vector.extract_strided_slice %3 {offsets = [0, 6], sizes = [8, 1], strides = [1, 1]} : vector<8x8xi1> to vector<8x1xi1>
    %1093 = vector.extract_strided_slice %1 {offsets = [0, 6], sizes = [8, 1], strides = [1, 1]} : vector<8x8xi32> to vector<8x1xi32>
    %1094 = arith.select %1092, %1091, %1093 : vector<8x1xi1>, vector<8x1xi32>
    %1095 = vector.broadcast %1094 : vector<8x1xi32> to vector<8x32xi32>
    %1096 = arith.cmpi eq, %0, %1095 : vector<8x32xi32>
    %1097 = arith.extui %1096 : vector<8x32xi1> to vector<8x32xi32>
    %1098 = arith.sitofp %1097 : vector<8x32xi32> to vector<8x32xf32>
    %cst_417 = arith.constant dense<0.000000e+00> : vector<8x128xf32>
    %1099 = tpu.matmul %1098, %16, %cst_417 {dimension_numbers = #tpu.dot_dimension_numbers<[1], [0], [0], [1], [0, 0, 1, 1], [], []>} : vector<8x32xf32>, vector<32x128xf32>, vector<8x128xf32> -> vector<8x128xf32>
    %c6_418 = arith.constant 6 : index
    %c0_419 = arith.constant 0 : index
    %c0_420 = arith.constant 0 : index
    %1100 = vector.load %arg9[%c6_418, %c0_419, %c0_420] : memref<8x8x128xf32, #tpu.memory_space<vmem>>, vector<1x8x128xf32>
    %1101 = vector.shape_cast %1100 : vector<1x8x128xf32> to vector<8x128xf32>
    %1102 = vector.shape_cast %1099 : vector<8x128xf32> to vector<1x8x128xf32>
    tpu.vector_store %arg9[%c6_418, %c0_419, %c0_420], %1102 {strides = array<i32>} : memref<8x8x128xf32, #tpu.memory_space<vmem>>, vector<1x8x128xf32>,
    %c0_421 = arith.constant 0 : index
    %c0_422 = arith.constant 0 : index
    %c0_423 = arith.constant 0 : index
    %1103 = vector.load %arg9[%c0_421, %c0_422, %c0_423] : memref<8x8x128xf32, #tpu.memory_space<vmem>>, vector<1x8x128xf32>
    %1104 = vector.shape_cast %1103 : vector<1x8x128xf32> to vector<8x128xf32>
    %1105 = arith.truncf %1054 : vector<8x32xf32> to vector<8x32xbf16>
    %cst_424 = arith.constant dense<0.000000e+00> : vector<8x128xf32>
    %1106 = tpu.matmul %1105, %20, %cst_424 {dimension_numbers = #tpu.dot_dimension_numbers<[1], [0], [0], [1], [0, 0, 1, 1], [], []>} : vector<8x32xbf16>, vector<32x128xbf16>, vector<8x128xf32> -> vector<8x128xf32>
    %1107 = arith.addf %1104, %1106 : vector<8x128xf32>
    %1108 = math.tanh %1107 : vector<8x128xf32>
    %1109 = vector.extract_strided_slice %1108 {offsets = [0, 0], sizes = [8, 32], strides = [1, 1]} : vector<8x128xf32> to vector<8x32xf32>
    %cst_425 = arith.constant 5.000000e-01 : f32
    %1110 = vector.broadcast %cst_425 : f32 to vector<8x32xf32>
    %1111 = arith.mulf %1109, %1110 : vector<8x32xf32>
    %cst_426 = arith.constant 5.000000e-01 : f32
    %1112 = vector.broadcast %cst_426 : f32 to vector<8x32xf32>
    %1113 = arith.addf %1111, %1112 : vector<8x32xf32>
    %1114 = vector.extract_strided_slice %1108 {offsets = [0, 32], sizes = [8, 32], strides = [1, 1]} : vector<8x128xf32> to vector<8x32xf32>
    %cst_427 = arith.constant 5.000000e-01 : f32
    %1115 = vector.broadcast %cst_427 : f32 to vector<8x32xf32>
    %1116 = arith.mulf %1114, %1115 : vector<8x32xf32>
    %cst_428 = arith.constant 5.000000e-01 : f32
    %1117 = vector.broadcast %cst_428 : f32 to vector<8x32xf32>
    %1118 = arith.addf %1116, %1117 : vector<8x32xf32>
    %1119 = vector.extract_strided_slice %1108 {offsets = [0, 64], sizes = [8, 32], strides = [1, 1]} : vector<8x128xf32> to vector<8x32xf32>
    %1120 = vector.extract_strided_slice %1108 {offsets = [0, 96], sizes = [8, 32], strides = [1, 1]} : vector<8x128xf32> to vector<8x32xf32>
    %cst_429 = arith.constant 5.000000e-01 : f32
    %1121 = vector.broadcast %cst_429 : f32 to vector<8x32xf32>
    %1122 = arith.mulf %1120, %1121 : vector<8x32xf32>
    %cst_430 = arith.constant 5.000000e-01 : f32
    %1123 = vector.broadcast %cst_430 : f32 to vector<8x32xf32>
    %1124 = arith.addf %1122, %1123 : vector<8x32xf32>
    %1125 = arith.mulf %1118, %1052 : vector<8x32xf32>
    %1126 = arith.mulf %1113, %1119 : vector<8x32xf32>
    %1127 = arith.addf %1125, %1126 : vector<8x32xf32>
    %1128 = math.tanh %1127 : vector<8x32xf32>
    %1129 = arith.mulf %1124, %1128 : vector<8x32xf32>
    %c1_431 = arith.constant 1 : index
    %c0_432 = arith.constant 0 : index
    %c0_433 = arith.constant 0 : index
    %1130 = vector.load %arg9[%c1_431, %c0_432, %c0_433] : memref<8x8x128xf32, #tpu.memory_space<vmem>>, vector<1x8x128xf32>
    %1131 = vector.shape_cast %1130 : vector<1x8x128xf32> to vector<8x128xf32>
    %1132 = arith.truncf %1129 : vector<8x32xf32> to vector<8x32xbf16>
    %cst_434 = arith.constant dense<0.000000e+00> : vector<8x128xf32>
    %1133 = tpu.matmul %1132, %20, %cst_434 {dimension_numbers = #tpu.dot_dimension_numbers<[1], [0], [0], [1], [0, 0, 1, 1], [], []>} : vector<8x32xbf16>, vector<32x128xbf16>, vector<8x128xf32> -> vector<8x128xf32>
    %1134 = arith.addf %1131, %1133 : vector<8x128xf32>
    %1135 = math.tanh %1134 : vector<8x128xf32>
    %1136 = vector.extract_strided_slice %1135 {offsets = [0, 0], sizes = [8, 32], strides = [1, 1]} : vector<8x128xf32> to vector<8x32xf32>
    %cst_435 = arith.constant 5.000000e-01 : f32
    %1137 = vector.broadcast %cst_435 : f32 to vector<8x32xf32>
    %1138 = arith.mulf %1136, %1137 : vector<8x32xf32>
    %cst_436 = arith.constant 5.000000e-01 : f32
    %1139 = vector.broadcast %cst_436 : f32 to vector<8x32xf32>
    %1140 = arith.addf %1138, %1139 : vector<8x32xf32>
    %1141 = vector.extract_strided_slice %1135 {offsets = [0, 32], sizes = [8, 32], strides = [1, 1]} : vector<8x128xf32> to vector<8x32xf32>
    %cst_437 = arith.constant 5.000000e-01 : f32
    %1142 = vector.broadcast %cst_437 : f32 to vector<8x32xf32>
    %1143 = arith.mulf %1141, %1142 : vector<8x32xf32>
    %cst_438 = arith.constant 5.000000e-01 : f32
    %1144 = vector.broadcast %cst_438 : f32 to vector<8x32xf32>
    %1145 = arith.addf %1143, %1144 : vector<8x32xf32>
    %1146 = vector.extract_strided_slice %1135 {offsets = [0, 64], sizes = [8, 32], strides = [1, 1]} : vector<8x128xf32> to vector<8x32xf32>
    %1147 = vector.extract_strided_slice %1135 {offsets = [0, 96], sizes = [8, 32], strides = [1, 1]} : vector<8x128xf32> to vector<8x32xf32>
    %cst_439 = arith.constant 5.000000e-01 : f32
    %1148 = vector.broadcast %cst_439 : f32 to vector<8x32xf32>
    %1149 = arith.mulf %1147, %1148 : vector<8x32xf32>
    %cst_440 = arith.constant 5.000000e-01 : f32
    %1150 = vector.broadcast %cst_440 : f32 to vector<8x32xf32>
    %1151 = arith.addf %1149, %1150 : vector<8x32xf32>
    %1152 = arith.mulf %1145, %1127 : vector<8x32xf32>
    %1153 = arith.mulf %1140, %1146 : vector<8x32xf32>
    %1154 = arith.addf %1152, %1153 : vector<8x32xf32>
    %1155 = math.tanh %1154 : vector<8x32xf32>
    %1156 = arith.mulf %1151, %1155 : vector<8x32xf32>
    %c2_441 = arith.constant 2 : index
    %c0_442 = arith.constant 0 : index
    %c0_443 = arith.constant 0 : index
    %1157 = vector.load %arg9[%c2_441, %c0_442, %c0_443] : memref<8x8x128xf32, #tpu.memory_space<vmem>>, vector<1x8x128xf32>
    %1158 = vector.shape_cast %1157 : vector<1x8x128xf32> to vector<8x128xf32>
    %1159 = arith.truncf %1156 : vector<8x32xf32> to vector<8x32xbf16>
    %cst_444 = arith.constant dense<0.000000e+00> : vector<8x128xf32>
    %1160 = tpu.matmul %1159, %20, %cst_444 {dimension_numbers = #tpu.dot_dimension_numbers<[1], [0], [0], [1], [0, 0, 1, 1], [], []>} : vector<8x32xbf16>, vector<32x128xbf16>, vector<8x128xf32> -> vector<8x128xf32>
    %1161 = arith.addf %1158, %1160 : vector<8x128xf32>
    %1162 = math.tanh %1161 : vector<8x128xf32>
    %1163 = vector.extract_strided_slice %1162 {offsets = [0, 0], sizes = [8, 32], strides = [1, 1]} : vector<8x128xf32> to vector<8x32xf32>
    %cst_445 = arith.constant 5.000000e-01 : f32
    %1164 = vector.broadcast %cst_445 : f32 to vector<8x32xf32>
    %1165 = arith.mulf %1163, %1164 : vector<8x32xf32>
    %cst_446 = arith.constant 5.000000e-01 : f32
    %1166 = vector.broadcast %cst_446 : f32 to vector<8x32xf32>
    %1167 = arith.addf %1165, %1166 : vector<8x32xf32>
    %1168 = vector.extract_strided_slice %1162 {offsets = [0, 32], sizes = [8, 32], strides = [1, 1]} : vector<8x128xf32> to vector<8x32xf32>
    %cst_447 = arith.constant 5.000000e-01 : f32
    %1169 = vector.broadcast %cst_447 : f32 to vector<8x32xf32>
    %1170 = arith.mulf %1168, %1169 : vector<8x32xf32>
    %cst_448 = arith.constant 5.000000e-01 : f32
    %1171 = vector.broadcast %cst_448 : f32 to vector<8x32xf32>
    %1172 = arith.addf %1170, %1171 : vector<8x32xf32>
    %1173 = vector.extract_strided_slice %1162 {offsets = [0, 64], sizes = [8, 32], strides = [1, 1]} : vector<8x128xf32> to vector<8x32xf32>
    %1174 = vector.extract_strided_slice %1162 {offsets = [0, 96], sizes = [8, 32], strides = [1, 1]} : vector<8x128xf32> to vector<8x32xf32>
    %cst_449 = arith.constant 5.000000e-01 : f32
    %1175 = vector.broadcast %cst_449 : f32 to vector<8x32xf32>
    %1176 = arith.mulf %1174, %1175 : vector<8x32xf32>
    %cst_450 = arith.constant 5.000000e-01 : f32
    %1177 = vector.broadcast %cst_450 : f32 to vector<8x32xf32>
    %1178 = arith.addf %1176, %1177 : vector<8x32xf32>
    %1179 = arith.mulf %1172, %1154 : vector<8x32xf32>
    %1180 = arith.mulf %1167, %1173 : vector<8x32xf32>
    %1181 = arith.addf %1179, %1180 : vector<8x32xf32>
    %1182 = math.tanh %1181 : vector<8x32xf32>
    %1183 = arith.mulf %1178, %1182 : vector<8x32xf32>
    %c3_451 = arith.constant 3 : index
    %c0_452 = arith.constant 0 : index
    %c0_453 = arith.constant 0 : index
    %1184 = vector.load %arg9[%c3_451, %c0_452, %c0_453] : memref<8x8x128xf32, #tpu.memory_space<vmem>>, vector<1x8x128xf32>
    %1185 = vector.shape_cast %1184 : vector<1x8x128xf32> to vector<8x128xf32>
    %1186 = arith.truncf %1183 : vector<8x32xf32> to vector<8x32xbf16>
    %cst_454 = arith.constant dense<0.000000e+00> : vector<8x128xf32>
    %1187 = tpu.matmul %1186, %20, %cst_454 {dimension_numbers = #tpu.dot_dimension_numbers<[1], [0], [0], [1], [0, 0, 1, 1], [], []>} : vector<8x32xbf16>, vector<32x128xbf16>, vector<8x128xf32> -> vector<8x128xf32>
    %1188 = arith.addf %1185, %1187 : vector<8x128xf32>
    %1189 = math.tanh %1188 : vector<8x128xf32>
    %1190 = vector.extract_strided_slice %1189 {offsets = [0, 0], sizes = [8, 32], strides = [1, 1]} : vector<8x128xf32> to vector<8x32xf32>
    %cst_455 = arith.constant 5.000000e-01 : f32
    %1191 = vector.broadcast %cst_455 : f32 to vector<8x32xf32>
    %1192 = arith.mulf %1190, %1191 : vector<8x32xf32>
    %cst_456 = arith.constant 5.000000e-01 : f32
    %1193 = vector.broadcast %cst_456 : f32 to vector<8x32xf32>
    %1194 = arith.addf %1192, %1193 : vector<8x32xf32>
    %1195 = vector.extract_strided_slice %1189 {offsets = [0, 32], sizes = [8, 32], strides = [1, 1]} : vector<8x128xf32> to vector<8x32xf32>
    %cst_457 = arith.constant 5.000000e-01 : f32
    %1196 = vector.broadcast %cst_457 : f32 to vector<8x32xf32>
    %1197 = arith.mulf %1195, %1196 : vector<8x32xf32>
    %cst_458 = arith.constant 5.000000e-01 : f32
    %1198 = vector.broadcast %cst_458 : f32 to vector<8x32xf32>
    %1199 = arith.addf %1197, %1198 : vector<8x32xf32>
    %1200 = vector.extract_strided_slice %1189 {offsets = [0, 64], sizes = [8, 32], strides = [1, 1]} : vector<8x128xf32> to vector<8x32xf32>
    %1201 = vector.extract_strided_slice %1189 {offsets = [0, 96], sizes = [8, 32], strides = [1, 1]} : vector<8x128xf32> to vector<8x32xf32>
    %cst_459 = arith.constant 5.000000e-01 : f32
    %1202 = vector.broadcast %cst_459 : f32 to vector<8x32xf32>
    %1203 = arith.mulf %1201, %1202 : vector<8x32xf32>
    %cst_460 = arith.constant 5.000000e-01 : f32
    %1204 = vector.broadcast %cst_460 : f32 to vector<8x32xf32>
    %1205 = arith.addf %1203, %1204 : vector<8x32xf32>
    %1206 = arith.mulf %1199, %1181 : vector<8x32xf32>
    %1207 = arith.mulf %1194, %1200 : vector<8x32xf32>
    %1208 = arith.addf %1206, %1207 : vector<8x32xf32>
    %1209 = math.tanh %1208 : vector<8x32xf32>
    %1210 = arith.mulf %1205, %1209 : vector<8x32xf32>
    %c4_461 = arith.constant 4 : index
    %c0_462 = arith.constant 0 : index
    %c0_463 = arith.constant 0 : index
    %1211 = vector.load %arg9[%c4_461, %c0_462, %c0_463] : memref<8x8x128xf32, #tpu.memory_space<vmem>>, vector<1x8x128xf32>
    %1212 = vector.shape_cast %1211 : vector<1x8x128xf32> to vector<8x128xf32>
    %1213 = arith.truncf %1210 : vector<8x32xf32> to vector<8x32xbf16>
    %cst_464 = arith.constant dense<0.000000e+00> : vector<8x128xf32>
    %1214 = tpu.matmul %1213, %20, %cst_464 {dimension_numbers = #tpu.dot_dimension_numbers<[1], [0], [0], [1], [0, 0, 1, 1], [], []>} : vector<8x32xbf16>, vector<32x128xbf16>, vector<8x128xf32> -> vector<8x128xf32>
    %1215 = arith.addf %1212, %1214 : vector<8x128xf32>
    %1216 = math.tanh %1215 : vector<8x128xf32>
    %1217 = vector.extract_strided_slice %1216 {offsets = [0, 0], sizes = [8, 32], strides = [1, 1]} : vector<8x128xf32> to vector<8x32xf32>
    %cst_465 = arith.constant 5.000000e-01 : f32
    %1218 = vector.broadcast %cst_465 : f32 to vector<8x32xf32>
    %1219 = arith.mulf %1217, %1218 : vector<8x32xf32>
    %cst_466 = arith.constant 5.000000e-01 : f32
    %1220 = vector.broadcast %cst_466 : f32 to vector<8x32xf32>
    %1221 = arith.addf %1219, %1220 : vector<8x32xf32>
    %1222 = vector.extract_strided_slice %1216 {offsets = [0, 32], sizes = [8, 32], strides = [1, 1]} : vector<8x128xf32> to vector<8x32xf32>
    %cst_467 = arith.constant 5.000000e-01 : f32
    %1223 = vector.broadcast %cst_467 : f32 to vector<8x32xf32>
    %1224 = arith.mulf %1222, %1223 : vector<8x32xf32>
    %cst_468 = arith.constant 5.000000e-01 : f32
    %1225 = vector.broadcast %cst_468 : f32 to vector<8x32xf32>
    %1226 = arith.addf %1224, %1225 : vector<8x32xf32>
    %1227 = vector.extract_strided_slice %1216 {offsets = [0, 64], sizes = [8, 32], strides = [1, 1]} : vector<8x128xf32> to vector<8x32xf32>
    %1228 = vector.extract_strided_slice %1216 {offsets = [0, 96], sizes = [8, 32], strides = [1, 1]} : vector<8x128xf32> to vector<8x32xf32>
    %cst_469 = arith.constant 5.000000e-01 : f32
    %1229 = vector.broadcast %cst_469 : f32 to vector<8x32xf32>
    %1230 = arith.mulf %1228, %1229 : vector<8x32xf32>
    %cst_470 = arith.constant 5.000000e-01 : f32
    %1231 = vector.broadcast %cst_470 : f32 to vector<8x32xf32>
    %1232 = arith.addf %1230, %1231 : vector<8x32xf32>
    %1233 = arith.mulf %1226, %1208 : vector<8x32xf32>
    %1234 = arith.mulf %1221, %1227 : vector<8x32xf32>
    %1235 = arith.addf %1233, %1234 : vector<8x32xf32>
    %1236 = math.tanh %1235 : vector<8x32xf32>
    %1237 = arith.mulf %1232, %1236 : vector<8x32xf32>
    %c5_471 = arith.constant 5 : index
    %c0_472 = arith.constant 0 : index
    %c0_473 = arith.constant 0 : index
    %1238 = vector.load %arg9[%c5_471, %c0_472, %c0_473] : memref<8x8x128xf32, #tpu.memory_space<vmem>>, vector<1x8x128xf32>
    %1239 = vector.shape_cast %1238 : vector<1x8x128xf32> to vector<8x128xf32>
    %1240 = arith.truncf %1237 : vector<8x32xf32> to vector<8x32xbf16>
    %cst_474 = arith.constant dense<0.000000e+00> : vector<8x128xf32>
    %1241 = tpu.matmul %1240, %20, %cst_474 {dimension_numbers = #tpu.dot_dimension_numbers<[1], [0], [0], [1], [0, 0, 1, 1], [], []>} : vector<8x32xbf16>, vector<32x128xbf16>, vector<8x128xf32> -> vector<8x128xf32>
    %1242 = arith.addf %1239, %1241 : vector<8x128xf32>
    %1243 = math.tanh %1242 : vector<8x128xf32>
    %1244 = vector.extract_strided_slice %1243 {offsets = [0, 0], sizes = [8, 32], strides = [1, 1]} : vector<8x128xf32> to vector<8x32xf32>
    %cst_475 = arith.constant 5.000000e-01 : f32
    %1245 = vector.broadcast %cst_475 : f32 to vector<8x32xf32>
    %1246 = arith.mulf %1244, %1245 : vector<8x32xf32>
    %cst_476 = arith.constant 5.000000e-01 : f32
    %1247 = vector.broadcast %cst_476 : f32 to vector<8x32xf32>
    %1248 = arith.addf %1246, %1247 : vector<8x32xf32>
    %1249 = vector.extract_strided_slice %1243 {offsets = [0, 32], sizes = [8, 32], strides = [1, 1]} : vector<8x128xf32> to vector<8x32xf32>
    %cst_477 = arith.constant 5.000000e-01 : f32
    %1250 = vector.broadcast %cst_477 : f32 to vector<8x32xf32>
    %1251 = arith.mulf %1249, %1250 : vector<8x32xf32>
    %cst_478 = arith.constant 5.000000e-01 : f32
    %1252 = vector.broadcast %cst_478 : f32 to vector<8x32xf32>
    %1253 = arith.addf %1251, %1252 : vector<8x32xf32>
    %1254 = vector.extract_strided_slice %1243 {offsets = [0, 64], sizes = [8, 32], strides = [1, 1]} : vector<8x128xf32> to vector<8x32xf32>
    %1255 = vector.extract_strided_slice %1243 {offsets = [0, 96], sizes = [8, 32], strides = [1, 1]} : vector<8x128xf32> to vector<8x32xf32>
    %cst_479 = arith.constant 5.000000e-01 : f32
    %1256 = vector.broadcast %cst_479 : f32 to vector<8x32xf32>
    %1257 = arith.mulf %1255, %1256 : vector<8x32xf32>
    %cst_480 = arith.constant 5.000000e-01 : f32
    %1258 = vector.broadcast %cst_480 : f32 to vector<8x32xf32>
    %1259 = arith.addf %1257, %1258 : vector<8x32xf32>
    %1260 = arith.mulf %1253, %1235 : vector<8x32xf32>
    %1261 = arith.mulf %1248, %1254 : vector<8x32xf32>
    %1262 = arith.addf %1260, %1261 : vector<8x32xf32>
    %1263 = math.tanh %1262 : vector<8x32xf32>
    %1264 = arith.mulf %1259, %1263 : vector<8x32xf32>
    %c6_481 = arith.constant 6 : index
    %c0_482 = arith.constant 0 : index
    %c0_483 = arith.constant 0 : index
    %1265 = vector.load %arg9[%c6_481, %c0_482, %c0_483] : memref<8x8x128xf32, #tpu.memory_space<vmem>>, vector<1x8x128xf32>
    %1266 = vector.shape_cast %1265 : vector<1x8x128xf32> to vector<8x128xf32>
    %1267 = arith.truncf %1264 : vector<8x32xf32> to vector<8x32xbf16>
    %cst_484 = arith.constant dense<0.000000e+00> : vector<8x128xf32>
    %1268 = tpu.matmul %1267, %20, %cst_484 {dimension_numbers = #tpu.dot_dimension_numbers<[1], [0], [0], [1], [0, 0, 1, 1], [], []>} : vector<8x32xbf16>, vector<32x128xbf16>, vector<8x128xf32> -> vector<8x128xf32>
    %1269 = arith.addf %1266, %1268 : vector<8x128xf32>
    %1270 = math.tanh %1269 : vector<8x128xf32>
    %1271 = vector.extract_strided_slice %1270 {offsets = [0, 0], sizes = [8, 32], strides = [1, 1]} : vector<8x128xf32> to vector<8x32xf32>
    %cst_485 = arith.constant 5.000000e-01 : f32
    %1272 = vector.broadcast %cst_485 : f32 to vector<8x32xf32>
    %1273 = arith.mulf %1271, %1272 : vector<8x32xf32>
    %cst_486 = arith.constant 5.000000e-01 : f32
    %1274 = vector.broadcast %cst_486 : f32 to vector<8x32xf32>
    %1275 = arith.addf %1273, %1274 : vector<8x32xf32>
    %1276 = vector.extract_strided_slice %1270 {offsets = [0, 32], sizes = [8, 32], strides = [1, 1]} : vector<8x128xf32> to vector<8x32xf32>
    %cst_487 = arith.constant 5.000000e-01 : f32
    %1277 = vector.broadcast %cst_487 : f32 to vector<8x32xf32>
    %1278 = arith.mulf %1276, %1277 : vector<8x32xf32>
    %cst_488 = arith.constant 5.000000e-01 : f32
    %1279 = vector.broadcast %cst_488 : f32 to vector<8x32xf32>
    %1280 = arith.addf %1278, %1279 : vector<8x32xf32>
    %1281 = vector.extract_strided_slice %1270 {offsets = [0, 64], sizes = [8, 32], strides = [1, 1]} : vector<8x128xf32> to vector<8x32xf32>
    %1282 = vector.extract_strided_slice %1270 {offsets = [0, 96], sizes = [8, 32], strides = [1, 1]} : vector<8x128xf32> to vector<8x32xf32>
    %cst_489 = arith.constant 5.000000e-01 : f32
    %1283 = vector.broadcast %cst_489 : f32 to vector<8x32xf32>
    %1284 = arith.mulf %1282, %1283 : vector<8x32xf32>
    %cst_490 = arith.constant 5.000000e-01 : f32
    %1285 = vector.broadcast %cst_490 : f32 to vector<8x32xf32>
    %1286 = arith.addf %1284, %1285 : vector<8x32xf32>
    %1287 = arith.mulf %1280, %1262 : vector<8x32xf32>
    %1288 = arith.mulf %1275, %1281 : vector<8x32xf32>
    %1289 = arith.addf %1287, %1288 : vector<8x32xf32>
    %1290 = math.tanh %1289 : vector<8x32xf32>
    %1291 = arith.mulf %1286, %1290 : vector<8x32xf32>
    %cst_491 = arith.constant dense<0.000000e+00> : vector<8x40xf32>
    %1292 = tpu.matmul %1291, %14, %cst_491 {dimension_numbers = #tpu.dot_dimension_numbers<[1], [0], [0], [1], [0, 0, 1, 1], [], []>} : vector<8x32xf32>, vector<32x40xf32>, vector<8x40xf32> -> vector<8x40xf32>
    %1293 = arith.addf %1292, %13 : vector<8x40xf32>
    %cst_492 = arith.constant 0.000000e+00 : f32
    %1294 = vector.broadcast %cst_492 : f32 to vector<8x40xf32>
    %1295 = arith.maximumf %1293, %1294 : vector<8x40xf32>
    %cst_493 = arith.constant dense<0.000000e+00> : vector<8xf32>
    %1296 = vector.multi_reduction <add>, %1295, %cst_493 [1] : vector<8x40xf32> to vector<8xf32>
    %1297 = vector.shape_cast %1296 : vector<8xf32> to vector<8x1xf32>
    %cst_494 = arith.constant 4.000000e+01 : f32
    %1298 = vector.broadcast %cst_494 : f32 to vector<8x1xf32>
    %1299 = arith.divf %1297, %1298 : vector<8x1xf32>
    %1300 = vector.broadcast %1299 : vector<8x1xf32> to vector<8x40xf32>
    %1301 = arith.subf %1295, %1300 : vector<8x40xf32>
    %1302 = arith.mulf %1301, %1301 : vector<8x40xf32>
    %cst_495 = arith.constant dense<0.000000e+00> : vector<8xf32>
    %1303 = vector.multi_reduction <add>, %1302, %cst_495 [1] : vector<8x40xf32> to vector<8xf32>
    %1304 = vector.shape_cast %1303 : vector<8xf32> to vector<8x1xf32>
    %cst_496 = arith.constant 4.000000e+01 : f32
    %1305 = vector.broadcast %cst_496 : f32 to vector<8x1xf32>
    %1306 = arith.divf %1304, %1305 : vector<8x1xf32>
    %1307 = vector.broadcast %1299 : vector<8x1xf32> to vector<8x40xf32>
    %1308 = arith.subf %1295, %1307 : vector<8x40xf32>
    %cst_497 = arith.constant 9.99999974E-6 : f32
    %1309 = vector.broadcast %cst_497 : f32 to vector<8x1xf32>
    %1310 = arith.addf %1306, %1309 : vector<8x1xf32>
    %1311 = math.rsqrt %1310 : vector<8x1xf32>
    %1312 = vector.broadcast %1311 : vector<8x1xf32> to vector<8x40xf32>
    %1313 = arith.mulf %1308, %1312 : vector<8x40xf32>
    %1314 = arith.mulf %1313, %6 : vector<8x40xf32>
    %1315 = arith.addf %1314, %9 : vector<8x40xf32>
    %cst_498 = arith.constant dense<0.000000e+00> : vector<8x32xf32>
    %1316 = tpu.matmul %1315, %15, %cst_498 {dimension_numbers = #tpu.dot_dimension_numbers<[1], [0], [0], [1], [0, 0, 1, 1], [], []>} : vector<8x40xf32>, vector<40x32xf32>, vector<8x32xf32> -> vector<8x32xf32>
    %1317 = arith.addf %1316, %12 : vector<8x32xf32>
    %c7_499 = arith.constant 7 : index
    %c0_500 = arith.constant 0 : index
    %c0_501 = arith.constant 0 : index
    %1318 = vector.load %arg8[%c7_499, %c0_500, %c0_501] : memref<8x8x32xf32, #tpu.memory_space<vmem>>, vector<1x8x32xf32>
    %1319 = vector.shape_cast %1318 : vector<1x8x32xf32> to vector<8x32xf32>
    %1320 = vector.shape_cast %1317 : vector<8x32xf32> to vector<1x8x32xf32>
    tpu.vector_store %arg8[%c7_499, %c0_500, %c0_501], %1320 {strides = array<i32>} : memref<8x8x32xf32, #tpu.memory_space<vmem>>, vector<1x8x32xf32>,
    return
  }
}

</mosaic_0001>

<llo_original>
// kernel: mul.24
$region0: #{mul.24}
  %s0 = inlined_call_operand.vmem [shape: f32[2,4], index: 0, kind: input, shape index: {}]
  %s1 = inlined_call_operand.vmem [shape: f32[8], index: 1, kind: output, shape index: {}]
  $region1: #{mul.24} parent=0
    #allocation0 [shape = 'u8[4096]{0}', space=vmem, size = 0x1000, scoped, tag = 'scoped mem for output reshape']
    #allocation1 [shape = 'u8[4096]{0}', space=vmem, size = 0x1000, scoped, tag = 'scoped mem for input reshape']
    %s3 = sshllo.u32 0, 2
    %v4 = vld [vmem:[%s0] sm:%s3]
    %5 = vst [vmem:[#allocation1] sm:%s3] %v4
    %v6 = vld [vmem:[#allocation1] sm:$0x1]
    %vm7 = vcmask 31744
    %8 = vst.msk [vmem:[#allocation0] sm:$0x1] %vm7, %v6
    %s9 = scalar_lea.vmem [#allocation1], 1
    %v10 = vld [vmem:[%s9] sm:$0x1]
    %11 = vrot.lane.b32.xlu0 %v10, 4
    %v12 = vpop.permute.xlu0 %11
    %vm13 = vcmask 64544
    %14 = vst.msk [vmem:[#allocation0] sm:$0x1] %vm13, %v12
    %s16 = sshllo.u32 0, 1
    %v18 = vld [vmem:[#allocation0] sm:%s16]
    %s19 = sshllo.u32 0, 1
    %20 = vst [vmem:[%s1] sm:%s19] %v18

// kernel: seq2seq_reinforce_forward.1
$region0: #{seq2seq_reinforce_forward.1}
  #allocation0 [shape = 'u32[]', space=smem, size = 0x4, offset = 0x4, fixed_abs, tag = 'smem constant byte address 0x4 - core index']
  #allocation1 [shape = 'u32[144,128]{1,0:T(1,128)}', space=vmem, size = 0x12000, scoped, tag = 'internal scratch']
  #allocation2 [shape = 'f32[8,8,128]{2,1,0:T(8,128)}', space=vmem, size = 0x8000, scoped, tag = 'scratch operand']
  %s0 = inlined_call_operand.vmem [shape: s32[8,8], index: 0, kind: input, shape index: {}]
  %s1 = inlined_call_operand.vmem [shape: f32[9,8,128], index: 1, kind: input, shape index: {}]
  %s2 = inlined_call_operand.vmem [shape: bf16[2,32,128], index: 2, kind: input, shape index: {}]
  %s3 = inlined_call_operand.vmem [shape: f32[32,128], index: 3, kind: input, shape index: {}]
  %s4 = inlined_call_operand.vmem [shape: f32[8,40], index: 4, kind: input, shape index: {}]
  %s5 = inlined_call_operand.vmem [shape: f32[32,40], index: 5, kind: input, shape index: {}]
  %s6 = inlined_call_operand.vmem [shape: f32[40,32], index: 6, kind: input, shape index: {}]
  %s7 = inlined_call_operand.vmem [shape: f32[3,128], index: 7, kind: input, shape index: {}]
  %s8 = inlined_call_operand.vmem [shape: f32[8,8,32], index: 8, kind: output, shape index: {}]
  %s9 = sld [smem:[#allocation0]]
  $region42: #{seq2seq_reinforce_forward.1} parent=0
    _
  %s11 = ssub.s32 1, %s9
  %s12 = scalar_select 0, %s11, %s9
  // Predicated region
  $region2: #{seq2seq_reinforce_forward.1} parent=0 // pred_check
    _
  $region3: #{seq2seq_reinforce_forward.1} parent=0 // pred_check_branch
    %14 = sbr.rel (0) target = $region5
  $region4: #{seq2seq_reinforce_forward.1} parent=0 // pred_region
    _
  $region5: #{seq2seq_reinforce_forward.1} parent=0 // pred_fallthru
    _
  // Predicated region
  $region6: #{seq2seq_reinforce_forward.1} parent=0 // pred_check
    _
  $region7: #{seq2seq_reinforce_forward.1} parent=0 // pred_check_branch
    %16 = sbr.rel (0) target = $region9
  $region8: #{seq2seq_reinforce_forward.1} parent=0 // pred_region
    _
  $region9: #{seq2seq_reinforce_forward.1} parent=0 // pred_fallthru
    _
  // Predicated region
  $region10: #{seq2seq_reinforce_forward.1} parent=0 // pred_check
    _
  $region11: #{seq2seq_reinforce_forward.1} parent=0 // pred_check_branch
    %18 = sbr.rel (0) target = $region13
  $region12: #{seq2seq_reinforce_forward.1} parent=0 // pred_region
    _
  $region13: #{seq2seq_reinforce_forward.1} parent=0 // pred_fallthru
    _
  // Predicated region
  $region14: #{seq2seq_reinforce_forward.1} parent=0 // pred_check
    _
  $region15: #{seq2seq_reinforce_forward.1} parent=0 // pred_check_branch
    %20 = sbr.rel (0) target = $region17
  $region16: #{seq2seq_reinforce_forward.1} parent=0 // pred_region
    _
  $region17: #{seq2seq_reinforce_forward.1} parent=0 // pred_fallthru
    _
  // Predicated region
  $region18: #{seq2seq_reinforce_forward.1} parent=0 // pred_check
    _
  $region19: #{seq2seq_reinforce_forward.1} parent=0 // pred_check_branch
    %22 = sbr.rel (0) target = $region21
  $region20: #{seq2seq_reinforce_forward.1} parent=0 // pred_region
    _
  $region21: #{seq2seq_reinforce_forward.1} parent=0 // pred_fallthru
    _
  // Predicated region
  $region22: #{seq2seq_reinforce_forward.1} parent=0 // pred_check
    _
  $region23: #{seq2seq_reinforce_forward.1} parent=0 // pred_check_branch
    %24 = sbr.rel (0) target = $region25
  $region24: #{seq2seq_reinforce_forward.1} parent=0 // pred_region
    _
  $region25: #{seq2seq_reinforce_forward.1} parent=0 // pred_fallthru
    _
  // Predicated region
  $region26: #{seq2seq_reinforce_forward.1} parent=0 // pred_check
    _
  $region27: #{seq2seq_reinforce_forward.1} parent=0 // pred_check_branch
    %26 = sbr.rel (0) target = $region29
  $region28: #{seq2seq_reinforce_forward.1} parent=0 // pred_region
    _
  $region29: #{seq2seq_reinforce_forward.1} parent=0 // pred_fallthru
    _
  // Predicated region
  $region30: #{seq2seq_reinforce_forward.1} parent=0 // pred_check
    _
  $region31: #{seq2seq_reinforce_forward.1} parent=0 // pred_check_branch
    %28 = sbr.rel (0) target = $region33
  $region32: #{seq2seq_reinforce_forward.1} parent=0 // pred_region
    _
  $region33: #{seq2seq_reinforce_forward.1} parent=0 // pred_fallthru
    _
  %v30 = vlaneseq
  %v31 = vand.u32 %v30, 127
  %v32 = vld [vmem:[%s0] sm:$0xff]
  %vm33 = vcmp.eq.s32.totalorder %v32, 3
  %v34 = vld [vmem:[%s7] sm:$0x1]
  %v35 = vlaneseq
  %v36 = vshrl.u32 %v35, 7
  %v37 = vsub.s32 0, %v36
  %v38 = vrot.slane %v34, %v37
  %v39 = vld [vmem:[%s7 + $0x1] sm:$0x1]
  %v40 = vlaneseq
  %v41 = vshrl.u32 %v40, 7
  %v42 = vsub.s32 0, %v41
  %v43 = vrot.slane %v39, %v42
  %v44 = vld [vmem:[%s7 + $0x2] sm:$0x1]
  %v45 = vlaneseq
  %v46 = vshrl.u32 %v45, 7
  %v47 = vsub.s32 0, %v46
  %v48 = vrot.slane %v44, %v47
  %v49 = vld [vmem:[%s4] sm:$0xff]
  %v50 = vld [vmem:[%s5] sm:$0xff]
  %v51 = vld [vmem:[%s5 + $0x8] sm:$0xff]
  %v52 = vld [vmem:[%s5 + $0x10] sm:$0xff]
  %v53 = vld [vmem:[%s5 + $0x18] sm:$0xff]
  %v54 = vld [vmem:[%s6] sm:$0xff]
  %v55 = vld [vmem:[%s6 + $0x8] sm:$0xff]
  %v56 = vld [vmem:[%s6 + $0x10] sm:$0xff]
  %v57 = vld [vmem:[%s6 + $0x18] sm:$0xff]
  %v58 = vld [vmem:[%s6 + $0x20] sm:$0xff]
  %v59 = vld [vmem:[%s3] sm:$0xff]
  %v60 = vld [vmem:[%s3 + $0x8] sm:$0xff]
  %v61 = vld [vmem:[%s3 + $0x10] sm:$0xff]
  %v62 = vld [vmem:[%s3 + $0x18] sm:$0xff]
  %v63 = vld [vmem:[%s2] sm:$0xf]
  %v64 = vld [vmem:[%s2 + $0x4] sm:$0xf]
  %v65 = vld [vmem:[%s2 + $0x8] sm:$0xf]
  %v66 = vld [vmem:[%s2 + $0xc] sm:$0xf]
  %s67 = scalar_lea.vmem %s2, 16
  %v68 = vld [vmem:[%s67] sm:$0xf]
  %v69 = vld [vmem:[%s67 + $0x4] sm:$0xf]
  %v70 = vld [vmem:[%s67 + $0x8] sm:$0xf]
  %v71 = vld [vmem:[%s67 + $0xc] sm:$0xf]
  %v72 = vld [vmem:[%s1] sm:$0xff]
  %v77 = vunpack.c.l.b16 %v63
  %v78 = vunpack.c.l.b16 %v64
  %v79 = vunpack.c.l.b16 %v65
  %v80 = vunpack.c.l.b16 %v66
  %v81 = vpack.c.b16 %v78, %v77
  %v82 = vpack.c.b16 %v80, %v79
  %vm85 = vcmask 261120
  %v87 = vsel %vm85, 0, 0
  %89 = vmatprep.subr.bf16.mxu0 0
  %90 = vmatpush1.bf16.msra.mxu0 %v81
  %91 = vmatprep.subr.bf16.mxu0 0
  %92 = vmatpush1.bf16.msra.mxu0 %v82
  %93 = vmatprep.subr.bf16.mxu0 0
  %94 = vmatpush1.bf16.msra.mxu0 0
  %95 = vmatprep.subr.bf16.mxu0 0
  %96 = vmatpush1.bf16.msra.mxu0 0
  %97 = vmatprep.subr.bf16.mxu0 0
  %98 = vmatpush1.bf16.msra.mxu0 0
  %99 = vmatprep.subr.bf16.mxu0 0
  %100 = vmatpush1.bf16.msra.mxu0 0
  %101 = vmatprep.subr.bf16.mxu0 0
  %102 = vmatpush1.bf16.msra.mxu0 0
  %103 = vmatprep.subr.bf16.mxu0 0
  %104 = vmatpush1.bf16.msra.mxu0 0
  %105 = vmatprep.subr.bf16.mxu0 0
  %106 = vmatpush1.bf16.msra.mxu0 0
  %107 = vmatprep.subr.bf16.mxu0 0
  %108 = vmatpush1.bf16.msra.mxu0 0
  %109 = vmatprep.subr.bf16.mxu0 0
  %110 = vmatpush1.bf16.msra.mxu0 0
  %111 = vmatprep.subr.bf16.mxu0 0
  %112 = vmatpush1.bf16.msra.mxu0 0
  %113 = vmatprep.subr.bf16.mxu0 0
  %114 = vmatpush1.bf16.msra.mxu0 0
  %115 = vmatprep.subr.bf16.mxu0 0
  %116 = vmatpush1.bf16.msra.mxu0 0
  %117 = vmatprep.subr.bf16.mxu0 0
  %118 = vmatpush1.bf16.msra.mxu0 0
  %119 = vmatprep.subr.bf16.mxu0 0
  %120 = vmatpush1.bf16.msra.mxu0 0
  %121 = vmatprep.mubr.bf16.mxu0 0
  %122 = vmatmul.mubr.bf16.gmra.mrb[0].mxu0 %v87
  %v123 = vpop.f32.mrb[0].mxu0
  %v124 = vadd.f32 0.0, %v123
  %v125 = vpop.f32.mrb[0].mxu0
  %v126 = vpop.f32.mrb[0].mxu0
  %v127 = vpop.f32.mrb[0].mxu0
  %128 = vdwg.mxu0
  %v129 = vadd.f32 %v72, %v124
  %v130 = vtanh.pop %v129
  %v131 = vmul.f32 %v130, 0.5
  %v132 = vadd.f32 %v131, 0.5
  %v133 = vmul.f32 %v132, 0.0
  %135 = vrot.lane.b32.xlu0 %v130, 64
  %v136 = vpop.permute.xlu0 %135
  %v138 = vmul.f32 %v132, %v136
  %140 = vrot.lane.b32.xlu0 %v138, 32
  %v141 = vpop.permute.xlu0 %140
  %v143 = vadd.f32 %v133, %v141
  %v144 = vtanh.pop %v143
  %146 = vrot.lane.b32.xlu0 %v144, 64
  %v147 = vpop.permute.xlu0 %146
  %v149 = vmul.f32 %v132, %v147
  %s150 = scalar_lea.vmem %s1, 8
  %v151 = vld [vmem:[%s150] sm:$0xff]
  %v152 = vpack.c.bf16 %v149, %v149
  %154 = vrot.lane.b32.xlu0 %v152, 32
  %v155 = vpop.permute.xlu0 %154
  %v157 = vsel %vm85, %v155, 0
  %159 = vmatprep.subr.bf16.mxu0 0
  %160 = vmatpush1.bf16.msra.mxu0 %v81
  %161 = vmatprep.subr.bf16.mxu0 0
  %162 = vmatpush1.bf16.msra.mxu0 %v82
  %163 = vmatprep.subr.bf16.mxu0 0
  %164 = vmatpush1.bf16.msra.mxu0 0
  %165 = vmatprep.subr.bf16.mxu0 0
  %166 = vmatpush1.bf16.msra.mxu0 0
  %167 = vmatprep.subr.bf16.mxu0 0
  %168 = vmatpush1.bf16.msra.mxu0 0
  %169 = vmatprep.subr.bf16.mxu0 0
  %170 = vmatpush1.bf16.msra.mxu0 0
  %171 = vmatprep.subr.bf16.mxu0 0
  %172 = vmatpush1.bf16.msra.mxu0 0
  %173 = vmatprep.subr.bf16.mxu0 0
  %174 = vmatpush1.bf16.msra.mxu0 0
  %175 = vmatprep.subr.bf16.mxu0 0
  %176 = vmatpush1.bf16.msra.mxu0 0
  %177 = vmatprep.subr.bf16.mxu0 0
  %178 = vmatpush1.bf16.msra.mxu0 0
  %179 = vmatprep.subr.bf16.mxu0 0
  %180 = vmatpush1.bf16.msra.mxu0 0
  %181 = vmatprep.subr.bf16.mxu0 0
  %182 = vmatpush1.bf16.msra.mxu0 0
  %183 = vmatprep.subr.bf16.mxu0 0
  %184 = vmatpush1.bf16.msra.mxu0 0
  %185 = vmatprep.subr.bf16.mxu0 0
  %186 = vmatpush1.bf16.msra.mxu0 0
  %187 = vmatprep.subr.bf16.mxu0 0
  %188 = vmatpush1.bf16.msra.mxu0 0
  %189 = vmatprep.subr.bf16.mxu0 0
  %190 = vmatpush1.bf16.msra.mxu0 0
  %191 = vmatprep.mubr.bf16.mxu0 0
  %192 = vmatmul.mubr.bf16.gmra.mrb[0].mxu0 %v157
  %v193 = vpop.f32.mrb[0].mxu0
  %v194 = vadd.f32 0.0, %v193
  %v195 = vpop.f32.mrb[0].mxu0
  %v196 = vpop.f32.mrb[0].mxu0
  %v197 = vpop.f32.mrb[0].mxu0
  %198 = vdwg.mxu0
  %v199 = vadd.f32 %v151, %v194
  %v200 = vtanh.pop %v199
  %v201 = vmul.f32 %v200, 0.5
  %v202 = vadd.f32 %v201, 0.5
  %v203 = vmul.f32 %v202, %v143
  %205 = vrot.lane.b32.xlu0 %v200, 64
  %v206 = vpop.permute.xlu0 %205
  %v208 = vmul.f32 %v202, %v206
  %210 = vrot.lane.b32.xlu0 %v208, 32
  %v211 = vpop.permute.xlu0 %210
  %v213 = vadd.f32 %v203, %v211
  %v214 = vtanh.pop %v213
  %216 = vrot.lane.b32.xlu0 %v214, 64
  %v217 = vpop.permute.xlu0 %216
  %v219 = vmul.f32 %v202, %v217
  %s220 = scalar_lea.vmem %s1, 16
  %v221 = vld [vmem:[%s220] sm:$0xff]
  %v222 = vpack.c.bf16 %v219, %v219
  %224 = vrot.lane.b32.xlu0 %v222, 32
  %v225 = vpop.permute.xlu0 %224
  %v227 = vsel %vm85, %v225, 0
  %229 = vmatprep.subr.bf16.mxu0 0
  %230 = vmatpush1.bf16.msra.mxu0 %v81
  %231 = vmatprep.subr.bf16.mxu0 0
  %232 = vmatpush1.bf16.msra.mxu0 %v82
  %233 = vmatprep.subr.bf16.mxu0 0
  %234 = vmatpush1.bf16.msra.mxu0 0
  %235 = vmatprep.subr.bf16.mxu0 0
  %236 = vmatpush1.bf16.msra.mxu0 0
  %237 = vmatprep.subr.bf16.mxu0 0
  %238 = vmatpush1.bf16.msra.mxu0 0
  %239 = vmatprep.subr.bf16.mxu0 0
  %240 = vmatpush1.bf16.msra.mxu0 0
  %241 = vmatprep.subr.bf16.mxu0 0
  %242 = vmatpush1.bf16.msra.mxu0 0
  %243 = vmatprep.subr.bf16.mxu0 0
  %244 = vmatpush1.bf16.msra.mxu0 0
  %245 = vmatprep.subr.bf16.mxu0 0
  %246 = vmatpush1.bf16.msra.mxu0 0
  %247 = vmatprep.subr.bf16.mxu0 0
  %248 = vmatpush1.bf16.msra.mxu0 0
  %249 = vmatprep.subr.bf16.mxu0 0
  %250 = vmatpush1.bf16.msra.mxu0 0
  %251 = vmatprep.subr.bf16.mxu0 0
  %252 = vmatpush1.bf16.msra.mxu0 0
  %253 = vmatprep.subr.bf16.mxu0 0
  %254 = vmatpush1.bf16.msra.mxu0 0
  %255 = vmatprep.subr.bf16.mxu0 0
  %256 = vmatpush1.bf16.msra.mxu0 0
  %257 = vmatprep.subr.bf16.mxu0 0
  %258 = vmatpush1.bf16.msra.mxu0 0
  %259 = vmatprep.subr.bf16.mxu0 0
  %260 = vmatpush1.bf16.msra.mxu0 0
  %261 = vmatprep.mubr.bf16.mxu0 0
  %262 = vmatmul.mubr.bf16.gmra.mrb[0].mxu0 %v227
  %v263 = vpop.f32.mrb[0].mxu0
  %v264 = vadd.f32 0.0, %v263
  %v265 = vpop.f32.mrb[0].mxu0
  %v266 = vpop.f32.mrb[0].mxu0
  %v267 = vpop.f32.mrb[0].mxu0
  %268 = vdwg.mxu0
  %v269 = vadd.f32 %v221, %v264
  %v270 = vtanh.pop %v269
  %v271 = vmul.f32 %v270, 0.5
  %v272 = vadd.f32 %v271, 0.5
  %v273 = vmul.f32 %v272, %v213
  %275 = vrot.lane.b32.xlu0 %v270, 64
  %v276 = vpop.permute.xlu0 %275
  %v278 = vmul.f32 %v272, %v276
  %280 = vrot.lane.b32.xlu0 %v278, 32
  %v281 = vpop.permute.xlu0 %280
  %v283 = vadd.f32 %v273, %v281
  %v284 = vtanh.pop %v283
  %286 = vrot.lane.b32.xlu0 %v284, 64
  %v287 = vpop.permute.xlu0 %286
  %v289 = vmul.f32 %v272, %v287
  %s290 = scalar_lea.vmem %s1, 24
  %v291 = vld [vmem:[%s290] sm:$0xff]
  %v292 = vpack.c.bf16 %v289, %v289
  %294 = vrot.lane.b32.xlu0 %v292, 32
  %v295 = vpop.permute.xlu0 %294
  %v297 = vsel %vm85, %v295, 0
  %299 = vmatprep.subr.bf16.mxu0 0
  %300 = vmatpush1.bf16.msra.mxu0 %v81
  %301 = vmatprep.subr.bf16.mxu0 0
  %302 = vmatpush1.bf16.msra.mxu0 %v82
  %303 = vmatprep.subr.bf16.mxu0 0
  %304 = vmatpush1.bf16.msra.mxu0 0
  %305 = vmatprep.subr.bf16.mxu0 0
  %306 = vmatpush1.bf16.msra.mxu0 0
  %307 = vmatprep.subr.bf16.mxu0 0
  %308 = vmatpush1.bf16.msra.mxu0 0
  %309 = vmatprep.subr.bf16.mxu0 0
  %310 = vmatpush1.bf16.msra.mxu0 0
  %311 = vmatprep.subr.bf16.mxu0 0
  %312 = vmatpush1.bf16.msra.mxu0 0
  %313 = vmatprep.subr.bf16.mxu0 0
  %314 = vmatpush1.bf16.msra.mxu0 0
  %315 = vmatprep.subr.bf16.mxu0 0
  %316 = vmatpush1.bf16.msra.mxu0 0
  %317 = vmatprep.subr.bf16.mxu0 0
  %318 = vmatpush1.bf16.msra.mxu0 0
  %319 = vmatprep.subr.bf16.mxu0 0
  %320 = vmatpush1.bf16.msra.mxu0 0
  %321 = vmatprep.subr.bf16.mxu0 0
  %322 = vmatpush1.bf16.msra.mxu0 0
  %323 = vmatprep.subr.bf16.mxu0 0
  %324 = vmatpush1.bf16.msra.mxu0 0
  %325 = vmatprep.subr.bf16.mxu0 0
  %326 = vmatpush1.bf16.msra.mxu0 0
  %327 = vmatprep.subr.bf16.mxu0 0
  %328 = vmatpush1.bf16.msra.mxu0 0
  %329 = vmatprep.subr.bf16.mxu0 0
  %330 = vmatpush1.bf16.msra.mxu0 0
  %331 = vmatprep.mubr.bf16.mxu0 0
  %332 = vmatmul.mubr.bf16.gmra.mrb[0].mxu0 %v297
  %v333 = vpop.f32.mrb[0].mxu0
  %v334 = vadd.f32 0.0, %v333
  %v335 = vpop.f32.mrb[0].mxu0
  %v336 = vpop.f32.mrb[0].mxu0
  %v337 = vpop.f32.mrb[0].mxu0
  %338 = vdwg.mxu0
  %v339 = vadd.f32 %v291, %v334
  %v340 = vtanh.pop %v339
  %v341 = vmul.f32 %v340, 0.5
  %v342 = vadd.f32 %v341, 0.5
  %v343 = vmul.f32 %v342, %v283
  %345 = vrot.lane.b32.xlu0 %v340, 64
  %v346 = vpop.permute.xlu0 %345
  %v348 = vmul.f32 %v342, %v346
  %350 = vrot.lane.b32.xlu0 %v348, 32
  %v351 = vpop.permute.xlu0 %350
  %v353 = vadd.f32 %v343, %v351
  %v354 = vtanh.pop %v353
  %356 = vrot.lane.b32.xlu0 %v354, 64
  %v357 = vpop.permute.xlu0 %356
  %v359 = vmul.f32 %v342, %v357
  %s360 = scalar_lea.vmem %s1, 32
  %v361 = vld [vmem:[%s360] sm:$0xff]
  %v362 = vpack.c.bf16 %v359, %v359
  %364 = vrot.lane.b32.xlu0 %v362, 32
  %v365 = vpop.permute.xlu0 %364
  %v367 = vsel %vm85, %v365, 0
  %369 = vmatprep.subr.bf16.mxu0 0
  %370 = vmatpush1.bf16.msra.mxu0 %v81
  %371 = vmatprep.subr.bf16.mxu0 0
  %372 = vmatpush1.bf16.msra.mxu0 %v82
  %373 = vmatprep.subr.bf16.mxu0 0
  %374 = vmatpush1.bf16.msra.mxu0 0
  %375 = vmatprep.subr.bf16.mxu0 0
  %376 = vmatpush1.bf16.msra.mxu0 0
  %377 = vmatprep.subr.bf16.mxu0 0
  %378 = vmatpush1.bf16.msra.mxu0 0
  %379 = vmatprep.subr.bf16.mxu0 0
  %380 = vmatpush1.bf16.msra.mxu0 0
  %381 = vmatprep.subr.bf16.mxu0 0
  %382 = vmatpush1.bf16.msra.mxu0 0
  %383 = vmatprep.subr.bf16.mxu0 0
  %384 = vmatpush1.bf16.msra.mxu0 0
  %385 = vmatprep.subr.bf16.mxu0 0
  %386 = vmatpush1.bf16.msra.mxu0 0
  %387 = vmatprep.subr.bf16.mxu0 0
  %388 = vmatpush1.bf16.msra.mxu0 0
  %389 = vmatprep.subr.bf16.mxu0 0
  %390 = vmatpush1.bf16.msra.mxu0 0
  %391 = vmatprep.subr.bf16.mxu0 0
  %392 = vmatpush1.bf16.msra.mxu0 0
  %393 = vmatprep.subr.bf16.mxu0 0
  %394 = vmatpush1.bf16.msra.mxu0 0
  %395 = vmatprep.subr.bf16.mxu0 0
  %396 = vmatpush1.bf16.msra.mxu0 0
  %397 = vmatprep.subr.bf16.mxu0 0
  %398 = vmatpush1.bf16.msra.mxu0 0
  %399 = vmatprep.subr.bf16.mxu0 0
  %400 = vmatpush1.bf16.msra.mxu0 0
  %401 = vmatprep.mubr.bf16.mxu0 0
  %402 = vmatmul.mubr.bf16.gmra.mrb[0].mxu0 %v367
  %v403 = vpop.f32.mrb[0].mxu0
  %v404 = vadd.f32 0.0, %v403
  %v405 = vpop.f32.mrb[0].mxu0
  %v406 = vpop.f32.mrb[0].mxu0
  %v407 = vpop.f32.mrb[0].mxu0
  %408 = vdwg.mxu0
  %v409 = vadd.f32 %v361, %v404
  %v410 = vtanh.pop %v409
  %v411 = vmul.f32 %v410, 0.5
  %v412 = vadd.f32 %v411, 0.5
  %v413 = vmul.f32 %v412, %v353
  %415 = vrot.lane.b32.xlu0 %v410, 64
  %v416 = vpop.permute.xlu0 %415
  %v418 = vmul.f32 %v412, %v416
  %420 = vrot.lane.b32.xlu0 %v418, 32
  %v421 = vpop.permute.xlu0 %420
  %v423 = vadd.f32 %v413, %v421
  %v424 = vtanh.pop %v423
  %426 = vrot.lane.b32.xlu0 %v424, 64
  %v427 = vpop.permute.xlu0 %426
  %v429 = vmul.f32 %v412, %v427
  %s430 = scalar_lea.vmem %s1, 40
  %v431 = vld [vmem:[%s430] sm:$0xff]
  %v432 = vpack.c.bf16 %v429, %v429
  %434 = vrot.lane.b32.xlu0 %v432, 32
  %v435 = vpop.permute.xlu0 %434
  %v437 = vsel %vm85, %v435, 0
  %439 = vmatprep.subr.bf16.mxu0 0
  %440 = vmatpush1.bf16.msra.mxu0 %v81
  %441 = vmatprep.subr.bf16.mxu0 0
  %442 = vmatpush1.bf16.msra.mxu0 %v82
  %443 = vmatprep.subr.bf16.mxu0 0
  %444 = vmatpush1.bf16.msra.mxu0 0
  %445 = vmatprep.subr.bf16.mxu0 0
  %446 = vmatpush1.bf16.msra.mxu0 0
  %447 = vmatprep.subr.bf16.mxu0 0
  %448 = vmatpush1.bf16.msra.mxu0 0
  %449 = vmatprep.subr.bf16.mxu0 0
  %450 = vmatpush1.bf16.msra.mxu0 0
  %451 = vmatprep.subr.bf16.mxu0 0
  %452 = vmatpush1.bf16.msra.mxu0 0
  %453 = vmatprep.subr.bf16.mxu0 0
  %454 = vmatpush1.bf16.msra.mxu0 0
  %455 = vmatprep.subr.bf16.mxu0 0
  %456 = vmatpush1.bf16.msra.mxu0 0
  %457 = vmatprep.subr.bf16.mxu0 0
  %458 = vmatpush1.bf16.msra.mxu0 0
  %459 = vmatprep.subr.bf16.mxu0 0
  %460 = vmatpush1.bf16.msra.mxu0 0
  %461 = vmatprep.subr.bf16.mxu0 0
  %462 = vmatpush1.bf16.msra.mxu0 0
  %463 = vmatprep.subr.bf16.mxu0 0
  %464 = vmatpush1.bf16.msra.mxu0 0
  %465 = vmatprep.subr.bf16.mxu0 0
  %466 = vmatpush1.bf16.msra.mxu0 0
  %467 = vmatprep.subr.bf16.mxu0 0
  %468 = vmatpush1.bf16.msra.mxu0 0
  %469 = vmatprep.subr.bf16.mxu0 0
  %470 = vmatpush1.bf16.msra.mxu0 0
  %471 = vmatprep.mubr.bf16.mxu0 0
  %472 = vmatmul.mubr.bf16.gmra.mrb[0].mxu0 %v437
  %v473 = vpop.f32.mrb[0].mxu0
  %v474 = vadd.f32 0.0, %v473
  %v475 = vpop.f32.mrb[0].mxu0
  %v476 = vpop.f32.mrb[0].mxu0
  %v477 = vpop.f32.mrb[0].mxu0
  %478 = vdwg.mxu0
  %v479 = vadd.f32 %v431, %v474
  %v480 = vtanh.pop %v479
  %v481 = vmul.f32 %v480, 0.5
  %v482 = vadd.f32 %v481, 0.5
  %v483 = vmul.f32 %v482, %v423
  %485 = vrot.lane.b32.xlu0 %v480, 64
  %v486 = vpop.permute.xlu0 %485
  %v488 = vmul.f32 %v482, %v486
  %490 = vrot.lane.b32.xlu0 %v488, 32
  %v491 = vpop.permute.xlu0 %490
  %v493 = vadd.f32 %v483, %v491
  %v494 = vtanh.pop %v493
  %496 = vrot.lane.b32.xlu0 %v494, 64
  %v497 = vpop.permute.xlu0 %496
  %v499 = vmul.f32 %v482, %v497
  %s500 = scalar_lea.vmem %s1, 48
  %v501 = vld [vmem:[%s500] sm:$0xff]
  %v502 = vpack.c.bf16 %v499, %v499
  %504 = vrot.lane.b32.xlu0 %v502, 32
  %v505 = vpop.permute.xlu0 %504
  %v507 = vsel %vm85, %v505, 0
  %509 = vmatprep.subr.bf16.mxu0 0
  %510 = vmatpush1.bf16.msra.mxu0 %v81
  %511 = vmatprep.subr.bf16.mxu0 0
  %512 = vmatpush1.bf16.msra.mxu0 %v82
  %513 = vmatprep.subr.bf16.mxu0 0
  %514 = vmatpush1.bf16.msra.mxu0 0
  %515 = vmatprep.subr.bf16.mxu0 0
  %516 = vmatpush1.bf16.msra.mxu0 0
  %517 = vmatprep.subr.bf16.mxu0 0
  %518 = vmatpush1.bf16.msra.mxu0 0
  %519 = vmatprep.subr.bf16.mxu0 0
  %520 = vmatpush1.bf16.msra.mxu0 0
  %521 = vmatprep.subr.bf16.mxu0 0
  %522 = vmatpush1.bf16.msra.mxu0 0
  %523 = vmatprep.subr.bf16.mxu0 0
  %524 = vmatpush1.bf16.msra.mxu0 0
  %525 = vmatprep.subr.bf16.mxu0 0
  %526 = vmatpush1.bf16.msra.mxu0 0
  %527 = vmatprep.subr.bf16.mxu0 0
  %528 = vmatpush1.bf16.msra.mxu0 0
  %529 = vmatprep.subr.bf16.mxu0 0
  %530 = vmatpush1.bf16.msra.mxu0 0
  %531 = vmatprep.subr.bf16.mxu0 0
  %532 = vmatpush1.bf16.msra.mxu0 0
  %533 = vmatprep.subr.bf16.mxu0 0
  %534 = vmatpush1.bf16.msra.mxu0 0
  %535 = vmatprep.subr.bf16.mxu0 0
  %536 = vmatpush1.bf16.msra.mxu0 0
  %537 = vmatprep.subr.bf16.mxu0 0
  %538 = vmatpush1.bf16.msra.mxu0 0
  %539 = vmatprep.subr.bf16.mxu0 0
  %540 = vmatpush1.bf16.msra.mxu0 0
  %541 = vmatprep.mubr.bf16.mxu0 0
  %542 = vmatmul.mubr.bf16.gmra.mrb[0].mxu0 %v507
  %v543 = vpop.f32.mrb[0].mxu0
  %v544 = vadd.f32 0.0, %v543
  %v545 = vpop.f32.mrb[0].mxu0
  %v546 = vpop.f32.mrb[0].mxu0
  %v547 = vpop.f32.mrb[0].mxu0
  %548 = vdwg.mxu0
  %v549 = vadd.f32 %v501, %v544
  %v550 = vtanh.pop %v549
  %v551 = vmul.f32 %v550, 0.5
  %v552 = vadd.f32 %v551, 0.5
  %v553 = vmul.f32 %v552, %v493
  %555 = vrot.lane.b32.xlu0 %v550, 64
  %v556 = vpop.permute.xlu0 %555
  %v558 = vmul.f32 %v552, %v556
  %560 = vrot.lane.b32.xlu0 %v558, 32
  %v561 = vpop.permute.xlu0 %560
  %v563 = vadd.f32 %v553, %v561
  %v564 = vtanh.pop %v563
  %566 = vrot.lane.b32.xlu0 %v564, 64
  %v567 = vpop.permute.xlu0 %566
  %v569 = vmul.f32 %v552, %v567
  %s570 = scalar_lea.vmem %s1, 56
  %v571 = vld [vmem:[%s570] sm:$0xff]
  %v572 = vpack.c.bf16 %v569, %v569
  %574 = vrot.lane.b32.xlu0 %v572, 32
  %v575 = vpop.permute.xlu0 %574
  %v577 = vsel %vm85, %v575, 0
  %579 = vmatprep.subr.bf16.mxu0 0
  %580 = vmatpush1.bf16.msra.mxu0 %v81
  %581 = vmatprep.subr.bf16.mxu0 0
  %582 = vmatpush1.bf16.msra.mxu0 %v82
  %583 = vmatprep.subr.bf16.mxu0 0
  %584 = vmatpush1.bf16.msra.mxu0 0
  %585 = vmatprep.subr.bf16.mxu0 0
  %586 = vmatpush1.bf16.msra.mxu0 0
  %587 = vmatprep.subr.bf16.mxu0 0
  %588 = vmatpush1.bf16.msra.mxu0 0
  %589 = vmatprep.subr.bf16.mxu0 0
  %590 = vmatpush1.bf16.msra.mxu0 0
  %591 = vmatprep.subr.bf16.mxu0 0
  %592 = vmatpush1.bf16.msra.mxu0 0
  %593 = vmatprep.subr.bf16.mxu0 0
  %594 = vmatpush1.bf16.msra.mxu0 0
  %595 = vmatprep.subr.bf16.mxu0 0
  %596 = vmatpush1.bf16.msra.mxu0 0
  %597 = vmatprep.subr.bf16.mxu0 0
  %598 = vmatpush1.bf16.msra.mxu0 0
  %599 = vmatprep.subr.bf16.mxu0 0
  %600 = vmatpush1.bf16.msra.mxu0 0
  %601 = vmatprep.subr.bf16.mxu0 0
  %602 = vmatpush1.bf16.msra.mxu0 0
  %603 = vmatprep.subr.bf16.mxu0 0
  %604 = vmatpush1.bf16.msra.mxu0 0
  %605 = vmatprep.subr.bf16.mxu0 0
  %606 = vmatpush1.bf16.msra.mxu0 0
  %607 = vmatprep.subr.bf16.mxu0 0
  %608 = vmatpush1.bf16.msra.mxu0 0
  %609 = vmatprep.subr.bf16.mxu0 0
  %610 = vmatpush1.bf16.msra.mxu0 0
  %611 = vmatprep.mubr.bf16.mxu0 0
  %612 = vmatmul.mubr.bf16.gmra.mrb[0].mxu0 %v577
  %v613 = vpop.f32.mrb[0].mxu0
  %v614 = vadd.f32 0.0, %v613
  %v615 = vpop.f32.mrb[0].mxu0
  %v616 = vpop.f32.mrb[0].mxu0
  %v617 = vpop.f32.mrb[0].mxu0
  %618 = vdwg.mxu0
  %v619 = vadd.f32 %v571, %v614
  %v620 = vtanh.pop %v619
  %v621 = vmul.f32 %v620, 0.5
  %v622 = vadd.f32 %v621, 0.5
  %v623 = vmul.f32 %v622, %v563
  %625 = vrot.lane.b32.xlu0 %v620, 64
  %v626 = vpop.permute.xlu0 %625
  %v628 = vmul.f32 %v622, %v626
  %630 = vrot.lane.b32.xlu0 %v628, 32
  %v631 = vpop.permute.xlu0 %630
  %v633 = vadd.f32 %v623, %v631
  %v634 = vtanh.pop %v633
  %636 = vrot.lane.b32.xlu0 %v634, 64
  %v637 = vpop.permute.xlu0 %636
  %v639 = vmul.f32 %v622, %v637
  %640 = vst.msk [vmem:[%s8] sm:$0xff] %vm85, 0.0
  %s641 = scalar_lea.vmem %s1, 64
  %v642 = vld [vmem:[%s641] sm:$0xff]
  %643 = vst [vmem:[#allocation2] sm:$0xff] %v642
  %v644 = vld [vmem:[#allocation2] sm:$0xff]
  %v645 = vpack.c.bf16 %v639, %v639
  %647 = vrot.lane.b32.xlu0 %v645, 32
  %v648 = vpop.permute.xlu0 %647
  %v653 = vunpack.c.l.b16 %v68
  %v654 = vunpack.c.l.b16 %v69
  %v655 = vunpack.c.l.b16 %v70
  %v656 = vunpack.c.l.b16 %v71
  %v657 = vpack.c.b16 %v654, %v653
  %v658 = vpack.c.b16 %v656, %v655
  %v662 = vsel %vm85, %v648, 0
  %664 = vmatprep.subr.bf16.mxu0 0
  %665 = vmatpush1.bf16.msra.mxu0 %v657
  %666 = vmatprep.subr.bf16.mxu0 0
  %667 = vmatpush1.bf16.msra.mxu0 %v658
  %668 = vmatprep.subr.bf16.mxu0 0
  %669 = vmatpush1.bf16.msra.mxu0 0
  %670 = vmatprep.subr.bf16.mxu0 0
  %671 = vmatpush1.bf16.msra.mxu0 0
  %672 = vmatprep.subr.bf16.mxu0 0
  %673 = vmatpush1.bf16.msra.mxu0 0
  %674 = vmatprep.subr.bf16.mxu0 0
  %675 = vmatpush1.bf16.msra.mxu0 0
  %676 = vmatprep.subr.bf16.mxu0 0
  %677 = vmatpush1.bf16.msra.mxu0 0
  %678 = vmatprep.subr.bf16.mxu0 0
  %679 = vmatpush1.bf16.msra.mxu0 0
  %680 = vmatprep.subr.bf16.mxu0 0
  %681 = vmatpush1.bf16.msra.mxu0 0
  %682 = vmatprep.subr.bf16.mxu0 0
  %683 = vmatpush1.bf16.msra.mxu0 0
  %684 = vmatprep.subr.bf16.mxu0 0
  %685 = vmatpush1.bf16.msra.mxu0 0
  %686 = vmatprep.subr.bf16.mxu0 0
  %687 = vmatpush1.bf16.msra.mxu0 0
  %688 = vmatprep.subr.bf16.mxu0 0
  %689 = vmatpush1.bf16.msra.mxu0 0
  %690 = vmatprep.subr.bf16.mxu0 0
  %691 = vmatpush1.bf16.msra.mxu0 0
  %692 = vmatprep.subr.bf16.mxu0 0
  %693 = vmatpush1.bf16.msra.mxu0 0
  %694 = vmatprep.subr.bf16.mxu0 0
  %695 = vmatpush1.bf16.msra.mxu0 0
  %696 = vmatprep.mubr.bf16.mxu0 0
  %697 = vmatmul.mubr.bf16.gmra.mrb[0].mxu0 %v662
  %v698 = vpop.f32.mrb[0].mxu0
  %v699 = vadd.f32 0.0, %v698
  %v700 = vpop.f32.mrb[0].mxu0
  %v701 = vpop.f32.mrb[0].mxu0
  %v702 = vpop.f32.mrb[0].mxu0
  %703 = vdwg.mxu0
  %v704 = vadd.f32 %v644, %v699
  %v705 = vtanh.pop %v704
  %v706 = vmul.f32 %v705, 0.5
  %v707 = vadd.f32 %v706, 0.5
  %v708 = vmul.f32 %v707, %v633
  %710 = vrot.lane.b32.xlu0 %v705, 64
  %v711 = vpop.permute.xlu0 %710
  %v713 = vmul.f32 %v707, %v711
  %715 = vrot.lane.b32.xlu0 %v713, 32
  %v716 = vpop.permute.xlu0 %715
  %v718 = vadd.f32 %v708, %v716
  %v719 = vtanh.pop %v718
  %721 = vrot.lane.b32.xlu0 %v719, 64
  %v722 = vpop.permute.xlu0 %721
  %v724 = vmul.f32 %v707, %v722
  %726 = vrot.lane.b32.xlu0 %v724, 32
  %v727 = vpop.permute.xlu0 %726
  %v728 = vsel %vm85, %v727, 0
  %730 = vmatprep.subr.mxu0 0.0
  %731 = vmatpush1.msra.mxu0 %v50
  %732 = vmatprep.subr.mxu0 0.0
  %733 = vmatpush1.msra.mxu0 %v51
  %734 = vmatprep.subr.mxu0 0.0
  %735 = vmatpush1.msra.mxu0 %v52
  %736 = vmatprep.subr.mxu0 0.0
  %737 = vmatpush1.msra.mxu0 %v53
  %738 = vmatprep.subr.mxu0 0.0
  %739 = vmatpush1.msra.mxu0 0.0
  %740 = vmatprep.subr.mxu0 0.0
  %741 = vmatpush1.msra.mxu0 0.0
  %742 = vmatprep.subr.mxu0 0.0
  %743 = vmatpush1.msra.mxu0 0.0
  %744 = vmatprep.subr.mxu0 0.0
  %745 = vmatpush1.msra.mxu0 0.0
  %746 = vmatprep.subr.mxu0 0.0
  %747 = vmatpush1.msra.mxu0 0.0
  %748 = vmatprep.subr.mxu0 0.0
  %749 = vmatpush1.msra.mxu0 0.0
  %750 = vmatprep.subr.mxu0 0.0
  %751 = vmatpush1.msra.mxu0 0.0
  %752 = vmatprep.subr.mxu0 0.0
  %753 = vmatpush1.msra.mxu0 0.0
  %754 = vmatprep.subr.mxu0 0.0
  %755 = vmatpush1.msra.mxu0 0.0
  %756 = vmatprep.subr.mxu0 0.0
  %757 = vmatpush1.msra.mxu0 0.0
  %758 = vmatprep.subr.mxu0 0.0
  %759 = vmatpush1.msra.mxu0 0.0
  %760 = vmatprep.subr.mxu0 0.0
  %761 = vmatpush1.msra.mxu0 0.0
  %762 = vmatprep.subr.mxu0 0.0
  %763 = vmatpush1.msra.mxu0 0.0
  %764 = vmatprep.subr.mxu0 0.0
  %765 = vmatpush1.msra.mxu0 0.0
  %766 = vmatprep.subr.mxu0 0.0
  %767 = vmatpush1.msra.mxu0 0.0
  %768 = vmatprep.subr.mxu0 0.0
  %769 = vmatpush1.msra.mxu0 0.0
  %770 = vmatprep.subr.mxu0 0.0
  %771 = vmatpush1.msra.mxu0 0.0
  %772 = vmatprep.subr.mxu0 0.0
  %773 = vmatpush1.msra.mxu0 0.0
  %774 = vmatprep.subr.mxu0 0.0
  %775 = vmatpush1.msra.mxu0 0.0
  %776 = vmatprep.subr.mxu0 0.0
  %777 = vmatpush1.msra.mxu0 0.0
  %778 = vmatprep.subr.mxu0 0.0
  %779 = vmatpush1.msra.mxu0 0.0
  %780 = vmatprep.subr.mxu0 0.0
  %781 = vmatpush1.msra.mxu0 0.0
  %782 = vmatprep.subr.mxu0 0.0
  %783 = vmatpush1.msra.mxu0 0.0
  %784 = vmatprep.subr.mxu0 0.0
  %785 = vmatpush1.msra.mxu0 0.0
  %786 = vmatprep.subr.mxu0 0.0
  %787 = vmatpush1.msra.mxu0 0.0
  %788 = vmatprep.subr.mxu0 0.0
  %789 = vmatpush1.msra.mxu0 0.0
  %790 = vmatprep.subr.mxu0 0.0
  %791 = vmatpush1.msra.mxu0 0.0
  %792 = vmatprep.subr.mxu0 0.0
  %793 = vmatpush1.msra.mxu0 0.0
  %794 = vmatprep.mubr.f32.mxu0 0.0
  %795 = vmatmul.mubr.f32.gmra.mrb[0].mxu0 %v728
  %v796 = vpop.f32.mrb[0].mxu0
  %v797 = vadd.f32 %v49, %v796
  %v798 = vpop.f32.mrb[0].mxu0
  %799 = vdwg.mxu0
  %v800 = vmax.f32 %v797, 0.0
  %vm801 = vcmask 326656
  %v802 = vsel %vm801, %v800, 0.0
  %803 = vadd.xlane.f32.xlu0 %v802
  %v804 = vpop.xlane.xlu0 %803
  %v805 = vrcp.pop 40.0
  %v806 = vmul.f32 %v804, %v805
  %v807 = vsub.f32 %v800, %v806
  %v808 = vmul.f32 %v807, %v807
  %v809 = vsel %vm801, %v808, 0.0
  %810 = vadd.xlane.f32.xlu0 %v809
  %v811 = vpop.xlane.xlu0 %810
  %v812 = vmul.f32 %v811, %v805
  %v813 = vadd.f32 %v812, 1e-05
  %v814 = vrsqrt.pop %v813
  %v815 = vmul.f32 %v807, %v814
  %v816 = vmul.f32 %v815, %v38
  %v817 = vadd.f32 %v816, %v43
  %v819 = vsel %vm801, %v817, 0
  %821 = vmatprep.subr.mxu0 0.0
  %822 = vmatpush1.msra.mxu0 %v54
  %823 = vmatprep.subr.mxu0 0.0
  %824 = vmatpush1.msra.mxu0 %v55
  %825 = vmatprep.subr.mxu0 0.0
  %826 = vmatpush1.msra.mxu0 %v56
  %827 = vmatprep.subr.mxu0 0.0
  %828 = vmatpush1.msra.mxu0 %v57
  %829 = vmatprep.subr.mxu0 0.0
  %830 = vmatpush1.msra.mxu0 %v58
  %831 = vmatprep.subr.mxu0 0.0
  %832 = vmatpush1.msra.mxu0 0.0
  %833 = vmatprep.subr.mxu0 0.0
  %834 = vmatpush1.msra.mxu0 0.0
  %835 = vmatprep.subr.mxu0 0.0
  %836 = vmatpush1.msra.mxu0 0.0
  %837 = vmatprep.subr.mxu0 0.0
  %838 = vmatpush1.msra.mxu0 0.0
  %839 = vmatprep.subr.mxu0 0.0
  %840 = vmatpush1.msra.mxu0 0.0
  %841 = vmatprep.subr.mxu0 0.0
  %842 = vmatpush1.msra.mxu0 0.0
  %843 = vmatprep.subr.mxu0 0.0
  %844 = vmatpush1.msra.mxu0 0.0
  %845 = vmatprep.subr.mxu0 0.0
  %846 = vmatpush1.msra.mxu0 0.0
  %847 = vmatprep.subr.mxu0 0.0
  %848 = vmatpush1.msra.mxu0 0.0
  %849 = vmatprep.subr.mxu0 0.0
  %850 = vmatpush1.msra.mxu0 0.0
  %851 = vmatprep.subr.mxu0 0.0
  %852 = vmatpush1.msra.mxu0 0.0
  %853 = vmatprep.subr.mxu0 0.0
  %854 = vmatpush1.msra.mxu0 0.0
  %855 = vmatprep.subr.mxu0 0.0
  %856 = vmatpush1.msra.mxu0 0.0
  %857 = vmatprep.subr.mxu0 0.0
  %858 = vmatpush1.msra.mxu0 0.0
  %859 = vmatprep.subr.mxu0 0.0
  %860 = vmatpush1.msra.mxu0 0.0
  %861 = vmatprep.subr.mxu0 0.0
  %862 = vmatpush1.msra.mxu0 0.0
  %863 = vmatprep.subr.mxu0 0.0
  %864 = vmatpush1.msra.mxu0 0.0
  %865 = vmatprep.subr.mxu0 0.0
  %866 = vmatpush1.msra.mxu0 0.0
  %867 = vmatprep.subr.mxu0 0.0
  %868 = vmatpush1.msra.mxu0 0.0
  %869 = vmatprep.subr.mxu0 0.0
  %870 = vmatpush1.msra.mxu0 0.0
  %871 = vmatprep.subr.mxu0 0.0
  %872 = vmatpush1.msra.mxu0 0.0
  %873 = vmatprep.subr.mxu0 0.0
  %874 = vmatpush1.msra.mxu0 0.0
  %875 = vmatprep.subr.mxu0 0.0
  %876 = vmatpush1.msra.mxu0 0.0
  %877 = vmatprep.subr.mxu0 0.0
  %878 = vmatpush1.msra.mxu0 0.0
  %879 = vmatprep.subr.mxu0 0.0
  %880 = vmatpush1.msra.mxu0 0.0
  %881 = vmatprep.subr.mxu0 0.0
  %882 = vmatpush1.msra.mxu0 0.0
  %883 = vmatprep.subr.mxu0 0.0
  %884 = vmatpush1.msra.mxu0 0.0
  %885 = vmatprep.mubr.f32.mxu0 0.0
  %886 = vmatmul.mubr.f32.gmra.mrb[0].mxu0 %v819
  %v887 = vpop.f32.mrb[0].mxu0
  %v888 = vadd.f32 %v48, %v887
  %v889 = vpop.f32.mrb[0].mxu0
  %890 = vdwg.mxu0
  %s891 = scalar_lea.vmem %s8, 8
  %892 = vst.msk [vmem:[%s891] sm:$0xff] %vm85, %v888
  %v893 = vsel %vm85, %v888, -inf
  %894 = vmax.xlane.f32.xlu0 %v893
  %v895 = vpop.xlane.xlu0 %894
  %vm896 = vcmp.eq.f32.partialorder %v888, %v895
  %v897 = vsel %vm896, %v31, 32
  %v898 = vsel %vm85, %v897, 2147483647
  %v899 = vand.u32 %v898, 65535
  %v900 = vshra.s32 %v898, 16
  %v901 = vcvt.s32.f32 %v899
  %v902 = vcvt.s32.f32 %v900
  %903 = vmin.xlane.f32.xlu0 %v902
  %v904 = vpop.xlane.xlu0 %903
  %vm905 = vcmp.eq.f32.partialorder %v902, %v904
  %v906 = vsel %vm905, %v901, inf
  %907 = vmin.xlane.f32.xlu0 %v906
  %v908 = vpop.xlane.xlu0 %907
  %v909 = vcvt.f32.s32 %v908
  %v910 = vcvt.f32.s32 %v904
  %v911 = vshll.u32 %v910, 16
  %v912 = vadd.s32 %v911, %v909
  %v913 = vsel %vm33, %v912, %v32
  %914 = vset.pattern.permute.xlu0 1
  %915 = vperm.xlu0 %914, %v913
  %v916 = vpop.permute.xlu0 %915
  %vm917 = vcmp.eq.s32.totalorder %v31, %v916
  %v918 = vsel %vm917, 1, 0
  %v919 = vcvt.s32.f32 %v918
  %v921 = vsel %vm85, %v919, 0
  %923 = vmatprep.subr.mxu0 0.0
  %924 = vmatpush1.msra.mxu0 %v59
  %925 = vmatprep.subr.mxu0 0.0
  %926 = vmatpush1.msra.mxu0 %v60
  %927 = vmatprep.subr.mxu0 0.0
  %928 = vmatpush1.msra.mxu0 %v61
  %929 = vmatprep.subr.mxu0 0.0
  %930 = vmatpush1.msra.mxu0 %v62
  %931 = vmatprep.subr.mxu0 0.0
  %932 = vmatpush1.msra.mxu0 0.0
  %933 = vmatprep.subr.mxu0 0.0
  %934 = vmatpush1.msra.mxu0 0.0
  %935 = vmatprep.subr.mxu0 0.0
  %936 = vmatpush1.msra.mxu0 0.0
  %937 = vmatprep.subr.mxu0 0.0
  %938 = vmatpush1.msra.mxu0 0.0
  %939 = vmatprep.subr.mxu0 0.0
  %940 = vmatpush1.msra.mxu0 0.0
  %941 = vmatprep.subr.mxu0 0.0
  %942 = vmatpush1.msra.mxu0 0.0
  %943 = vmatprep.subr.mxu0 0.0
  %944 = vmatpush1.msra.mxu0 0.0
  %945 = vmatprep.subr.mxu0 0.0
  %946 = vmatpush1.msra.mxu0 0.0
  %947 = vmatprep.subr.mxu0 0.0
  %948 = vmatpush1.msra.mxu0 0.0
  %949 = vmatprep.subr.mxu0 0.0
  %950 = vmatpush1.msra.mxu0 0.0
  %951 = vmatprep.subr.mxu0 0.0
  %952 = vmatpush1.msra.mxu0 0.0
  %953 = vmatprep.subr.mxu0 0.0
  %954 = vmatpush1.msra.mxu0 0.0
  %955 = vmatprep.subr.mxu0 0.0
  %956 = vmatpush1.msra.mxu0 0.0
  %957 = vmatprep.subr.mxu0 0.0
  %958 = vmatpush1.msra.mxu0 0.0
  %959 = vmatprep.subr.mxu0 0.0
  %960 = vmatpush1.msra.mxu0 0.0
  %961 = vmatprep.subr.mxu0 0.0
  %962 = vmatpush1.msra.mxu0 0.0
  %963 = vmatprep.subr.mxu0 0.0
  %964 = vmatpush1.msra.mxu0 0.0
  %965 = vmatprep.subr.mxu0 0.0
  %966 = vmatpush1.msra.mxu0 0.0
  %967 = vmatprep.subr.mxu0 0.0
  %968 = vmatpush1.msra.mxu0 0.0
  %969 = vmatprep.subr.mxu0 0.0
  %970 = vmatpush1.msra.mxu0 0.0
  %971 = vmatprep.subr.mxu0 0.0
  %972 = vmatpush1.msra.mxu0 0.0
  %973 = vmatprep.subr.mxu0 0.0
  %974 = vmatpush1.msra.mxu0 0.0
  %975 = vmatprep.subr.mxu0 0.0
  %976 = vmatpush1.msra.mxu0 0.0
  %977 = vmatprep.subr.mxu0 0.0
  %978 = vmatpush1.msra.mxu0 0.0
  %979 = vmatprep.subr.mxu0 0.0
  %980 = vmatpush1.msra.mxu0 0.0
  %981 = vmatprep.subr.mxu0 0.0
  %982 = vmatpush1.msra.mxu0 0.0
  %983 = vmatprep.subr.mxu0 0.0
  %984 = vmatpush1.msra.mxu0 0.0
  %985 = vmatprep.subr.mxu0 0.0
  %986 = vmatpush1.msra.mxu0 0.0
  %987 = vmatprep.mubr.f32.mxu0 0.0
  %988 = vmatmul.mubr.f32.gmra.mrb[0].mxu0 %v921
  %v989 = vpop.f32.mrb[0].mxu0
  %v990 = vadd.f32 0.0, %v989
  %v991 = vpop.f32.mrb[0].mxu0
  %992 = vdwg.mxu0
  %s993 = scalar_lea.vmem [#allocation2], 8
  %994 = vst [vmem:[%s993] sm:$0xff] %v990
  %v995 = vld [vmem:[#allocation2] sm:$0xff]
  %v996 = vpack.c.bf16 %v724, %v724
  %998 = vrot.lane.b32.xlu0 %v996, 32
  %v999 = vpop.permute.xlu0 %998
  %v1001 = vsel %vm85, %v999, 0
  %1003 = vmatprep.subr.bf16.mxu0 0
  %1004 = vmatpush1.bf16.msra.mxu0 %v657
  %1005 = vmatprep.subr.bf16.mxu0 0
  %1006 = vmatpush1.bf16.msra.mxu0 %v658
  %1007 = vmatprep.subr.bf16.mxu0 0
  %1008 = vmatpush1.bf16.msra.mxu0 0
  %1009 = vmatprep.subr.bf16.mxu0 0
  %1010 = vmatpush1.bf16.msra.mxu0 0
  %1011 = vmatprep.subr.bf16.mxu0 0
  %1012 = vmatpush1.bf16.msra.mxu0 0
  %1013 = vmatprep.subr.bf16.mxu0 0
  %1014 = vmatpush1.bf16.msra.mxu0 0
  %1015 = vmatprep.subr.bf16.mxu0 0
  %1016 = vmatpush1.bf16.msra.mxu0 0
  %1017 = vmatprep.subr.bf16.mxu0 0
  %1018 = vmatpush1.bf16.msra.mxu0 0
  %1019 = vmatprep.subr.bf16.mxu0 0
  %1020 = vmatpush1.bf16.msra.mxu0 0
  %1021 = vmatprep.subr.bf16.mxu0 0
  %1022 = vmatpush1.bf16.msra.mxu0 0
  %1023 = vmatprep.subr.bf16.mxu0 0
  %1024 = vmatpush1.bf16.msra.mxu0 0
  %1025 = vmatprep.subr.bf16.mxu0 0
  %1026 = vmatpush1.bf16.msra.mxu0 0
  %1027 = vmatprep.subr.bf16.mxu0 0
  %1028 = vmatpush1.bf16.msra.mxu0 0
  %1029 = vmatprep.subr.bf16.mxu0 0
  %1030 = vmatpush1.bf16.msra.mxu0 0
  %1031 = vmatprep.subr.bf16.mxu0 0
  %1032 = vmatpush1.bf16.msra.mxu0 0
  %1033 = vmatprep.subr.bf16.mxu0 0
  %1034 = vmatpush1.bf16.msra.mxu0 0
  %1035 = vmatprep.mubr.bf16.mxu0 0
  %1036 = vmatmul.mubr.bf16.gmra.mrb[0].mxu0 %v1001
  %v1037 = vpop.f32.mrb[0].mxu0
  %v1038 = vadd.f32 0.0, %v1037
  %v1039 = vpop.f32.mrb[0].mxu0
  %v1040 = vpop.f32.mrb[0].mxu0
  %v1041 = vpop.f32.mrb[0].mxu0
  %1042 = vdwg.mxu0
  %v1043 = vadd.f32 %v995, %v1038
  %v1044 = vtanh.pop %v1043
  %v1045 = vmul.f32 %v1044, 0.5
  %v1046 = vadd.f32 %v1045, 0.5
  %v1047 = vmul.f32 %v1046, %v718
  %1049 = vrot.lane.b32.xlu0 %v1044, 64
  %v1050 = vpop.permute.xlu0 %1049
  %v1052 = vmul.f32 %v1046, %v1050
  %1054 = vrot.lane.b32.xlu0 %v1052, 32
  %v1055 = vpop.permute.xlu0 %1054
  %v1057 = vadd.f32 %v1047, %v1055
  %v1058 = vtanh.pop %v1057
  %1060 = vrot.lane.b32.xlu0 %v1058, 64
  %v1061 = vpop.permute.xlu0 %1060
  %v1063 = vmul.f32 %v1046, %v1061
  %v1064 = vld [vmem:[%s993] sm:$0xff]
  %v1065 = vpack.c.bf16 %v1063, %v1063
  %1067 = vrot.lane.b32.xlu0 %v1065, 32
  %v1068 = vpop.permute.xlu0 %1067
  %v1070 = vsel %vm85, %v1068, 0
  %1072 = vmatprep.subr.bf16.mxu0 0
  %1073 = vmatpush1.bf16.msra.mxu0 %v657
  %1074 = vmatprep.subr.bf16.mxu0 0
  %1075 = vmatpush1.bf16.msra.mxu0 %v658
  %1076 = vmatprep.subr.bf16.mxu0 0
  %1077 = vmatpush1.bf16.msra.mxu0 0
  %1078 = vmatprep.subr.bf16.mxu0 0
  %1079 = vmatpush1.bf16.msra.mxu0 0
  %1080 = vmatprep.subr.bf16.mxu0 0
  %1081 = vmatpush1.bf16.msra.mxu0 0
  %1082 = vmatprep.subr.bf16.mxu0 0
  %1083 = vmatpush1.bf16.msra.mxu0 0
  %1084 = vmatprep.subr.bf16.mxu0 0
  %1085 = vmatpush1.bf16.msra.mxu0 0
  %1086 = vmatprep.subr.bf16.mxu0 0
  %1087 = vmatpush1.bf16.msra.mxu0 0
  %1088 = vmatprep.subr.bf16.mxu0 0
  %1089 = vmatpush1.bf16.msra.mxu0 0
  %1090 = vmatprep.subr.bf16.mxu0 0
  %1091 = vmatpush1.bf16.msra.mxu0 0
  %1092 = vmatprep.subr.bf16.mxu0 0
  %1093 = vmatpush1.bf16.msra.mxu0 0
  %1094 = vmatprep.subr.bf16.mxu0 0
  %1095 = vmatpush1.bf16.msra.mxu0 0
  %1096 = vmatprep.subr.bf16.mxu0 0
  %1097 = vmatpush1.bf16.msra.mxu0 0
  %1098 = vmatprep.subr.bf16.mxu0 0
  %1099 = vmatpush1.bf16.msra.mxu0 0
  %1100 = vmatprep.subr.bf16.mxu0 0
  %1101 = vmatpush1.bf16.msra.mxu0 0
  %1102 = vmatprep.subr.bf16.mxu0 0
  %1103 = vmatpush1.bf16.msra.mxu0 0
  %1104 = vmatprep.mubr.bf16.mxu0 0
  %1105 = vmatmul.mubr.bf16.gmra.mrb[0].mxu0 %v1070
  %v1106 = vpop.f32.mrb[0].mxu0
  %v1107 = vadd.f32 0.0, %v1106
  %v1108 = vpop.f32.mrb[0].mxu0
  %v1109 = vpop.f32.mrb[0].mxu0
  %v1110 = vpop.f32.mrb[0].mxu0
  %1111 = vdwg.mxu0
  %v1112 = vadd.f32 %v1064, %v1107
  %v1113 = vtanh.pop %v1112
  %v1114 = vmul.f32 %v1113, 0.5
  %v1115 = vadd.f32 %v1114, 0.5
  %v1116 = vmul.f32 %v1115, %v1057
  %1118 = vrot.lane.b32.xlu0 %v1113, 64
  %v1119 = vpop.permute.xlu0 %1118
  %v1121 = vmul.f32 %v1115, %v1119
  %1123 = vrot.lane.b32.xlu0 %v1121, 32
  %v1124 = vpop.permute.xlu0 %1123
  %v1126 = vadd.f32 %v1116, %v1124
  %v1127 = vtanh.pop %v1126
  %1129 = vrot.lane.b32.xlu0 %v1127, 64
  %v1130 = vpop.permute.xlu0 %1129
  %v1132 = vmul.f32 %v1115, %v1130
  %1134 = vrot.lane.b32.xlu0 %v1132, 32
  %v1135 = vpop.permute.xlu0 %1134
  %v1136 = vsel %vm85, %v1135, 0
  %1138 = vmatprep.subr.mxu0 0.0
  %1139 = vmatpush1.msra.mxu0 %v50
  %1140 = vmatprep.subr.mxu0 0.0
  %1141 = vmatpush1.msra.mxu0 %v51
  %1142 = vmatprep.subr.mxu0 0.0
  %1143 = vmatpush1.msra.mxu0 %v52
  %1144 = vmatprep.subr.mxu0 0.0
  %1145 = vmatpush1.msra.mxu0 %v53
  %1146 = vmatprep.subr.mxu0 0.0
  %1147 = vmatpush1.msra.mxu0 0.0
  %1148 = vmatprep.subr.mxu0 0.0
  %1149 = vmatpush1.msra.mxu0 0.0
  %1150 = vmatprep.subr.mxu0 0.0
  %1151 = vmatpush1.msra.mxu0 0.0
  %1152 = vmatprep.subr.mxu0 0.0
  %1153 = vmatpush1.msra.mxu0 0.0
  %1154 = vmatprep.subr.mxu0 0.0
  %1155 = vmatpush1.msra.mxu0 0.0
  %1156 = vmatprep.subr.mxu0 0.0
  %1157 = vmatpush1.msra.mxu0 0.0
  %1158 = vmatprep.subr.mxu0 0.0
  %1159 = vmatpush1.msra.mxu0 0.0
  %1160 = vmatprep.subr.mxu0 0.0
  %1161 = vmatpush1.msra.mxu0 0.0
  %1162 = vmatprep.subr.mxu0 0.0
  %1163 = vmatpush1.msra.mxu0 0.0
  %1164 = vmatprep.subr.mxu0 0.0
  %1165 = vmatpush1.msra.mxu0 0.0
  %1166 = vmatprep.subr.mxu0 0.0
  %1167 = vmatpush1.msra.mxu0 0.0
  %1168 = vmatprep.subr.mxu0 0.0
  %1169 = vmatpush1.msra.mxu0 0.0
  %1170 = vmatprep.subr.mxu0 0.0
  %1171 = vmatpush1.msra.mxu0 0.0
  %1172 = vmatprep.subr.mxu0 0.0
  %1173 = vmatpush1.msra.mxu0 0.0
  %1174 = vmatprep.subr.mxu0 0.0
  %1175 = vmatpush1.msra.mxu0 0.0
  %1176 = vmatprep.subr.mxu0 0.0
  %1177 = vmatpush1.msra.mxu0 0.0
  %1178 = vmatprep.subr.mxu0 0.0
  %1179 = vmatpush1.msra.mxu0 0.0
  %1180 = vmatprep.subr.mxu0 0.0
  %1181 = vmatpush1.msra.mxu0 0.0
  %1182 = vmatprep.subr.mxu0 0.0
  %1183 = vmatpush1.msra.mxu0 0.0
  %1184 = vmatprep.subr.mxu0 0.0
  %1185 = vmatpush1.msra.mxu0 0.0
  %1186 = vmatprep.subr.mxu0 0.0
  %1187 = vmatpush1.msra.mxu0 0.0
  %1188 = vmatprep.subr.mxu0 0.0
  %1189 = vmatpush1.msra.mxu0 0.0
  %1190 = vmatprep.subr.mxu0 0.0
  %1191 = vmatpush1.msra.mxu0 0.0
  %1192 = vmatprep.subr.mxu0 0.0
  %1193 = vmatpush1.msra.mxu0 0.0
  %1194 = vmatprep.subr.mxu0 0.0
  %1195 = vmatpush1.msra.mxu0 0.0
  %1196 = vmatprep.subr.mxu0 0.0
  %1197 = vmatpush1.msra.mxu0 0.0
  %1198 = vmatprep.subr.mxu0 0.0
  %1199 = vmatpush1.msra.mxu0 0.0
  %1200 = vmatprep.subr.mxu0 0.0
  %1201 = vmatpush1.msra.mxu0 0.0
  %1202 = vmatprep.mubr.f32.mxu0 0.0
  %1203 = vmatmul.mubr.f32.gmra.mrb[0].mxu0 %v1136
  %v1204 = vpop.f32.mrb[0].mxu0
  %v1205 = vadd.f32 %v49, %v1204
  %v1206 = vpop.f32.mrb[0].mxu0
  %1207 = vdwg.mxu0
  %v1208 = vmax.f32 %v1205, 0.0
  %v1209 = vsel %vm801, %v1208, 0.0
  %1210 = vadd.xlane.f32.xlu0 %v1209
  %v1211 = vpop.xlane.xlu0 %1210
  %v1212 = vmul.f32 %v1211, %v805
  %v1213 = vsub.f32 %v1208, %v1212
  %v1214 = vmul.f32 %v1213, %v1213
  %v1215 = vsel %vm801, %v1214, 0.0
  %1216 = vadd.xlane.f32.xlu0 %v1215
  %v1217 = vpop.xlane.xlu0 %1216
  %v1218 = vmul.f32 %v1217, %v805
  %v1219 = vadd.f32 %v1218, 1e-05
  %v1220 = vrsqrt.pop %v1219
  %v1221 = vmul.f32 %v1213, %v1220
  %v1222 = vmul.f32 %v1221, %v38
  %v1223 = vadd.f32 %v1222, %v43
  %v1225 = vsel %vm801, %v1223, 0
  %1227 = vmatprep.subr.mxu0 0.0
  %1228 = vmatpush1.msra.mxu0 %v54
  %1229 = vmatprep.subr.mxu0 0.0
  %1230 = vmatpush1.msra.mxu0 %v55
  %1231 = vmatprep.subr.mxu0 0.0
  %1232 = vmatpush1.msra.mxu0 %v56
  %1233 = vmatprep.subr.mxu0 0.0
  %1234 = vmatpush1.msra.mxu0 %v57
  %1235 = vmatprep.subr.mxu0 0.0
  %1236 = vmatpush1.msra.mxu0 %v58
  %1237 = vmatprep.subr.mxu0 0.0
  %1238 = vmatpush1.msra.mxu0 0.0
  %1239 = vmatprep.subr.mxu0 0.0
  %1240 = vmatpush1.msra.mxu0 0.0
  %1241 = vmatprep.subr.mxu0 0.0
  %1242 = vmatpush1.msra.mxu0 0.0
  %1243 = vmatprep.subr.mxu0 0.0
  %1244 = vmatpush1.msra.mxu0 0.0
  %1245 = vmatprep.subr.mxu0 0.0
  %1246 = vmatpush1.msra.mxu0 0.0
  %1247 = vmatprep.subr.mxu0 0.0
  %1248 = vmatpush1.msra.mxu0 0.0
  %1249 = vmatprep.subr.mxu0 0.0
  %1250 = vmatpush1.msra.mxu0 0.0
  %1251 = vmatprep.subr.mxu0 0.0
  %1252 = vmatpush1.msra.mxu0 0.0
  %1253 = vmatprep.subr.mxu0 0.0
  %1254 = vmatpush1.msra.mxu0 0.0
  %1255 = vmatprep.subr.mxu0 0.0
  %1256 = vmatpush1.msra.mxu0 0.0
  %1257 = vmatprep.subr.mxu0 0.0
  %1258 = vmatpush1.msra.mxu0 0.0
  %1259 = vmatprep.subr.mxu0 0.0
  %1260 = vmatpush1.msra.mxu0 0.0
  %1261 = vmatprep.subr.mxu0 0.0
  %1262 = vmatpush1.msra.mxu0 0.0
  %1263 = vmatprep.subr.mxu0 0.0
  %1264 = vmatpush1.msra.mxu0 0.0
  %1265 = vmatprep.subr.mxu0 0.0
  %1266 = vmatpush1.msra.mxu0 0.0
  %1267 = vmatprep.subr.mxu0 0.0
  %1268 = vmatpush1.msra.mxu0 0.0
  %1269 = vmatprep.subr.mxu0 0.0
  %1270 = vmatpush1.msra.mxu0 0.0
  %1271 = vmatprep.subr.mxu0 0.0
  %1272 = vmatpush1.msra.mxu0 0.0
  %1273 = vmatprep.subr.mxu0 0.0
  %1274 = vmatpush1.msra.mxu0 0.0
  %1275 = vmatprep.subr.mxu0 0.0
  %1276 = vmatpush1.msra.mxu0 0.0
  %1277 = vmatprep.subr.mxu0 0.0
  %1278 = vmatpush1.msra.mxu0 0.0
  %1279 = vmatprep.subr.mxu0 0.0
  %1280 = vmatpush1.msra.mxu0 0.0
  %1281 = vmatprep.subr.mxu0 0.0
  %1282 = vmatpush1.msra.mxu0 0.0
  %1283 = vmatprep.subr.mxu0 0.0
  %1284 = vmatpush1.msra.mxu0 0.0
  %1285 = vmatprep.subr.mxu0 0.0
  %1286 = vmatpush1.msra.mxu0 0.0
  %1287 = vmatprep.subr.mxu0 0.0
  %1288 = vmatpush1.msra.mxu0 0.0
  %1289 = vmatprep.subr.mxu0 0.0
  %1290 = vmatpush1.msra.mxu0 0.0
  %1291 = vmatprep.mubr.f32.mxu0 0.0
  %1292 = vmatmul.mubr.f32.gmra.mrb[0].mxu0 %v1225
  %v1293 = vpop.f32.mrb[0].mxu0
  %v1294 = vadd.f32 %v48, %v1293
  %v1295 = vpop.f32.mrb[0].mxu0
  %1296 = vdwg.mxu0
  %s1297 = scalar_lea.vmem %s8, 16
  %1298 = vst.msk [vmem:[%s1297] sm:$0xff] %vm85, %v1294
  %v1299 = vsel %vm85, %v1294, -inf
  %1300 = vmax.xlane.f32.xlu0 %v1299
  %v1301 = vpop.xlane.xlu0 %1300
  %vm1302 = vcmp.eq.f32.partialorder %v1294, %v1301
  %v1303 = vsel %vm1302, %v31, 32
  %v1304 = vsel %vm85, %v1303, 2147483647
  %v1305 = vand.u32 %v1304, 65535
  %v1306 = vshra.s32 %v1304, 16
  %v1307 = vcvt.s32.f32 %v1305
  %v1308 = vcvt.s32.f32 %v1306
  %1309 = vmin.xlane.f32.xlu0 %v1308
  %v1310 = vpop.xlane.xlu0 %1309
  %vm1311 = vcmp.eq.f32.partialorder %v1308, %v1310
  %v1312 = vsel %vm1311, %v1307, inf
  %1313 = vmin.xlane.f32.xlu0 %v1312
  %v1314 = vpop.xlane.xlu0 %1313
  %v1315 = vcvt.f32.s32 %v1314
  %v1316 = vcvt.f32.s32 %v1310
  %v1317 = vshll.u32 %v1316, 16
  %v1318 = vadd.s32 %v1317, %v1315
  %v1319 = vsel %vm33, %v1318, %v32
  %1320 = vset.pattern.permute.xlu0 2
  %1321 = vperm.xlu0 %1320, %v1319
  %v1322 = vpop.permute.xlu0 %1321
  %vm1323 = vcmp.eq.s32.totalorder %v31, %v1322
  %v1324 = vsel %vm1323, 1, 0
  %v1325 = vcvt.s32.f32 %v1324
  %v1327 = vsel %vm85, %v1325, 0
  %1329 = vmatprep.subr.mxu0 0.0
  %1330 = vmatpush1.msra.mxu0 %v59
  %1331 = vmatprep.subr.mxu0 0.0
  %1332 = vmatpush1.msra.mxu0 %v60
  %1333 = vmatprep.subr.mxu0 0.0
  %1334 = vmatpush1.msra.mxu0 %v61
  %1335 = vmatprep.subr.mxu0 0.0
  %1336 = vmatpush1.msra.mxu0 %v62
  %1337 = vmatprep.subr.mxu0 0.0
  %1338 = vmatpush1.msra.mxu0 0.0
  %1339 = vmatprep.subr.mxu0 0.0
  %1340 = vmatpush1.msra.mxu0 0.0
  %1341 = vmatprep.subr.mxu0 0.0
  %1342 = vmatpush1.msra.mxu0 0.0
  %1343 = vmatprep.subr.mxu0 0.0
  %1344 = vmatpush1.msra.mxu0 0.0
  %1345 = vmatprep.subr.mxu0 0.0
  %1346 = vmatpush1.msra.mxu0 0.0
  %1347 = vmatprep.subr.mxu0 0.0
  %1348 = vmatpush1.msra.mxu0 0.0
  %1349 = vmatprep.subr.mxu0 0.0
  %1350 = vmatpush1.msra.mxu0 0.0
  %1351 = vmatprep.subr.mxu0 0.0
  %1352 = vmatpush1.msra.mxu0 0.0
  %1353 = vmatprep.subr.mxu0 0.0
  %1354 = vmatpush1.msra.mxu0 0.0
  %1355 = vmatprep.subr.mxu0 0.0
  %1356 = vmatpush1.msra.mxu0 0.0
  %1357 = vmatprep.subr.mxu0 0.0
  %1358 = vmatpush1.msra.mxu0 0.0
  %1359 = vmatprep.subr.mxu0 0.0
  %1360 = vmatpush1.msra.mxu0 0.0
  %1361 = vmatprep.subr.mxu0 0.0
  %1362 = vmatpush1.msra.mxu0 0.0
  %1363 = vmatprep.subr.mxu0 0.0
  %1364 = vmatpush1.msra.mxu0 0.0
  %1365 = vmatprep.subr.mxu0 0.0
  %1366 = vmatpush1.msra.mxu0 0.0
  %1367 = vmatprep.subr.mxu0 0.0
  %1368 = vmatpush1.msra.mxu0 0.0
  %1369 = vmatprep.subr.mxu0 0.0
  %1370 = vmatpush1.msra.mxu0 0.0
  %1371 = vmatprep.subr.mxu0 0.0
  %1372 = vmatpush1.msra.mxu0 0.0
  %1373 = vmatprep.subr.mxu0 0.0
  %1374 = vmatpush1.msra.mxu0 0.0
  %1375 = vmatprep.subr.mxu0 0.0
  %1376 = vmatpush1.msra.mxu0 0.0
  %1377 = vmatprep.subr.mxu0 0.0
  %1378 = vmatpush1.msra.mxu0 0.0
  %1379 = vmatprep.subr.mxu0 0.0
  %1380 = vmatpush1.msra.mxu0 0.0
  %1381 = vmatprep.subr.mxu0 0.0
  %1382 = vmatpush1.msra.mxu0 0.0
  %1383 = vmatprep.subr.mxu0 0.0
  %1384 = vmatpush1.msra.mxu0 0.0
  %1385 = vmatprep.subr.mxu0 0.0
  %1386 = vmatpush1.msra.mxu0 0.0
  %1387 = vmatprep.subr.mxu0 0.0
  %1388 = vmatpush1.msra.mxu0 0.0
  %1389 = vmatprep.subr.mxu0 0.0
  %1390 = vmatpush1.msra.mxu0 0.0
  %1391 = vmatprep.subr.mxu0 0.0
  %1392 = vmatpush1.msra.mxu0 0.0
  %1393 = vmatprep.mubr.f32.mxu0 0.0
  %1394 = vmatmul.mubr.f32.gmra.mrb[0].mxu0 %v1327
  %v1395 = vpop.f32.mrb[0].mxu0
  %v1396 = vadd.f32 0.0, %v1395
  %v1397 = vpop.f32.mrb[0].mxu0
  %1398 = vdwg.mxu0
  %s1399 = scalar_lea.vmem [#allocation2], 16
  %1400 = vst [vmem:[%s1399] sm:$0xff] %v1396
  %v1401 = vld [vmem:[#allocation2] sm:$0xff]
  %v1402 = vpack.c.bf16 %v1132, %v1132
  %1404 = vrot.lane.b32.xlu0 %v1402, 32
  %v1405 = vpop.permute.xlu0 %1404
  %v1407 = vsel %vm85, %v1405, 0
  %1409 = vmatprep.subr.bf16.mxu0 0
  %1410 = vmatpush1.bf16.msra.mxu0 %v657
  %1411 = vmatprep.subr.bf16.mxu0 0
  %1412 = vmatpush1.bf16.msra.mxu0 %v658
  %1413 = vmatprep.subr.bf16.mxu0 0
  %1414 = vmatpush1.bf16.msra.mxu0 0
  %1415 = vmatprep.subr.bf16.mxu0 0
  %1416 = vmatpush1.bf16.msra.mxu0 0
  %1417 = vmatprep.subr.bf16.mxu0 0
  %1418 = vmatpush1.bf16.msra.mxu0 0
  %1419 = vmatprep.subr.bf16.mxu0 0
  %1420 = vmatpush1.bf16.msra.mxu0 0
  %1421 = vmatprep.subr.bf16.mxu0 0
  %1422 = vmatpush1.bf16.msra.mxu0 0
  %1423 = vmatprep.subr.bf16.mxu0 0
  %1424 = vmatpush1.bf16.msra.mxu0 0
  %1425 = vmatprep.subr.bf16.mxu0 0
  %1426 = vmatpush1.bf16.msra.mxu0 0
  %1427 = vmatprep.subr.bf16.mxu0 0
  %1428 = vmatpush1.bf16.msra.mxu0 0
  %1429 = vmatprep.subr.bf16.mxu0 0
  %1430 = vmatpush1.bf16.msra.mxu0 0
  %1431 = vmatprep.subr.bf16.mxu0 0
  %1432 = vmatpush1.bf16.msra.mxu0 0
  %1433 = vmatprep.subr.bf16.mxu0 0
  %1434 = vmatpush1.bf16.msra.mxu0 0
  %1435 = vmatprep.subr.bf16.mxu0 0
  %1436 = vmatpush1.bf16.msra.mxu0 0
  %1437 = vmatprep.subr.bf16.mxu0 0
  %1438 = vmatpush1.bf16.msra.mxu0 0
  %1439 = vmatprep.subr.bf16.mxu0 0
  %1440 = vmatpush1.bf16.msra.mxu0 0
  %1441 = vmatprep.mubr.bf16.mxu0 0
  %1442 = vmatmul.mubr.bf16.gmra.mrb[0].mxu0 %v1407
  %v1443 = vpop.f32.mrb[0].mxu0
  %v1444 = vadd.f32 0.0, %v1443
  %v1445 = vpop.f32.mrb[0].mxu0
  %v1446 = vpop.f32.mrb[0].mxu0
  %v1447 = vpop.f32.mrb[0].mxu0
  %1448 = vdwg.mxu0
  %v1449 = vadd.f32 %v1401, %v1444
  %v1450 = vtanh.pop %v1449
  %v1451 = vmul.f32 %v1450, 0.5
  %v1452 = vadd.f32 %v1451, 0.5
  %v1453 = vmul.f32 %v1452, %v1126
  %1455 = vrot.lane.b32.xlu0 %v1450, 64
  %v1456 = vpop.permute.xlu0 %1455
  %v1458 = vmul.f32 %v1452, %v1456
  %1460 = vrot.lane.b32.xlu0 %v1458, 32
  %v1461 = vpop.permute.xlu0 %1460
  %v1463 = vadd.f32 %v1453, %v1461
  %v1464 = vtanh.pop %v1463
  %1466 = vrot.lane.b32.xlu0 %v1464, 64
  %v1467 = vpop.permute.xlu0 %1466
  %v1469 = vmul.f32 %v1452, %v1467
  %v1470 = vld [vmem:[%s993] sm:$0xff]
  %v1471 = vpack.c.bf16 %v1469, %v1469
  %1473 = vrot.lane.b32.xlu0 %v1471, 32
  %v1474 = vpop.permute.xlu0 %1473
  %v1476 = vsel %vm85, %v1474, 0
  %1478 = vmatprep.subr.bf16.mxu0 0
  %1479 = vmatpush1.bf16.msra.mxu0 %v657
  %1480 = vmatprep.subr.bf16.mxu0 0
  %1481 = vmatpush1.bf16.msra.mxu0 %v658
  %1482 = vmatprep.subr.bf16.mxu0 0
  %1483 = vmatpush1.bf16.msra.mxu0 0
  %1484 = vmatprep.subr.bf16.mxu0 0
  %1485 = vmatpush1.bf16.msra.mxu0 0
  %1486 = vmatprep.subr.bf16.mxu0 0
  %1487 = vmatpush1.bf16.msra.mxu0 0
  %1488 = vmatprep.subr.bf16.mxu0 0
  %1489 = vmatpush1.bf16.msra.mxu0 0
  %1490 = vmatprep.subr.bf16.mxu0 0
  %1491 = vmatpush1.bf16.msra.mxu0 0
  %1492 = vmatprep.subr.bf16.mxu0 0
  %1493 = vmatpush1.bf16.msra.mxu0 0
  %1494 = vmatprep.subr.bf16.mxu0 0
  %1495 = vmatpush1.bf16.msra.mxu0 0
  %1496 = vmatprep.subr.bf16.mxu0 0
  %1497 = vmatpush1.bf16.msra.mxu0 0
  %1498 = vmatprep.subr.bf16.mxu0 0
  %1499 = vmatpush1.bf16.msra.mxu0 0
  %1500 = vmatprep.subr.bf16.mxu0 0
  %1501 = vmatpush1.bf16.msra.mxu0 0
  %1502 = vmatprep.subr.bf16.mxu0 0
  %1503 = vmatpush1.bf16.msra.mxu0 0
  %1504 = vmatprep.subr.bf16.mxu0 0
  %1505 = vmatpush1.bf16.msra.mxu0 0
  %1506 = vmatprep.subr.bf16.mxu0 0
  %1507 = vmatpush1.bf16.msra.mxu0 0
  %1508 = vmatprep.subr.bf16.mxu0 0
  %1509 = vmatpush1.bf16.msra.mxu0 0
  %1510 = vmatprep.mubr.bf16.mxu0 0
  %1511 = vmatmul.mubr.bf16.gmra.mrb[0].mxu0 %v1476
  %v1512 = vpop.f32.mrb[0].mxu0
  %v1513 = vadd.f32 0.0, %v1512
  %v1514 = vpop.f32.mrb[0].mxu0
  %v1515 = vpop.f32.mrb[0].mxu0
  %v1516 = vpop.f32.mrb[0].mxu0
  %1517 = vdwg.mxu0
  %v1518 = vadd.f32 %v1470, %v1513
  %v1519 = vtanh.pop %v1518
  %v1520 = vmul.f32 %v1519, 0.5
  %v1521 = vadd.f32 %v1520, 0.5
  %v1522 = vmul.f32 %v1521, %v1463
  %1524 = vrot.lane.b32.xlu0 %v1519, 64
  %v1525 = vpop.permute.xlu0 %1524
  %v1527 = vmul.f32 %v1521, %v1525
  %1529 = vrot.lane.b32.xlu0 %v1527, 32
  %v1530 = vpop.permute.xlu0 %1529
  %v1532 = vadd.f32 %v1522, %v1530
  %v1533 = vtanh.pop %v1532
  %1535 = vrot.lane.b32.xlu0 %v1533, 64
  %v1536 = vpop.permute.xlu0 %1535
  %v1538 = vmul.f32 %v1521, %v1536
  %v1539 = vld [vmem:[%s1399] sm:$0xff]
  %v1540 = vpack.c.bf16 %v1538, %v1538
  %1542 = vrot.lane.b32.xlu0 %v1540, 32
  %v1543 = vpop.permute.xlu0 %1542
  %v1545 = vsel %vm85, %v1543, 0
  %1547 = vmatprep.subr.bf16.mxu0 0
  %1548 = vmatpush1.bf16.msra.mxu0 %v657
  %1549 = vmatprep.subr.bf16.mxu0 0
  %1550 = vmatpush1.bf16.msra.mxu0 %v658
  %1551 = vmatprep.subr.bf16.mxu0 0
  %1552 = vmatpush1.bf16.msra.mxu0 0
  %1553 = vmatprep.subr.bf16.mxu0 0
  %1554 = vmatpush1.bf16.msra.mxu0 0
  %1555 = vmatprep.subr.bf16.mxu0 0
  %1556 = vmatpush1.bf16.msra.mxu0 0
  %1557 = vmatprep.subr.bf16.mxu0 0
  %1558 = vmatpush1.bf16.msra.mxu0 0
  %1559 = vmatprep.subr.bf16.mxu0 0
  %1560 = vmatpush1.bf16.msra.mxu0 0
  %1561 = vmatprep.subr.bf16.mxu0 0
  %1562 = vmatpush1.bf16.msra.mxu0 0
  %1563 = vmatprep.subr.bf16.mxu0 0
  %1564 = vmatpush1.bf16.msra.mxu0 0
  %1565 = vmatprep.subr.bf16.mxu0 0
  %1566 = vmatpush1.bf16.msra.mxu0 0
  %1567 = vmatprep.subr.bf16.mxu0 0
  %1568 = vmatpush1.bf16.msra.mxu0 0
  %1569 = vmatprep.subr.bf16.mxu0 0
  %1570 = vmatpush1.bf16.msra.mxu0 0
  %1571 = vmatprep.subr.bf16.mxu0 0
  %1572 = vmatpush1.bf16.msra.mxu0 0
  %1573 = vmatprep.subr.bf16.mxu0 0
  %1574 = vmatpush1.bf16.msra.mxu0 0
  %1575 = vmatprep.subr.bf16.mxu0 0
  %1576 = vmatpush1.bf16.msra.mxu0 0
  %1577 = vmatprep.subr.bf16.mxu0 0
  %1578 = vmatpush1.bf16.msra.mxu0 0
  %1579 = vmatprep.mubr.bf16.mxu0 0
  %1580 = vmatmul.mubr.bf16.gmra.mrb[0].mxu0 %v1545
  %v1581 = vpop.f32.mrb[0].mxu0
  %v1582 = vadd.f32 0.0, %v1581
  %v1583 = vpop.f32.mrb[0].mxu0
  %v1584 = vpop.f32.mrb[0].mxu0
  %v1585 = vpop.f32.mrb[0].mxu0
  %1586 = vdwg.mxu0
  %v1587 = vadd.f32 %v1539, %v1582
  %v1588 = vtanh.pop %v1587
  %v1589 = vmul.f32 %v1588, 0.5
  %v1590 = vadd.f32 %v1589, 0.5
  %v1591 = vmul.f32 %v1590, %v1532
  %1593 = vrot.lane.b32.xlu0 %v1588, 64
  %v1594 = vpop.permute.xlu0 %1593
  %v1596 = vmul.f32 %v1590, %v1594
  %1598 = vrot.lane.b32.xlu0 %v1596, 32
  %v1599 = vpop.permute.xlu0 %1598
  %v1601 = vadd.f32 %v1591, %v1599
  %v1602 = vtanh.pop %v1601
  %1604 = vrot.lane.b32.xlu0 %v1602, 64
  %v1605 = vpop.permute.xlu0 %1604
  %v1607 = vmul.f32 %v1590, %v1605
  %1609 = vrot.lane.b32.xlu0 %v1607, 32
  %v1610 = vpop.permute.xlu0 %1609
  %v1611 = vsel %vm85, %v1610, 0
  %1613 = vmatprep.subr.mxu0 0.0
  %1614 = vmatpush1.msra.mxu0 %v50
  %1615 = vmatprep.subr.mxu0 0.0
  %1616 = vmatpush1.msra.mxu0 %v51
  %1617 = vmatprep.subr.mxu0 0.0
  %1618 = vmatpush1.msra.mxu0 %v52
  %1619 = vmatprep.subr.mxu0 0.0
  %1620 = vmatpush1.msra.mxu0 %v53
  %1621 = vmatprep.subr.mxu0 0.0
  %1622 = vmatpush1.msra.mxu0 0.0
  %1623 = vmatprep.subr.mxu0 0.0
  %1624 = vmatpush1.msra.mxu0 0.0
  %1625 = vmatprep.subr.mxu0 0.0
  %1626 = vmatpush1.msra.mxu0 0.0
  %1627 = vmatprep.subr.mxu0 0.0
  %1628 = vmatpush1.msra.mxu0 0.0
  %1629 = vmatprep.subr.mxu0 0.0
  %1630 = vmatpush1.msra.mxu0 0.0
  %1631 = vmatprep.subr.mxu0 0.0
  %1632 = vmatpush1.msra.mxu0 0.0
  %1633 = vmatprep.subr.mxu0 0.0
  %1634 = vmatpush1.msra.mxu0 0.0
  %1635 = vmatprep.subr.mxu0 0.0
  %1636 = vmatpush1.msra.mxu0 0.0
  %1637 = vmatprep.subr.mxu0 0.0
  %1638 = vmatpush1.msra.mxu0 0.0
  %1639 = vmatprep.subr.mxu0 0.0
  %1640 = vmatpush1.msra.mxu0 0.0
  %1641 = vmatprep.subr.mxu0 0.0
  %1642 = vmatpush1.msra.mxu0 0.0
  %1643 = vmatprep.subr.mxu0 0.0
  %1644 = vmatpush1.msra.mxu0 0.0
  %1645 = vmatprep.subr.mxu0 0.0
  %1646 = vmatpush1.msra.mxu0 0.0
  %1647 = vmatprep.subr.mxu0 0.0
  %1648 = vmatpush1.msra.mxu0 0.0
  %1649 = vmatprep.subr.mxu0 0.0
  %1650 = vmatpush1.msra.mxu0 0.0
  %1651 = vmatprep.subr.mxu0 0.0
  %1652 = vmatpush1.msra.mxu0 0.0
  %1653 = vmatprep.subr.mxu0 0.0
  %1654 = vmatpush1.msra.mxu0 0.0
  %1655 = vmatprep.subr.mxu0 0.0
  %1656 = vmatpush1.msra.mxu0 0.0
  %1657 = vmatprep.subr.mxu0 0.0
  %1658 = vmatpush1.msra.mxu0 0.0
  %1659 = vmatprep.subr.mxu0 0.0
  %1660 = vmatpush1.msra.mxu0 0.0
  %1661 = vmatprep.subr.mxu0 0.0
  %1662 = vmatpush1.msra.mxu0 0.0
  %1663 = vmatprep.subr.mxu0 0.0
  %1664 = vmatpush1.msra.mxu0 0.0
  %1665 = vmatprep.subr.mxu0 0.0
  %1666 = vmatpush1.msra.mxu0 0.0
  %1667 = vmatprep.subr.mxu0 0.0
  %1668 = vmatpush1.msra.mxu0 0.0
  %1669 = vmatprep.subr.mxu0 0.0
  %1670 = vmatpush1.msra.mxu0 0.0
  %1671 = vmatprep.subr.mxu0 0.0
  %1672 = vmatpush1.msra.mxu0 0.0
  %1673 = vmatprep.subr.mxu0 0.0
  %1674 = vmatpush1.msra.mxu0 0.0
  %1675 = vmatprep.subr.mxu0 0.0
  %1676 = vmatpush1.msra.mxu0 0.0
  %1677 = vmatprep.mubr.f32.mxu0 0.0
  %1678 = vmatmul.mubr.f32.gmra.mrb[0].mxu0 %v1611
  %v1679 = vpop.f32.mrb[0].mxu0
  %v1680 = vadd.f32 %v49, %v1679
  %v1681 = vpop.f32.mrb[0].mxu0
  %1682 = vdwg.mxu0
  %v1683 = vmax.f32 %v1680, 0.0
  %v1684 = vsel %vm801, %v1683, 0.0
  %1685 = vadd.xlane.f32.xlu0 %v1684
  %v1686 = vpop.xlane.xlu0 %1685
  %v1687 = vmul.f32 %v1686, %v805
  %v1688 = vsub.f32 %v1683, %v1687
  %v1689 = vmul.f32 %v1688, %v1688
  %v1690 = vsel %vm801, %v1689, 0.0
  %1691 = vadd.xlane.f32.xlu0 %v1690
  %v1692 = vpop.xlane.xlu0 %1691
  %v1693 = vmul.f32 %v1692, %v805
  %v1694 = vadd.f32 %v1693, 1e-05
  %v1695 = vrsqrt.pop %v1694
  %v1696 = vmul.f32 %v1688, %v1695
  %v1697 = vmul.f32 %v1696, %v38
  %v1698 = vadd.f32 %v1697, %v43
  %v1700 = vsel %vm801, %v1698, 0
  %1702 = vmatprep.subr.mxu0 0.0
  %1703 = vmatpush1.msra.mxu0 %v54
  %1704 = vmatprep.subr.mxu0 0.0
  %1705 = vmatpush1.msra.mxu0 %v55
  %1706 = vmatprep.subr.mxu0 0.0
  %1707 = vmatpush1.msra.mxu0 %v56
  %1708 = vmatprep.subr.mxu0 0.0
  %1709 = vmatpush1.msra.mxu0 %v57
  %1710 = vmatprep.subr.mxu0 0.0
  %1711 = vmatpush1.msra.mxu0 %v58
  %1712 = vmatprep.subr.mxu0 0.0
  %1713 = vmatpush1.msra.mxu0 0.0
  %1714 = vmatprep.subr.mxu0 0.0
  %1715 = vmatpush1.msra.mxu0 0.0
  %1716 = vmatprep.subr.mxu0 0.0
  %1717 = vmatpush1.msra.mxu0 0.0
  %1718 = vmatprep.subr.mxu0 0.0
  %1719 = vmatpush1.msra.mxu0 0.0
  %1720 = vmatprep.subr.mxu0 0.0
  %1721 = vmatpush1.msra.mxu0 0.0
  %1722 = vmatprep.subr.mxu0 0.0
  %1723 = vmatpush1.msra.mxu0 0.0
  %1724 = vmatprep.subr.mxu0 0.0
  %1725 = vmatpush1.msra.mxu0 0.0
  %1726 = vmatprep.subr.mxu0 0.0
  %1727 = vmatpush1.msra.mxu0 0.0
  %1728 = vmatprep.subr.mxu0 0.0
  %1729 = vmatpush1.msra.mxu0 0.0
  %1730 = vmatprep.subr.mxu0 0.0
  %1731 = vmatpush1.msra.mxu0 0.0
  %1732 = vmatprep.subr.mxu0 0.0
  %1733 = vmatpush1.msra.mxu0 0.0
  %1734 = vmatprep.subr.mxu0 0.0
  %1735 = vmatpush1.msra.mxu0 0.0
  %1736 = vmatprep.subr.mxu0 0.0
  %1737 = vmatpush1.msra.mxu0 0.0
  %1738 = vmatprep.subr.mxu0 0.0
  %1739 = vmatpush1.msra.mxu0 0.0
  %1740 = vmatprep.subr.mxu0 0.0
  %1741 = vmatpush1.msra.mxu0 0.0
  %1742 = vmatprep.subr.mxu0 0.0
  %1743 = vmatpush1.msra.mxu0 0.0
  %1744 = vmatprep.subr.mxu0 0.0
  %1745 = vmatpush1.msra.mxu0 0.0
  %1746 = vmatprep.subr.mxu0 0.0
  %1747 = vmatpush1.msra.mxu0 0.0
  %1748 = vmatprep.subr.mxu0 0.0
  %1749 = vmatpush1.msra.mxu0 0.0
  %1750 = vmatprep.subr.mxu0 0.0
  %1751 = vmatpush1.msra.mxu0 0.0
  %1752 = vmatprep.subr.mxu0 0.0
  %1753 = vmatpush1.msra.mxu0 0.0
  %1754 = vmatprep.subr.mxu0 0.0
  %1755 = vmatpush1.msra.mxu0 0.0
  %1756 = vmatprep.subr.mxu0 0.0
  %1757 = vmatpush1.msra.mxu0 0.0
  %1758 = vmatprep.subr.mxu0 0.0
  %1759 = vmatpush1.msra.mxu0 0.0
  %1760 = vmatprep.subr.mxu0 0.0
  %1761 = vmatpush1.msra.mxu0 0.0
  %1762 = vmatprep.subr.mxu0 0.0
  %1763 = vmatpush1.msra.mxu0 0.0
  %1764 = vmatprep.subr.mxu0 0.0
  %1765 = vmatpush1.msra.mxu0 0.0
  %1766 = vmatprep.mubr.f32.mxu0 0.0
  %1767 = vmatmul.mubr.f32.gmra.mrb[0].mxu0 %v1700
  %v1768 = vpop.f32.mrb[0].mxu0
  %v1769 = vadd.f32 %v48, %v1768
  %v1770 = vpop.f32.mrb[0].mxu0
  %1771 = vdwg.mxu0
  %s1772 = scalar_lea.vmem %s8, 24
  %1773 = vst.msk [vmem:[%s1772] sm:$0xff] %vm85, %v1769
  %v1774 = vsel %vm85, %v1769, -inf
  %1775 = vmax.xlane.f32.xlu0 %v1774
  %v1776 = vpop.xlane.xlu0 %1775
  %vm1777 = vcmp.eq.f32.partialorder %v1769, %v1776
  %v1778 = vsel %vm1777, %v31, 32
  %v1779 = vsel %vm85, %v1778, 2147483647
  %v1780 = vand.u32 %v1779, 65535
  %v1781 = vshra.s32 %v1779, 16
  %v1782 = vcvt.s32.f32 %v1780
  %v1783 = vcvt.s32.f32 %v1781
  %1784 = vmin.xlane.f32.xlu0 %v1783
  %v1785 = vpop.xlane.xlu0 %1784
  %vm1786 = vcmp.eq.f32.partialorder %v1783, %v1785
  %v1787 = vsel %vm1786, %v1782, inf
  %1788 = vmin.xlane.f32.xlu0 %v1787
  %v1789 = vpop.xlane.xlu0 %1788
  %v1790 = vcvt.f32.s32 %v1789
  %v1791 = vcvt.f32.s32 %v1785
  %v1792 = vshll.u32 %v1791, 16
  %v1793 = vadd.s32 %v1792, %v1790
  %v1794 = vsel %vm33, %v1793, %v32
  %1795 = vset.pattern.permute.xlu0 3
  %1796 = vperm.xlu0 %1795, %v1794
  %v1797 = vpop.permute.xlu0 %1796
  %vm1798 = vcmp.eq.s32.totalorder %v31, %v1797
  %v1799 = vsel %vm1798, 1, 0
  %v1800 = vcvt.s32.f32 %v1799
  %v1802 = vsel %vm85, %v1800, 0
  %1804 = vmatprep.subr.mxu0 0.0
  %1805 = vmatpush1.msra.mxu0 %v59
  %1806 = vmatprep.subr.mxu0 0.0
  %1807 = vmatpush1.msra.mxu0 %v60
  %1808 = vmatprep.subr.mxu0 0.0
  %1809 = vmatpush1.msra.mxu0 %v61
  %1810 = vmatprep.subr.mxu0 0.0
  %1811 = vmatpush1.msra.mxu0 %v62
  %1812 = vmatprep.subr.mxu0 0.0
  %1813 = vmatpush1.msra.mxu0 0.0
  %1814 = vmatprep.subr.mxu0 0.0
  %1815 = vmatpush1.msra.mxu0 0.0
  %1816 = vmatprep.subr.mxu0 0.0
  %1817 = vmatpush1.msra.mxu0 0.0
  %1818 = vmatprep.subr.mxu0 0.0
  %1819 = vmatpush1.msra.mxu0 0.0
  %1820 = vmatprep.subr.mxu0 0.0
  %1821 = vmatpush1.msra.mxu0 0.0
  %1822 = vmatprep.subr.mxu0 0.0
  %1823 = vmatpush1.msra.mxu0 0.0
  %1824 = vmatprep.subr.mxu0 0.0
  %1825 = vmatpush1.msra.mxu0 0.0
  %1826 = vmatprep.subr.mxu0 0.0
  %1827 = vmatpush1.msra.mxu0 0.0
  %1828 = vmatprep.subr.mxu0 0.0
  %1829 = vmatpush1.msra.mxu0 0.0
  %1830 = vmatprep.subr.mxu0 0.0
  %1831 = vmatpush1.msra.mxu0 0.0
  %1832 = vmatprep.subr.mxu0 0.0
  %1833 = vmatpush1.msra.mxu0 0.0
  %1834 = vmatprep.subr.mxu0 0.0
  %1835 = vmatpush1.msra.mxu0 0.0
  %1836 = vmatprep.subr.mxu0 0.0
  %1837 = vmatpush1.msra.mxu0 0.0
  %1838 = vmatprep.subr.mxu0 0.0
  %1839 = vmatpush1.msra.mxu0 0.0
  %1840 = vmatprep.subr.mxu0 0.0
  %1841 = vmatpush1.msra.mxu0 0.0
  %1842 = vmatprep.subr.mxu0 0.0
  %1843 = vmatpush1.msra.mxu0 0.0
  %1844 = vmatprep.subr.mxu0 0.0
  %1845 = vmatpush1.msra.mxu0 0.0
  %1846 = vmatprep.subr.mxu0 0.0
  %1847 = vmatpush1.msra.mxu0 0.0
  %1848 = vmatprep.subr.mxu0 0.0
  %1849 = vmatpush1.msra.mxu0 0.0
  %1850 = vmatprep.subr.mxu0 0.0
  %1851 = vmatpush1.msra.mxu0 0.0
  %1852 = vmatprep.subr.mxu0 0.0
  %1853 = vmatpush1.msra.mxu0 0.0
  %1854 = vmatprep.subr.mxu0 0.0
  %1855 = vmatpush1.msra.mxu0 0.0
  %1856 = vmatprep.subr.mxu0 0.0
  %1857 = vmatpush1.msra.mxu0 0.0
  %1858 = vmatprep.subr.mxu0 0.0
  %1859 = vmatpush1.msra.mxu0 0.0
  %1860 = vmatprep.subr.mxu0 0.0
  %1861 = vmatpush1.msra.mxu0 0.0
  %1862 = vmatprep.subr.mxu0 0.0
  %1863 = vmatpush1.msra.mxu0 0.0
  %1864 = vmatprep.subr.mxu0 0.0
  %1865 = vmatpush1.msra.mxu0 0.0
  %1866 = vmatprep.subr.mxu0 0.0
  %1867 = vmatpush1.msra.mxu0 0.0
  %1868 = vmatprep.mubr.f32.mxu0 0.0
  %1869 = vmatmul.mubr.f32.gmra.mrb[0].mxu0 %v1802
  %v1870 = vpop.f32.mrb[0].mxu0
  %v1871 = vadd.f32 0.0, %v1870
  %v1872 = vpop.f32.mrb[0].mxu0
  %1873 = vdwg.mxu0
  %s1874 = scalar_lea.vmem [#allocation2], 24
  %1875 = vst [vmem:[%s1874] sm:$0xff] %v1871
  %v1876 = vld [vmem:[#allocation2] sm:$0xff]
  %v1877 = vpack.c.bf16 %v1607, %v1607
  %1879 = vrot.lane.b32.xlu0 %v1877, 32
  %v1880 = vpop.permute.xlu0 %1879
  %v1882 = vsel %vm85, %v1880, 0
  %1884 = vmatprep.subr.bf16.mxu0 0
  %1885 = vmatpush1.bf16.msra.mxu0 %v657
  %1886 = vmatprep.subr.bf16.mxu0 0
  %1887 = vmatpush1.bf16.msra.mxu0 %v658
  %1888 = vmatprep.subr.bf16.mxu0 0
  %1889 = vmatpush1.bf16.msra.mxu0 0
  %1890 = vmatprep.subr.bf16.mxu0 0
  %1891 = vmatpush1.bf16.msra.mxu0 0
  %1892 = vmatprep.subr.bf16.mxu0 0
  %1893 = vmatpush1.bf16.msra.mxu0 0
  %1894 = vmatprep.subr.bf16.mxu0 0
  %1895 = vmatpush1.bf16.msra.mxu0 0
  %1896 = vmatprep.subr.bf16.mxu0 0
  %1897 = vmatpush1.bf16.msra.mxu0 0
  %1898 = vmatprep.subr.bf16.mxu0 0
  %1899 = vmatpush1.bf16.msra.mxu0 0
  %1900 = vmatprep.subr.bf16.mxu0 0
  %1901 = vmatpush1.bf16.msra.mxu0 0
  %1902 = vmatprep.subr.bf16.mxu0 0
  %1903 = vmatpush1.bf16.msra.mxu0 0
  %1904 = vmatprep.subr.bf16.mxu0 0
  %1905 = vmatpush1.bf16.msra.mxu0 0
  %1906 = vmatprep.subr.bf16.mxu0 0
  %1907 = vmatpush1.bf16.msra.mxu0 0
  %1908 = vmatprep.subr.bf16.mxu0 0
  %1909 = vmatpush1.bf16.msra.mxu0 0
  %1910 = vmatprep.subr.bf16.mxu0 0
  %1911 = vmatpush1.bf16.msra.mxu0 0
  %1912 = vmatprep.subr.bf16.mxu0 0
  %1913 = vmatpush1.bf16.msra.mxu0 0
  %1914 = vmatprep.subr.bf16.mxu0 0
  %1915 = vmatpush1.bf16.msra.mxu0 0
  %1916 = vmatprep.mubr.bf16.mxu0 0
  %1917 = vmatmul.mubr.bf16.gmra.mrb[0].mxu0 %v1882
  %v1918 = vpop.f32.mrb[0].mxu0
  %v1919 = vadd.f32 0.0, %v1918
  %v1920 = vpop.f32.mrb[0].mxu0
  %v1921 = vpop.f32.mrb[0].mxu0
  %v1922 = vpop.f32.mrb[0].mxu0
  %1923 = vdwg.mxu0
  %v1924 = vadd.f32 %v1876, %v1919
  %v1925 = vtanh.pop %v1924
  %v1926 = vmul.f32 %v1925, 0.5
  %v1927 = vadd.f32 %v1926, 0.5
  %v1928 = vmul.f32 %v1927, %v1601
  %1930 = vrot.lane.b32.xlu0 %v1925, 64
  %v1931 = vpop.permute.xlu0 %1930
  %v1933 = vmul.f32 %v1927, %v1931
  %1935 = vrot.lane.b32.xlu0 %v1933, 32
  %v1936 = vpop.permute.xlu0 %1935
  %v1938 = vadd.f32 %v1928, %v1936
  %v1939 = vtanh.pop %v1938
  %1941 = vrot.lane.b32.xlu0 %v1939, 64
  %v1942 = vpop.permute.xlu0 %1941
  %v1944 = vmul.f32 %v1927, %v1942
  %v1945 = vld [vmem:[%s993] sm:$0xff]
  %v1946 = vpack.c.bf16 %v1944, %v1944
  %1948 = vrot.lane.b32.xlu0 %v1946, 32
  %v1949 = vpop.permute.xlu0 %1948
  %v1951 = vsel %vm85, %v1949, 0
  %1953 = vmatprep.subr.bf16.mxu0 0
  %1954 = vmatpush1.bf16.msra.mxu0 %v657
  %1955 = vmatprep.subr.bf16.mxu0 0
  %1956 = vmatpush1.bf16.msra.mxu0 %v658
  %1957 = vmatprep.subr.bf16.mxu0 0
  %1958 = vmatpush1.bf16.msra.mxu0 0
  %1959 = vmatprep.subr.bf16.mxu0 0
  %1960 = vmatpush1.bf16.msra.mxu0 0
  %1961 = vmatprep.subr.bf16.mxu0 0
  %1962 = vmatpush1.bf16.msra.mxu0 0
  %1963 = vmatprep.subr.bf16.mxu0 0
  %1964 = vmatpush1.bf16.msra.mxu0 0
  %1965 = vmatprep.subr.bf16.mxu0 0
  %1966 = vmatpush1.bf16.msra.mxu0 0
  %1967 = vmatprep.subr.bf16.mxu0 0
  %1968 = vmatpush1.bf16.msra.mxu0 0
  %1969 = vmatprep.subr.bf16.mxu0 0
  %1970 = vmatpush1.bf16.msra.mxu0 0
  %1971 = vmatprep.subr.bf16.mxu0 0
  %1972 = vmatpush1.bf16.msra.mxu0 0
  %1973 = vmatprep.subr.bf16.mxu0 0
  %1974 = vmatpush1.bf16.msra.mxu0 0
  %1975 = vmatprep.subr.bf16.mxu0 0
  %1976 = vmatpush1.bf16.msra.mxu0 0
  %1977 = vmatprep.subr.bf16.mxu0 0
  %1978 = vmatpush1.bf16.msra.mxu0 0
  %1979 = vmatprep.subr.bf16.mxu0 0
  %1980 = vmatpush1.bf16.msra.mxu0 0
  %1981 = vmatprep.subr.bf16.mxu0 0
  %1982 = vmatpush1.bf16.msra.mxu0 0
  %1983 = vmatprep.subr.bf16.mxu0 0
  %1984 = vmatpush1.bf16.msra.mxu0 0
  %1985 = vmatprep.mubr.bf16.mxu0 0
  %1986 = vmatmul.mubr.bf16.gmra.mrb[0].mxu0 %v1951
  %v1987 = vpop.f32.mrb[0].mxu0
  %v1988 = vadd.f32 0.0, %v1987
  %v1989 = vpop.f32.mrb[0].mxu0
  %v1990 = vpop.f32.mrb[0].mxu0
  %v1991 = vpop.f32.mrb[0].mxu0
  %1992 = vdwg.mxu0
  %v1993 = vadd.f32 %v1945, %v1988
  %v1994 = vtanh.pop %v1993
  %v1995 = vmul.f32 %v1994, 0.5
  %v1996 = vadd.f32 %v1995, 0.5
  %v1997 = vmul.f32 %v1996, %v1938
  %1999 = vrot.lane.b32.xlu0 %v1994, 64
  %v2000 = vpop.permute.xlu0 %1999
  %v2002 = vmul.f32 %v1996, %v2000
  %2004 = vrot.lane.b32.xlu0 %v2002, 32
  %v2005 = vpop.permute.xlu0 %2004
  %v2007 = vadd.f32 %v1997, %v2005
  %v2008 = vtanh.pop %v2007
  %2010 = vrot.lane.b32.xlu0 %v2008, 64
  %v2011 = vpop.permute.xlu0 %2010
  %v2013 = vmul.f32 %v1996, %v2011
  %v2014 = vld [vmem:[%s1399] sm:$0xff]
  %v2015 = vpack.c.bf16 %v2013, %v2013
  %2017 = vrot.lane.b32.xlu0 %v2015, 32
  %v2018 = vpop.permute.xlu0 %2017
  %v2020 = vsel %vm85, %v2018, 0
  %2022 = vmatprep.subr.bf16.mxu0 0
  %2023 = vmatpush1.bf16.msra.mxu0 %v657
  %2024 = vmatprep.subr.bf16.mxu0 0
  %2025 = vmatpush1.bf16.msra.mxu0 %v658
  %2026 = vmatprep.subr.bf16.mxu0 0
  %2027 = vmatpush1.bf16.msra.mxu0 0
  %2028 = vmatprep.subr.bf16.mxu0 0
  %2029 = vmatpush1.bf16.msra.mxu0 0
  %2030 = vmatprep.subr.bf16.mxu0 0
  %2031 = vmatpush1.bf16.msra.mxu0 0
  %2032 = vmatprep.subr.bf16.mxu0 0
  %2033 = vmatpush1.bf16.msra.mxu0 0
  %2034 = vmatprep.subr.bf16.mxu0 0
  %2035 = vmatpush1.bf16.msra.mxu0 0
  %2036 = vmatprep.subr.bf16.mxu0 0
  %2037 = vmatpush1.bf16.msra.mxu0 0
  %2038 = vmatprep.subr.bf16.mxu0 0
  %2039 = vmatpush1.bf16.msra.mxu0 0
  %2040 = vmatprep.subr.bf16.mxu0 0
  %2041 = vmatpush1.bf16.msra.mxu0 0
  %2042 = vmatprep.subr.bf16.mxu0 0
  %2043 = vmatpush1.bf16.msra.mxu0 0
  %2044 = vmatprep.subr.bf16.mxu0 0
  %2045 = vmatpush1.bf16.msra.mxu0 0
  %2046 = vmatprep.subr.bf16.mxu0 0
  %2047 = vmatpush1.bf16.msra.mxu0 0
  %2048 = vmatprep.subr.bf16.mxu0 0
  %2049 = vmatpush1.bf16.msra.mxu0 0
  %2050 = vmatprep.subr.bf16.mxu0 0
  %2051 = vmatpush1.bf16.msra.mxu0 0
  %2052 = vmatprep.subr.bf16.mxu0 0
  %2053 = vmatpush1.bf16.msra.mxu0 0
  %2054 = vmatprep.mubr.bf16.mxu0 0
  %2055 = vmatmul.mubr.bf16.gmra.mrb[0].mxu0 %v2020
  %v2056 = vpop.f32.mrb[0].mxu0
  %v2057 = vadd.f32 0.0, %v2056
  %v2058 = vpop.f32.mrb[0].mxu0
  %v2059 = vpop.f32.mrb[0].mxu0
  %v2060 = vpop.f32.mrb[0].mxu0
  %2061 = vdwg.mxu0
  %v2062 = vadd.f32 %v2014, %v2057
  %v2063 = vtanh.pop %v2062
  %v2064 = vmul.f32 %v2063, 0.5
  %v2065 = vadd.f32 %v2064, 0.5
  %v2066 = vmul.f32 %v2065, %v2007
  %2068 = vrot.lane.b32.xlu0 %v2063, 64
  %v2069 = vpop.permute.xlu0 %2068
  %v2071 = vmul.f32 %v2065, %v2069
  %2073 = vrot.lane.b32.xlu0 %v2071, 32
  %v2074 = vpop.permute.xlu0 %2073
  %v2076 = vadd.f32 %v2066, %v2074
  %v2077 = vtanh.pop %v2076
  %2079 = vrot.lane.b32.xlu0 %v2077, 64
  %v2080 = vpop.permute.xlu0 %2079
  %v2082 = vmul.f32 %v2065, %v2080
  %v2083 = vld [vmem:[%s1874] sm:$0xff]
  %v2084 = vpack.c.bf16 %v2082, %v2082
  %2086 = vrot.lane.b32.xlu0 %v2084, 32
  %v2087 = vpop.permute.xlu0 %2086
  %v2089 = vsel %vm85, %v2087, 0
  %2091 = vmatprep.subr.bf16.mxu0 0
  %2092 = vmatpush1.bf16.msra.mxu0 %v657
  %2093 = vmatprep.subr.bf16.mxu0 0
  %2094 = vmatpush1.bf16.msra.mxu0 %v658
  %2095 = vmatprep.subr.bf16.mxu0 0
  %2096 = vmatpush1.bf16.msra.mxu0 0
  %2097 = vmatprep.subr.bf16.mxu0 0
  %2098 = vmatpush1.bf16.msra.mxu0 0
  %2099 = vmatprep.subr.bf16.mxu0 0
  %2100 = vmatpush1.bf16.msra.mxu0 0
  %2101 = vmatprep.subr.bf16.mxu0 0
  %2102 = vmatpush1.bf16.msra.mxu0 0
  %2103 = vmatprep.subr.bf16.mxu0 0
  %2104 = vmatpush1.bf16.msra.mxu0 0
  %2105 = vmatprep.subr.bf16.mxu0 0
  %2106 = vmatpush1.bf16.msra.mxu0 0
  %2107 = vmatprep.subr.bf16.mxu0 0
  %2108 = vmatpush1.bf16.msra.mxu0 0
  %2109 = vmatprep.subr.bf16.mxu0 0
  %2110 = vmatpush1.bf16.msra.mxu0 0
  %2111 = vmatprep.subr.bf16.mxu0 0
  %2112 = vmatpush1.bf16.msra.mxu0 0
  %2113 = vmatprep.subr.bf16.mxu0 0
  %2114 = vmatpush1.bf16.msra.mxu0 0
  %2115 = vmatprep.subr.bf16.mxu0 0
  %2116 = vmatpush1.bf16.msra.mxu0 0
  %2117 = vmatprep.subr.bf16.mxu0 0
  %2118 = vmatpush1.bf16.msra.mxu0 0
  %2119 = vmatprep.subr.bf16.mxu0 0
  %2120 = vmatpush1.bf16.msra.mxu0 0
  %2121 = vmatprep.subr.bf16.mxu0 0
  %2122 = vmatpush1.bf16.msra.mxu0 0
  %2123 = vmatprep.mubr.bf16.mxu0 0
  %2124 = vmatmul.mubr.bf16.gmra.mrb[0].mxu0 %v2089
  %v2125 = vpop.f32.mrb[0].mxu0
  %v2126 = vadd.f32 0.0, %v2125
  %v2127 = vpop.f32.mrb[0].mxu0
  %v2128 = vpop.f32.mrb[0].mxu0
  %v2129 = vpop.f32.mrb[0].mxu0
  %2130 = vdwg.mxu0
  %v2131 = vadd.f32 %v2083, %v2126
  %v2132 = vtanh.pop %v2131
  %v2133 = vmul.f32 %v2132, 0.5
  %v2134 = vadd.f32 %v2133, 0.5
  %v2135 = vmul.f32 %v2134, %v2076
  %2137 = vrot.lane.b32.xlu0 %v2132, 64
  %v2138 = vpop.permute.xlu0 %2137
  %v2140 = vmul.f32 %v2134, %v2138
  %2142 = vrot.lane.b32.xlu0 %v2140, 32
  %v2143 = vpop.permute.xlu0 %2142
  %v2145 = vadd.f32 %v2135, %v2143
  %v2146 = vtanh.pop %v2145
  %2148 = vrot.lane.b32.xlu0 %v2146, 64
  %v2149 = vpop.permute.xlu0 %2148
  %v2151 = vmul.f32 %v2134, %v2149
  %2153 = vrot.lane.b32.xlu0 %v2151, 32
  %v2154 = vpop.permute.xlu0 %2153
  %v2155 = vsel %vm85, %v2154, 0
  %2157 = vmatprep.subr.mxu0 0.0
  %2158 = vmatpush1.msra.mxu0 %v50
  %2159 = vmatprep.subr.mxu0 0.0
  %2160 = vmatpush1.msra.mxu0 %v51
  %2161 = vmatprep.subr.mxu0 0.0
  %2162 = vmatpush1.msra.mxu0 %v52
  %2163 = vmatprep.subr.mxu0 0.0
  %2164 = vmatpush1.msra.mxu0 %v53
  %2165 = vmatprep.subr.mxu0 0.0
  %2166 = vmatpush1.msra.mxu0 0.0
  %2167 = vmatprep.subr.mxu0 0.0
  %2168 = vmatpush1.msra.mxu0 0.0
  %2169 = vmatprep.subr.mxu0 0.0
  %2170 = vmatpush1.msra.mxu0 0.0
  %2171 = vmatprep.subr.mxu0 0.0
  %2172 = vmatpush1.msra.mxu0 0.0
  %2173 = vmatprep.subr.mxu0 0.0
  %2174 = vmatpush1.msra.mxu0 0.0
  %2175 = vmatprep.subr.mxu0 0.0
  %2176 = vmatpush1.msra.mxu0 0.0
  %2177 = vmatprep.subr.mxu0 0.0
  %2178 = vmatpush1.msra.mxu0 0.0
  %2179 = vmatprep.subr.mxu0 0.0
  %2180 = vmatpush1.msra.mxu0 0.0
  %2181 = vmatprep.subr.mxu0 0.0
  %2182 = vmatpush1.msra.mxu0 0.0
  %2183 = vmatprep.subr.mxu0 0.0
  %2184 = vmatpush1.msra.mxu0 0.0
  %2185 = vmatprep.subr.mxu0 0.0
  %2186 = vmatpush1.msra.mxu0 0.0
  %2187 = vmatprep.subr.mxu0 0.0
  %2188 = vmatpush1.msra.mxu0 0.0
  %2189 = vmatprep.subr.mxu0 0.0
  %2190 = vmatpush1.msra.mxu0 0.0
  %2191 = vmatprep.subr.mxu0 0.0
  %2192 = vmatpush1.msra.mxu0 0.0
  %2193 = vmatprep.subr.mxu0 0.0
  %2194 = vmatpush1.msra.mxu0 0.0
  %2195 = vmatprep.subr.mxu0 0.0
  %2196 = vmatpush1.msra.mxu0 0.0
  %2197 = vmatprep.subr.mxu0 0.0
  %2198 = vmatpush1.msra.mxu0 0.0
  %2199 = vmatprep.subr.mxu0 0.0
  %2200 = vmatpush1.msra.mxu0 0.0
  %2201 = vmatprep.subr.mxu0 0.0
  %2202 = vmatpush1.msra.mxu0 0.0
  %2203 = vmatprep.subr.mxu0 0.0
  %2204 = vmatpush1.msra.mxu0 0.0
  %2205 = vmatprep.subr.mxu0 0.0
  %2206 = vmatpush1.msra.mxu0 0.0
  %2207 = vmatprep.subr.mxu0 0.0
  %2208 = vmatpush1.msra.mxu0 0.0
  %2209 = vmatprep.subr.mxu0 0.0
  %2210 = vmatpush1.msra.mxu0 0.0
  %2211 = vmatprep.subr.mxu0 0.0
  %2212 = vmatpush1.msra.mxu0 0.0
  %2213 = vmatprep.subr.mxu0 0.0
  %2214 = vmatpush1.msra.mxu0 0.0
  %2215 = vmatprep.subr.mxu0 0.0
  %2216 = vmatpush1.msra.mxu0 0.0
  %2217 = vmatprep.subr.mxu0 0.0
  %2218 = vmatpush1.msra.mxu0 0.0
  %2219 = vmatprep.subr.mxu0 0.0
  %2220 = vmatpush1.msra.mxu0 0.0
  %2221 = vmatprep.mubr.f32.mxu0 0.0
  %2222 = vmatmul.mubr.f32.gmra.mrb[0].mxu0 %v2155
  %v2223 = vpop.f32.mrb[0].mxu0
  %v2224 = vadd.f32 %v49, %v2223
  %v2225 = vpop.f32.mrb[0].mxu0
  %2226 = vdwg.mxu0
  %v2227 = vmax.f32 %v2224, 0.0
  %v2228 = vsel %vm801, %v2227, 0.0
  %2229 = vadd.xlane.f32.xlu0 %v2228
  %v2230 = vpop.xlane.xlu0 %2229
  %v2231 = vmul.f32 %v2230, %v805
  %v2232 = vsub.f32 %v2227, %v2231
  %v2233 = vmul.f32 %v2232, %v2232
  %v2234 = vsel %vm801, %v2233, 0.0
  %2235 = vadd.xlane.f32.xlu0 %v2234
  %v2236 = vpop.xlane.xlu0 %2235
  %v2237 = vmul.f32 %v2236, %v805
  %v2238 = vadd.f32 %v2237, 1e-05
  %v2239 = vrsqrt.pop %v2238
  %v2240 = vmul.f32 %v2232, %v2239
  %v2241 = vmul.f32 %v2240, %v38
  %v2242 = vadd.f32 %v2241, %v43
  %v2244 = vsel %vm801, %v2242, 0
  %2246 = vmatprep.subr.mxu0 0.0
  %2247 = vmatpush1.msra.mxu0 %v54
  %2248 = vmatprep.subr.mxu0 0.0
  %2249 = vmatpush1.msra.mxu0 %v55
  %2250 = vmatprep.subr.mxu0 0.0
  %2251 = vmatpush1.msra.mxu0 %v56
  %2252 = vmatprep.subr.mxu0 0.0
  %2253 = vmatpush1.msra.mxu0 %v57
  %2254 = vmatprep.subr.mxu0 0.0
  %2255 = vmatpush1.msra.mxu0 %v58
  %2256 = vmatprep.subr.mxu0 0.0
  %2257 = vmatpush1.msra.mxu0 0.0
  %2258 = vmatprep.subr.mxu0 0.0
  %2259 = vmatpush1.msra.mxu0 0.0
  %2260 = vmatprep.subr.mxu0 0.0
  %2261 = vmatpush1.msra.mxu0 0.0
  %2262 = vmatprep.subr.mxu0 0.0
  %2263 = vmatpush1.msra.mxu0 0.0
  %2264 = vmatprep.subr.mxu0 0.0
  %2265 = vmatpush1.msra.mxu0 0.0
  %2266 = vmatprep.subr.mxu0 0.0
  %2267 = vmatpush1.msra.mxu0 0.0
  %2268 = vmatprep.subr.mxu0 0.0
  %2269 = vmatpush1.msra.mxu0 0.0
  %2270 = vmatprep.subr.mxu0 0.0
  %2271 = vmatpush1.msra.mxu0 0.0
  %2272 = vmatprep.subr.mxu0 0.0
  %2273 = vmatpush1.msra.mxu0 0.0
  %2274 = vmatprep.subr.mxu0 0.0
  %2275 = vmatpush1.msra.mxu0 0.0
  %2276 = vmatprep.subr.mxu0 0.0
  %2277 = vmatpush1.msra.mxu0 0.0
  %2278 = vmatprep.subr.mxu0 0.0
  %2279 = vmatpush1.msra.mxu0 0.0
  %2280 = vmatprep.subr.mxu0 0.0
  %2281 = vmatpush1.msra.mxu0 0.0
  %2282 = vmatprep.subr.mxu0 0.0
  %2283 = vmatpush1.msra.mxu0 0.0
  %2284 = vmatprep.subr.mxu0 0.0
  %2285 = vmatpush1.msra.mxu0 0.0
  %2286 = vmatprep.subr.mxu0 0.0
  %2287 = vmatpush1.msra.mxu0 0.0
  %2288 = vmatprep.subr.mxu0 0.0
  %2289 = vmatpush1.msra.mxu0 0.0
  %2290 = vmatprep.subr.mxu0 0.0
  %2291 = vmatpush1.msra.mxu0 0.0
  %2292 = vmatprep.subr.mxu0 0.0
  %2293 = vmatpush1.msra.mxu0 0.0
  %2294 = vmatprep.subr.mxu0 0.0
  %2295 = vmatpush1.msra.mxu0 0.0
  %2296 = vmatprep.subr.mxu0 0.0
  %2297 = vmatpush1.msra.mxu0 0.0
  %2298 = vmatprep.subr.mxu0 0.0
  %2299 = vmatpush1.msra.mxu0 0.0
  %2300 = vmatprep.subr.mxu0 0.0
  %2301 = vmatpush1.msra.mxu0 0.0
  %2302 = vmatprep.subr.mxu0 0.0
  %2303 = vmatpush1.msra.mxu0 0.0
  %2304 = vmatprep.subr.mxu0 0.0
  %2305 = vmatpush1.msra.mxu0 0.0
  %2306 = vmatprep.subr.mxu0 0.0
  %2307 = vmatpush1.msra.mxu0 0.0
  %2308 = vmatprep.subr.mxu0 0.0
  %2309 = vmatpush1.msra.mxu0 0.0
  %2310 = vmatprep.mubr.f32.mxu0 0.0
  %2311 = vmatmul.mubr.f32.gmra.mrb[0].mxu0 %v2244
  %v2312 = vpop.f32.mrb[0].mxu0
  %v2313 = vadd.f32 %v48, %v2312
  %v2314 = vpop.f32.mrb[0].mxu0
  %2315 = vdwg.mxu0
  %s2316 = scalar_lea.vmem %s8, 32
  %2317 = vst.msk [vmem:[%s2316] sm:$0xff] %vm85, %v2313
  %v2318 = vsel %vm85, %v2313, -inf
  %2319 = vmax.xlane.f32.xlu0 %v2318
  %v2320 = vpop.xlane.xlu0 %2319
  %vm2321 = vcmp.eq.f32.partialorder %v2313, %v2320
  %v2322 = vsel %vm2321, %v31, 32
  %v2323 = vsel %vm85, %v2322, 2147483647
  %v2324 = vand.u32 %v2323, 65535
  %v2325 = vshra.s32 %v2323, 16
  %v2326 = vcvt.s32.f32 %v2324
  %v2327 = vcvt.s32.f32 %v2325
  %2328 = vmin.xlane.f32.xlu0 %v2327
  %v2329 = vpop.xlane.xlu0 %2328
  %vm2330 = vcmp.eq.f32.partialorder %v2327, %v2329
  %v2331 = vsel %vm2330, %v2326, inf
  %2332 = vmin.xlane.f32.xlu0 %v2331
  %v2333 = vpop.xlane.xlu0 %2332
  %v2334 = vcvt.f32.s32 %v2333
  %v2335 = vcvt.f32.s32 %v2329
  %v2336 = vshll.u32 %v2335, 16
  %v2337 = vadd.s32 %v2336, %v2334
  %v2338 = vsel %vm33, %v2337, %v32
  %2339 = vset.pattern.permute.xlu0 4
  %2340 = vperm.xlu0 %2339, %v2338
  %v2341 = vpop.permute.xlu0 %2340
  %vm2342 = vcmp.eq.s32.totalorder %v31, %v2341
  %v2343 = vsel %vm2342, 1, 0
  %v2344 = vcvt.s32.f32 %v2343
  %v2346 = vsel %vm85, %v2344, 0
  %2348 = vmatprep.subr.mxu0 0.0
  %2349 = vmatpush1.msra.mxu0 %v59
  %2350 = vmatprep.subr.mxu0 0.0
  %2351 = vmatpush1.msra.mxu0 %v60
  %2352 = vmatprep.subr.mxu0 0.0
  %2353 = vmatpush1.msra.mxu0 %v61
  %2354 = vmatprep.subr.mxu0 0.0
  %2355 = vmatpush1.msra.mxu0 %v62
  %2356 = vmatprep.subr.mxu0 0.0
  %2357 = vmatpush1.msra.mxu0 0.0
  %2358 = vmatprep.subr.mxu0 0.0
  %2359 = vmatpush1.msra.mxu0 0.0
  %2360 = vmatprep.subr.mxu0 0.0
  %2361 = vmatpush1.msra.mxu0 0.0
  %2362 = vmatprep.subr.mxu0 0.0
  %2363 = vmatpush1.msra.mxu0 0.0
  %2364 = vmatprep.subr.mxu0 0.0
  %2365 = vmatpush1.msra.mxu0 0.0
  %2366 = vmatprep.subr.mxu0 0.0
  %2367 = vmatpush1.msra.mxu0 0.0
  %2368 = vmatprep.subr.mxu0 0.0
  %2369 = vmatpush1.msra.mxu0 0.0
  %2370 = vmatprep.subr.mxu0 0.0
  %2371 = vmatpush1.msra.mxu0 0.0
  %2372 = vmatprep.subr.mxu0 0.0
  %2373 = vmatpush1.msra.mxu0 0.0
  %2374 = vmatprep.subr.mxu0 0.0
  %2375 = vmatpush1.msra.mxu0 0.0
  %2376 = vmatprep.subr.mxu0 0.0
  %2377 = vmatpush1.msra.mxu0 0.0
  %2378 = vmatprep.subr.mxu0 0.0
  %2379 = vmatpush1.msra.mxu0 0.0
  %2380 = vmatprep.subr.mxu0 0.0
  %2381 = vmatpush1.msra.mxu0 0.0
  %2382 = vmatprep.subr.mxu0 0.0
  %2383 = vmatpush1.msra.mxu0 0.0
  %2384 = vmatprep.subr.mxu0 0.0
  %2385 = vmatpush1.msra.mxu0 0.0
  %2386 = vmatprep.subr.mxu0 0.0
  %2387 = vmatpush1.msra.mxu0 0.0
  %2388 = vmatprep.subr.mxu0 0.0
  %2389 = vmatpush1.msra.mxu0 0.0
  %2390 = vmatprep.subr.mxu0 0.0
  %2391 = vmatpush1.msra.mxu0 0.0
  %2392 = vmatprep.subr.mxu0 0.0
  %2393 = vmatpush1.msra.mxu0 0.0
  %2394 = vmatprep.subr.mxu0 0.0
  %2395 = vmatpush1.msra.mxu0 0.0
  %2396 = vmatprep.subr.mxu0 0.0
  %2397 = vmatpush1.msra.mxu0 0.0
  %2398 = vmatprep.subr.mxu0 0.0
  %2399 = vmatpush1.msra.mxu0 0.0
  %2400 = vmatprep.subr.mxu0 0.0
  %2401 = vmatpush1.msra.mxu0 0.0
  %2402 = vmatprep.subr.mxu0 0.0
  %2403 = vmatpush1.msra.mxu0 0.0
  %2404 = vmatprep.subr.mxu0 0.0
  %2405 = vmatpush1.msra.mxu0 0.0
  %2406 = vmatprep.subr.mxu0 0.0
  %2407 = vmatpush1.msra.mxu0 0.0
  %2408 = vmatprep.subr.mxu0 0.0
  %2409 = vmatpush1.msra.mxu0 0.0
  %2410 = vmatprep.subr.mxu0 0.0
  %2411 = vmatpush1.msra.mxu0 0.0
  %2412 = vmatprep.mubr.f32.mxu0 0.0
  %2413 = vmatmul.mubr.f32.gmra.mrb[0].mxu0 %v2346
  %v2414 = vpop.f32.mrb[0].mxu0
  %v2415 = vadd.f32 0.0, %v2414
  %v2416 = vpop.f32.mrb[0].mxu0
  %2417 = vdwg.mxu0
  %s2418 = scalar_lea.vmem [#allocation2], 32
  %2419 = vst [vmem:[%s2418] sm:$0xff] %v2415
  %v2420 = vld [vmem:[#allocation2] sm:$0xff]
  %v2421 = vpack.c.bf16 %v2151, %v2151
  %2423 = vrot.lane.b32.xlu0 %v2421, 32
  %v2424 = vpop.permute.xlu0 %2423
  %v2426 = vsel %vm85, %v2424, 0
  %2428 = vmatprep.subr.bf16.mxu0 0
  %2429 = vmatpush1.bf16.msra.mxu0 %v657
  %2430 = vmatprep.subr.bf16.mxu0 0
  %2431 = vmatpush1.bf16.msra.mxu0 %v658
  %2432 = vmatprep.subr.bf16.mxu0 0
  %2433 = vmatpush1.bf16.msra.mxu0 0
  %2434 = vmatprep.subr.bf16.mxu0 0
  %2435 = vmatpush1.bf16.msra.mxu0 0
  %2436 = vmatprep.subr.bf16.mxu0 0
  %2437 = vmatpush1.bf16.msra.mxu0 0
  %2438 = vmatprep.subr.bf16.mxu0 0
  %2439 = vmatpush1.bf16.msra.mxu0 0
  %2440 = vmatprep.subr.bf16.mxu0 0
  %2441 = vmatpush1.bf16.msra.mxu0 0
  %2442 = vmatprep.subr.bf16.mxu0 0
  %2443 = vmatpush1.bf16.msra.mxu0 0
  %2444 = vmatprep.subr.bf16.mxu0 0
  %2445 = vmatpush1.bf16.msra.mxu0 0
  %2446 = vmatprep.subr.bf16.mxu0 0
  %2447 = vmatpush1.bf16.msra.mxu0 0
  %2448 = vmatprep.subr.bf16.mxu0 0
  %2449 = vmatpush1.bf16.msra.mxu0 0
  %2450 = vmatprep.subr.bf16.mxu0 0
  %2451 = vmatpush1.bf16.msra.mxu0 0
  %2452 = vmatprep.subr.bf16.mxu0 0
  %2453 = vmatpush1.bf16.msra.mxu0 0
  %2454 = vmatprep.subr.bf16.mxu0 0
  %2455 = vmatpush1.bf16.msra.mxu0 0
  %2456 = vmatprep.subr.bf16.mxu0 0
  %2457 = vmatpush1.bf16.msra.mxu0 0
  %2458 = vmatprep.subr.bf16.mxu0 0
  %2459 = vmatpush1.bf16.msra.mxu0 0
  %2460 = vmatprep.mubr.bf16.mxu0 0
  %2461 = vmatmul.mubr.bf16.gmra.mrb[0].mxu0 %v2426
  %v2462 = vpop.f32.mrb[0].mxu0
  %v2463 = vadd.f32 0.0, %v2462
  %v2464 = vpop.f32.mrb[0].mxu0
  %v2465 = vpop.f32.mrb[0].mxu0
  %v2466 = vpop.f32.mrb[0].mxu0
  %2467 = vdwg.mxu0
  %v2468 = vadd.f32 %v2420, %v2463
  %v2469 = vtanh.pop %v2468
  %v2470 = vmul.f32 %v2469, 0.5
  %v2471 = vadd.f32 %v2470, 0.5
  %v2472 = vmul.f32 %v2471, %v2145
  %2474 = vrot.lane.b32.xlu0 %v2469, 64
  %v2475 = vpop.permute.xlu0 %2474
  %v2477 = vmul.f32 %v2471, %v2475
  %2479 = vrot.lane.b32.xlu0 %v2477, 32
  %v2480 = vpop.permute.xlu0 %2479
  %v2482 = vadd.f32 %v2472, %v2480
  %v2483 = vtanh.pop %v2482
  %2485 = vrot.lane.b32.xlu0 %v2483, 64
  %v2486 = vpop.permute.xlu0 %2485
  %v2488 = vmul.f32 %v2471, %v2486
  %v2489 = vld [vmem:[%s993] sm:$0xff]
  %v2490 = vpack.c.bf16 %v2488, %v2488
  %2492 = vrot.lane.b32.xlu0 %v2490, 32
  %v2493 = vpop.permute.xlu0 %2492
  %v2495 = vsel %vm85, %v2493, 0
  %2497 = vmatprep.subr.bf16.mxu0 0
  %2498 = vmatpush1.bf16.msra.mxu0 %v657
  %2499 = vmatprep.subr.bf16.mxu0 0
  %2500 = vmatpush1.bf16.msra.mxu0 %v658
  %2501 = vmatprep.subr.bf16.mxu0 0
  %2502 = vmatpush1.bf16.msra.mxu0 0
  %2503 = vmatprep.subr.bf16.mxu0 0
  %2504 = vmatpush1.bf16.msra.mxu0 0
  %2505 = vmatprep.subr.bf16.mxu0 0
  %2506 = vmatpush1.bf16.msra.mxu0 0
  %2507 = vmatprep.subr.bf16.mxu0 0
  %2508 = vmatpush1.bf16.msra.mxu0 0
  %2509 = vmatprep.subr.bf16.mxu0 0
  %2510 = vmatpush1.bf16.msra.mxu0 0
  %2511 = vmatprep.subr.bf16.mxu0 0
  %2512 = vmatpush1.bf16.msra.mxu0 0
  %2513 = vmatprep.subr.bf16.mxu0 0
  %2514 = vmatpush1.bf16.msra.mxu0 0
  %2515 = vmatprep.subr.bf16.mxu0 0
  %2516 = vmatpush1.bf16.msra.mxu0 0
  %2517 = vmatprep.subr.bf16.mxu0 0
  %2518 = vmatpush1.bf16.msra.mxu0 0
  %2519 = vmatprep.subr.bf16.mxu0 0
  %2520 = vmatpush1.bf16.msra.mxu0 0
  %2521 = vmatprep.subr.bf16.mxu0 0
  %2522 = vmatpush1.bf16.msra.mxu0 0
  %2523 = vmatprep.subr.bf16.mxu0 0
  %2524 = vmatpush1.bf16.msra.mxu0 0
  %2525 = vmatprep.subr.bf16.mxu0 0
  %2526 = vmatpush1.bf16.msra.mxu0 0
  %2527 = vmatprep.subr.bf16.mxu0 0
  %2528 = vmatpush1.bf16.msra.mxu0 0
  %2529 = vmatprep.mubr.bf16.mxu0 0
  %2530 = vmatmul.mubr.bf16.gmra.mrb[0].mxu0 %v2495
  %v2531 = vpop.f32.mrb[0].mxu0
  %v2532 = vadd.f32 0.0, %v2531
  %v2533 = vpop.f32.mrb[0].mxu0
  %v2534 = vpop.f32.mrb[0].mxu0
  %v2535 = vpop.f32.mrb[0].mxu0
  %2536 = vdwg.mxu0
  %v2537 = vadd.f32 %v2489, %v2532
  %v2538 = vtanh.pop %v2537
  %v2539 = vmul.f32 %v2538, 0.5
  %v2540 = vadd.f32 %v2539, 0.5
  %v2541 = vmul.f32 %v2540, %v2482
  %2543 = vrot.lane.b32.xlu0 %v2538, 64
  %v2544 = vpop.permute.xlu0 %2543
  %v2546 = vmul.f32 %v2540, %v2544
  %2548 = vrot.lane.b32.xlu0 %v2546, 32
  %v2549 = vpop.permute.xlu0 %2548
  %v2551 = vadd.f32 %v2541, %v2549
  %v2552 = vtanh.pop %v2551
  %2554 = vrot.lane.b32.xlu0 %v2552, 64
  %v2555 = vpop.permute.xlu0 %2554
  %v2557 = vmul.f32 %v2540, %v2555
  %v2558 = vld [vmem:[%s1399] sm:$0xff]
  %v2559 = vpack.c.bf16 %v2557, %v2557
  %2561 = vrot.lane.b32.xlu0 %v2559, 32
  %v2562 = vpop.permute.xlu0 %2561
  %v2564 = vsel %vm85, %v2562, 0
  %2566 = vmatprep.subr.bf16.mxu0 0
  %2567 = vmatpush1.bf16.msra.mxu0 %v657
  %2568 = vmatprep.subr.bf16.mxu0 0
  %2569 = vmatpush1.bf16.msra.mxu0 %v658
  %2570 = vmatprep.subr.bf16.mxu0 0
  %2571 = vmatpush1.bf16.msra.mxu0 0
  %2572 = vmatprep.subr.bf16.mxu0 0
  %2573 = vmatpush1.bf16.msra.mxu0 0
  %2574 = vmatprep.subr.bf16.mxu0 0
  %2575 = vmatpush1.bf16.msra.mxu0 0
  %2576 = vmatprep.subr.bf16.mxu0 0
  %2577 = vmatpush1.bf16.msra.mxu0 0
  %2578 = vmatprep.subr.bf16.mxu0 0
  %2579 = vmatpush1.bf16.msra.mxu0 0
  %2580 = vmatprep.subr.bf16.mxu0 0
  %2581 = vmatpush1.bf16.msra.mxu0 0
  %2582 = vmatprep.subr.bf16.mxu0 0
  %2583 = vmatpush1.bf16.msra.mxu0 0
  %2584 = vmatprep.subr.bf16.mxu0 0
  %2585 = vmatpush1.bf16.msra.mxu0 0
  %2586 = vmatprep.subr.bf16.mxu0 0
  %2587 = vmatpush1.bf16.msra.mxu0 0
  %2588 = vmatprep.subr.bf16.mxu0 0
  %2589 = vmatpush1.bf16.msra.mxu0 0
  %2590 = vmatprep.subr.bf16.mxu0 0
  %2591 = vmatpush1.bf16.msra.mxu0 0
  %2592 = vmatprep.subr.bf16.mxu0 0
  %2593 = vmatpush1.bf16.msra.mxu0 0
  %2594 = vmatprep.subr.bf16.mxu0 0
  %2595 = vmatpush1.bf16.msra.mxu0 0
  %2596 = vmatprep.subr.bf16.mxu0 0
  %2597 = vmatpush1.bf16.msra.mxu0 0
  %2598 = vmatprep.mubr.bf16.mxu0 0
  %2599 = vmatmul.mubr.bf16.gmra.mrb[0].mxu0 %v2564
  %v2600 = vpop.f32.mrb[0].mxu0
  %v2601 = vadd.f32 0.0, %v2600
  %v2602 = vpop.f32.mrb[0].mxu0
  %v2603 = vpop.f32.mrb[0].mxu0
  %v2604 = vpop.f32.mrb[0].mxu0
  %2605 = vdwg.mxu0
  %v2606 = vadd.f32 %v2558, %v2601
  %v2607 = vtanh.pop %v2606
  %v2608 = vmul.f32 %v2607, 0.5
  %v2609 = vadd.f32 %v2608, 0.5
  %v2610 = vmul.f32 %v2609, %v2551
  %2612 = vrot.lane.b32.xlu0 %v2607, 64
  %v2613 = vpop.permute.xlu0 %2612
  %v2615 = vmul.f32 %v2609, %v2613
  %2617 = vrot.lane.b32.xlu0 %v2615, 32
  %v2618 = vpop.permute.xlu0 %2617
  %v2620 = vadd.f32 %v2610, %v2618
  %v2621 = vtanh.pop %v2620
  %2623 = vrot.lane.b32.xlu0 %v2621, 64
  %v2624 = vpop.permute.xlu0 %2623
  %v2626 = vmul.f32 %v2609, %v2624
  %v2627 = vld [vmem:[%s1874] sm:$0xff]
  %v2628 = vpack.c.bf16 %v2626, %v2626
  %2630 = vrot.lane.b32.xlu0 %v2628, 32
  %v2631 = vpop.permute.xlu0 %2630
  %v2633 = vsel %vm85, %v2631, 0
  %2635 = vmatprep.subr.bf16.mxu0 0
  %2636 = vmatpush1.bf16.msra.mxu0 %v657
  %2637 = vmatprep.subr.bf16.mxu0 0
  %2638 = vmatpush1.bf16.msra.mxu0 %v658
  %2639 = vmatprep.subr.bf16.mxu0 0
  %2640 = vmatpush1.bf16.msra.mxu0 0
  %2641 = vmatprep.subr.bf16.mxu0 0
  %2642 = vmatpush1.bf16.msra.mxu0 0
  %2643 = vmatprep.subr.bf16.mxu0 0
  %2644 = vmatpush1.bf16.msra.mxu0 0
  %2645 = vmatprep.subr.bf16.mxu0 0
  %2646 = vmatpush1.bf16.msra.mxu0 0
  %2647 = vmatprep.subr.bf16.mxu0 0
  %2648 = vmatpush1.bf16.msra.mxu0 0
  %2649 = vmatprep.subr.bf16.mxu0 0
  %2650 = vmatpush1.bf16.msra.mxu0 0
  %2651 = vmatprep.subr.bf16.mxu0 0
  %2652 = vmatpush1.bf16.msra.mxu0 0
  %2653 = vmatprep.subr.bf16.mxu0 0
  %2654 = vmatpush1.bf16.msra.mxu0 0
  %2655 = vmatprep.subr.bf16.mxu0 0
  %2656 = vmatpush1.bf16.msra.mxu0 0
  %2657 = vmatprep.subr.bf16.mxu0 0
  %2658 = vmatpush1.bf16.msra.mxu0 0
  %2659 = vmatprep.subr.bf16.mxu0 0
  %2660 = vmatpush1.bf16.msra.mxu0 0
  %2661 = vmatprep.subr.bf16.mxu0 0
  %2662 = vmatpush1.bf16.msra.mxu0 0
  %2663 = vmatprep.subr.bf16.mxu0 0
  %2664 = vmatpush1.bf16.msra.mxu0 0
  %2665 = vmatprep.subr.bf16.mxu0 0
  %2666 = vmatpush1.bf16.msra.mxu0 0
  %2667 = vmatprep.mubr.bf16.mxu0 0
  %2668 = vmatmul.mubr.bf16.gmra.mrb[0].mxu0 %v2633
  %v2669 = vpop.f32.mrb[0].mxu0
  %v2670 = vadd.f32 0.0, %v2669
  %v2671 = vpop.f32.mrb[0].mxu0
  %v2672 = vpop.f32.mrb[0].mxu0
  %v2673 = vpop.f32.mrb[0].mxu0
  %2674 = vdwg.mxu0
  %v2675 = vadd.f32 %v2627, %v2670
  %v2676 = vtanh.pop %v2675
  %v2677 = vmul.f32 %v2676, 0.5
  %v2678 = vadd.f32 %v2677, 0.5
  %v2679 = vmul.f32 %v2678, %v2620
  %2681 = vrot.lane.b32.xlu0 %v2676, 64
  %v2682 = vpop.permute.xlu0 %2681
  %v2684 = vmul.f32 %v2678, %v2682
  %2686 = vrot.lane.b32.xlu0 %v2684, 32
  %v2687 = vpop.permute.xlu0 %2686
  %v2689 = vadd.f32 %v2679, %v2687
  %v2690 = vtanh.pop %v2689
  %2692 = vrot.lane.b32.xlu0 %v2690, 64
  %v2693 = vpop.permute.xlu0 %2692
  %v2695 = vmul.f32 %v2678, %v2693
  %v2696 = vld [vmem:[%s2418] sm:$0xff]
  %v2697 = vpack.c.bf16 %v2695, %v2695
  %2699 = vrot.lane.b32.xlu0 %v2697, 32
  %v2700 = vpop.permute.xlu0 %2699
  %v2702 = vsel %vm85, %v2700, 0
  %2704 = vmatprep.subr.bf16.mxu0 0
  %2705 = vmatpush1.bf16.msra.mxu0 %v657
  %2706 = vmatprep.subr.bf16.mxu0 0
  %2707 = vmatpush1.bf16.msra.mxu0 %v658
  %2708 = vmatprep.subr.bf16.mxu0 0
  %2709 = vmatpush1.bf16.msra.mxu0 0
  %2710 = vmatprep.subr.bf16.mxu0 0
  %2711 = vmatpush1.bf16.msra.mxu0 0
  %2712 = vmatprep.subr.bf16.mxu0 0
  %2713 = vmatpush1.bf16.msra.mxu0 0
  %2714 = vmatprep.subr.bf16.mxu0 0
  %2715 = vmatpush1.bf16.msra.mxu0 0
  %2716 = vmatprep.subr.bf16.mxu0 0
  %2717 = vmatpush1.bf16.msra.mxu0 0
  %2718 = vmatprep.subr.bf16.mxu0 0
  %2719 = vmatpush1.bf16.msra.mxu0 0
  %2720 = vmatprep.subr.bf16.mxu0 0
  %2721 = vmatpush1.bf16.msra.mxu0 0
  %2722 = vmatprep.subr.bf16.mxu0 0
  %2723 = vmatpush1.bf16.msra.mxu0 0
  %2724 = vmatprep.subr.bf16.mxu0 0
  %2725 = vmatpush1.bf16.msra.mxu0 0
  %2726 = vmatprep.subr.bf16.mxu0 0
  %2727 = vmatpush1.bf16.msra.mxu0 0
  %2728 = vmatprep.subr.bf16.mxu0 0
  %2729 = vmatpush1.bf16.msra.mxu0 0
  %2730 = vmatprep.subr.bf16.mxu0 0
  %2731 = vmatpush1.bf16.msra.mxu0 0
  %2732 = vmatprep.subr.bf16.mxu0 0
  %2733 = vmatpush1.bf16.msra.mxu0 0
  %2734 = vmatprep.subr.bf16.mxu0 0
  %2735 = vmatpush1.bf16.msra.mxu0 0
  %2736 = vmatprep.mubr.bf16.mxu0 0
  %2737 = vmatmul.mubr.bf16.gmra.mrb[0].mxu0 %v2702
  %v2738 = vpop.f32.mrb[0].mxu0
  %v2739 = vadd.f32 0.0, %v2738
  %v2740 = vpop.f32.mrb[0].mxu0
  %v2741 = vpop.f32.mrb[0].mxu0
  %v2742 = vpop.f32.mrb[0].mxu0
  %2743 = vdwg.mxu0
  %v2744 = vadd.f32 %v2696, %v2739
  %v2745 = vtanh.pop %v2744
  %v2746 = vmul.f32 %v2745, 0.5
  %v2747 = vadd.f32 %v2746, 0.5
  %v2748 = vmul.f32 %v2747, %v2689
  %2750 = vrot.lane.b32.xlu0 %v2745, 64
  %v2751 = vpop.permute.xlu0 %2750
  %v2753 = vmul.f32 %v2747, %v2751
  %2755 = vrot.lane.b32.xlu0 %v2753, 32
  %v2756 = vpop.permute.xlu0 %2755
  %v2758 = vadd.f32 %v2748, %v2756
  %v2759 = vtanh.pop %v2758
  %2761 = vrot.lane.b32.xlu0 %v2759, 64
  %v2762 = vpop.permute.xlu0 %2761
  %v2764 = vmul.f32 %v2747, %v2762
  %2766 = vrot.lane.b32.xlu0 %v2764, 32
  %v2767 = vpop.permute.xlu0 %2766
  %v2768 = vsel %vm85, %v2767, 0
  %2770 = vmatprep.subr.mxu0 0.0
  %2771 = vmatpush1.msra.mxu0 %v50
  %2772 = vmatprep.subr.mxu0 0.0
  %2773 = vmatpush1.msra.mxu0 %v51
  %2774 = vmatprep.subr.mxu0 0.0
  %2775 = vmatpush1.msra.mxu0 %v52
  %2776 = vmatprep.subr.mxu0 0.0
  %2777 = vmatpush1.msra.mxu0 %v53
  %2778 = vmatprep.subr.mxu0 0.0
  %2779 = vmatpush1.msra.mxu0 0.0
  %2780 = vmatprep.subr.mxu0 0.0
  %2781 = vmatpush1.msra.mxu0 0.0
  %2782 = vmatprep.subr.mxu0 0.0
  %2783 = vmatpush1.msra.mxu0 0.0
  %2784 = vmatprep.subr.mxu0 0.0
  %2785 = vmatpush1.msra.mxu0 0.0
  %2786 = vmatprep.subr.mxu0 0.0
  %2787 = vmatpush1.msra.mxu0 0.0
  %2788 = vmatprep.subr.mxu0 0.0
  %2789 = vmatpush1.msra.mxu0 0.0
  %2790 = vmatprep.subr.mxu0 0.0
  %2791 = vmatpush1.msra.mxu0 0.0
  %2792 = vmatprep.subr.mxu0 0.0
  %2793 = vmatpush1.msra.mxu0 0.0
  %2794 = vmatprep.subr.mxu0 0.0
  %2795 = vmatpush1.msra.mxu0 0.0
  %2796 = vmatprep.subr.mxu0 0.0
  %2797 = vmatpush1.msra.mxu0 0.0
  %2798 = vmatprep.subr.mxu0 0.0
  %2799 = vmatpush1.msra.mxu0 0.0
  %2800 = vmatprep.subr.mxu0 0.0
  %2801 = vmatpush1.msra.mxu0 0.0
  %2802 = vmatprep.subr.mxu0 0.0
  %2803 = vmatpush1.msra.mxu0 0.0
  %2804 = vmatprep.subr.mxu0 0.0
  %2805 = vmatpush1.msra.mxu0 0.0
  %2806 = vmatprep.subr.mxu0 0.0
  %2807 = vmatpush1.msra.mxu0 0.0
  %2808 = vmatprep.subr.mxu0 0.0
  %2809 = vmatpush1.msra.mxu0 0.0
  %2810 = vmatprep.subr.mxu0 0.0
  %2811 = vmatpush1.msra.mxu0 0.0
  %2812 = vmatprep.subr.mxu0 0.0
  %2813 = vmatpush1.msra.mxu0 0.0
  %2814 = vmatprep.subr.mxu0 0.0
  %2815 = vmatpush1.msra.mxu0 0.0
  %2816 = vmatprep.subr.mxu0 0.0
  %2817 = vmatpush1.msra.mxu0 0.0
  %2818 = vmatprep.subr.mxu0 0.0
  %2819 = vmatpush1.msra.mxu0 0.0
  %2820 = vmatprep.subr.mxu0 0.0
  %2821 = vmatpush1.msra.mxu0 0.0
  %2822 = vmatprep.subr.mxu0 0.0
  %2823 = vmatpush1.msra.mxu0 0.0
  %2824 = vmatprep.subr.mxu0 0.0
  %2825 = vmatpush1.msra.mxu0 0.0
  %2826 = vmatprep.subr.mxu0 0.0
  %2827 = vmatpush1.msra.mxu0 0.0
  %2828 = vmatprep.subr.mxu0 0.0
  %2829 = vmatpush1.msra.mxu0 0.0
  %2830 = vmatprep.subr.mxu0 0.0
  %2831 = vmatpush1.msra.mxu0 0.0
  %2832 = vmatprep.subr.mxu0 0.0
  %2833 = vmatpush1.msra.mxu0 0.0
  %2834 = vmatprep.mubr.f32.mxu0 0.0
  %2835 = vmatmul.mubr.f32.gmra.mrb[0].mxu0 %v2768
  %v2836 = vpop.f32.mrb[0].mxu0
  %v2837 = vadd.f32 %v49, %v2836
  %v2838 = vpop.f32.mrb[0].mxu0
  %2839 = vdwg.mxu0
  %v2840 = vmax.f32 %v2837, 0.0
  %v2841 = vsel %vm801, %v2840, 0.0
  %2842 = vadd.xlane.f32.xlu0 %v2841
  %v2843 = vpop.xlane.xlu0 %2842
  %v2844 = vmul.f32 %v2843, %v805
  %v2845 = vsub.f32 %v2840, %v2844
  %v2846 = vmul.f32 %v2845, %v2845
  %v2847 = vsel %vm801, %v2846, 0.0
  %2848 = vadd.xlane.f32.xlu0 %v2847
  %v2849 = vpop.xlane.xlu0 %2848
  %v2850 = vmul.f32 %v2849, %v805
  %v2851 = vadd.f32 %v2850, 1e-05
  %v2852 = vrsqrt.pop %v2851
  %v2853 = vmul.f32 %v2845, %v2852
  %v2854 = vmul.f32 %v2853, %v38
  %v2855 = vadd.f32 %v2854, %v43
  %v2857 = vsel %vm801, %v2855, 0
  %2859 = vmatprep.subr.mxu0 0.0
  %2860 = vmatpush1.msra.mxu0 %v54
  %2861 = vmatprep.subr.mxu0 0.0
  %2862 = vmatpush1.msra.mxu0 %v55
  %2863 = vmatprep.subr.mxu0 0.0
  %2864 = vmatpush1.msra.mxu0 %v56
  %2865 = vmatprep.subr.mxu0 0.0
  %2866 = vmatpush1.msra.mxu0 %v57
  %2867 = vmatprep.subr.mxu0 0.0
  %2868 = vmatpush1.msra.mxu0 %v58
  %2869 = vmatprep.subr.mxu0 0.0
  %2870 = vmatpush1.msra.mxu0 0.0
  %2871 = vmatprep.subr.mxu0 0.0
  %2872 = vmatpush1.msra.mxu0 0.0
  %2873 = vmatprep.subr.mxu0 0.0
  %2874 = vmatpush1.msra.mxu0 0.0
  %2875 = vmatprep.subr.mxu0 0.0
  %2876 = vmatpush1.msra.mxu0 0.0
  %2877 = vmatprep.subr.mxu0 0.0
  %2878 = vmatpush1.msra.mxu0 0.0
  %2879 = vmatprep.subr.mxu0 0.0
  %2880 = vmatpush1.msra.mxu0 0.0
  %2881 = vmatprep.subr.mxu0 0.0
  %2882 = vmatpush1.msra.mxu0 0.0
  %2883 = vmatprep.subr.mxu0 0.0
  %2884 = vmatpush1.msra.mxu0 0.0
  %2885 = vmatprep.subr.mxu0 0.0
  %2886 = vmatpush1.msra.mxu0 0.0
  %2887 = vmatprep.subr.mxu0 0.0
  %2888 = vmatpush1.msra.mxu0 0.0
  %2889 = vmatprep.subr.mxu0 0.0
  %2890 = vmatpush1.msra.mxu0 0.0
  %2891 = vmatprep.subr.mxu0 0.0
  %2892 = vmatpush1.msra.mxu0 0.0
  %2893 = vmatprep.subr.mxu0 0.0
  %2894 = vmatpush1.msra.mxu0 0.0
  %2895 = vmatprep.subr.mxu0 0.0
  %2896 = vmatpush1.msra.mxu0 0.0
  %2897 = vmatprep.subr.mxu0 0.0
  %2898 = vmatpush1.msra.mxu0 0.0
  %2899 = vmatprep.subr.mxu0 0.0
  %2900 = vmatpush1.msra.mxu0 0.0
  %2901 = vmatprep.subr.mxu0 0.0
  %2902 = vmatpush1.msra.mxu0 0.0
  %2903 = vmatprep.subr.mxu0 0.0
  %2904 = vmatpush1.msra.mxu0 0.0
  %2905 = vmatprep.subr.mxu0 0.0
  %2906 = vmatpush1.msra.mxu0 0.0
  %2907 = vmatprep.subr.mxu0 0.0
  %2908 = vmatpush1.msra.mxu0 0.0
  %2909 = vmatprep.subr.mxu0 0.0
  %2910 = vmatpush1.msra.mxu0 0.0
  %2911 = vmatprep.subr.mxu0 0.0
  %2912 = vmatpush1.msra.mxu0 0.0
  %2913 = vmatprep.subr.mxu0 0.0
  %2914 = vmatpush1.msra.mxu0 0.0
  %2915 = vmatprep.subr.mxu0 0.0
  %2916 = vmatpush1.msra.mxu0 0.0
  %2917 = vmatprep.subr.mxu0 0.0
  %2918 = vmatpush1.msra.mxu0 0.0
  %2919 = vmatprep.subr.mxu0 0.0
  %2920 = vmatpush1.msra.mxu0 0.0
  %2921 = vmatprep.subr.mxu0 0.0
  %2922 = vmatpush1.msra.mxu0 0.0
  %2923 = vmatprep.mubr.f32.mxu0 0.0
  %2924 = vmatmul.mubr.f32.gmra.mrb[0].mxu0 %v2857
  %v2925 = vpop.f32.mrb[0].mxu0
  %v2926 = vadd.f32 %v48, %v2925
  %v2927 = vpop.f32.mrb[0].mxu0
  %2928 = vdwg.mxu0
  %s2929 = scalar_lea.vmem %s8, 40
  %2930 = vst.msk [vmem:[%s2929] sm:$0xff] %vm85, %v2926
  %v2931 = vsel %vm85, %v2926, -inf
  %2932 = vmax.xlane.f32.xlu0 %v2931
  %v2933 = vpop.xlane.xlu0 %2932
  %vm2934 = vcmp.eq.f32.partialorder %v2926, %v2933
  %v2935 = vsel %vm2934, %v31, 32
  %v2936 = vsel %vm85, %v2935, 2147483647
  %v2937 = vand.u32 %v2936, 65535
  %v2938 = vshra.s32 %v2936, 16
  %v2939 = vcvt.s32.f32 %v2937
  %v2940 = vcvt.s32.f32 %v2938
  %2941 = vmin.xlane.f32.xlu0 %v2940
  %v2942 = vpop.xlane.xlu0 %2941
  %vm2943 = vcmp.eq.f32.partialorder %v2940, %v2942
  %v2944 = vsel %vm2943, %v2939, inf
  %2945 = vmin.xlane.f32.xlu0 %v2944
  %v2946 = vpop.xlane.xlu0 %2945
  %v2947 = vcvt.f32.s32 %v2946
  %v2948 = vcvt.f32.s32 %v2942
  %v2949 = vshll.u32 %v2948, 16
  %v2950 = vadd.s32 %v2949, %v2947
  %v2951 = vsel %vm33, %v2950, %v32
  %2952 = vset.pattern.permute.xlu0 5
  %2953 = vperm.xlu0 %2952, %v2951
  %v2954 = vpop.permute.xlu0 %2953
  %vm2955 = vcmp.eq.s32.totalorder %v31, %v2954
  %v2956 = vsel %vm2955, 1, 0
  %v2957 = vcvt.s32.f32 %v2956
  %v2959 = vsel %vm85, %v2957, 0
  %2961 = vmatprep.subr.mxu0 0.0
  %2962 = vmatpush1.msra.mxu0 %v59
  %2963 = vmatprep.subr.mxu0 0.0
  %2964 = vmatpush1.msra.mxu0 %v60
  %2965 = vmatprep.subr.mxu0 0.0
  %2966 = vmatpush1.msra.mxu0 %v61
  %2967 = vmatprep.subr.mxu0 0.0
  %2968 = vmatpush1.msra.mxu0 %v62
  %2969 = vmatprep.subr.mxu0 0.0
  %2970 = vmatpush1.msra.mxu0 0.0
  %2971 = vmatprep.subr.mxu0 0.0
  %2972 = vmatpush1.msra.mxu0 0.0
  %2973 = vmatprep.subr.mxu0 0.0
  %2974 = vmatpush1.msra.mxu0 0.0
  %2975 = vmatprep.subr.mxu0 0.0
  %2976 = vmatpush1.msra.mxu0 0.0
  %2977 = vmatprep.subr.mxu0 0.0
  %2978 = vmatpush1.msra.mxu0 0.0
  %2979 = vmatprep.subr.mxu0 0.0
  %2980 = vmatpush1.msra.mxu0 0.0
  %2981 = vmatprep.subr.mxu0 0.0
  %2982 = vmatpush1.msra.mxu0 0.0
  %2983 = vmatprep.subr.mxu0 0.0
  %2984 = vmatpush1.msra.mxu0 0.0
  %2985 = vmatprep.subr.mxu0 0.0
  %2986 = vmatpush1.msra.mxu0 0.0
  %2987 = vmatprep.subr.mxu0 0.0
  %2988 = vmatpush1.msra.mxu0 0.0
  %2989 = vmatprep.subr.mxu0 0.0
  %2990 = vmatpush1.msra.mxu0 0.0
  %2991 = vmatprep.subr.mxu0 0.0
  %2992 = vmatpush1.msra.mxu0 0.0
  %2993 = vmatprep.subr.mxu0 0.0
  %2994 = vmatpush1.msra.mxu0 0.0
  %2995 = vmatprep.subr.mxu0 0.0
  %2996 = vmatpush1.msra.mxu0 0.0
  %2997 = vmatprep.subr.mxu0 0.0
  %2998 = vmatpush1.msra.mxu0 0.0
  %2999 = vmatprep.subr.mxu0 0.0
  %3000 = vmatpush1.msra.mxu0 0.0
  %3001 = vmatprep.subr.mxu0 0.0
  %3002 = vmatpush1.msra.mxu0 0.0
  %3003 = vmatprep.subr.mxu0 0.0
  %3004 = vmatpush1.msra.mxu0 0.0
  %3005 = vmatprep.subr.mxu0 0.0
  %3006 = vmatpush1.msra.mxu0 0.0
  %3007 = vmatprep.subr.mxu0 0.0
  %3008 = vmatpush1.msra.mxu0 0.0
  %3009 = vmatprep.subr.mxu0 0.0
  %3010 = vmatpush1.msra.mxu0 0.0
  %3011 = vmatprep.subr.mxu0 0.0
  %3012 = vmatpush1.msra.mxu0 0.0
  %3013 = vmatprep.subr.mxu0 0.0
  %3014 = vmatpush1.msra.mxu0 0.0
  %3015 = vmatprep.subr.mxu0 0.0
  %3016 = vmatpush1.msra.mxu0 0.0
  %3017 = vmatprep.subr.mxu0 0.0
  %3018 = vmatpush1.msra.mxu0 0.0
  %3019 = vmatprep.subr.mxu0 0.0
  %3020 = vmatpush1.msra.mxu0 0.0
  %3021 = vmatprep.subr.mxu0 0.0
  %3022 = vmatpush1.msra.mxu0 0.0
  %3023 = vmatprep.subr.mxu0 0.0
  %3024 = vmatpush1.msra.mxu0 0.0
  %3025 = vmatprep.mubr.f32.mxu0 0.0
  %3026 = vmatmul.mubr.f32.gmra.mrb[0].mxu0 %v2959
  %v3027 = vpop.f32.mrb[0].mxu0
  %v3028 = vadd.f32 0.0, %v3027
  %v3029 = vpop.f32.mrb[0].mxu0
  %3030 = vdwg.mxu0
  %s3031 = scalar_lea.vmem [#allocation2], 40
  %3032 = vst [vmem:[%s3031] sm:$0xff] %v3028
  %v3033 = vld [vmem:[#allocation2] sm:$0xff]
  %v3034 = vpack.c.bf16 %v2764, %v2764
  %3036 = vrot.lane.b32.xlu0 %v3034, 32
  %v3037 = vpop.permute.xlu0 %3036
  %v3039 = vsel %vm85, %v3037, 0
  %3041 = vmatprep.subr.bf16.mxu0 0
  %3042 = vmatpush1.bf16.msra.mxu0 %v657
  %3043 = vmatprep.subr.bf16.mxu0 0
  %3044 = vmatpush1.bf16.msra.mxu0 %v658
  %3045 = vmatprep.subr.bf16.mxu0 0
  %3046 = vmatpush1.bf16.msra.mxu0 0
  %3047 = vmatprep.subr.bf16.mxu0 0
  %3048 = vmatpush1.bf16.msra.mxu0 0
  %3049 = vmatprep.subr.bf16.mxu0 0
  %3050 = vmatpush1.bf16.msra.mxu0 0
  %3051 = vmatprep.subr.bf16.mxu0 0
  %3052 = vmatpush1.bf16.msra.mxu0 0
  %3053 = vmatprep.subr.bf16.mxu0 0
  %3054 = vmatpush1.bf16.msra.mxu0 0
  %3055 = vmatprep.subr.bf16.mxu0 0
  %3056 = vmatpush1.bf16.msra.mxu0 0
  %3057 = vmatprep.subr.bf16.mxu0 0
  %3058 = vmatpush1.bf16.msra.mxu0 0
  %3059 = vmatprep.subr.bf16.mxu0 0
  %3060 = vmatpush1.bf16.msra.mxu0 0
  %3061 = vmatprep.subr.bf16.mxu0 0
  %3062 = vmatpush1.bf16.msra.mxu0 0
  %3063 = vmatprep.subr.bf16.mxu0 0
  %3064 = vmatpush1.bf16.msra.mxu0 0
  %3065 = vmatprep.subr.bf16.mxu0 0
  %3066 = vmatpush1.bf16.msra.mxu0 0
  %3067 = vmatprep.subr.bf16.mxu0 0
  %3068 = vmatpush1.bf16.msra.mxu0 0
  %3069 = vmatprep.subr.bf16.mxu0 0
  %3070 = vmatpush1.bf16.msra.mxu0 0
  %3071 = vmatprep.subr.bf16.mxu0 0
  %3072 = vmatpush1.bf16.msra.mxu0 0
  %3073 = vmatprep.mubr.bf16.mxu0 0
  %3074 = vmatmul.mubr.bf16.gmra.mrb[0].mxu0 %v3039
  %v3075 = vpop.f32.mrb[0].mxu0
  %v3076 = vadd.f32 0.0, %v3075
  %v3077 = vpop.f32.mrb[0].mxu0
  %v3078 = vpop.f32.mrb[0].mxu0
  %v3079 = vpop.f32.mrb[0].mxu0
  %3080 = vdwg.mxu0
  %v3081 = vadd.f32 %v3033, %v3076
  %v3082 = vtanh.pop %v3081
  %v3083 = vmul.f32 %v3082, 0.5
  %v3084 = vadd.f32 %v3083, 0.5
  %v3085 = vmul.f32 %v3084, %v2758
  %3087 = vrot.lane.b32.xlu0 %v3082, 64
  %v3088 = vpop.permute.xlu0 %3087
  %v3090 = vmul.f32 %v3084, %v3088
  %3092 = vrot.lane.b32.xlu0 %v3090, 32
  %v3093 = vpop.permute.xlu0 %3092
  %v3095 = vadd.f32 %v3085, %v3093
  %v3096 = vtanh.pop %v3095
  %3098 = vrot.lane.b32.xlu0 %v3096, 64
  %v3099 = vpop.permute.xlu0 %3098
  %v3101 = vmul.f32 %v3084, %v3099
  %v3102 = vld [vmem:[%s993] sm:$0xff]
  %v3103 = vpack.c.bf16 %v3101, %v3101
  %3105 = vrot.lane.b32.xlu0 %v3103, 32
  %v3106 = vpop.permute.xlu0 %3105
  %v3108 = vsel %vm85, %v3106, 0
  %3110 = vmatprep.subr.bf16.mxu0 0
  %3111 = vmatpush1.bf16.msra.mxu0 %v657
  %3112 = vmatprep.subr.bf16.mxu0 0
  %3113 = vmatpush1.bf16.msra.mxu0 %v658
  %3114 = vmatprep.subr.bf16.mxu0 0
  %3115 = vmatpush1.bf16.msra.mxu0 0
  %3116 = vmatprep.subr.bf16.mxu0 0
  %3117 = vmatpush1.bf16.msra.mxu0 0
  %3118 = vmatprep.subr.bf16.mxu0 0
  %3119 = vmatpush1.bf16.msra.mxu0 0
  %3120 = vmatprep.subr.bf16.mxu0 0
  %3121 = vmatpush1.bf16.msra.mxu0 0
  %3122 = vmatprep.subr.bf16.mxu0 0
  %3123 = vmatpush1.bf16.msra.mxu0 0
  %3124 = vmatprep.subr.bf16.mxu0 0
  %3125 = vmatpush1.bf16.msra.mxu0 0
  %3126 = vmatprep.subr.bf16.mxu0 0
  %3127 = vmatpush1.bf16.msra.mxu0 0
  %3128 = vmatprep.subr.bf16.mxu0 0
  %3129 = vmatpush1.bf16.msra.mxu0 0
  %3130 = vmatprep.subr.bf16.mxu0 0
  %3131 = vmatpush1.bf16.msra.mxu0 0
  %3132 = vmatprep.subr.bf16.mxu0 0
  %3133 = vmatpush1.bf16.msra.mxu0 0
  %3134 = vmatprep.subr.bf16.mxu0 0
  %3135 = vmatpush1.bf16.msra.mxu0 0
  %3136 = vmatprep.subr.bf16.mxu0 0
  %3137 = vmatpush1.bf16.msra.mxu0 0
  %3138 = vmatprep.subr.bf16.mxu0 0
  %3139 = vmatpush1.bf16.msra.mxu0 0
  %3140 = vmatprep.subr.bf16.mxu0 0
  %3141 = vmatpush1.bf16.msra.mxu0 0
  %3142 = vmatprep.mubr.bf16.mxu0 0
  %3143 = vmatmul.mubr.bf16.gmra.mrb[0].mxu0 %v3108
  %v3144 = vpop.f32.mrb[0].mxu0
  %v3145 = vadd.f32 0.0, %v3144
  %v3146 = vpop.f32.mrb[0].mxu0
  %v3147 = vpop.f32.mrb[0].mxu0
  %v3148 = vpop.f32.mrb[0].mxu0
  %3149 = vdwg.mxu0
  %v3150 = vadd.f32 %v3102, %v3145
  %v3151 = vtanh.pop %v3150
  %v3152 = vmul.f32 %v3151, 0.5
  %v3153 = vadd.f32 %v3152, 0.5
  %v3154 = vmul.f32 %v3153, %v3095
  %3156 = vrot.lane.b32.xlu0 %v3151, 64
  %v3157 = vpop.permute.xlu0 %3156
  %v3159 = vmul.f32 %v3153, %v3157
  %3161 = vrot.lane.b32.xlu0 %v3159, 32
  %v3162 = vpop.permute.xlu0 %3161
  %v3164 = vadd.f32 %v3154, %v3162
  %v3165 = vtanh.pop %v3164
  %3167 = vrot.lane.b32.xlu0 %v3165, 64
  %v3168 = vpop.permute.xlu0 %3167
  %v3170 = vmul.f32 %v3153, %v3168
  %v3171 = vld [vmem:[%s1399] sm:$0xff]
  %v3172 = vpack.c.bf16 %v3170, %v3170
  %3174 = vrot.lane.b32.xlu0 %v3172, 32
  %v3175 = vpop.permute.xlu0 %3174
  %v3177 = vsel %vm85, %v3175, 0
  %3179 = vmatprep.subr.bf16.mxu0 0
  %3180 = vmatpush1.bf16.msra.mxu0 %v657
  %3181 = vmatprep.subr.bf16.mxu0 0
  %3182 = vmatpush1.bf16.msra.mxu0 %v658
  %3183 = vmatprep.subr.bf16.mxu0 0
  %3184 = vmatpush1.bf16.msra.mxu0 0
  %3185 = vmatprep.subr.bf16.mxu0 0
  %3186 = vmatpush1.bf16.msra.mxu0 0
  %3187 = vmatprep.subr.bf16.mxu0 0
  %3188 = vmatpush1.bf16.msra.mxu0 0
  %3189 = vmatprep.subr.bf16.mxu0 0
  %3190 = vmatpush1.bf16.msra.mxu0 0
  %3191 = vmatprep.subr.bf16.mxu0 0
  %3192 = vmatpush1.bf16.msra.mxu0 0
  %3193 = vmatprep.subr.bf16.mxu0 0
  %3194 = vmatpush1.bf16.msra.mxu0 0
  %3195 = vmatprep.subr.bf16.mxu0 0
  %3196 = vmatpush1.bf16.msra.mxu0 0
  %3197 = vmatprep.subr.bf16.mxu0 0
  %3198 = vmatpush1.bf16.msra.mxu0 0
  %3199 = vmatprep.subr.bf16.mxu0 0
  %3200 = vmatpush1.bf16.msra.mxu0 0
  %3201 = vmatprep.subr.bf16.mxu0 0
  %3202 = vmatpush1.bf16.msra.mxu0 0
  %3203 = vmatprep.subr.bf16.mxu0 0
  %3204 = vmatpush1.bf16.msra.mxu0 0
  %3205 = vmatprep.subr.bf16.mxu0 0
  %3206 = vmatpush1.bf16.msra.mxu0 0
  %3207 = vmatprep.subr.bf16.mxu0 0
  %3208 = vmatpush1.bf16.msra.mxu0 0
  %3209 = vmatprep.subr.bf16.mxu0 0
  %3210 = vmatpush1.bf16.msra.mxu0 0
  %3211 = vmatprep.mubr.bf16.mxu0 0
  %3212 = vmatmul.mubr.bf16.gmra.mrb[0].mxu0 %v3177
  %v3213 = vpop.f32.mrb[0].mxu0
  %v3214 = vadd.f32 0.0, %v3213
  %v3215 = vpop.f32.mrb[0].mxu0
  %v3216 = vpop.f32.mrb[0].mxu0
  %v3217 = vpop.f32.mrb[0].mxu0
  %3218 = vdwg.mxu0
  %v3219 = vadd.f32 %v3171, %v3214
  %v3220 = vtanh.pop %v3219
  %v3221 = vmul.f32 %v3220, 0.5
  %v3222 = vadd.f32 %v3221, 0.5
  %v3223 = vmul.f32 %v3222, %v3164
  %3225 = vrot.lane.b32.xlu0 %v3220, 64
  %v3226 = vpop.permute.xlu0 %3225
  %v3228 = vmul.f32 %v3222, %v3226
  %3230 = vrot.lane.b32.xlu0 %v3228, 32
  %v3231 = vpop.permute.xlu0 %3230
  %v3233 = vadd.f32 %v3223, %v3231
  %v3234 = vtanh.pop %v3233
  %3236 = vrot.lane.b32.xlu0 %v3234, 64
  %v3237 = vpop.permute.xlu0 %3236
  %v3239 = vmul.f32 %v3222, %v3237
  %v3240 = vld [vmem:[%s1874] sm:$0xff]
  %v3241 = vpack.c.bf16 %v3239, %v3239
  %3243 = vrot.lane.b32.xlu0 %v3241, 32
  %v3244 = vpop.permute.xlu0 %3243
  %v3246 = vsel %vm85, %v3244, 0
  %3248 = vmatprep.subr.bf16.mxu0 0
  %3249 = vmatpush1.bf16.msra.mxu0 %v657
  %3250 = vmatprep.subr.bf16.mxu0 0
  %3251 = vmatpush1.bf16.msra.mxu0 %v658
  %3252 = vmatprep.subr.bf16.mxu0 0
  %3253 = vmatpush1.bf16.msra.mxu0 0
  %3254 = vmatprep.subr.bf16.mxu0 0
  %3255 = vmatpush1.bf16.msra.mxu0 0
  %3256 = vmatprep.subr.bf16.mxu0 0
  %3257 = vmatpush1.bf16.msra.mxu0 0
  %3258 = vmatprep.subr.bf16.mxu0 0
  %3259 = vmatpush1.bf16.msra.mxu0 0
  %3260 = vmatprep.subr.bf16.mxu0 0
  %3261 = vmatpush1.bf16.msra.mxu0 0
  %3262 = vmatprep.subr.bf16.mxu0 0
  %3263 = vmatpush1.bf16.msra.mxu0 0
  %3264 = vmatprep.subr.bf16.mxu0 0
  %3265 = vmatpush1.bf16.msra.mxu0 0
  %3266 = vmatprep.subr.bf16.mxu0 0
  %3267 = vmatpush1.bf16.msra.mxu0 0
  %3268 = vmatprep.subr.bf16.mxu0 0
  %3269 = vmatpush1.bf16.msra.mxu0 0
  %3270 = vmatprep.subr.bf16.mxu0 0
  %3271 = vmatpush1.bf16.msra.mxu0 0
  %3272 = vmatprep.subr.bf16.mxu0 0
  %3273 = vmatpush1.bf16.msra.mxu0 0
  %3274 = vmatprep.subr.bf16.mxu0 0
  %3275 = vmatpush1.bf16.msra.mxu0 0
  %3276 = vmatprep.subr.bf16.mxu0 0
  %3277 = vmatpush1.bf16.msra.mxu0 0
  %3278 = vmatprep.subr.bf16.mxu0 0
  %3279 = vmatpush1.bf16.msra.mxu0 0
  %3280 = vmatprep.mubr.bf16.mxu0 0
  %3281 = vmatmul.mubr.bf16.gmra.mrb[0].mxu0 %v3246
  %v3282 = vpop.f32.mrb[0].mxu0
  %v3283 = vadd.f32 0.0, %v3282
  %v3284 = vpop.f32.mrb[0].mxu0
  %v3285 = vpop.f32.mrb[0].mxu0
  %v3286 = vpop.f32.mrb[0].mxu0
  %3287 = vdwg.mxu0
  %v3288 = vadd.f32 %v3240, %v3283
  %v3289 = vtanh.pop %v3288
  %v3290 = vmul.f32 %v3289, 0.5
  %v3291 = vadd.f32 %v3290, 0.5
  %v3292 = vmul.f32 %v3291, %v3233
  %3294 = vrot.lane.b32.xlu0 %v3289, 64
  %v3295 = vpop.permute.xlu0 %3294
  %v3297 = vmul.f32 %v3291, %v3295
  %3299 = vrot.lane.b32.xlu0 %v3297, 32
  %v3300 = vpop.permute.xlu0 %3299
  %v3302 = vadd.f32 %v3292, %v3300
  %v3303 = vtanh.pop %v3302
  %3305 = vrot.lane.b32.xlu0 %v3303, 64
  %v3306 = vpop.permute.xlu0 %3305
  %v3308 = vmul.f32 %v3291, %v3306
  %v3309 = vld [vmem:[%s2418] sm:$0xff]
  %v3310 = vpack.c.bf16 %v3308, %v3308
  %3312 = vrot.lane.b32.xlu0 %v3310, 32
  %v3313 = vpop.permute.xlu0 %3312
  %v3315 = vsel %vm85, %v3313, 0
  %3317 = vmatprep.subr.bf16.mxu0 0
  %3318 = vmatpush1.bf16.msra.mxu0 %v657
  %3319 = vmatprep.subr.bf16.mxu0 0
  %3320 = vmatpush1.bf16.msra.mxu0 %v658
  %3321 = vmatprep.subr.bf16.mxu0 0
  %3322 = vmatpush1.bf16.msra.mxu0 0
  %3323 = vmatprep.subr.bf16.mxu0 0
  %3324 = vmatpush1.bf16.msra.mxu0 0
  %3325 = vmatprep.subr.bf16.mxu0 0
  %3326 = vmatpush1.bf16.msra.mxu0 0
  %3327 = vmatprep.subr.bf16.mxu0 0
  %3328 = vmatpush1.bf16.msra.mxu0 0
  %3329 = vmatprep.subr.bf16.mxu0 0
  %3330 = vmatpush1.bf16.msra.mxu0 0
  %3331 = vmatprep.subr.bf16.mxu0 0
  %3332 = vmatpush1.bf16.msra.mxu0 0
  %3333 = vmatprep.subr.bf16.mxu0 0
  %3334 = vmatpush1.bf16.msra.mxu0 0
  %3335 = vmatprep.subr.bf16.mxu0 0
  %3336 = vmatpush1.bf16.msra.mxu0 0
  %3337 = vmatprep.subr.bf16.mxu0 0
  %3338 = vmatpush1.bf16.msra.mxu0 0
  %3339 = vmatprep.subr.bf16.mxu0 0
  %3340 = vmatpush1.bf16.msra.mxu0 0
  %3341 = vmatprep.subr.bf16.mxu0 0
  %3342 = vmatpush1.bf16.msra.mxu0 0
  %3343 = vmatprep.subr.bf16.mxu0 0
  %3344 = vmatpush1.bf16.msra.mxu0 0
  %3345 = vmatprep.subr.bf16.mxu0 0
  %3346 = vmatpush1.bf16.msra.mxu0 0
  %3347 = vmatprep.subr.bf16.mxu0 0
  %3348 = vmatpush1.bf16.msra.mxu0 0
  %3349 = vmatprep.mubr.bf16.mxu0 0
  %3350 = vmatmul.mubr.bf16.gmra.mrb[0].mxu0 %v3315
  %v3351 = vpop.f32.mrb[0].mxu0
  %v3352 = vadd.f32 0.0, %v3351
  %v3353 = vpop.f32.mrb[0].mxu0
  %v3354 = vpop.f32.mrb[0].mxu0
  %v3355 = vpop.f32.mrb[0].mxu0
  %3356 = vdwg.mxu0
  %v3357 = vadd.f32 %v3309, %v3352
  %v3358 = vtanh.pop %v3357
  %v3359 = vmul.f32 %v3358, 0.5
  %v3360 = vadd.f32 %v3359, 0.5
  %v3361 = vmul.f32 %v3360, %v3302
  %3363 = vrot.lane.b32.xlu0 %v3358, 64
  %v3364 = vpop.permute.xlu0 %3363
  %v3366 = vmul.f32 %v3360, %v3364
  %3368 = vrot.lane.b32.xlu0 %v3366, 32
  %v3369 = vpop.permute.xlu0 %3368
  %v3371 = vadd.f32 %v3361, %v3369
  %v3372 = vtanh.pop %v3371
  %3374 = vrot.lane.b32.xlu0 %v3372, 64
  %v3375 = vpop.permute.xlu0 %3374
  %v3377 = vmul.f32 %v3360, %v3375
  %v3378 = vld [vmem:[%s3031] sm:$0xff]
  %v3379 = vpack.c.bf16 %v3377, %v3377
  %3381 = vrot.lane.b32.xlu0 %v3379, 32
  %v3382 = vpop.permute.xlu0 %3381
  %v3384 = vsel %vm85, %v3382, 0
  %3386 = vmatprep.subr.bf16.mxu0 0
  %3387 = vmatpush1.bf16.msra.mxu0 %v657
  %3388 = vmatprep.subr.bf16.mxu0 0
  %3389 = vmatpush1.bf16.msra.mxu0 %v658
  %3390 = vmatprep.subr.bf16.mxu0 0
  %3391 = vmatpush1.bf16.msra.mxu0 0
  %3392 = vmatprep.subr.bf16.mxu0 0
  %3393 = vmatpush1.bf16.msra.mxu0 0
  %3394 = vmatprep.subr.bf16.mxu0 0
  %3395 = vmatpush1.bf16.msra.mxu0 0
  %3396 = vmatprep.subr.bf16.mxu0 0
  %3397 = vmatpush1.bf16.msra.mxu0 0
  %3398 = vmatprep.subr.bf16.mxu0 0
  %3399 = vmatpush1.bf16.msra.mxu0 0
  %3400 = vmatprep.subr.bf16.mxu0 0
  %3401 = vmatpush1.bf16.msra.mxu0 0
  %3402 = vmatprep.subr.bf16.mxu0 0
  %3403 = vmatpush1.bf16.msra.mxu0 0
  %3404 = vmatprep.subr.bf16.mxu0 0
  %3405 = vmatpush1.bf16.msra.mxu0 0
  %3406 = vmatprep.subr.bf16.mxu0 0
  %3407 = vmatpush1.bf16.msra.mxu0 0
  %3408 = vmatprep.subr.bf16.mxu0 0
  %3409 = vmatpush1.bf16.msra.mxu0 0
  %3410 = vmatprep.subr.bf16.mxu0 0
  %3411 = vmatpush1.bf16.msra.mxu0 0
  %3412 = vmatprep.subr.bf16.mxu0 0
  %3413 = vmatpush1.bf16.msra.mxu0 0
  %3414 = vmatprep.subr.bf16.mxu0 0
  %3415 = vmatpush1.bf16.msra.mxu0 0
  %3416 = vmatprep.subr.bf16.mxu0 0
  %3417 = vmatpush1.bf16.msra.mxu0 0
  %3418 = vmatprep.mubr.bf16.mxu0 0
  %3419 = vmatmul.mubr.bf16.gmra.mrb[0].mxu0 %v3384
  %v3420 = vpop.f32.mrb[0].mxu0
  %v3421 = vadd.f32 0.0, %v3420
  %v3422 = vpop.f32.mrb[0].mxu0
  %v3423 = vpop.f32.mrb[0].mxu0
  %v3424 = vpop.f32.mrb[0].mxu0
  %3425 = vdwg.mxu0
  %v3426 = vadd.f32 %v3378, %v3421
  %v3427 = vtanh.pop %v3426
  %v3428 = vmul.f32 %v3427, 0.5
  %v3429 = vadd.f32 %v3428, 0.5
  %v3430 = vmul.f32 %v3429, %v3371
  %3432 = vrot.lane.b32.xlu0 %v3427, 64
  %v3433 = vpop.permute.xlu0 %3432
  %v3435 = vmul.f32 %v3429, %v3433
  %3437 = vrot.lane.b32.xlu0 %v3435, 32
  %v3438 = vpop.permute.xlu0 %3437
  %v3440 = vadd.f32 %v3430, %v3438
  %v3441 = vtanh.pop %v3440
  %3443 = vrot.lane.b32.xlu0 %v3441, 64
  %v3444 = vpop.permute.xlu0 %3443
  %v3446 = vmul.f32 %v3429, %v3444
  %3448 = vrot.lane.b32.xlu0 %v3446, 32
  %v3449 = vpop.permute.xlu0 %3448
  %v3450 = vsel %vm85, %v3449, 0
  %3452 = vmatprep.subr.mxu0 0.0
  %3453 = vmatpush1.msra.mxu0 %v50
  %3454 = vmatprep.subr.mxu0 0.0
  %3455 = vmatpush1.msra.mxu0 %v51
  %3456 = vmatprep.subr.mxu0 0.0
  %3457 = vmatpush1.msra.mxu0 %v52
  %3458 = vmatprep.subr.mxu0 0.0
  %3459 = vmatpush1.msra.mxu0 %v53
  %3460 = vmatprep.subr.mxu0 0.0
  %3461 = vmatpush1.msra.mxu0 0.0
  %3462 = vmatprep.subr.mxu0 0.0
  %3463 = vmatpush1.msra.mxu0 0.0
  %3464 = vmatprep.subr.mxu0 0.0
  %3465 = vmatpush1.msra.mxu0 0.0
  %3466 = vmatprep.subr.mxu0 0.0
  %3467 = vmatpush1.msra.mxu0 0.0
  %3468 = vmatprep.subr.mxu0 0.0
  %3469 = vmatpush1.msra.mxu0 0.0
  %3470 = vmatprep.subr.mxu0 0.0
  %3471 = vmatpush1.msra.mxu0 0.0
  %3472 = vmatprep.subr.mxu0 0.0
  %3473 = vmatpush1.msra.mxu0 0.0
  %3474 = vmatprep.subr.mxu0 0.0
  %3475 = vmatpush1.msra.mxu0 0.0
  %3476 = vmatprep.subr.mxu0 0.0
  %3477 = vmatpush1.msra.mxu0 0.0
  %3478 = vmatprep.subr.mxu0 0.0
  %3479 = vmatpush1.msra.mxu0 0.0
  %3480 = vmatprep.subr.mxu0 0.0
  %3481 = vmatpush1.msra.mxu0 0.0
  %3482 = vmatprep.subr.mxu0 0.0
  %3483 = vmatpush1.msra.mxu0 0.0
  %3484 = vmatprep.subr.mxu0 0.0
  %3485 = vmatpush1.msra.mxu0 0.0
  %3486 = vmatprep.subr.mxu0 0.0
  %3487 = vmatpush1.msra.mxu0 0.0
  %3488 = vmatprep.subr.mxu0 0.0
  %3489 = vmatpush1.msra.mxu0 0.0
  %3490 = vmatprep.subr.mxu0 0.0
  %3491 = vmatpush1.msra.mxu0 0.0
  %3492 = vmatprep.subr.mxu0 0.0
  %3493 = vmatpush1.msra.mxu0 0.0
  %3494 = vmatprep.subr.mxu0 0.0
  %3495 = vmatpush1.msra.mxu0 0.0
  %3496 = vmatprep.subr.mxu0 0.0
  %3497 = vmatpush1.msra.mxu0 0.0
  %3498 = vmatprep.subr.mxu0 0.0
  %3499 = vmatpush1.msra.mxu0 0.0
  %3500 = vmatprep.subr.mxu0 0.0
  %3501 = vmatpush1.msra.mxu0 0.0
  %3502 = vmatprep.subr.mxu0 0.0
  %3503 = vmatpush1.msra.mxu0 0.0
  %3504 = vmatprep.subr.mxu0 0.0
  %3505 = vmatpush1.msra.mxu0 0.0
  %3506 = vmatprep.subr.mxu0 0.0
  %3507 = vmatpush1.msra.mxu0 0.0
  %3508 = vmatprep.subr.mxu0 0.0
  %3509 = vmatpush1.msra.mxu0 0.0
  %3510 = vmatprep.subr.mxu0 0.0
  %3511 = vmatpush1.msra.mxu0 0.0
  %3512 = vmatprep.subr.mxu0 0.0
  %3513 = vmatpush1.msra.mxu0 0.0
  %3514 = vmatprep.subr.mxu0 0.0
  %3515 = vmatpush1.msra.mxu0 0.0
  %3516 = vmatprep.mubr.f32.mxu0 0.0
  %3517 = vmatmul.mubr.f32.gmra.mrb[0].mxu0 %v3450
  %v3518 = vpop.f32.mrb[0].mxu0
  %v3519 = vadd.f32 %v49, %v3518
  %v3520 = vpop.f32.mrb[0].mxu0
  %3521 = vdwg.mxu0
  %v3522 = vmax.f32 %v3519, 0.0
  %v3523 = vsel %vm801, %v3522, 0.0
  %3524 = vadd.xlane.f32.xlu0 %v3523
  %v3525 = vpop.xlane.xlu0 %3524
  %v3526 = vmul.f32 %v3525, %v805
  %v3527 = vsub.f32 %v3522, %v3526
  %v3528 = vmul.f32 %v3527, %v3527
  %v3529 = vsel %vm801, %v3528, 0.0
  %3530 = vadd.xlane.f32.xlu0 %v3529
  %v3531 = vpop.xlane.xlu0 %3530
  %v3532 = vmul.f32 %v3531, %v805
  %v3533 = vadd.f32 %v3532, 1e-05
  %v3534 = vrsqrt.pop %v3533
  %v3535 = vmul.f32 %v3527, %v3534
  %v3536 = vmul.f32 %v3535, %v38
  %v3537 = vadd.f32 %v3536, %v43
  %v3539 = vsel %vm801, %v3537, 0
  %3541 = vmatprep.subr.mxu0 0.0
  %3542 = vmatpush1.msra.mxu0 %v54
  %3543 = vmatprep.subr.mxu0 0.0
  %3544 = vmatpush1.msra.mxu0 %v55
  %3545 = vmatprep.subr.mxu0 0.0
  %3546 = vmatpush1.msra.mxu0 %v56
  %3547 = vmatprep.subr.mxu0 0.0
  %3548 = vmatpush1.msra.mxu0 %v57
  %3549 = vmatprep.subr.mxu0 0.0
  %3550 = vmatpush1.msra.mxu0 %v58
  %3551 = vmatprep.subr.mxu0 0.0
  %3552 = vmatpush1.msra.mxu0 0.0
  %3553 = vmatprep.subr.mxu0 0.0
  %3554 = vmatpush1.msra.mxu0 0.0
  %3555 = vmatprep.subr.mxu0 0.0
  %3556 = vmatpush1.msra.mxu0 0.0
  %3557 = vmatprep.subr.mxu0 0.0
  %3558 = vmatpush1.msra.mxu0 0.0
  %3559 = vmatprep.subr.mxu0 0.0
  %3560 = vmatpush1.msra.mxu0 0.0
  %3561 = vmatprep.subr.mxu0 0.0
  %3562 = vmatpush1.msra.mxu0 0.0
  %3563 = vmatprep.subr.mxu0 0.0
  %3564 = vmatpush1.msra.mxu0 0.0
  %3565 = vmatprep.subr.mxu0 0.0
  %3566 = vmatpush1.msra.mxu0 0.0
  %3567 = vmatprep.subr.mxu0 0.0
  %3568 = vmatpush1.msra.mxu0 0.0
  %3569 = vmatprep.subr.mxu0 0.0
  %3570 = vmatpush1.msra.mxu0 0.0
  %3571 = vmatprep.subr.mxu0 0.0
  %3572 = vmatpush1.msra.mxu0 0.0
  %3573 = vmatprep.subr.mxu0 0.0
  %3574 = vmatpush1.msra.mxu0 0.0
  %3575 = vmatprep.subr.mxu0 0.0
  %3576 = vmatpush1.msra.mxu0 0.0
  %3577 = vmatprep.subr.mxu0 0.0
  %3578 = vmatpush1.msra.mxu0 0.0
  %3579 = vmatprep.subr.mxu0 0.0
  %3580 = vmatpush1.msra.mxu0 0.0
  %3581 = vmatprep.subr.mxu0 0.0
  %3582 = vmatpush1.msra.mxu0 0.0
  %3583 = vmatprep.subr.mxu0 0.0
  %3584 = vmatpush1.msra.mxu0 0.0
  %3585 = vmatprep.subr.mxu0 0.0
  %3586 = vmatpush1.msra.mxu0 0.0
  %3587 = vmatprep.subr.mxu0 0.0
  %3588 = vmatpush1.msra.mxu0 0.0
  %3589 = vmatprep.subr.mxu0 0.0
  %3590 = vmatpush1.msra.mxu0 0.0
  %3591 = vmatprep.subr.mxu0 0.0
  %3592 = vmatpush1.msra.mxu0 0.0
  %3593 = vmatprep.subr.mxu0 0.0
  %3594 = vmatpush1.msra.mxu0 0.0
  %3595 = vmatprep.subr.mxu0 0.0
  %3596 = vmatpush1.msra.mxu0 0.0
  %3597 = vmatprep.subr.mxu0 0.0
  %3598 = vmatpush1.msra.mxu0 0.0
  %3599 = vmatprep.subr.mxu0 0.0
  %3600 = vmatpush1.msra.mxu0 0.0
  %3601 = vmatprep.subr.mxu0 0.0
  %3602 = vmatpush1.msra.mxu0 0.0
  %3603 = vmatprep.subr.mxu0 0.0
  %3604 = vmatpush1.msra.mxu0 0.0
  %3605 = vmatprep.mubr.f32.mxu0 0.0
  %3606 = vmatmul.mubr.f32.gmra.mrb[0].mxu0 %v3539
  %v3607 = vpop.f32.mrb[0].mxu0
  %v3608 = vadd.f32 %v48, %v3607
  %v3609 = vpop.f32.mrb[0].mxu0
  %3610 = vdwg.mxu0
  %s3611 = scalar_lea.vmem %s8, 48
  %3612 = vst.msk [vmem:[%s3611] sm:$0xff] %vm85, %v3608
  %v3613 = vsel %vm85, %v3608, -inf
  %3614 = vmax.xlane.f32.xlu0 %v3613
  %v3615 = vpop.xlane.xlu0 %3614
  %vm3616 = vcmp.eq.f32.partialorder %v3608, %v3615
  %v3617 = vsel %vm3616, %v31, 32
  %v3618 = vsel %vm85, %v3617, 2147483647
  %v3619 = vand.u32 %v3618, 65535
  %v3620 = vshra.s32 %v3618, 16
  %v3621 = vcvt.s32.f32 %v3619
  %v3622 = vcvt.s32.f32 %v3620
  %3623 = vmin.xlane.f32.xlu0 %v3622
  %v3624 = vpop.xlane.xlu0 %3623
  %vm3625 = vcmp.eq.f32.partialorder %v3622, %v3624
  %v3626 = vsel %vm3625, %v3621, inf
  %3627 = vmin.xlane.f32.xlu0 %v3626
  %v3628 = vpop.xlane.xlu0 %3627
  %v3629 = vcvt.f32.s32 %v3628
  %v3630 = vcvt.f32.s32 %v3624
  %v3631 = vshll.u32 %v3630, 16
  %v3632 = vadd.s32 %v3631, %v3629
  %v3633 = vsel %vm33, %v3632, %v32
  %3634 = vset.pattern.permute.xlu0 6
  %3635 = vperm.xlu0 %3634, %v3633
  %v3636 = vpop.permute.xlu0 %3635
  %vm3637 = vcmp.eq.s32.totalorder %v31, %v3636
  %v3638 = vsel %vm3637, 1, 0
  %v3639 = vcvt.s32.f32 %v3638
  %v3641 = vsel %vm85, %v3639, 0
  %3643 = vmatprep.subr.mxu0 0.0
  %3644 = vmatpush1.msra.mxu0 %v59
  %3645 = vmatprep.subr.mxu0 0.0
  %3646 = vmatpush1.msra.mxu0 %v60
  %3647 = vmatprep.subr.mxu0 0.0
  %3648 = vmatpush1.msra.mxu0 %v61
  %3649 = vmatprep.subr.mxu0 0.0
  %3650 = vmatpush1.msra.mxu0 %v62
  %3651 = vmatprep.subr.mxu0 0.0
  %3652 = vmatpush1.msra.mxu0 0.0
  %3653 = vmatprep.subr.mxu0 0.0
  %3654 = vmatpush1.msra.mxu0 0.0
  %3655 = vmatprep.subr.mxu0 0.0
  %3656 = vmatpush1.msra.mxu0 0.0
  %3657 = vmatprep.subr.mxu0 0.0
  %3658 = vmatpush1.msra.mxu0 0.0
  %3659 = vmatprep.subr.mxu0 0.0
  %3660 = vmatpush1.msra.mxu0 0.0
  %3661 = vmatprep.subr.mxu0 0.0
  %3662 = vmatpush1.msra.mxu0 0.0
  %3663 = vmatprep.subr.mxu0 0.0
  %3664 = vmatpush1.msra.mxu0 0.0
  %3665 = vmatprep.subr.mxu0 0.0
  %3666 = vmatpush1.msra.mxu0 0.0
  %3667 = vmatprep.subr.mxu0 0.0
  %3668 = vmatpush1.msra.mxu0 0.0
  %3669 = vmatprep.subr.mxu0 0.0
  %3670 = vmatpush1.msra.mxu0 0.0
  %3671 = vmatprep.subr.mxu0 0.0
  %3672 = vmatpush1.msra.mxu0 0.0
  %3673 = vmatprep.subr.mxu0 0.0
  %3674 = vmatpush1.msra.mxu0 0.0
  %3675 = vmatprep.subr.mxu0 0.0
  %3676 = vmatpush1.msra.mxu0 0.0
  %3677 = vmatprep.subr.mxu0 0.0
  %3678 = vmatpush1.msra.mxu0 0.0
  %3679 = vmatprep.subr.mxu0 0.0
  %3680 = vmatpush1.msra.mxu0 0.0
  %3681 = vmatprep.subr.mxu0 0.0
  %3682 = vmatpush1.msra.mxu0 0.0
  %3683 = vmatprep.subr.mxu0 0.0
  %3684 = vmatpush1.msra.mxu0 0.0
  %3685 = vmatprep.subr.mxu0 0.0
  %3686 = vmatpush1.msra.mxu0 0.0
  %3687 = vmatprep.subr.mxu0 0.0
  %3688 = vmatpush1.msra.mxu0 0.0
  %3689 = vmatprep.subr.mxu0 0.0
  %3690 = vmatpush1.msra.mxu0 0.0
  %3691 = vmatprep.subr.mxu0 0.0
  %3692 = vmatpush1.msra.mxu0 0.0
  %3693 = vmatprep.subr.mxu0 0.0
  %3694 = vmatpush1.msra.mxu0 0.0
  %3695 = vmatprep.subr.mxu0 0.0
  %3696 = vmatpush1.msra.mxu0 0.0
  %3697 = vmatprep.subr.mxu0 0.0
  %3698 = vmatpush1.msra.mxu0 0.0
  %3699 = vmatprep.subr.mxu0 0.0
  %3700 = vmatpush1.msra.mxu0 0.0
  %3701 = vmatprep.subr.mxu0 0.0
  %3702 = vmatpush1.msra.mxu0 0.0
  %3703 = vmatprep.subr.mxu0 0.0
  %3704 = vmatpush1.msra.mxu0 0.0
  %3705 = vmatprep.subr.mxu0 0.0
  %3706 = vmatpush1.msra.mxu0 0.0
  %3707 = vmatprep.mubr.f32.mxu0 0.0
  %3708 = vmatmul.mubr.f32.gmra.mrb[0].mxu0 %v3641
  %v3709 = vpop.f32.mrb[0].mxu0
  %v3710 = vadd.f32 0.0, %v3709
  %v3711 = vpop.f32.mrb[0].mxu0
  %3712 = vdwg.mxu0
  %s3713 = scalar_lea.vmem [#allocation2], 48
  %3714 = vst [vmem:[%s3713] sm:$0xff] %v3710
  %v3715 = vld [vmem:[#allocation2] sm:$0xff]
  %v3716 = vpack.c.bf16 %v3446, %v3446
  %3718 = vrot.lane.b32.xlu0 %v3716, 32
  %v3719 = vpop.permute.xlu0 %3718
  %v3721 = vsel %vm85, %v3719, 0
  %3723 = vmatprep.subr.bf16.mxu0 0
  %3724 = vmatpush1.bf16.msra.mxu0 %v657
  %3725 = vmatprep.subr.bf16.mxu0 0
  %3726 = vmatpush1.bf16.msra.mxu0 %v658
  %3727 = vmatprep.subr.bf16.mxu0 0
  %3728 = vmatpush1.bf16.msra.mxu0 0
  %3729 = vmatprep.subr.bf16.mxu0 0
  %3730 = vmatpush1.bf16.msra.mxu0 0
  %3731 = vmatprep.subr.bf16.mxu0 0
  %3732 = vmatpush1.bf16.msra.mxu0 0
  %3733 = vmatprep.subr.bf16.mxu0 0
  %3734 = vmatpush1.bf16.msra.mxu0 0
  %3735 = vmatprep.subr.bf16.mxu0 0
  %3736 = vmatpush1.bf16.msra.mxu0 0
  %3737 = vmatprep.subr.bf16.mxu0 0
  %3738 = vmatpush1.bf16.msra.mxu0 0
  %3739 = vmatprep.subr.bf16.mxu0 0
  %3740 = vmatpush1.bf16.msra.mxu0 0
  %3741 = vmatprep.subr.bf16.mxu0 0
  %3742 = vmatpush1.bf16.msra.mxu0 0
  %3743 = vmatprep.subr.bf16.mxu0 0
  %3744 = vmatpush1.bf16.msra.mxu0 0
  %3745 = vmatprep.subr.bf16.mxu0 0
  %3746 = vmatpush1.bf16.msra.mxu0 0
  %3747 = vmatprep.subr.bf16.mxu0 0
  %3748 = vmatpush1.bf16.msra.mxu0 0
  %3749 = vmatprep.subr.bf16.mxu0 0
  %3750 = vmatpush1.bf16.msra.mxu0 0
  %3751 = vmatprep.subr.bf16.mxu0 0
  %3752 = vmatpush1.bf16.msra.mxu0 0
  %3753 = vmatprep.subr.bf16.mxu0 0
  %3754 = vmatpush1.bf16.msra.mxu0 0
  %3755 = vmatprep.mubr.bf16.mxu0 0
  %3756 = vmatmul.mubr.bf16.gmra.mrb[0].mxu0 %v3721
  %v3757 = vpop.f32.mrb[0].mxu0
  %v3758 = vadd.f32 0.0, %v3757
  %v3759 = vpop.f32.mrb[0].mxu0
  %v3760 = vpop.f32.mrb[0].mxu0
  %v3761 = vpop.f32.mrb[0].mxu0
  %3762 = vdwg.mxu0
  %v3763 = vadd.f32 %v3715, %v3758
  %v3764 = vtanh.pop %v3763
  %v3765 = vmul.f32 %v3764, 0.5
  %v3766 = vadd.f32 %v3765, 0.5
  %v3767 = vmul.f32 %v3766, %v3440
  %3769 = vrot.lane.b32.xlu0 %v3764, 64
  %v3770 = vpop.permute.xlu0 %3769
  %v3772 = vmul.f32 %v3766, %v3770
  %3774 = vrot.lane.b32.xlu0 %v3772, 32
  %v3775 = vpop.permute.xlu0 %3774
  %v3777 = vadd.f32 %v3767, %v3775
  %v3778 = vtanh.pop %v3777
  %3780 = vrot.lane.b32.xlu0 %v3778, 64
  %v3781 = vpop.permute.xlu0 %3780
  %v3783 = vmul.f32 %v3766, %v3781
  %v3784 = vld [vmem:[%s993] sm:$0xff]
  %v3785 = vpack.c.bf16 %v3783, %v3783
  %3787 = vrot.lane.b32.xlu0 %v3785, 32
  %v3788 = vpop.permute.xlu0 %3787
  %v3790 = vsel %vm85, %v3788, 0
  %3792 = vmatprep.subr.bf16.mxu0 0
  %3793 = vmatpush1.bf16.msra.mxu0 %v657
  %3794 = vmatprep.subr.bf16.mxu0 0
  %3795 = vmatpush1.bf16.msra.mxu0 %v658
  %3796 = vmatprep.subr.bf16.mxu0 0
  %3797 = vmatpush1.bf16.msra.mxu0 0
  %3798 = vmatprep.subr.bf16.mxu0 0
  %3799 = vmatpush1.bf16.msra.mxu0 0
  %3800 = vmatprep.subr.bf16.mxu0 0
  %3801 = vmatpush1.bf16.msra.mxu0 0
  %3802 = vmatprep.subr.bf16.mxu0 0
  %3803 = vmatpush1.bf16.msra.mxu0 0
  %3804 = vmatprep.subr.bf16.mxu0 0
  %3805 = vmatpush1.bf16.msra.mxu0 0
  %3806 = vmatprep.subr.bf16.mxu0 0
  %3807 = vmatpush1.bf16.msra.mxu0 0
  %3808 = vmatprep.subr.bf16.mxu0 0
  %3809 = vmatpush1.bf16.msra.mxu0 0
  %3810 = vmatprep.subr.bf16.mxu0 0
  %3811 = vmatpush1.bf16.msra.mxu0 0
  %3812 = vmatprep.subr.bf16.mxu0 0
  %3813 = vmatpush1.bf16.msra.mxu0 0
  %3814 = vmatprep.subr.bf16.mxu0 0
  %3815 = vmatpush1.bf16.msra.mxu0 0
  %3816 = vmatprep.subr.bf16.mxu0 0
  %3817 = vmatpush1.bf16.msra.mxu0 0
  %3818 = vmatprep.subr.bf16.mxu0 0
  %3819 = vmatpush1.bf16.msra.mxu0 0
  %3820 = vmatprep.subr.bf16.mxu0 0
  %3821 = vmatpush1.bf16.msra.mxu0 0
  %3822 = vmatprep.subr.bf16.mxu0 0
  %3823 = vmatpush1.bf16.msra.mxu0 0
  %3824 = vmatprep.mubr.bf16.mxu0 0
  %3825 = vmatmul.mubr.bf16.gmra.mrb[0].mxu0 %v3790
  %v3826 = vpop.f32.mrb[0].mxu0
  %v3827 = vadd.f32 0.0, %v3826
  %v3828 = vpop.f32.mrb[0].mxu0
  %v3829 = vpop.f32.mrb[0].mxu0
  %v3830 = vpop.f32.mrb[0].mxu0
  %3831 = vdwg.mxu0
  %v3832 = vadd.f32 %v3784, %v3827
  %v3833 = vtanh.pop %v3832
  %v3834 = vmul.f32 %v3833, 0.5
  %v3835 = vadd.f32 %v3834, 0.5
  %v3836 = vmul.f32 %v3835, %v3777
  %3838 = vrot.lane.b32.xlu0 %v3833, 64
  %v3839 = vpop.permute.xlu0 %3838
  %v3841 = vmul.f32 %v3835, %v3839
  %3843 = vrot.lane.b32.xlu0 %v3841, 32
  %v3844 = vpop.permute.xlu0 %3843
  %v3846 = vadd.f32 %v3836, %v3844
  %v3847 = vtanh.pop %v3846
  %3849 = vrot.lane.b32.xlu0 %v3847, 64
  %v3850 = vpop.permute.xlu0 %3849
  %v3852 = vmul.f32 %v3835, %v3850
  %v3853 = vld [vmem:[%s1399] sm:$0xff]
  %v3854 = vpack.c.bf16 %v3852, %v3852
  %3856 = vrot.lane.b32.xlu0 %v3854, 32
  %v3857 = vpop.permute.xlu0 %3856
  %v3859 = vsel %vm85, %v3857, 0
  %3861 = vmatprep.subr.bf16.mxu0 0
  %3862 = vmatpush1.bf16.msra.mxu0 %v657
  %3863 = vmatprep.subr.bf16.mxu0 0
  %3864 = vmatpush1.bf16.msra.mxu0 %v658
  %3865 = vmatprep.subr.bf16.mxu0 0
  %3866 = vmatpush1.bf16.msra.mxu0 0
  %3867 = vmatprep.subr.bf16.mxu0 0
  %3868 = vmatpush1.bf16.msra.mxu0 0
  %3869 = vmatprep.subr.bf16.mxu0 0
  %3870 = vmatpush1.bf16.msra.mxu0 0
  %3871 = vmatprep.subr.bf16.mxu0 0
  %3872 = vmatpush1.bf16.msra.mxu0 0
  %3873 = vmatprep.subr.bf16.mxu0 0
  %3874 = vmatpush1.bf16.msra.mxu0 0
  %3875 = vmatprep.subr.bf16.mxu0 0
  %3876 = vmatpush1.bf16.msra.mxu0 0
  %3877 = vmatprep.subr.bf16.mxu0 0
  %3878 = vmatpush1.bf16.msra.mxu0 0
  %3879 = vmatprep.subr.bf16.mxu0 0
  %3880 = vmatpush1.bf16.msra.mxu0 0
  %3881 = vmatprep.subr.bf16.mxu0 0
  %3882 = vmatpush1.bf16.msra.mxu0 0
  %3883 = vmatprep.subr.bf16.mxu0 0
  %3884 = vmatpush1.bf16.msra.mxu0 0
  %3885 = vmatprep.subr.bf16.mxu0 0
  %3886 = vmatpush1.bf16.msra.mxu0 0
  %3887 = vmatprep.subr.bf16.mxu0 0
  %3888 = vmatpush1.bf16.msra.mxu0 0
  %3889 = vmatprep.subr.bf16.mxu0 0
  %3890 = vmatpush1.bf16.msra.mxu0 0
  %3891 = vmatprep.subr.bf16.mxu0 0
  %3892 = vmatpush1.bf16.msra.mxu0 0
  %3893 = vmatprep.mubr.bf16.mxu0 0
  %3894 = vmatmul.mubr.bf16.gmra.mrb[0].mxu0 %v3859
  %v3895 = vpop.f32.mrb[0].mxu0
  %v3896 = vadd.f32 0.0, %v3895
  %v3897 = vpop.f32.mrb[0].mxu0
  %v3898 = vpop.f32.mrb[0].mxu0
  %v3899 = vpop.f32.mrb[0].mxu0
  %3900 = vdwg.mxu0
  %v3901 = vadd.f32 %v3853, %v3896
  %v3902 = vtanh.pop %v3901
  %v3903 = vmul.f32 %v3902, 0.5
  %v3904 = vadd.f32 %v3903, 0.5
  %v3905 = vmul.f32 %v3904, %v3846
  %3907 = vrot.lane.b32.xlu0 %v3902, 64
  %v3908 = vpop.permute.xlu0 %3907
  %v3910 = vmul.f32 %v3904, %v3908
  %3912 = vrot.lane.b32.xlu0 %v3910, 32
  %v3913 = vpop.permute.xlu0 %3912
  %v3915 = vadd.f32 %v3905, %v3913
  %v3916 = vtanh.pop %v3915
  %3918 = vrot.lane.b32.xlu0 %v3916, 64
  %v3919 = vpop.permute.xlu0 %3918
  %v3921 = vmul.f32 %v3904, %v3919
  %v3922 = vld [vmem:[%s1874] sm:$0xff]
  %v3923 = vpack.c.bf16 %v3921, %v3921
  %3925 = vrot.lane.b32.xlu0 %v3923, 32
  %v3926 = vpop.permute.xlu0 %3925
  %v3928 = vsel %vm85, %v3926, 0
  %3930 = vmatprep.subr.bf16.mxu0 0
  %3931 = vmatpush1.bf16.msra.mxu0 %v657
  %3932 = vmatprep.subr.bf16.mxu0 0
  %3933 = vmatpush1.bf16.msra.mxu0 %v658
  %3934 = vmatprep.subr.bf16.mxu0 0
  %3935 = vmatpush1.bf16.msra.mxu0 0
  %3936 = vmatprep.subr.bf16.mxu0 0
  %3937 = vmatpush1.bf16.msra.mxu0 0
  %3938 = vmatprep.subr.bf16.mxu0 0
  %3939 = vmatpush1.bf16.msra.mxu0 0
  %3940 = vmatprep.subr.bf16.mxu0 0
  %3941 = vmatpush1.bf16.msra.mxu0 0
  %3942 = vmatprep.subr.bf16.mxu0 0
  %3943 = vmatpush1.bf16.msra.mxu0 0
  %3944 = vmatprep.subr.bf16.mxu0 0
  %3945 = vmatpush1.bf16.msra.mxu0 0
  %3946 = vmatprep.subr.bf16.mxu0 0
  %3947 = vmatpush1.bf16.msra.mxu0 0
  %3948 = vmatprep.subr.bf16.mxu0 0
  %3949 = vmatpush1.bf16.msra.mxu0 0
  %3950 = vmatprep.subr.bf16.mxu0 0
  %3951 = vmatpush1.bf16.msra.mxu0 0
  %3952 = vmatprep.subr.bf16.mxu0 0
  %3953 = vmatpush1.bf16.msra.mxu0 0
  %3954 = vmatprep.subr.bf16.mxu0 0
  %3955 = vmatpush1.bf16.msra.mxu0 0
  %3956 = vmatprep.subr.bf16.mxu0 0
  %3957 = vmatpush1.bf16.msra.mxu0 0
  %3958 = vmatprep.subr.bf16.mxu0 0
  %3959 = vmatpush1.bf16.msra.mxu0 0
  %3960 = vmatprep.subr.bf16.mxu0 0
  %3961 = vmatpush1.bf16.msra.mxu0 0
  %3962 = vmatprep.mubr.bf16.mxu0 0
  %3963 = vmatmul.mubr.bf16.gmra.mrb[0].mxu0 %v3928
  %v3964 = vpop.f32.mrb[0].mxu0
  %v3965 = vadd.f32 0.0, %v3964
  %v3966 = vpop.f32.mrb[0].mxu0
  %v3967 = vpop.f32.mrb[0].mxu0
  %v3968 = vpop.f32.mrb[0].mxu0
  %3969 = vdwg.mxu0
  %v3970 = vadd.f32 %v3922, %v3965
  %v3971 = vtanh.pop %v3970
  %v3972 = vmul.f32 %v3971, 0.5
  %v3973 = vadd.f32 %v3972, 0.5
  %v3974 = vmul.f32 %v3973, %v3915
  %3976 = vrot.lane.b32.xlu0 %v3971, 64
  %v3977 = vpop.permute.xlu0 %3976
  %v3979 = vmul.f32 %v3973, %v3977
  %3981 = vrot.lane.b32.xlu0 %v3979, 32
  %v3982 = vpop.permute.xlu0 %3981
  %v3984 = vadd.f32 %v3974, %v3982
  %v3985 = vtanh.pop %v3984
  %3987 = vrot.lane.b32.xlu0 %v3985, 64
  %v3988 = vpop.permute.xlu0 %3987
  %v3990 = vmul.f32 %v3973, %v3988
  %v3991 = vld [vmem:[%s2418] sm:$0xff]
  %v3992 = vpack.c.bf16 %v3990, %v3990
  %3994 = vrot.lane.b32.xlu0 %v3992, 32
  %v3995 = vpop.permute.xlu0 %3994
  %v3997 = vsel %vm85, %v3995, 0
  %3999 = vmatprep.subr.bf16.mxu0 0
  %4000 = vmatpush1.bf16.msra.mxu0 %v657
  %4001 = vmatprep.subr.bf16.mxu0 0
  %4002 = vmatpush1.bf16.msra.mxu0 %v658
  %4003 = vmatprep.subr.bf16.mxu0 0
  %4004 = vmatpush1.bf16.msra.mxu0 0
  %4005 = vmatprep.subr.bf16.mxu0 0
  %4006 = vmatpush1.bf16.msra.mxu0 0
  %4007 = vmatprep.subr.bf16.mxu0 0
  %4008 = vmatpush1.bf16.msra.mxu0 0
  %4009 = vmatprep.subr.bf16.mxu0 0
  %4010 = vmatpush1.bf16.msra.mxu0 0
  %4011 = vmatprep.subr.bf16.mxu0 0
  %4012 = vmatpush1.bf16.msra.mxu0 0
  %4013 = vmatprep.subr.bf16.mxu0 0
  %4014 = vmatpush1.bf16.msra.mxu0 0
  %4015 = vmatprep.subr.bf16.mxu0 0
  %4016 = vmatpush1.bf16.msra.mxu0 0
  %4017 = vmatprep.subr.bf16.mxu0 0
  %4018 = vmatpush1.bf16.msra.mxu0 0
  %4019 = vmatprep.subr.bf16.mxu0 0
  %4020 = vmatpush1.bf16.msra.mxu0 0
  %4021 = vmatprep.subr.bf16.mxu0 0
  %4022 = vmatpush1.bf16.msra.mxu0 0
  %4023 = vmatprep.subr.bf16.mxu0 0
  %4024 = vmatpush1.bf16.msra.mxu0 0
  %4025 = vmatprep.subr.bf16.mxu0 0
  %4026 = vmatpush1.bf16.msra.mxu0 0
  %4027 = vmatprep.subr.bf16.mxu0 0
  %4028 = vmatpush1.bf16.msra.mxu0 0
  %4029 = vmatprep.subr.bf16.mxu0 0
  %4030 = vmatpush1.bf16.msra.mxu0 0
  %4031 = vmatprep.mubr.bf16.mxu0 0
  %4032 = vmatmul.mubr.bf16.gmra.mrb[0].mxu0 %v3997
  %v4033 = vpop.f32.mrb[0].mxu0
  %v4034 = vadd.f32 0.0, %v4033
  %v4035 = vpop.f32.mrb[0].mxu0
  %v4036 = vpop.f32.mrb[0].mxu0
  %v4037 = vpop.f32.mrb[0].mxu0
  %4038 = vdwg.mxu0
  %v4039 = vadd.f32 %v3991, %v4034
  %v4040 = vtanh.pop %v4039
  %v4041 = vmul.f32 %v4040, 0.5
  %v4042 = vadd.f32 %v4041, 0.5
  %v4043 = vmul.f32 %v4042, %v3984
  %4045 = vrot.lane.b32.xlu0 %v4040, 64
  %v4046 = vpop.permute.xlu0 %4045
  %v4048 = vmul.f32 %v4042, %v4046
  %4050 = vrot.lane.b32.xlu0 %v4048, 32
  %v4051 = vpop.permute.xlu0 %4050
  %v4053 = vadd.f32 %v4043, %v4051
  %v4054 = vtanh.pop %v4053
  %4056 = vrot.lane.b32.xlu0 %v4054, 64
  %v4057 = vpop.permute.xlu0 %4056
  %v4059 = vmul.f32 %v4042, %v4057
  %v4060 = vld [vmem:[%s3031] sm:$0xff]
  %v4061 = vpack.c.bf16 %v4059, %v4059
  %4063 = vrot.lane.b32.xlu0 %v4061, 32
  %v4064 = vpop.permute.xlu0 %4063
  %v4066 = vsel %vm85, %v4064, 0
  %4068 = vmatprep.subr.bf16.mxu0 0
  %4069 = vmatpush1.bf16.msra.mxu0 %v657
  %4070 = vmatprep.subr.bf16.mxu0 0
  %4071 = vmatpush1.bf16.msra.mxu0 %v658
  %4072 = vmatprep.subr.bf16.mxu0 0
  %4073 = vmatpush1.bf16.msra.mxu0 0
  %4074 = vmatprep.subr.bf16.mxu0 0
  %4075 = vmatpush1.bf16.msra.mxu0 0
  %4076 = vmatprep.subr.bf16.mxu0 0
  %4077 = vmatpush1.bf16.msra.mxu0 0
  %4078 = vmatprep.subr.bf16.mxu0 0
  %4079 = vmatpush1.bf16.msra.mxu0 0
  %4080 = vmatprep.subr.bf16.mxu0 0
  %4081 = vmatpush1.bf16.msra.mxu0 0
  %4082 = vmatprep.subr.bf16.mxu0 0
  %4083 = vmatpush1.bf16.msra.mxu0 0
  %4084 = vmatprep.subr.bf16.mxu0 0
  %4085 = vmatpush1.bf16.msra.mxu0 0
  %4086 = vmatprep.subr.bf16.mxu0 0
  %4087 = vmatpush1.bf16.msra.mxu0 0
  %4088 = vmatprep.subr.bf16.mxu0 0
  %4089 = vmatpush1.bf16.msra.mxu0 0
  %4090 = vmatprep.subr.bf16.mxu0 0
  %4091 = vmatpush1.bf16.msra.mxu0 0
  %4092 = vmatprep.subr.bf16.mxu0 0
  %4093 = vmatpush1.bf16.msra.mxu0 0
  %4094 = vmatprep.subr.bf16.mxu0 0
  %4095 = vmatpush1.bf16.msra.mxu0 0
  %4096 = vmatprep.subr.bf16.mxu0 0
  %4097 = vmatpush1.bf16.msra.mxu0 0
  %4098 = vmatprep.subr.bf16.mxu0 0
  %4099 = vmatpush1.bf16.msra.mxu0 0
  %4100 = vmatprep.mubr.bf16.mxu0 0
  %4101 = vmatmul.mubr.bf16.gmra.mrb[0].mxu0 %v4066
  %v4102 = vpop.f32.mrb[0].mxu0
  %v4103 = vadd.f32 0.0, %v4102
  %v4104 = vpop.f32.mrb[0].mxu0
  %v4105 = vpop.f32.mrb[0].mxu0
  %v4106 = vpop.f32.mrb[0].mxu0
  %4107 = vdwg.mxu0
  %v4108 = vadd.f32 %v4060, %v4103
  %v4109 = vtanh.pop %v4108
  %v4110 = vmul.f32 %v4109, 0.5
  %v4111 = vadd.f32 %v4110, 0.5
  %v4112 = vmul.f32 %v4111, %v4053
  %4114 = vrot.lane.b32.xlu0 %v4109, 64
  %v4115 = vpop.permute.xlu0 %4114
  %v4117 = vmul.f32 %v4111, %v4115
  %4119 = vrot.lane.b32.xlu0 %v4117, 32
  %v4120 = vpop.permute.xlu0 %4119
  %v4122 = vadd.f32 %v4112, %v4120
  %v4123 = vtanh.pop %v4122
  %4125 = vrot.lane.b32.xlu0 %v4123, 64
  %v4126 = vpop.permute.xlu0 %4125
  %v4128 = vmul.f32 %v4111, %v4126
  %v4129 = vld [vmem:[%s3713] sm:$0xff]
  %v4130 = vpack.c.bf16 %v4128, %v4128
  %4132 = vrot.lane.b32.xlu0 %v4130, 32
  %v4133 = vpop.permute.xlu0 %4132
  %v4135 = vsel %vm85, %v4133, 0
  %4137 = vmatprep.subr.bf16.mxu0 0
  %4138 = vmatpush1.bf16.msra.mxu0 %v657
  %4139 = vmatprep.subr.bf16.mxu0 0
  %4140 = vmatpush1.bf16.msra.mxu0 %v658
  %4141 = vmatprep.subr.bf16.mxu0 0
  %4142 = vmatpush1.bf16.msra.mxu0 0
  %4143 = vmatprep.subr.bf16.mxu0 0
  %4144 = vmatpush1.bf16.msra.mxu0 0
  %4145 = vmatprep.subr.bf16.mxu0 0
  %4146 = vmatpush1.bf16.msra.mxu0 0
  %4147 = vmatprep.subr.bf16.mxu0 0
  %4148 = vmatpush1.bf16.msra.mxu0 0
  %4149 = vmatprep.subr.bf16.mxu0 0
  %4150 = vmatpush1.bf16.msra.mxu0 0
  %4151 = vmatprep.subr.bf16.mxu0 0
  %4152 = vmatpush1.bf16.msra.mxu0 0
  %4153 = vmatprep.subr.bf16.mxu0 0
  %4154 = vmatpush1.bf16.msra.mxu0 0
  %4155 = vmatprep.subr.bf16.mxu0 0
  %4156 = vmatpush1.bf16.msra.mxu0 0
  %4157 = vmatprep.subr.bf16.mxu0 0
  %4158 = vmatpush1.bf16.msra.mxu0 0
  %4159 = vmatprep.subr.bf16.mxu0 0
  %4160 = vmatpush1.bf16.msra.mxu0 0
  %4161 = vmatprep.subr.bf16.mxu0 0
  %4162 = vmatpush1.bf16.msra.mxu0 0
  %4163 = vmatprep.subr.bf16.mxu0 0
  %4164 = vmatpush1.bf16.msra.mxu0 0
  %4165 = vmatprep.subr.bf16.mxu0 0
  %4166 = vmatpush1.bf16.msra.mxu0 0
  %4167 = vmatprep.subr.bf16.mxu0 0
  %4168 = vmatpush1.bf16.msra.mxu0 0
  %4169 = vmatprep.mubr.bf16.mxu0 0
  %4170 = vmatmul.mubr.bf16.gmra.mrb[0].mxu0 %v4135
  %v4171 = vpop.f32.mrb[0].mxu0
  %v4172 = vadd.f32 0.0, %v4171
  %v4173 = vpop.f32.mrb[0].mxu0
  %v4174 = vpop.f32.mrb[0].mxu0
  %v4175 = vpop.f32.mrb[0].mxu0
  %4176 = vdwg.mxu0
  %v4177 = vadd.f32 %v4129, %v4172
  %v4178 = vtanh.pop %v4177
  %v4179 = vmul.f32 %v4178, 0.5
  %v4180 = vadd.f32 %v4179, 0.5
  %v4181 = vmul.f32 %v4180, %v4122
  %4183 = vrot.lane.b32.xlu0 %v4178, 64
  %v4184 = vpop.permute.xlu0 %4183
  %v4186 = vmul.f32 %v4180, %v4184
  %4188 = vrot.lane.b32.xlu0 %v4186, 32
  %v4189 = vpop.permute.xlu0 %4188
  %v4191 = vadd.f32 %v4181, %v4189
  %v4192 = vtanh.pop %v4191
  %4194 = vrot.lane.b32.xlu0 %v4192, 64
  %v4195 = vpop.permute.xlu0 %4194
  %v4197 = vmul.f32 %v4180, %v4195
  %4199 = vrot.lane.b32.xlu0 %v4197, 32
  %v4200 = vpop.permute.xlu0 %4199
  %v4201 = vsel %vm85, %v4200, 0
  %4203 = vmatprep.subr.mxu0 0.0
  %4204 = vmatpush1.msra.mxu0 %v50
  %4205 = vmatprep.subr.mxu0 0.0
  %4206 = vmatpush1.msra.mxu0 %v51
  %4207 = vmatprep.subr.mxu0 0.0
  %4208 = vmatpush1.msra.mxu0 %v52
  %4209 = vmatprep.subr.mxu0 0.0
  %4210 = vmatpush1.msra.mxu0 %v53
  %4211 = vmatprep.subr.mxu0 0.0
  %4212 = vmatpush1.msra.mxu0 0.0
  %4213 = vmatprep.subr.mxu0 0.0
  %4214 = vmatpush1.msra.mxu0 0.0
  %4215 = vmatprep.subr.mxu0 0.0
  %4216 = vmatpush1.msra.mxu0 0.0
  %4217 = vmatprep.subr.mxu0 0.0
  %4218 = vmatpush1.msra.mxu0 0.0
  %4219 = vmatprep.subr.mxu0 0.0
  %4220 = vmatpush1.msra.mxu0 0.0
  %4221 = vmatprep.subr.mxu0 0.0
  %4222 = vmatpush1.msra.mxu0 0.0
  %4223 = vmatprep.subr.mxu0 0.0
  %4224 = vmatpush1.msra.mxu0 0.0
  %4225 = vmatprep.subr.mxu0 0.0
  %4226 = vmatpush1.msra.mxu0 0.0
  %4227 = vmatprep.subr.mxu0 0.0
  %4228 = vmatpush1.msra.mxu0 0.0
  %4229 = vmatprep.subr.mxu0 0.0
  %4230 = vmatpush1.msra.mxu0 0.0
  %4231 = vmatprep.subr.mxu0 0.0
  %4232 = vmatpush1.msra.mxu0 0.0
  %4233 = vmatprep.subr.mxu0 0.0
  %4234 = vmatpush1.msra.mxu0 0.0
  %4235 = vmatprep.subr.mxu0 0.0
  %4236 = vmatpush1.msra.mxu0 0.0
  %4237 = vmatprep.subr.mxu0 0.0
  %4238 = vmatpush1.msra.mxu0 0.0
  %4239 = vmatprep.subr.mxu0 0.0
  %4240 = vmatpush1.msra.mxu0 0.0
  %4241 = vmatprep.subr.mxu0 0.0
  %4242 = vmatpush1.msra.mxu0 0.0
  %4243 = vmatprep.subr.mxu0 0.0
  %4244 = vmatpush1.msra.mxu0 0.0
  %4245 = vmatprep.subr.mxu0 0.0
  %4246 = vmatpush1.msra.mxu0 0.0
  %4247 = vmatprep.subr.mxu0 0.0
  %4248 = vmatpush1.msra.mxu0 0.0
  %4249 = vmatprep.subr.mxu0 0.0
  %4250 = vmatpush1.msra.mxu0 0.0
  %4251 = vmatprep.subr.mxu0 0.0
  %4252 = vmatpush1.msra.mxu0 0.0
  %4253 = vmatprep.subr.mxu0 0.0
  %4254 = vmatpush1.msra.mxu0 0.0
  %4255 = vmatprep.subr.mxu0 0.0
  %4256 = vmatpush1.msra.mxu0 0.0
  %4257 = vmatprep.subr.mxu0 0.0
  %4258 = vmatpush1.msra.mxu0 0.0
  %4259 = vmatprep.subr.mxu0 0.0
  %4260 = vmatpush1.msra.mxu0 0.0
  %4261 = vmatprep.subr.mxu0 0.0
  %4262 = vmatpush1.msra.mxu0 0.0
  %4263 = vmatprep.subr.mxu0 0.0
  %4264 = vmatpush1.msra.mxu0 0.0
  %4265 = vmatprep.subr.mxu0 0.0
  %4266 = vmatpush1.msra.mxu0 0.0
  %4267 = vmatprep.mubr.f32.mxu0 0.0
  %4268 = vmatmul.mubr.f32.gmra.mrb[0].mxu0 %v4201
  %v4269 = vpop.f32.mrb[0].mxu0
  %v4270 = vadd.f32 %v49, %v4269
  %v4271 = vpop.f32.mrb[0].mxu0
  %4272 = vdwg.mxu0
  %v4273 = vmax.f32 %v4270, 0.0
  %v4274 = vsel %vm801, %v4273, 0.0
  %4275 = vadd.xlane.f32.xlu0 %v4274
  %v4276 = vpop.xlane.xlu0 %4275
  %v4277 = vmul.f32 %v4276, %v805
  %v4278 = vsub.f32 %v4273, %v4277
  %v4279 = vmul.f32 %v4278, %v4278
  %v4280 = vsel %vm801, %v4279, 0.0
  %4281 = vadd.xlane.f32.xlu0 %v4280
  %v4282 = vpop.xlane.xlu0 %4281
  %v4283 = vmul.f32 %v4282, %v805
  %v4284 = vadd.f32 %v4283, 1e-05
  %v4285 = vrsqrt.pop %v4284
  %v4286 = vmul.f32 %v4278, %v4285
  %v4287 = vmul.f32 %v4286, %v38
  %v4288 = vadd.f32 %v4287, %v43
  %v4290 = vsel %vm801, %v4288, 0
  %4292 = vmatprep.subr.mxu0 0.0
  %4293 = vmatpush1.msra.mxu0 %v54
  %4294 = vmatprep.subr.mxu0 0.0
  %4295 = vmatpush1.msra.mxu0 %v55
  %4296 = vmatprep.subr.mxu0 0.0
  %4297 = vmatpush1.msra.mxu0 %v56
  %4298 = vmatprep.subr.mxu0 0.0
  %4299 = vmatpush1.msra.mxu0 %v57
  %4300 = vmatprep.subr.mxu0 0.0
  %4301 = vmatpush1.msra.mxu0 %v58
  %4302 = vmatprep.subr.mxu0 0.0
  %4303 = vmatpush1.msra.mxu0 0.0
  %4304 = vmatprep.subr.mxu0 0.0
  %4305 = vmatpush1.msra.mxu0 0.0
  %4306 = vmatprep.subr.mxu0 0.0
  %4307 = vmatpush1.msra.mxu0 0.0
  %4308 = vmatprep.subr.mxu0 0.0
  %4309 = vmatpush1.msra.mxu0 0.0
  %4310 = vmatprep.subr.mxu0 0.0
  %4311 = vmatpush1.msra.mxu0 0.0
  %4312 = vmatprep.subr.mxu0 0.0
  %4313 = vmatpush1.msra.mxu0 0.0
  %4314 = vmatprep.subr.mxu0 0.0
  %4315 = vmatpush1.msra.mxu0 0.0
  %4316 = vmatprep.subr.mxu0 0.0
  %4317 = vmatpush1.msra.mxu0 0.0
  %4318 = vmatprep.subr.mxu0 0.0
  %4319 = vmatpush1.msra.mxu0 0.0
  %4320 = vmatprep.subr.mxu0 0.0
  %4321 = vmatpush1.msra.mxu0 0.0
  %4322 = vmatprep.subr.mxu0 0.0
  %4323 = vmatpush1.msra.mxu0 0.0
  %4324 = vmatprep.subr.mxu0 0.0
  %4325 = vmatpush1.msra.mxu0 0.0
  %4326 = vmatprep.subr.mxu0 0.0
  %4327 = vmatpush1.msra.mxu0 0.0
  %4328 = vmatprep.subr.mxu0 0.0
  %4329 = vmatpush1.msra.mxu0 0.0
  %4330 = vmatprep.subr.mxu0 0.0
  %4331 = vmatpush1.msra.mxu0 0.0
  %4332 = vmatprep.subr.mxu0 0.0
  %4333 = vmatpush1.msra.mxu0 0.0
  %4334 = vmatprep.subr.mxu0 0.0
  %4335 = vmatpush1.msra.mxu0 0.0
  %4336 = vmatprep.subr.mxu0 0.0
  %4337 = vmatpush1.msra.mxu0 0.0
  %4338 = vmatprep.subr.mxu0 0.0
  %4339 = vmatpush1.msra.mxu0 0.0
  %4340 = vmatprep.subr.mxu0 0.0
  %4341 = vmatpush1.msra.mxu0 0.0
  %4342 = vmatprep.subr.mxu0 0.0
  %4343 = vmatpush1.msra.mxu0 0.0
  %4344 = vmatprep.subr.mxu0 0.0
  %4345 = vmatpush1.msra.mxu0 0.0
  %4346 = vmatprep.subr.mxu0 0.0
  %4347 = vmatpush1.msra.mxu0 0.0
  %4348 = vmatprep.subr.mxu0 0.0
  %4349 = vmatpush1.msra.mxu0 0.0
  %4350 = vmatprep.subr.mxu0 0.0
  %4351 = vmatpush1.msra.mxu0 0.0
  %4352 = vmatprep.subr.mxu0 0.0
  %4353 = vmatpush1.msra.mxu0 0.0
  %4354 = vmatprep.subr.mxu0 0.0
  %4355 = vmatpush1.msra.mxu0 0.0
  %4356 = vmatprep.mubr.f32.mxu0 0.0
  %4357 = vmatmul.mubr.f32.gmra.mrb[0].mxu0 %v4290
  %v4358 = vpop.f32.mrb[0].mxu0
  %v4359 = vadd.f32 %v48, %v4358
  %v4360 = vpop.f32.mrb[0].mxu0
  %4361 = vdwg.mxu0
  %s4362 = scalar_lea.vmem %s8, 56
  %4363 = vst.msk [vmem:[%s4362] sm:$0xff] %vm85, %v4359
  // Predicated region
  $region34: #{seq2seq_reinforce_forward.1} parent=0 // pred_check
    _
  $region35: #{seq2seq_reinforce_forward.1} parent=0 // pred_check_branch
    %4365 = sbr.rel (0) target = $region37
  $region36: #{seq2seq_reinforce_forward.1} parent=0 // pred_region
    _
  $region37: #{seq2seq_reinforce_forward.1} parent=0 // pred_fallthru
    _
  // Predicated region
  $region38: #{seq2seq_reinforce_forward.1} parent=0 // pred_check
    _
  $region39: #{seq2seq_reinforce_forward.1} parent=0 // pred_check_branch
    %4367 = sbr.rel (0) target = $region41
  $region40: #{seq2seq_reinforce_forward.1} parent=0 // pred_region
    _
  $region41: #{seq2seq_reinforce_forward.1} parent=0 // pred_fallthru
    _

</llo_original>
